<compile_context>
chip_gen: v7x
topology: tpu7x:2x2x1
jax: 0.10.0
libtpu: 0.0.40
codegen_flags: <defaults>
</compile_context>

<pallas_src>
import functools

import jax
import jax.numpy as jnp
from jax.experimental import pallas as pl
from jax.experimental.pallas import tpu as pltpu

_BN_EPS = 1e-5


def _round_up(x, m):
    return ((x + m - 1) // m) * m


def _pad_to(a, shape):
    pads = [(0, t - s) for s, t in zip(a.shape, shape)]
    if all(p == (0, 0) for p in pads):
        return a
    return jnp.pad(a, pads)


def _pick_tn(np_):
    """Largest lane tile <= 2048 dividing np_, preferring >=2 lane blocks so both v7x
    TensorCores get work (no effect on v5e/v6e)."""
    best = 128
    for cand in range(128, min(np_, 2048) + 1, 128):
        if np_ % cand == 0 and (np_ // cand >= 2 or np_ == 128):
            best = cand
    return best


# ----------------------------------------------------------------------------
# Unified single-pass "tap GEMM" kernel:
#   o = act(scale * (sum_t  x[row_start_t : row_start_t+rows_out, :] @ w[k_start_t : +C, :])
#           + bias)
# For the FC layer taps = ((0, 0),) (plain GEMM); for the deconvs the 9 taps are the
# statically shifted 3x3 window reads of the flattened padded NHWC activation.
# ----------------------------------------------------------------------------
def _tap_gemm_kernel(x_ref, w_ref, scale_ref, bias_ref, o_ref, *, taps, activation):
    rows_out = o_ref.shape[0]
    c = x_ref.shape[1]
    acc = None
    for row_start, k_start in taps:          # static, unrolled (<= 9 taps)
        xs = x_ref[pl.ds(row_start, rows_out), :].astype(jnp.bfloat16)
        wt = w_ref[pl.ds(k_start, c), :]
        d = jnp.dot(xs, wt, preferred_element_type=jnp.float32)
        acc = d if acc is None else acc + d
    out = acc * scale_ref[...] + bias_ref[...]          # f32 epilogue (v5e-friendly)
    if activation == "relu":
        out = jnp.maximum(out, 0.0)
    elif activation == "sigmoid":
        out = jax.nn.sigmoid(out)
    o_ref[...] = out.astype(o_ref.dtype)


def tap_gemm(x_rows, w, scale, bias, *, taps, rows_out, tn, activation, out_dtype):
    """x_rows: (rows_in, C).  w: (len(taps)*C, Np) bf16 with Np % tn == 0.
    scale/bias: (1, Np) f32.  Returns (rows_out, Np) in out_dtype."""
    rows_in, c = x_rows.shape
    kp, np_ = w.shape
    assert np_ % tn == 0 and kp == c * len(taps)

    kernel = functools.partial(_tap_gemm_kernel, taps=tuple(taps), activation=activation)
    return pl.pallas_call(
        kernel,
        out_shape=jax.ShapeDtypeStruct((rows_out, np_), out_dtype),
        grid_spec=pltpu.PrefetchScalarGridSpec(
            num_scalar_prefetch=0,
            grid=(np_ // tn,),                       # lane blocks only; single K pass
            in_specs=[
                pl.BlockSpec((rows_in, c), lambda j: (0, 0)),   # full activation resident
                pl.BlockSpec((kp, tn), lambda j: (0, j)),
                pl.BlockSpec((1, tn), lambda j: (0, j)),
                pl.BlockSpec((1, tn), lambda j: (0, j)),
            ],
            out_specs=pl.BlockSpec((rows_out, tn), lambda j: (0, j)),
        ),
        compiler_params=pltpu.CompilerParams(dimension_semantics=("parallel",)),
        cost_estimate=pl.CostEstimate(
            flops=2 * rows_out * c * np_ * len(taps),
            transcendentals=rows_out * np_ if activation == "sigmoid" else 0,
            bytes_accessed=(x_rows.size * x_rows.dtype.itemsize + kp * np_ * 2
                            + rows_out * np_ * jnp.dtype(out_dtype).itemsize),
        ),
    )(x_rows, w, scale, bias)


# ----------------------------------------------------------------------------
# ConvTranspose2d(k=4, s=2, p=1) as a phase-decomposed tap GEMM.
# Output pixel (2i+a, 2j+b) depends only on the 3x3 window of the 1-padded input at
# (i, j); the GEMM emits the 4 phases as 4*C_out output columns per input pixel and a
# cheap XLA pixel shuffle interleaves them.
# ----------------------------------------------------------------------------
_TAPS = ((0, 0, 3), (0, 1, 1), (1, 1, 2), (1, 2, 0))  # (phase, patch offset, kernel index)


def _deconv_weight_matrix(w_pt):
    """PyTorch ConvTranspose2d weight (C_in, C_out, 4, 4) -> (9*C_in, 4*C_out).
    Row blocks ordered by (di, dj) over the 3x3 window; columns by phase (a, b, c_out)."""
    c_in, c_out = w_pt.shape[0], w_pt.shape[1]
    wm = jnp.zeros((3, 3, c_in, 2, 2, c_out), jnp.float32)
    for a, di, kh in _TAPS:
        for b, dj, kw in _TAPS:
            wm = wm.at[di, dj, :, a, b, :].set(w_pt[:, :, kh, kw])
    return wm.reshape(9 * c_in, 4 * c_out)


def _deconv_layer(h_nhwc, layer, *, c_out, activation, out_dtype):
    """h_nhwc: (N, H, W, C_in) f32 -> (N, 2H, 2W, c_out) via the in-kernel tap GEMM."""
    n, hh, ww, c_in = h_nhwc.shape
    hp, wp = hh + 2, ww + 2                    # zero-ring padded spatial grid
    rows_valid = n * hp * wp
    rows_out = _round_up(rows_valid, 16)
    guard = _round_up(ww + 3, 8)               # >= max |row shift| = wp + 1
    rows_in = rows_out + 2 * guard

    # One tiny pad: zero spatial ring (gives the deconv its boundary zeros) + guard rows
    # (keeps every shifted in-kernel window read in bounds).  No 9x im2col copy.
    xp = jnp.pad(h_nhwc.astype(jnp.float32), ((0, 0), (1, 1), (1, 1), (0, 0)))
    x_rows = jnp.pad(xp.reshape(rows_valid, c_in),
                     ((guard, rows_in - guard - rows_valid), (0, 0)))

    # Tap t=(di,dj): row shift (di-1)*wp + (dj-1) (same padded row stride for in & out),
    # weight rows [t*C_in, (t+1)*C_in).
    taps = tuple((guard + (di - 1) * wp + (dj - 1), (di * 3 + dj) * c_in)
                 for di in range(3) for dj in range(3))

    y = tap_gemm(x_rows, layer["w"], layer["scale"], layer["bias"],
                 taps=taps, rows_out=rows_out, tn=_pick_tn(layer["w"].shape[1]),
                 activation=activation, out_dtype=out_dtype)

    # Rows follow the padded (N, H+2, W+2) grid; keep the interior and shuffle phases.
    y = y[:rows_valid, :4 * c_out].reshape(n, hp, wp, 2, 2, c_out)
    y = y[:, 1:1 + hh, 1:1 + ww]
    y = jnp.transpose(y, (0, 1, 3, 2, 4, 5)).reshape(n, 2 * hh, 2 * ww, c_out)
    return y


# ----------------------------------------------------------------------------
# Parameter preparation: BN folding, weight layout, bf16 cast, lane padding (done once).
# ----------------------------------------------------------------------------
def _fold_bn(gamma, beta, mean, var, lin_bias):
    scale = gamma / jnp.sqrt(var + _BN_EPS)
    return scale, scale * (lin_bias - mean) + beta


def _prep_layer(w_mat, scale, bias):
    k, n = w_mat.shape
    np_ = _round_up(n, 128)          # lane-pad output dim only; K stays exact (single pass)
    return {
        "w": _pad_to(w_mat.astype(jnp.bfloat16), (k, np_)),
        "scale": _pad_to(scale.reshape(1, n).astype(jnp.float32), (1, np_)),
        "bias": _pad_to(bias.reshape(1, n).astype(jnp.float32), (1, np_)),
    }


def prepare_params(raw):
    # FC + BatchNorm1d.  Permute output columns from (C, H, W) flattening to (H, W, C)
    # so the FC output is directly NHWC for the first deconv (Lin_View becomes free).
    s_fc, b_fc = _fold_bn(raw["bn1"]["g"], raw["bn1"]["b"], raw["bn1"]["m"],
                          raw["bn1"]["v"], raw["fc_b"])
    g = jnp.arange(128 * 7 * 7)
    perm = (g % 128) * 49 + (g // 128)   # new col (h*7+w)*128+c  <-  old col c*49+(h*7+w)
    fc = _prep_layer(raw["fc_w"].T[:, perm], s_fc[perm], b_fc[perm])

    # Deconv 1 (128 -> 64) + BatchNorm2d(64): per-channel scale/shift repeated per phase.
    s1, b1 = _fold_bn(raw["bn2"]["g"], raw["bn2"]["b"], raw["bn2"]["m"],
                      raw["bn2"]["v"], raw["dc1_b"])
    dc1 = _prep_layer(_deconv_weight_matrix(raw["dc1_w"]), jnp.tile(s1, 4), jnp.tile(b1, 4))

    # Deconv 2 (64 -> nChannels) + BatchNorm2d(nChannels).
    s2, b2 = _fold_bn(raw["bn3"]["g"], raw["bn3"]["b"], raw["bn3"]["m"],
                      raw["bn3"]["v"], raw["dc2_b"])
    dc2 = _prep_layer(_deconv_weight_matrix(raw["dc2_w"]), jnp.tile(s2, 4), jnp.tile(b2, 4))

    return {"fc": fc, "deconv1": dc1, "deconv2": dc2}


# ----------------------------------------------------------------------------
# Forward pass (matches ClusterGAN_Dec.forward, inference-mode BatchNorm).
# ----------------------------------------------------------------------------
def clustergan_dec_forward(params, x, *, n_channels):
    n = x.shape[0]
    mp = _round_up(n, 16)                                  # bf16-friendly M tile
    x_p = _pad_to(x.astype(jnp.bfloat16), (mp, x.shape[1]))

    # Linear -> BN1d -> ReLU  (columns already permuted to NHWC order)
    h = tap_gemm(x_p, params["fc"]["w"], params["fc"]["scale"], params["fc"]["bias"],
                 taps=((0, 0),), rows_out=mp, tn=_pick_tn(params["fc"]["w"].shape[1]),
                 activation="relu", out_dtype=jnp.float32)
    h = h[:n].reshape(n, 7, 7, 128)                        # (N, 7, 7, 128) NHWC

    # ConvTranspose2d(128 -> 64) -> BN2d -> ReLU
    h = _deconv_layer(h, params["deconv1"], c_out=64,
                      activation="relu", out_dtype=jnp.float32)       # (N, 14, 14, 64)

    # ConvTranspose2d(64 -> nChannels) -> BN2d -> Sigmoid
    y = _deconv_layer(h, params["deconv2"], c_out=n_channels,
                      activation="sigmoid", out_dtype=jnp.float32)    # (N, 28, 28, nC)
    return jnp.transpose(y, (0, 3, 1, 2))                  # NCHW at the model boundary


# ----------------------------------------------------------------------------
# Raw (PyTorch-layout) parameter init and a pure-JAX reference for validation.
# ----------------------------------------------------------------------------
def init_raw_params(key, x_fdim1, n_channels):
    ks = jax.random.split(key, 9)

    def u(k, shape, fan_in):
        b = 1.0 / (fan_in ** 0.5)
        return jax.random.uniform(k, shape, jnp.float32, -b, b)

    def bn(k, c):
        k1, k2, k3, k4 = jax.random.split(k, 4)
        return {"g": jax.random.uniform(k1, (c,), jnp.float32, 0.5, 1.5),
                "b": jax.random.uniform(k2, (c,), jnp.float32, -0.2, 0.2),
                "m": jax.random.uniform(k3, (c,), jnp.float32, -0.2, 0.2),
                "v": jax.random.uniform(k4, (c,), jnp.float32, 0.5, 1.5)}

    f = 128 * 7 * 7
    return {
        "fc_w": u(ks[0], (f, x_fdim1), x_fdim1),
        "fc_b": u(ks[1], (f,), x_fdim1),
        "bn1": bn(ks[2], f),
        "dc1_w": u(ks[3], (128, 64, 4, 4), 128 * 16),
        "dc1_b": u(ks[4], (64,), 128 * 16),
        "bn2": bn(ks[5], 64),
        "dc2_w": u(ks[6], (64, n_channels, 4, 4), 64 * 16),
        "dc2_b": u(ks[7], (n_channels,), 64 * 16),
        "bn3": bn(ks[8], n_channels),
    }


def _conv_transpose_ref(x, w, b, stride=2, pad=1):
    """Direct PyTorch ConvTranspose2d semantics: out[ih*s - p + kh] += x[ih] * w[kh]."""
    n, _, h, wd = x.shape
    co, kh, kw = w.shape[1], w.shape[2], w.shape[3]
    full = jnp.zeros((n, co, (h - 1) * stride + kh, (wd - 1) * stride + kw), jnp.float32)
    for i in range(kh):
        for j in range(kw):
            t = jnp.einsum("nchw,cd->ndhw", x, w[:, :, i, j],
                           precision=jax.lax.Precision.HIGHEST)
            full = full.at[:, :, i:i + stride * h:stride, j:j + stride * wd:stride].add(t)
    oh = (h - 1) * stride - 2 * pad + kh
    ow = (wd - 1) * stride - 2 * pad + kw
    return full[:, :, pad:pad + oh, pad:pad + ow] + b[None, :, None, None]


def reference_forward(raw, x):
    def bn1d(z, p):
        return (z - p["m"]) / jnp.sqrt(p["v"] + _BN_EPS) * p["g"] + p["b"]

    def bn2d(z, p):
        rs = lambda a: a[None, :, None, None]
        return (z - rs(p["m"])) / jnp.sqrt(rs(p["v"]) + _BN_EPS) * rs(p["g"]) + rs(p["b"])

    h = jnp.dot(x, raw["fc_w"].T, precision=jax.lax.Precision.HIGHEST) + raw["fc_b"]
    h = jnp.maximum(bn1d(h, raw["bn1"]), 0.0)
    h = h.reshape(x.shape[0], 128, 7, 7)
    h = _conv_transpose_ref(h, raw["dc1_w"], raw["dc1_b"])
    h = jnp.maximum(bn2d(h, raw["bn2"]), 0.0)
    h = _conv_transpose_ref(h, raw["dc2_w"], raw["dc2_b"])
    return jax.nn.sigmoid(bn2d(h, raw["bn3"]))


if __name__ == "__main__":
    batch, x_fdim1, n_channels = 2, 64, 1   # capacity fixed at 64 by the module

    key = jax.random.PRNGKey(0)
    k_x, k_p = jax.random.split(key)
    x = jax.random.normal(k_x, (batch, x_fdim1), jnp.float32)
    raw = init_raw_params(k_p, x_fdim1, n_channels)
    params = prepare_params(raw)

    fwd = jax.jit(functools.partial(clustergan_dec_forward, n_channels=n_channels))
    out = jax.block_until_ready(fwd(params, x))

    assert out.shape == (batch, n_channels, 28, 28), out.shape
    assert bool(jnp.all(jnp.isfinite(out)))

    ref = reference_forward(raw, x)
    max_err = float(jnp.max(jnp.abs(out - ref)))
    assert max_err < 3e-2, f"max abs error vs reference: {max_err}"
    print("KERNEL_OK")
</pallas_src>

<mosaic_0001>
module attributes {stable_mosaic.version = 11 : i64} {
  func.func @_tap_gemm_kernel(%arg0: i32, %arg1: memref<16x64xbf16, #tpu.memory_space<vmem>>, %arg2: memref<64x896xbf16, #tpu.memory_space<vmem>>, %arg3: memref<1x896xf32, #tpu.memory_space<vmem>>, %arg4: memref<1x896xf32, #tpu.memory_space<vmem>>, %arg5: memref<16x896xf32, #tpu.memory_space<vmem>>) attributes {dimension_semantics = [#tpu.dimension_semantics<parallel>], iteration_bounds = array<i64: 7>, scalar_prefetch = 0 : i64, scratch_operands = 0 : i64, tpu.core_type = #tpu.core_type<tc>, window_params = [{pipeline_mode = #tpu.pipeline_mode<synchronous>, transform_indices = @transform_0, window_bounds = array<i64: 16, 64>}, {transform_indices = @transform_1, window_bounds = array<i64: 64, 896>}, {transform_indices = @transform_2, window_bounds = array<i64: 1, 896>}, {transform_indices = @transform_3, window_bounds = array<i64: 1, 896>}, {transform_indices = @transform_4, window_bounds = array<i64: 16, 896>}]} {
    %c0 = arith.constant 0 : index
    %c0_0 = arith.constant 0 : index
    %0 = vector.load %arg1[%c0, %c0_0] : memref<16x64xbf16, #tpu.memory_space<vmem>>, vector<16x64xbf16>
    %c0_1 = arith.constant 0 : index
    %c0_2 = arith.constant 0 : index
    %1 = vector.load %arg2[%c0_1, %c0_2] : memref<64x896xbf16, #tpu.memory_space<vmem>>, vector<64x896xbf16>
    %cst = arith.constant dense<0.000000e+00> : vector<16x896xf32>
    %2 = tpu.matmul %0, %1, %cst {dimension_numbers = #tpu.dot_dimension_numbers<[1], [0], [0], [1], [0, 0, 1, 1], [], []>} : vector<16x64xbf16>, vector<64x896xbf16>, vector<16x896xf32> -> vector<16x896xf32>
    %c0_3 = arith.constant 0 : index
    %c0_4 = arith.constant 0 : index
    %3 = vector.load %arg3[%c0_3, %c0_4] : memref<1x896xf32, #tpu.memory_space<vmem>>, vector<1x896xf32>
    %4 = vector.broadcast %3 : vector<1x896xf32> to vector<16x896xf32>
    %5 = arith.mulf %2, %4 : vector<16x896xf32>
    %c0_5 = arith.constant 0 : index
    %c0_6 = arith.constant 0 : index
    %6 = vector.load %arg4[%c0_5, %c0_6] : memref<1x896xf32, #tpu.memory_space<vmem>>, vector<1x896xf32>
    %7 = vector.broadcast %6 : vector<1x896xf32> to vector<16x896xf32>
    %8 = arith.addf %5, %7 : vector<16x896xf32>
    %cst_7 = arith.constant 0.000000e+00 : f32
    %9 = vector.broadcast %cst_7 : f32 to vector<16x896xf32>
    %10 = arith.maximumf %8, %9 : vector<16x896xf32>
    %c0_8 = arith.constant 0 : index
    %c0_9 = arith.constant 0 : index
    %11 = vector.load %arg5[%c0_8, %c0_9] : memref<16x896xf32, #tpu.memory_space<vmem>>, vector<16x896xf32>
    tpu.vector_store %arg5[%c0_8, %c0_9], %10 {strides = array<i32>} : memref<16x896xf32, #tpu.memory_space<vmem>>, vector<16x896xf32>,
    return
  }
  func.func @transform_0(%arg0: i32) -> (i32, i32) {
    %c0_i32 = arith.constant 0 : i32
    %c0_i32_0 = arith.constant 0 : i32
    %c0_i32_1 = arith.constant 0 : i32
    return %c0_i32, %c0_i32_0 : i32, i32
  }
  func.func @transform_1(%arg0: i32) -> (i32, i32) {
    %c0_i32 = arith.constant 0 : i32
    %c0_i32_0 = arith.constant 0 : i32
    return %c0_i32, %arg0 : i32, i32
  }
  func.func @transform_2(%arg0: i32) -> (i32, i32) {
    %c0_i32 = arith.constant 0 : i32
    %c0_i32_0 = arith.constant 0 : i32
    return %c0_i32, %arg0 : i32, i32
  }
  func.func @transform_3(%arg0: i32) -> (i32, i32) {
    %c0_i32 = arith.constant 0 : i32
    %c0_i32_0 = arith.constant 0 : i32
    return %c0_i32, %arg0 : i32, i32
  }
  func.func @transform_4(%arg0: i32) -> (i32, i32) {
    %c0_i32 = arith.constant 0 : i32
    %c0_i32_0 = arith.constant 0 : i32
    return %c0_i32, %arg0 : i32, i32
  }
}

module attributes {stable_mosaic.version = 11 : i64} {
  func.func @_tap_gemm_kernel(%arg0: i32, %arg1: memref<208x128xf32, #tpu.memory_space<vmem>>, %arg2: memref<1152x128xbf16, #tpu.memory_space<vmem>>, %arg3: memref<1x128xf32, #tpu.memory_space<vmem>>, %arg4: memref<1x128xf32, #tpu.memory_space<vmem>>, %arg5: memref<176x128xf32, #tpu.memory_space<vmem>>) attributes {dimension_semantics = [#tpu.dimension_semantics<parallel>], iteration_bounds = array<i64: 2>, scalar_prefetch = 0 : i64, scratch_operands = 0 : i64, tpu.core_type = #tpu.core_type<tc>, window_params = [{pipeline_mode = #tpu.pipeline_mode<synchronous>, transform_indices = @transform_0, window_bounds = array<i64: 208, 128>}, {transform_indices = @transform_1, window_bounds = array<i64: 1152, 128>}, {transform_indices = @transform_2, window_bounds = array<i64: 1, 128>}, {transform_indices = @transform_3, window_bounds = array<i64: 1, 128>}, {transform_indices = @transform_4, window_bounds = array<i64: 176, 128>}]} {
    %c6 = arith.constant 6 : index
    %c0 = arith.constant 0 : index
    %0 = vector.load %arg1[%c6, %c0] : memref<208x128xf32, #tpu.memory_space<vmem>>, vector<176x128xf32>
    %1 = arith.truncf %0 : vector<176x128xf32> to vector<176x128xbf16>
    %c0_0 = arith.constant 0 : index
    %c0_1 = arith.constant 0 : index
    %2 = vector.load %arg2[%c0_0, %c0_1] : memref<1152x128xbf16, #tpu.memory_space<vmem>>, vector<128x128xbf16>
    %cst = arith.constant dense<0.000000e+00> : vector<176x128xf32>
    %3 = tpu.matmul %1, %2, %cst {dimension_numbers = #tpu.dot_dimension_numbers<[1], [0], [0], [1], [0, 0, 1, 1], [], []>} : vector<176x128xbf16>, vector<128x128xbf16>, vector<176x128xf32> -> vector<176x128xf32>
    %c7 = arith.constant 7 : index
    %c0_2 = arith.constant 0 : index
    %4 = vector.load %arg1[%c7, %c0_2] : memref<208x128xf32, #tpu.memory_space<vmem>>, vector<176x128xf32>
    %5 = arith.truncf %4 : vector<176x128xf32> to vector<176x128xbf16>
    %c128 = arith.constant 128 : index
    %c0_3 = arith.constant 0 : index
    %6 = vector.load %arg2[%c128, %c0_3] : memref<1152x128xbf16, #tpu.memory_space<vmem>>, vector<128x128xbf16>
    %cst_4 = arith.constant dense<0.000000e+00> : vector<176x128xf32>
    %7 = tpu.matmul %5, %6, %cst_4 {dimension_numbers = #tpu.dot_dimension_numbers<[1], [0], [0], [1], [0, 0, 1, 1], [], []>} : vector<176x128xbf16>, vector<128x128xbf16>, vector<176x128xf32> -> vector<176x128xf32>
    %8 = arith.addf %3, %7 : vector<176x128xf32>
    %c8 = arith.constant 8 : index
    %c0_5 = arith.constant 0 : index
    %9 = vector.load %arg1[%c8, %c0_5] : memref<208x128xf32, #tpu.memory_space<vmem>>, vector<176x128xf32>
    %10 = arith.truncf %9 : vector<176x128xf32> to vector<176x128xbf16>
    %c256 = arith.constant 256 : index
    %c0_6 = arith.constant 0 : index
    %11 = vector.load %arg2[%c256, %c0_6] : memref<1152x128xbf16, #tpu.memory_space<vmem>>, vector<128x128xbf16>
    %cst_7 = arith.constant dense<0.000000e+00> : vector<176x128xf32>
    %12 = tpu.matmul %10, %11, %cst_7 {dimension_numbers = #tpu.dot_dimension_numbers<[1], [0], [0], [1], [0, 0, 1, 1], [], []>} : vector<176x128xbf16>, vector<128x128xbf16>, vector<176x128xf32> -> vector<176x128xf32>
    %13 = arith.addf %8, %12 : vector<176x128xf32>
    %c15 = arith.constant 15 : index
    %c0_8 = arith.constant 0 : index
    %14 = vector.load %arg1[%c15, %c0_8] : memref<208x128xf32, #tpu.memory_space<vmem>>, vector<176x128xf32>
    %15 = arith.truncf %14 : vector<176x128xf32> to vector<176x128xbf16>
    %c384 = arith.constant 384 : index
    %c0_9 = arith.constant 0 : index
    %16 = vector.load %arg2[%c384, %c0_9] : memref<1152x128xbf16, #tpu.memory_space<vmem>>, vector<128x128xbf16>
    %cst_10 = arith.constant dense<0.000000e+00> : vector<176x128xf32>
    %17 = tpu.matmul %15, %16, %cst_10 {dimension_numbers = #tpu.dot_dimension_numbers<[1], [0], [0], [1], [0, 0, 1, 1], [], []>} : vector<176x128xbf16>, vector<128x128xbf16>, vector<176x128xf32> -> vector<176x128xf32>
    %18 = arith.addf %13, %17 : vector<176x128xf32>
    %c16 = arith.constant 16 : index
    %c0_11 = arith.constant 0 : index
    %19 = vector.load %arg1[%c16, %c0_11] : memref<208x128xf32, #tpu.memory_space<vmem>>, vector<176x128xf32>
    %20 = arith.truncf %19 : vector<176x128xf32> to vector<176x128xbf16>
    %c512 = arith.constant 512 : index
    %c0_12 = arith.constant 0 : index
    %21 = vector.load %arg2[%c512, %c0_12] : memref<1152x128xbf16, #tpu.memory_space<vmem>>, vector<128x128xbf16>
    %cst_13 = arith.constant dense<0.000000e+00> : vector<176x128xf32>
    %22 = tpu.matmul %20, %21, %cst_13 {dimension_numbers = #tpu.dot_dimension_numbers<[1], [0], [0], [1], [0, 0, 1, 1], [], []>} : vector<176x128xbf16>, vector<128x128xbf16>, vector<176x128xf32> -> vector<176x128xf32>
    %23 = arith.addf %18, %22 : vector<176x128xf32>
    %c17 = arith.constant 17 : index
    %c0_14 = arith.constant 0 : index
    %24 = vector.load %arg1[%c17, %c0_14] : memref<208x128xf32, #tpu.memory_space<vmem>>, vector<176x128xf32>
    %25 = arith.truncf %24 : vector<176x128xf32> to vector<176x128xbf16>
    %c640 = arith.constant 640 : index
    %c0_15 = arith.constant 0 : index
    %26 = vector.load %arg2[%c640, %c0_15] : memref<1152x128xbf16, #tpu.memory_space<vmem>>, vector<128x128xbf16>
    %cst_16 = arith.constant dense<0.000000e+00> : vector<176x128xf32>
    %27 = tpu.matmul %25, %26, %cst_16 {dimension_numbers = #tpu.dot_dimension_numbers<[1], [0], [0], [1], [0, 0, 1, 1], [], []>} : vector<176x128xbf16>, vector<128x128xbf16>, vector<176x128xf32> -> vector<176x128xf32>
    %28 = arith.addf %23, %27 : vector<176x128xf32>
    %c24 = arith.constant 24 : index
    %c0_17 = arith.constant 0 : index
    %29 = vector.load %arg1[%c24, %c0_17] : memref<208x128xf32, #tpu.memory_space<vmem>>, vector<176x128xf32>
    %30 = arith.truncf %29 : vector<176x128xf32> to vector<176x128xbf16>
    %c768 = arith.constant 768 : index
    %c0_18 = arith.constant 0 : index
    %31 = vector.load %arg2[%c768, %c0_18] : memref<1152x128xbf16, #tpu.memory_space<vmem>>, vector<128x128xbf16>
    %cst_19 = arith.constant dense<0.000000e+00> : vector<176x128xf32>
    %32 = tpu.matmul %30, %31, %cst_19 {dimension_numbers = #tpu.dot_dimension_numbers<[1], [0], [0], [1], [0, 0, 1, 1], [], []>} : vector<176x128xbf16>, vector<128x128xbf16>, vector<176x128xf32> -> vector<176x128xf32>
    %33 = arith.addf %28, %32 : vector<176x128xf32>
    %c25 = arith.constant 25 : index
    %c0_20 = arith.constant 0 : index
    %34 = vector.load %arg1[%c25, %c0_20] : memref<208x128xf32, #tpu.memory_space<vmem>>, vector<176x128xf32>
    %35 = arith.truncf %34 : vector<176x128xf32> to vector<176x128xbf16>
    %c896 = arith.constant 896 : index
    %c0_21 = arith.constant 0 : index
    %36 = vector.load %arg2[%c896, %c0_21] : memref<1152x128xbf16, #tpu.memory_space<vmem>>, vector<128x128xbf16>
    %cst_22 = arith.constant dense<0.000000e+00> : vector<176x128xf32>
    %37 = tpu.matmul %35, %36, %cst_22 {dimension_numbers = #tpu.dot_dimension_numbers<[1], [0], [0], [1], [0, 0, 1, 1], [], []>} : vector<176x128xbf16>, vector<128x128xbf16>, vector<176x128xf32> -> vector<176x128xf32>
    %38 = arith.addf %33, %37 : vector<176x128xf32>
    %c26 = arith.constant 26 : index
    %c0_23 = arith.constant 0 : index
    %39 = vector.load %arg1[%c26, %c0_23] : memref<208x128xf32, #tpu.memory_space<vmem>>, vector<176x128xf32>
    %40 = arith.truncf %39 : vector<176x128xf32> to vector<176x128xbf16>
    %c1024 = arith.constant 1024 : index
    %c0_24 = arith.constant 0 : index
    %41 = vector.load %arg2[%c1024, %c0_24] : memref<1152x128xbf16, #tpu.memory_space<vmem>>, vector<128x128xbf16>
    %cst_25 = arith.constant dense<0.000000e+00> : vector<176x128xf32>
    %42 = tpu.matmul %40, %41, %cst_25 {dimension_numbers = #tpu.dot_dimension_numbers<[1], [0], [0], [1], [0, 0, 1, 1], [], []>} : vector<176x128xbf16>, vector<128x128xbf16>, vector<176x128xf32> -> vector<176x128xf32>
    %43 = arith.addf %38, %42 : vector<176x128xf32>
    %c0_26 = arith.constant 0 : index
    %c0_27 = arith.constant 0 : index
    %44 = vector.load %arg3[%c0_26, %c0_27] : memref<1x128xf32, #tpu.memory_space<vmem>>, vector<1x128xf32>
    %45 = vector.broadcast %44 : vector<1x128xf32> to vector<176x128xf32>
    %46 = arith.mulf %43, %45 : vector<176x128xf32>
    %c0_28 = arith.constant 0 : index
    %c0_29 = arith.constant 0 : index
    %47 = vector.load %arg4[%c0_28, %c0_29] : memref<1x128xf32, #tpu.memory_space<vmem>>, vector<1x128xf32>
    %48 = vector.broadcast %47 : vector<1x128xf32> to vector<176x128xf32>
    %49 = arith.addf %46, %48 : vector<176x128xf32>
    %cst_30 = arith.constant 0.000000e+00 : f32
    %50 = vector.broadcast %cst_30 : f32 to vector<176x128xf32>
    %51 = arith.maximumf %49, %50 : vector<176x128xf32>
    %c0_31 = arith.constant 0 : index
    %c0_32 = arith.constant 0 : index
    %52 = vector.load %arg5[%c0_31, %c0_32] : memref<176x128xf32, #tpu.memory_space<vmem>>, vector<176x128xf32>
    tpu.vector_store %arg5[%c0_31, %c0_32], %51 {strides = array<i32>} : memref<176x128xf32, #tpu.memory_space<vmem>>, vector<176x128xf32>,
    return
  }
  func.func @transform_0(%arg0: i32) -> (i32, i32) {
    %c0_i32 = arith.constant 0 : i32
    %c0_i32_0 = arith.constant 0 : i32
    %c0_i32_1 = arith.constant 0 : i32
    return %c0_i32, %c0_i32_0 : i32, i32
  }
  func.func @transform_1(%arg0: i32) -> (i32, i32) {
    %c0_i32 = arith.constant 0 : i32
    %c0_i32_0 = arith.constant 0 : i32
    return %c0_i32, %arg0 : i32, i32
  }
  func.func @transform_2(%arg0: i32) -> (i32, i32) {
    %c0_i32 = arith.constant 0 : i32
    %c0_i32_0 = arith.constant 0 : i32
    return %c0_i32, %arg0 : i32, i32
  }
  func.func @transform_3(%arg0: i32) -> (i32, i32) {
    %c0_i32 = arith.constant 0 : i32
    %c0_i32_0 = arith.constant 0 : i32
    return %c0_i32, %arg0 : i32, i32
  }
  func.func @transform_4(%arg0: i32) -> (i32, i32) {
    %c0_i32 = arith.constant 0 : i32
    %c0_i32_0 = arith.constant 0 : i32
    return %c0_i32, %arg0 : i32, i32
  }
}

module attributes {stable_mosaic.version = 11 : i64} {
  func.func @_tap_gemm_kernel(%arg0: i32, %arg1: memref<560x64xf32, #tpu.memory_space<vmem>>, %arg2: memref<576x128xbf16, #tpu.memory_space<vmem>>, %arg3: memref<1x128xf32, #tpu.memory_space<vmem>>, %arg4: memref<1x128xf32, #tpu.memory_space<vmem>>, %arg5: memref<512x128xf32, #tpu.memory_space<vmem>>) attributes {dimension_semantics = [#tpu.dimension_semantics<parallel>], iteration_bounds = array<i64: 1>, scalar_prefetch = 0 : i64, scratch_operands = 0 : i64, tpu.core_type = #tpu.core_type<tc>, window_params = [{pipeline_mode = #tpu.pipeline_mode<synchronous>, transform_indices = @transform_0, window_bounds = array<i64: 560, 64>}, {transform_indices = @transform_1, window_bounds = array<i64: 576, 128>}, {transform_indices = @transform_2, window_bounds = array<i64: 1, 128>}, {transform_indices = @transform_3, window_bounds = array<i64: 1, 128>}, {transform_indices = @transform_4, window_bounds = array<i64: 512, 128>}]} {
    %c7 = arith.constant 7 : index
    %c0 = arith.constant 0 : index
    %0 = vector.load %arg1[%c7, %c0] : memref<560x64xf32, #tpu.memory_space<vmem>>, vector<512x64xf32>
    %1 = arith.truncf %0 : vector<512x64xf32> to vector<512x64xbf16>
    %c0_0 = arith.constant 0 : index
    %c0_1 = arith.constant 0 : index
    %2 = vector.load %arg2[%c0_0, %c0_1] : memref<576x128xbf16, #tpu.memory_space<vmem>>, vector<64x128xbf16>
    %cst = arith.constant dense<0.000000e+00> : vector<512x128xf32>
    %3 = tpu.matmul %1, %2, %cst {dimension_numbers = #tpu.dot_dimension_numbers<[1], [0], [0], [1], [0, 0, 1, 1], [], []>} : vector<512x64xbf16>, vector<64x128xbf16>, vector<512x128xf32> -> vector<512x128xf32>
    %c8 = arith.constant 8 : index
    %c0_2 = arith.constant 0 : index
    %4 = vector.load %arg1[%c8, %c0_2] : memref<560x64xf32, #tpu.memory_space<vmem>>, vector<512x64xf32>
    %5 = arith.truncf %4 : vector<512x64xf32> to vector<512x64xbf16>
    %c64 = arith.constant 64 : index
    %c0_3 = arith.constant 0 : index
    %6 = vector.load %arg2[%c64, %c0_3] : memref<576x128xbf16, #tpu.memory_space<vmem>>, vector<64x128xbf16>
    %cst_4 = arith.constant dense<0.000000e+00> : vector<512x128xf32>
    %7 = tpu.matmul %5, %6, %cst_4 {dimension_numbers = #tpu.dot_dimension_numbers<[1], [0], [0], [1], [0, 0, 1, 1], [], []>} : vector<512x64xbf16>, vector<64x128xbf16>, vector<512x128xf32> -> vector<512x128xf32>
    %8 = arith.addf %3, %7 : vector<512x128xf32>
    %c9 = arith.constant 9 : index
    %c0_5 = arith.constant 0 : index
    %9 = vector.load %arg1[%c9, %c0_5] : memref<560x64xf32, #tpu.memory_space<vmem>>, vector<512x64xf32>
    %10 = arith.truncf %9 : vector<512x64xf32> to vector<512x64xbf16>
    %c128 = arith.constant 128 : index
    %c0_6 = arith.constant 0 : index
    %11 = vector.load %arg2[%c128, %c0_6] : memref<576x128xbf16, #tpu.memory_space<vmem>>, vector<64x128xbf16>
    %cst_7 = arith.constant dense<0.000000e+00> : vector<512x128xf32>
    %12 = tpu.matmul %10, %11, %cst_7 {dimension_numbers = #tpu.dot_dimension_numbers<[1], [0], [0], [1], [0, 0, 1, 1], [], []>} : vector<512x64xbf16>, vector<64x128xbf16>, vector<512x128xf32> -> vector<512x128xf32>
    %13 = arith.addf %8, %12 : vector<512x128xf32>
    %c23 = arith.constant 23 : index
    %c0_8 = arith.constant 0 : index
    %14 = vector.load %arg1[%c23, %c0_8] : memref<560x64xf32, #tpu.memory_space<vmem>>, vector<512x64xf32>
    %15 = arith.truncf %14 : vector<512x64xf32> to vector<512x64xbf16>
    %c192 = arith.constant 192 : index
    %c0_9 = arith.constant 0 : index
    %16 = vector.load %arg2[%c192, %c0_9] : memref<576x128xbf16, #tpu.memory_space<vmem>>, vector<64x128xbf16>
    %cst_10 = arith.constant dense<0.000000e+00> : vector<512x128xf32>
    %17 = tpu.matmul %15, %16, %cst_10 {dimension_numbers = #tpu.dot_dimension_numbers<[1], [0], [0], [1], [0, 0, 1, 1], [], []>} : vector<512x64xbf16>, vector<64x128xbf16>, vector<512x128xf32> -> vector<512x128xf32>
    %18 = arith.addf %13, %17 : vector<512x128xf32>
    %c24 = arith.constant 24 : index
    %c0_11 = arith.constant 0 : index
    %19 = vector.load %arg1[%c24, %c0_11] : memref<560x64xf32, #tpu.memory_space<vmem>>, vector<512x64xf32>
    %20 = arith.truncf %19 : vector<512x64xf32> to vector<512x64xbf16>
    %c256 = arith.constant 256 : index
    %c0_12 = arith.constant 0 : index
    %21 = vector.load %arg2[%c256, %c0_12] : memref<576x128xbf16, #tpu.memory_space<vmem>>, vector<64x128xbf16>
    %cst_13 = arith.constant dense<0.000000e+00> : vector<512x128xf32>
    %22 = tpu.matmul %20, %21, %cst_13 {dimension_numbers = #tpu.dot_dimension_numbers<[1], [0], [0], [1], [0, 0, 1, 1], [], []>} : vector<512x64xbf16>, vector<64x128xbf16>, vector<512x128xf32> -> vector<512x128xf32>
    %23 = arith.addf %18, %22 : vector<512x128xf32>
    %c25 = arith.constant 25 : index
    %c0_14 = arith.constant 0 : index
    %24 = vector.load %arg1[%c25, %c0_14] : memref<560x64xf32, #tpu.memory_space<vmem>>, vector<512x64xf32>
    %25 = arith.truncf %24 : vector<512x64xf32> to vector<512x64xbf16>
    %c320 = arith.constant 320 : index
    %c0_15 = arith.constant 0 : index
    %26 = vector.load %arg2[%c320, %c0_15] : memref<576x128xbf16, #tpu.memory_space<vmem>>, vector<64x128xbf16>
    %cst_16 = arith.constant dense<0.000000e+00> : vector<512x128xf32>
    %27 = tpu.matmul %25, %26, %cst_16 {dimension_numbers = #tpu.dot_dimension_numbers<[1], [0], [0], [1], [0, 0, 1, 1], [], []>} : vector<512x64xbf16>, vector<64x128xbf16>, vector<512x128xf32> -> vector<512x128xf32>
    %28 = arith.addf %23, %27 : vector<512x128xf32>
    %c39 = arith.constant 39 : index
    %c0_17 = arith.constant 0 : index
    %29 = vector.load %arg1[%c39, %c0_17] : memref<560x64xf32, #tpu.memory_space<vmem>>, vector<512x64xf32>
    %30 = arith.truncf %29 : vector<512x64xf32> to vector<512x64xbf16>
    %c384 = arith.constant 384 : index
    %c0_18 = arith.constant 0 : index
    %31 = vector.load %arg2[%c384, %c0_18] : memref<576x128xbf16, #tpu.memory_space<vmem>>, vector<64x128xbf16>
    %cst_19 = arith.constant dense<0.000000e+00> : vector<512x128xf32>
    %32 = tpu.matmul %30, %31, %cst_19 {dimension_numbers = #tpu.dot_dimension_numbers<[1], [0], [0], [1], [0, 0, 1, 1], [], []>} : vector<512x64xbf16>, vector<64x128xbf16>, vector<512x128xf32> -> vector<512x128xf32>
    %33 = arith.addf %28, %32 : vector<512x128xf32>
    %c40 = arith.constant 40 : index
    %c0_20 = arith.constant 0 : index
    %34 = vector.load %arg1[%c40, %c0_20] : memref<560x64xf32, #tpu.memory_space<vmem>>, vector<512x64xf32>
    %35 = arith.truncf %34 : vector<512x64xf32> to vector<512x64xbf16>
    %c448 = arith.constant 448 : index
    %c0_21 = arith.constant 0 : index
    %36 = vector.load %arg2[%c448, %c0_21] : memref<576x128xbf16, #tpu.memory_space<vmem>>, vector<64x128xbf16>
    %cst_22 = arith.constant dense<0.000000e+00> : vector<512x128xf32>
    %37 = tpu.matmul %35, %36, %cst_22 {dimension_numbers = #tpu.dot_dimension_numbers<[1], [0], [0], [1], [0, 0, 1, 1], [], []>} : vector<512x64xbf16>, vector<64x128xbf16>, vector<512x128xf32> -> vector<512x128xf32>
    %38 = arith.addf %33, %37 : vector<512x128xf32>
    %c41 = arith.constant 41 : index
    %c0_23 = arith.constant 0 : index
    %39 = vector.load %arg1[%c41, %c0_23] : memref<560x64xf32, #tpu.memory_space<vmem>>, vector<512x64xf32>
    %40 = arith.truncf %39 : vector<512x64xf32> to vector<512x64xbf16>
    %c512 = arith.constant 512 : index
    %c0_24 = arith.constant 0 : index
    %41 = vector.load %arg2[%c512, %c0_24] : memref<576x128xbf16, #tpu.memory_space<vmem>>, vector<64x128xbf16>
    %cst_25 = arith.constant dense<0.000000e+00> : vector<512x128xf32>
    %42 = tpu.matmul %40, %41, %cst_25 {dimension_numbers = #tpu.dot_dimension_numbers<[1], [0], [0], [1], [0, 0, 1, 1], [], []>} : vector<512x64xbf16>, vector<64x128xbf16>, vector<512x128xf32> -> vector<512x128xf32>
    %43 = arith.addf %38, %42 : vector<512x128xf32>
    %c0_26 = arith.constant 0 : index
    %c0_27 = arith.constant 0 : index
    %44 = vector.load %arg3[%c0_26, %c0_27] : memref<1x128xf32, #tpu.memory_space<vmem>>, vector<1x128xf32>
    %45 = vector.broadcast %44 : vector<1x128xf32> to vector<512x128xf32>
    %46 = arith.mulf %43, %45 : vector<512x128xf32>
    %c0_28 = arith.constant 0 : index
    %c0_29 = arith.constant 0 : index
    %47 = vector.load %arg4[%c0_28, %c0_29] : memref<1x128xf32, #tpu.memory_space<vmem>>, vector<1x128xf32>
    %48 = vector.broadcast %47 : vector<1x128xf32> to vector<512x128xf32>
    %49 = arith.addf %46, %48 : vector<512x128xf32>
    %50 = arith.negf %49 : vector<512x128xf32>
    %51 = math.exp %50 : vector<512x128xf32>
    %cst_30 = arith.constant 1.000000e+00 : f32
    %52 = vector.broadcast %cst_30 : f32 to vector<512x128xf32>
    %53 = arith.addf %52, %51 : vector<512x128xf32>
    %54 = arith.divf %52, %53 : vector<512x128xf32>
    %c0_31 = arith.constant 0 : index
    %c0_32 = arith.constant 0 : index
    %55 = vector.load %arg5[%c0_31, %c0_32] : memref<512x128xf32, #tpu.memory_space<vmem>>, vector<512x128xf32>
    tpu.vector_store %arg5[%c0_31, %c0_32], %54 {strides = array<i32>} : memref<512x128xf32, #tpu.memory_space<vmem>>, vector<512x128xf32>,
    return
  }
  func.func @transform_0(%arg0: i32) -> (i32, i32) {
    %c0_i32 = arith.constant 0 : i32
    %c0_i32_0 = arith.constant 0 : i32
    %c0_i32_1 = arith.constant 0 : i32
    return %c0_i32, %c0_i32_0 : i32, i32
  }
  func.func @transform_1(%arg0: i32) -> (i32, i32) {
    %c0_i32 = arith.constant 0 : i32
    %c0_i32_0 = arith.constant 0 : i32
    return %c0_i32, %arg0 : i32, i32
  }
  func.func @transform_2(%arg0: i32) -> (i32, i32) {
    %c0_i32 = arith.constant 0 : i32
    %c0_i32_0 = arith.constant 0 : i32
    return %c0_i32, %arg0 : i32, i32
  }
  func.func @transform_3(%arg0: i32) -> (i32, i32) {
    %c0_i32 = arith.constant 0 : i32
    %c0_i32_0 = arith.constant 0 : i32
    return %c0_i32, %arg0 : i32, i32
  }
  func.func @transform_4(%arg0: i32) -> (i32, i32) {
    %c0_i32 = arith.constant 0 : i32
    %c0_i32_0 = arith.constant 0 : i32
    return %c0_i32, %arg0 : i32, i32
  }
}

</mosaic_0001>

<llo_original>
// kernel: clustergan_dec_forward.3
$region0: #{clustergan_dec_forward.3}
  #allocation0 [shape = 'u32[]', space=smem, size = 0x4, offset = 0x4, fixed_abs, tag = 'smem constant byte address 0x4 - core index']
  #allocation1 [shape = 'u32[144,128]{1,0:T(1,128)}', space=vmem, size = 0x12000, scoped, tag = 'internal scratch']
  %s0 = inlined_call_operand.vmem [shape: bf16[16,64], index: 0, kind: input, shape index: {}]
  %s1 = inlined_call_operand.hbm [shape: bf16[64,6272], index: 1, kind: input, shape index: {}]
  %s2 = inlined_call_operand.hbm [shape: f32[1,6272], index: 2, kind: input, shape index: {}]
  %s3 = inlined_call_operand.hbm [shape: f32[1,6272], index: 3, kind: input, shape index: {}]
  %s4 = inlined_call_operand.vmem [shape: f32[16,6272], index: 4, kind: output, shape index: {}]
  %s5 = sld [smem:[#allocation0]]
  $region80: #{clustergan_dec_forward.3} parent=0
    _
  %s7 = ssub.s32 1, %s5
  %s8 = scalar_select 0, %s7, %s5
  $region1: #{clustergan_dec_forward.3} parent=0
    #allocation2 [shape = 'u8[229376]{0}', space=vmem, size = 0x38000, scoped, tag = 'input window, operand 1']
    #allocation3 [shape = 's32[2]{0}', space=sflag, size = 0x8, scoped, tag = 'scoped memory for clustergan_dec_forward.3']
    #allocation4 [shape = 'u8[7168]{0}', space=vmem, size = 0x1c00, scoped, tag = 'input window, operand 2']
    #allocation5 [shape = 's32[2]{0}', space=sflag, size = 0x8, scoped, tag = 'scoped memory for clustergan_dec_forward.3']
    #allocation6 [shape = 'u8[7168]{0}', space=vmem, size = 0x1c00, scoped, tag = 'input window, operand 3']
    #allocation7 [shape = 'u8[114688]{0}', space=vmem, size = 0x1c000, scoped, tag = 'output window, operand 0']
    %9 = vsyncpa [#allocation3], 0
    %s10 = scalar_lea.sflag [#allocation3], 1
    %11 = vsyncpa %s10, 0
    %12 = vsyncpa [#allocation5], 0
    %s13 = scalar_lea.sflag [#allocation5], 1
    %14 = vsyncpa %s13, 0
    loop: start=0, step=1, limit=9
    $region2: #{clustergan_dec_forward.3} parent=1 // loop_pre_header
      _
    $region3: #{clustergan_dec_forward.3} parent=1 // loop_header
      %s16 = sphi 0, %s20
      %p17 = scmp.ge.s32.totalorder %s16, 9
      %s24 = sphi 0, %s24
      %s26 = sphi 0, %s24
      %s27 = sphi 0, %s26
      %s41 = sphi 0, %s27
      %s47 = sphi 0, %s49
      %s50 = sphi 0, %s47
      %s51 = sphi 0, %s50
      %s67 = sphi 0, %s51
      %s73 = sphi 0, %s75
      %s76 = sphi 0, %s73
      %s77 = sphi 0, %s76
      %s93 = sphi 0, %s77
      %s99 = sphi 0, %s101
      %s102 = sphi 0, %s99
      %s103 = sphi 0, %s102
      %s119 = sphi 0, %s103
      %s125 = sphi 0, %s127
      %s128 = sphi 0, %s125
      %s129 = sphi 0, %s128
      %s145 = sphi 0, %s129
    $region4: #{clustergan_dec_forward.3} parent=1 // loop_header_branch
      %19 = sbr.rel (%p17) target = $region8
    $region5: #{clustergan_dec_forward.3} parent=1 // loop_body
      %s21 = ssub.s32 %s16, 1
      %s22 = ssub.s32 %s16, 2
      %s23 = sadd.s32 %s16, 1
      %s25 = sadd.s32 %s24, 1
      %p28 = scmp.eq.s32.totalorder %s16, 6
      %p29 = scmp.ne.s32.totalorder %s24, %s26
      %p30 = scmp.eq.s32.totalorder %s16, 0
      %p31 = por %p29, %p30
      %p32 = scmp.ne.s32.totalorder %s24, %s26
      %p33 = scmp.eq.s32.totalorder %s21, 6
      %p34 = por %p32, %p33
      %p35 = scmp.ne.s32.totalorder %s26, %s27
      %p36 = scmp.eq.s32.totalorder %s21, 0
      %p37 = por %p35, %p36
      %p38 = scmp.ne.s32.totalorder %s26, %s27
      %p39 = scmp.eq.s32.totalorder %s22, 6
      %p40 = por %p38, %p39
      %p42 = scmp.ne.s32.totalorder %s27, %s41
      %p43 = scmp.eq.s32.totalorder %s22, 0
      %p44 = por %p42, %p43
      %s45 = ssub.s32 %s16, %s23
      %p46 = scmp.eq.s32.totalorder %s45, 0
      %s48 = sadd.s32 %s47, 1
      %s49 = scalar_select %p46, %s47, %s48
      %p52 = pneg %p46
      %p53 = scmp.eq.s32.totalorder %s16, 6
      %p54 = por %p52, %p53
      %p55 = scmp.ne.s32.totalorder %s47, %s50
      %p56 = scmp.eq.s32.totalorder %s16, 0
      %p57 = por %p55, %p56
      %p58 = scmp.ne.s32.totalorder %s47, %s50
      %p59 = scmp.eq.s32.totalorder %s21, 6
      %p60 = por %p58, %p59
      %p61 = scmp.ne.s32.totalorder %s50, %s51
      %p62 = scmp.eq.s32.totalorder %s21, 0
      %p63 = por %p61, %p62
      %p64 = scmp.ne.s32.totalorder %s50, %s51
      %p65 = scmp.eq.s32.totalorder %s22, 6
      %p66 = por %p64, %p65
      %p68 = scmp.ne.s32.totalorder %s51, %s67
      %p69 = scmp.eq.s32.totalorder %s22, 0
      %p70 = por %p68, %p69
      %s71 = ssub.s32 %s16, %s23
      %p72 = scmp.eq.s32.totalorder %s71, 0
      %s74 = sadd.s32 %s73, 1
      %s75 = scalar_select %p72, %s73, %s74
      %p78 = pneg %p72
      %p79 = scmp.eq.s32.totalorder %s16, 6
      %p80 = por %p78, %p79
      %p81 = scmp.ne.s32.totalorder %s73, %s76
      %p82 = scmp.eq.s32.totalorder %s16, 0
      %p83 = por %p81, %p82
      %p84 = scmp.ne.s32.totalorder %s73, %s76
      %p85 = scmp.eq.s32.totalorder %s21, 6
      %p86 = por %p84, %p85
      %p87 = scmp.ne.s32.totalorder %s76, %s77
      %p88 = scmp.eq.s32.totalorder %s21, 0
      %p89 = por %p87, %p88
      %p90 = scmp.ne.s32.totalorder %s76, %s77
      %p91 = scmp.eq.s32.totalorder %s22, 6
      %p92 = por %p90, %p91
      %p94 = scmp.ne.s32.totalorder %s77, %s93
      %p95 = scmp.eq.s32.totalorder %s22, 0
      %p96 = por %p94, %p95
      %s97 = ssub.s32 %s16, %s23
      %p98 = scmp.eq.s32.totalorder %s97, 0
      %s100 = sadd.s32 %s99, 1
      %s101 = scalar_select %p98, %s99, %s100
      %p104 = pneg %p98
      %p105 = scmp.eq.s32.totalorder %s16, 6
      %p106 = por %p104, %p105
      %p107 = scmp.ne.s32.totalorder %s99, %s102
      %p108 = scmp.eq.s32.totalorder %s16, 0
      %p109 = por %p107, %p108
      %p110 = scmp.ne.s32.totalorder %s99, %s102
      %p111 = scmp.eq.s32.totalorder %s21, 6
      %p112 = por %p110, %p111
      %p113 = scmp.ne.s32.totalorder %s102, %s103
      %p114 = scmp.eq.s32.totalorder %s21, 0
      %p115 = por %p113, %p114
      %p116 = scmp.ne.s32.totalorder %s102, %s103
      %p117 = scmp.eq.s32.totalorder %s22, 6
      %p118 = por %p116, %p117
      %p120 = scmp.ne.s32.totalorder %s103, %s119
      %p121 = scmp.eq.s32.totalorder %s22, 0
      %p122 = por %p120, %p121
      %s123 = ssub.s32 %s16, %s23
      %p124 = scmp.eq.s32.totalorder %s123, 0
      %s126 = sadd.s32 %s125, 1
      %s127 = scalar_select %p124, %s125, %s126
      %p130 = pneg %p124
      %p131 = scmp.eq.s32.totalorder %s16, 6
      %p132 = por %p130, %p131
      %p133 = scmp.ne.s32.totalorder %s125, %s128
      %p134 = scmp.eq.s32.totalorder %s16, 0
      %p135 = por %p133, %p134
      %p136 = scmp.ne.s32.totalorder %s125, %s128
      %p137 = scmp.eq.s32.totalorder %s21, 6
      %p138 = por %p136, %p137
      %p139 = scmp.ne.s32.totalorder %s128, %s129
      %p140 = scmp.eq.s32.totalorder %s21, 0
      %p141 = por %p139, %p140
      %p142 = scmp.ne.s32.totalorder %s128, %s129
      %p143 = scmp.eq.s32.totalorder %s22, 6
      %p144 = por %p142, %p143
      %p146 = scmp.ne.s32.totalorder %s129, %s145
      %p147 = scmp.eq.s32.totalorder %s22, 0
      %p148 = por %p146, %p147
      %p149 = scmp.le.s32.totalorder 1, %s16
      %p150 = scmp.lt.s32.totalorder %s16, 8
      %p151 = pnand %p149, %p150
      %p152 = pneg %p151
      // Predicated region
      $region9: #{clustergan_dec_forward.3} parent=5 // pred_check
        _
      $region10: #{clustergan_dec_forward.3} parent=5 // pred_check_branch
        %154 = sbr.rel (%p151) target = $region12
      $region11: #{clustergan_dec_forward.3} parent=5 // pred_region
        %s155 = ssub.s32 %s16, 1
        // Predicated region
        $region13: #{clustergan_dec_forward.3} parent=11 // pred_check
          %p156 = pneg %p37
        $region14: #{clustergan_dec_forward.3} parent=11 // pred_check_branch
          %158 = sbr.rel (%p156) target = $region16
        $region15: #{clustergan_dec_forward.3} parent=11 // pred_region
          _
        $region16: #{clustergan_dec_forward.3} parent=11 // pred_fallthru
          _
      $region12: #{clustergan_dec_forward.3} parent=5 // pred_fallthru
        _
      %p159 = scmp.lt.s32.totalorder %s16, 7
      // Predicated region
      $region17: #{clustergan_dec_forward.3} parent=5 // pred_check
        %p160 = pneg %p159
      $region18: #{clustergan_dec_forward.3} parent=5 // pred_check_branch
        %162 = sbr.rel (%p160) target = $region20
      $region19: #{clustergan_dec_forward.3} parent=5 // pred_region
        // Predicated region
        $region21: #{clustergan_dec_forward.3} parent=19 // pred_check
          %p163 = pneg %p57
        $region22: #{clustergan_dec_forward.3} parent=19 // pred_check_branch
          %165 = sbr.rel (%p163) target = $region24
        $region23: #{clustergan_dec_forward.3} parent=19 // pred_region
          %s166 = sand.u32 %s47, 1
          %s167 = scalar_lea.sflag [#allocation3], %s166
          %s168 = sand.u32 %s47, 1
          %s169 = smul.addr %s168, 224
          %s170 = scalar_lea.vmem [#allocation2], %s169
          %s171 = smul.u32 7, %s16
          %s173 = ssub.s32 3584, 3584
          %174 = vsyncadd %s167, %s173
          %s175 = smul.addr %s171, 64
          %s176 = scalar_lea.hbm %s1, %s175
          %s177 = sshll.u32 %s170, 4
          %s178 = int_to_ptr.vmem [resolvable:$true] %s177
          %183 = dma.hbm_to_vmem [thread:$0]  %s176, 3584, %s178, %s167, 3136, 448, 28
        $region24: #{clustergan_dec_forward.3} parent=19 // pred_fallthru
          _
        // Predicated region
        $region25: #{clustergan_dec_forward.3} parent=19 // pred_check
          %p184 = pneg %p83
        $region26: #{clustergan_dec_forward.3} parent=19 // pred_check_branch
          %186 = sbr.rel (%p184) target = $region28
        $region27: #{clustergan_dec_forward.3} parent=19 // pred_region
          %s187 = sand.u32 %s16, 1
          %s188 = scalar_lea.sflag [#allocation5], %s187
          %s189 = sand.u32 %s73, 1
          %s190 = smul.addr %s189, 7
          %s191 = scalar_lea.vmem [#allocation4], %s190
          %s192 = smul.u32 7, %s16
          %s194 = ssub.s32 112, 112
          %195 = vsyncadd %s188, %s194
          %s196 = smul.addr %s192, 16
          %s197 = scalar_lea.hbm %s2, %s196
          %s199 = sshll.u32 %s191, 4
          %s200 = int_to_ptr.vmem [resolvable:$true] %s199
          %202 = dma.hbm_to_vmem [thread:$0]  %s197, 112, %s200, %s188
        $region28: #{clustergan_dec_forward.3} parent=19 // pred_fallthru
          _
        // Predicated region
        $region29: #{clustergan_dec_forward.3} parent=19 // pred_check
          %p203 = pneg %p109
        $region30: #{clustergan_dec_forward.3} parent=19 // pred_check_branch
          %205 = sbr.rel (%p203) target = $region32
        $region31: #{clustergan_dec_forward.3} parent=19 // pred_region
          %s206 = sand.u32 %s16, 1
          %s207 = scalar_lea.sflag [#allocation5], %s206
          %s208 = sand.u32 %s99, 1
          %s209 = smul.addr %s208, 7
          %s210 = scalar_lea.vmem [#allocation6], %s209
          %s211 = smul.u32 7, %s16
          %s213 = ssub.s32 112, 112
          %214 = vsyncadd %s207, %s213
          %s215 = smul.addr %s211, 16
          %s216 = scalar_lea.hbm %s3, %s215
          %s218 = sshll.u32 %s210, 4
          %s219 = int_to_ptr.vmem [resolvable:$true] %s218
          %221 = dma.hbm_to_vmem [thread:$0]  %s216, 112, %s219, %s207
        $region32: #{clustergan_dec_forward.3} parent=19 // pred_fallthru
          _
      $region20: #{clustergan_dec_forward.3} parent=5 // pred_fallthru
        _
      %p222 = scmp.le.s32.totalorder 1, %s16
      %p223 = scmp.lt.s32.totalorder %s16, 8
      %p224 = pnand %p222, %p223
      %p225 = pneg %p224
      // Predicated region
      $region33: #{clustergan_dec_forward.3} parent=5 // pred_check
        _
      $region34: #{clustergan_dec_forward.3} parent=5 // pred_check_branch
        %227 = sbr.rel (%p224) target = $region36
      $region35: #{clustergan_dec_forward.3} parent=5 // pred_region
        %s228 = ssub.s32 %s16, 1
        %s229 = sand.u32 %s50, 1
        %s230 = scalar_lea.sflag [#allocation3], %s229
        %s231 = sand.u32 %s50, 1
        %s232 = smul.addr %s231, 224
        %s233 = scalar_lea.vmem [#allocation2], %s232
        // Predicated region
        $region37: #{clustergan_dec_forward.3} parent=35 // pred_check
          %p234 = pneg %p63
        $region38: #{clustergan_dec_forward.3} parent=35 // pred_check_branch
          %236 = sbr.rel (%p234) target = $region40
        $region39: #{clustergan_dec_forward.3} parent=35 // pred_region
          %237 = dma.done %s230, 3584
        $region40: #{clustergan_dec_forward.3} parent=35 // pred_fallthru
          _
        %s238 = sand.u32 %s21, 1
        %s239 = scalar_lea.sflag [#allocation5], %s238
        %s240 = sand.u32 %s76, 1
        %s241 = smul.addr %s240, 7
        %s242 = scalar_lea.vmem [#allocation4], %s241
        // Predicated region
        $region41: #{clustergan_dec_forward.3} parent=35 // pred_check
          %p243 = pneg %p89
        $region42: #{clustergan_dec_forward.3} parent=35 // pred_check_branch
          %245 = sbr.rel (%p243) target = $region44
        $region43: #{clustergan_dec_forward.3} parent=35 // pred_region
          %246 = dma.done %s239, 112
        $region44: #{clustergan_dec_forward.3} parent=35 // pred_fallthru
          _
        %s247 = sand.u32 %s21, 1
        %s248 = scalar_lea.sflag [#allocation5], %s247
        %s249 = sand.u32 %s102, 1
        %s250 = smul.addr %s249, 7
        %s251 = scalar_lea.vmem [#allocation6], %s250
        // Predicated region
        $region45: #{clustergan_dec_forward.3} parent=35 // pred_check
          %p252 = pneg %p115
        $region46: #{clustergan_dec_forward.3} parent=35 // pred_check_branch
          %254 = sbr.rel (%p252) target = $region48
        $region47: #{clustergan_dec_forward.3} parent=35 // pred_region
          %255 = dma.done %s248, 112
        $region48: #{clustergan_dec_forward.3} parent=35 // pred_fallthru
          _
        %p256 = pneg %p37
        %p257 = pneg %p34
        %s258 = sand.u32 %s50, 1
        %s259 = scalar_lea.sflag [#allocation3], %s258
        %s260 = sand.u32 %s50, 1
        %s261 = smul.addr %s260, 224
        %s262 = scalar_lea.vmem [#allocation2], %s261
        %p263 = pneg %p63
        %p264 = pneg %p60
        %s265 = sand.u32 %s21, 1
        %s266 = scalar_lea.sflag [#allocation5], %s265
        %s267 = sand.u32 %s76, 1
        %s268 = smul.addr %s267, 7
        %s269 = scalar_lea.vmem [#allocation4], %s268
        %p270 = pneg %p89
        %p271 = pneg %p86
        %s272 = sand.u32 %s21, 1
        %s273 = scalar_lea.sflag [#allocation5], %s272
        %s274 = sand.u32 %s102, 1
        %s275 = smul.addr %s274, 7
        %s276 = scalar_lea.vmem [#allocation6], %s275
        %p277 = pneg %p115
        %p278 = pneg %p112
        %p279 = pneg %p141
        %p280 = pneg %p138
        %s281 = sand.u32 %s128, 1
        %s282 = sand.u32 %s128, 1
        %s283 = smul.addr %s282, 112
        %s284 = scalar_lea.vmem [#allocation7], %s283
        %s285 = smul.u32 7, %s21
        %s286 = smul.u32 7, %s21
        %s287 = smul.u32 7, %s21
        %s288 = smul.u32 7, %s21
        %v290 = vld [vmem:[%s0] sm:$0xf]
        %v291 = vld [vmem:[%s0 + $0x4] sm:$0xf]
        %v292 = vld [vmem:[%s233] sm:$0xff]
        %v293 = vld [vmem:[%s233 + $0x8] sm:$0xff]
        %v294 = vld [vmem:[%s233 + $0x10] sm:$0xff]
        %v295 = vld [vmem:[%s233 + $0x18] sm:$0xf]
        %v296 = vld [vmem:[%s233 + $0x1c] sm:$0xff]
        %v297 = vld [vmem:[%s233 + $0x24] sm:$0xff]
        %v298 = vld [vmem:[%s233 + $0x2c] sm:$0xff]
        %v299 = vld [vmem:[%s233 + $0x34] sm:$0xf]
        %v300 = vld [vmem:[%s233 + $0x38] sm:$0xff]
        %v301 = vld [vmem:[%s233 + $0x40] sm:$0xff]
        %v302 = vld [vmem:[%s233 + $0x48] sm:$0xff]
        %v303 = vld [vmem:[%s233 + $0x50] sm:$0xf]
        %v304 = vld [vmem:[%s233 + $0x54] sm:$0xff]
        %v305 = vld [vmem:[%s233 + $0x5c] sm:$0xff]
        %v306 = vld [vmem:[%s233 + $0x64] sm:$0xff]
        %v307 = vld [vmem:[%s233 + $0x6c] sm:$0xf]
        %v308 = vld [vmem:[%s233 + $0x70] sm:$0xff]
        %v309 = vld [vmem:[%s233 + $0x78] sm:$0xff]
        %v310 = vld [vmem:[%s233 + $0x80] sm:$0xff]
        %v311 = vld [vmem:[%s233 + $0x88] sm:$0xf]
        %v312 = vld [vmem:[%s233 + $0x8c] sm:$0xff]
        %v313 = vld [vmem:[%s233 + $0x94] sm:$0xff]
        %v314 = vld [vmem:[%s233 + $0x9c] sm:$0xff]
        %v315 = vld [vmem:[%s233 + $0xa4] sm:$0xf]
        %v316 = vld [vmem:[%s233 + $0xa8] sm:$0xff]
        %v317 = vld [vmem:[%s233 + $0xb0] sm:$0xff]
        %v318 = vld [vmem:[%s233 + $0xb8] sm:$0xff]
        %v319 = vld [vmem:[%s233 + $0xc0] sm:$0xf]
        %v320 = vld [vmem:[%s233 + $0xc4] sm:$0xff]
        %v321 = vld [vmem:[%s233 + $0xcc] sm:$0xff]
        %v322 = vld [vmem:[%s233 + $0xd4] sm:$0xff]
        %v323 = vld [vmem:[%s233 + $0xdc] sm:$0xf]
        %v326 = vunpack.c.l.b16 %v290
        %v327 = vunpack.c.l.b16 %v291
        %v328 = vpack.c.b16 %v327, %v326
        %v361 = vunpack.c.l.b16 %v292
        %v362 = vunpack.c.h.b16 %v292
        %v363 = vunpack.c.l.b16 %v293
        %v364 = vunpack.c.h.b16 %v293
        %v365 = vunpack.c.l.b16 %v294
        %v366 = vunpack.c.h.b16 %v294
        %v367 = vunpack.c.l.b16 %v295
        %v368 = vunpack.c.l.b16 %v296
        %v369 = vunpack.c.h.b16 %v296
        %v370 = vunpack.c.l.b16 %v297
        %v371 = vunpack.c.h.b16 %v297
        %v372 = vunpack.c.l.b16 %v298
        %v373 = vunpack.c.h.b16 %v298
        %v374 = vunpack.c.l.b16 %v299
        %v375 = vunpack.c.l.b16 %v300
        %v376 = vunpack.c.h.b16 %v300
        %v377 = vunpack.c.l.b16 %v301
        %v378 = vunpack.c.h.b16 %v301
        %v379 = vunpack.c.l.b16 %v302
        %v380 = vunpack.c.h.b16 %v302
        %v381 = vunpack.c.l.b16 %v303
        %v382 = vunpack.c.l.b16 %v304
        %v383 = vunpack.c.h.b16 %v304
        %v384 = vunpack.c.l.b16 %v305
        %v385 = vunpack.c.h.b16 %v305
        %v386 = vunpack.c.l.b16 %v306
        %v387 = vunpack.c.h.b16 %v306
        %v388 = vunpack.c.l.b16 %v307
        %v389 = vunpack.c.l.b16 %v308
        %v390 = vunpack.c.h.b16 %v308
        %v391 = vunpack.c.l.b16 %v309
        %v392 = vunpack.c.h.b16 %v309
        %v393 = vunpack.c.l.b16 %v310
        %v394 = vunpack.c.h.b16 %v310
        %v395 = vunpack.c.l.b16 %v311
        %v396 = vunpack.c.l.b16 %v312
        %v397 = vunpack.c.h.b16 %v312
        %v398 = vunpack.c.l.b16 %v313
        %v399 = vunpack.c.h.b16 %v313
        %v400 = vunpack.c.l.b16 %v314
        %v401 = vunpack.c.h.b16 %v314
        %v402 = vunpack.c.l.b16 %v315
        %v403 = vunpack.c.l.b16 %v316
        %v404 = vunpack.c.h.b16 %v316
        %v405 = vunpack.c.l.b16 %v317
        %v406 = vunpack.c.h.b16 %v317
        %v407 = vunpack.c.l.b16 %v318
        %v408 = vunpack.c.h.b16 %v318
        %v409 = vunpack.c.l.b16 %v319
        %v410 = vunpack.c.l.b16 %v320
        %v411 = vunpack.c.h.b16 %v320
        %v412 = vunpack.c.l.b16 %v321
        %v413 = vunpack.c.h.b16 %v321
        %v414 = vunpack.c.l.b16 %v322
        %v415 = vunpack.c.h.b16 %v322
        %v416 = vunpack.c.l.b16 %v323
        %v417 = vpack.c.b16 %v368, %v361
        %v418 = vpack.c.b16 %v369, %v362
        %v419 = vpack.c.b16 %v370, %v363
        %v420 = vpack.c.b16 %v371, %v364
        %v421 = vpack.c.b16 %v372, %v365
        %v422 = vpack.c.b16 %v373, %v366
        %v423 = vpack.c.b16 %v374, %v367
        %v424 = vpack.c.b16 %v382, %v375
        %v425 = vpack.c.b16 %v383, %v376
        %v426 = vpack.c.b16 %v384, %v377
        %v427 = vpack.c.b16 %v385, %v378
        %v428 = vpack.c.b16 %v386, %v379
        %v429 = vpack.c.b16 %v387, %v380
        %v430 = vpack.c.b16 %v388, %v381
        %v431 = vpack.c.b16 %v396, %v389
        %v432 = vpack.c.b16 %v397, %v390
        %v433 = vpack.c.b16 %v398, %v391
        %v434 = vpack.c.b16 %v399, %v392
        %v435 = vpack.c.b16 %v400, %v393
        %v436 = vpack.c.b16 %v401, %v394
        %v437 = vpack.c.b16 %v402, %v395
        %v438 = vpack.c.b16 %v410, %v403
        %v439 = vpack.c.b16 %v411, %v404
        %v440 = vpack.c.b16 %v412, %v405
        %v441 = vpack.c.b16 %v413, %v406
        %v442 = vpack.c.b16 %v414, %v407
        %v443 = vpack.c.b16 %v415, %v408
        %v444 = vpack.c.b16 %v416, %v409
        %vm473 = vcmask 523264
        %v475 = vsel %vm473, %v328, 0
        %477 = vmatprep.subr.bf16.mxu0 %v418
        %478 = vmatpush1.bf16.msra.mxu0 %v417
        %479 = vmatprep.subr.bf16.mxu0 %v425
        %480 = vmatpush1.bf16.msra.mxu0 %v424
        %481 = vmatprep.subr.bf16.mxu0 %v432
        %482 = vmatpush1.bf16.msra.mxu0 %v431
        %483 = vmatprep.subr.bf16.mxu0 %v439
        %484 = vmatpush1.bf16.msra.mxu0 %v438
        %485 = vmatprep.subr.bf16.mxu0 0
        %486 = vmatpush1.bf16.msra.mxu0 0
        %487 = vmatprep.subr.bf16.mxu0 0
        %488 = vmatpush1.bf16.msra.mxu0 0
        %489 = vmatprep.subr.bf16.mxu0 0
        %490 = vmatpush1.bf16.msra.mxu0 0
        %491 = vmatprep.subr.bf16.mxu0 0
        %492 = vmatpush1.bf16.msra.mxu0 0
        %493 = vmatprep.subr.bf16.mxu0 0
        %494 = vmatpush1.bf16.msra.mxu0 0
        %495 = vmatprep.subr.bf16.mxu0 0
        %496 = vmatpush1.bf16.msra.mxu0 0
        %497 = vmatprep.subr.bf16.mxu0 0
        %498 = vmatpush1.bf16.msra.mxu0 0
        %499 = vmatprep.subr.bf16.mxu0 0
        %500 = vmatpush1.bf16.msra.mxu0 0
        %501 = vmatprep.subr.bf16.mxu0 0
        %502 = vmatpush1.bf16.msra.mxu0 0
        %503 = vmatprep.subr.bf16.mxu0 0
        %504 = vmatpush1.bf16.msra.mxu0 0
        %505 = vmatprep.subr.bf16.mxu0 0
        %506 = vmatpush1.bf16.msra.mxu0 0
        %507 = vmatprep.subr.bf16.mxu0 0
        %508 = vmatpush1.bf16.msra.mxu0 0
        %509 = vmatprep.mubr.bf16.mxu0 0
        %510 = vmatmul.mubr.bf16.gmra.mrb[0].mxu0 %v475
        %v511 = vpop.f32.mrb[0].mxu0
        %v512 = vadd.f32 0.0, %v511
        %v513 = vpop.f32.mrb[0].mxu0
        %v514 = vadd.f32 0.0, %v513
        %v515 = vpop.f32.mrb[0].mxu0
        %v516 = vadd.f32 0.0, %v515
        %v517 = vpop.f32.mrb[0].mxu0
        %v518 = vadd.f32 0.0, %v517
        %519 = vdwg.mxu0
        %520 = vmatprep.subr.bf16.mxu0 %v420
        %521 = vmatpush1.bf16.msra.mxu0 %v419
        %522 = vmatprep.subr.bf16.mxu0 %v427
        %523 = vmatpush1.bf16.msra.mxu0 %v426
        %524 = vmatprep.subr.bf16.mxu0 %v434
        %525 = vmatpush1.bf16.msra.mxu0 %v433
        %526 = vmatprep.subr.bf16.mxu0 %v441
        %527 = vmatpush1.bf16.msra.mxu0 %v440
        %528 = vmatprep.subr.bf16.mxu0 0
        %529 = vmatpush1.bf16.msra.mxu0 0
        %530 = vmatprep.subr.bf16.mxu0 0
        %531 = vmatpush1.bf16.msra.mxu0 0
        %532 = vmatprep.subr.bf16.mxu0 0
        %533 = vmatpush1.bf16.msra.mxu0 0
        %534 = vmatprep.subr.bf16.mxu0 0
        %535 = vmatpush1.bf16.msra.mxu0 0
        %536 = vmatprep.subr.bf16.mxu0 0
        %537 = vmatpush1.bf16.msra.mxu0 0
        %538 = vmatprep.subr.bf16.mxu0 0
        %539 = vmatpush1.bf16.msra.mxu0 0
        %540 = vmatprep.subr.bf16.mxu0 0
        %541 = vmatpush1.bf16.msra.mxu0 0
        %542 = vmatprep.subr.bf16.mxu0 0
        %543 = vmatpush1.bf16.msra.mxu0 0
        %544 = vmatprep.subr.bf16.mxu0 0
        %545 = vmatpush1.bf16.msra.mxu0 0
        %546 = vmatprep.subr.bf16.mxu0 0
        %547 = vmatpush1.bf16.msra.mxu0 0
        %548 = vmatprep.subr.bf16.mxu0 0
        %549 = vmatpush1.bf16.msra.mxu0 0
        %550 = vmatprep.subr.bf16.mxu0 0
        %551 = vmatpush1.bf16.msra.mxu0 0
        %552 = vmatprep.mubr.bf16.mxu0 0
        %553 = vmatmul.mubr.bf16.gmra.mrb[0].mxu0 %v475
        %v554 = vpop.f32.mrb[0].mxu0
        %v555 = vadd.f32 0.0, %v554
        %v556 = vpop.f32.mrb[0].mxu0
        %v557 = vadd.f32 0.0, %v556
        %v558 = vpop.f32.mrb[0].mxu0
        %v559 = vadd.f32 0.0, %v558
        %v560 = vpop.f32.mrb[0].mxu0
        %v561 = vadd.f32 0.0, %v560
        %562 = vdwg.mxu0
        %563 = vmatprep.subr.bf16.mxu0 %v422
        %564 = vmatpush1.bf16.msra.mxu0 %v421
        %565 = vmatprep.subr.bf16.mxu0 %v429
        %566 = vmatpush1.bf16.msra.mxu0 %v428
        %567 = vmatprep.subr.bf16.mxu0 %v436
        %568 = vmatpush1.bf16.msra.mxu0 %v435
        %569 = vmatprep.subr.bf16.mxu0 %v443
        %570 = vmatpush1.bf16.msra.mxu0 %v442
        %571 = vmatprep.subr.bf16.mxu0 0
        %572 = vmatpush1.bf16.msra.mxu0 0
        %573 = vmatprep.subr.bf16.mxu0 0
        %574 = vmatpush1.bf16.msra.mxu0 0
        %575 = vmatprep.subr.bf16.mxu0 0
        %576 = vmatpush1.bf16.msra.mxu0 0
        %577 = vmatprep.subr.bf16.mxu0 0
        %578 = vmatpush1.bf16.msra.mxu0 0
        %579 = vmatprep.subr.bf16.mxu0 0
        %580 = vmatpush1.bf16.msra.mxu0 0
        %581 = vmatprep.subr.bf16.mxu0 0
        %582 = vmatpush1.bf16.msra.mxu0 0
        %583 = vmatprep.subr.bf16.mxu0 0
        %584 = vmatpush1.bf16.msra.mxu0 0
        %585 = vmatprep.subr.bf16.mxu0 0
        %586 = vmatpush1.bf16.msra.mxu0 0
        %587 = vmatprep.subr.bf16.mxu0 0
        %588 = vmatpush1.bf16.msra.mxu0 0
        %589 = vmatprep.subr.bf16.mxu0 0
        %590 = vmatpush1.bf16.msra.mxu0 0
        %591 = vmatprep.subr.bf16.mxu0 0
        %592 = vmatpush1.bf16.msra.mxu0 0
        %593 = vmatprep.subr.bf16.mxu0 0
        %594 = vmatpush1.bf16.msra.mxu0 0
        %595 = vmatprep.mubr.bf16.mxu0 0
        %596 = vmatmul.mubr.bf16.gmra.mrb[0].mxu0 %v475
        %v597 = vpop.f32.mrb[0].mxu0
        %v598 = vadd.f32 0.0, %v597
        %v599 = vpop.f32.mrb[0].mxu0
        %v600 = vadd.f32 0.0, %v599
        %v601 = vpop.f32.mrb[0].mxu0
        %v602 = vadd.f32 0.0, %v601
        %v603 = vpop.f32.mrb[0].mxu0
        %v604 = vadd.f32 0.0, %v603
        %605 = vdwg.mxu0
        %606 = vmatprep.subr.bf16.mxu0 0
        %607 = vmatpush1.bf16.msra.mxu0 %v423
        %608 = vmatprep.subr.bf16.mxu0 0
        %609 = vmatpush1.bf16.msra.mxu0 %v430
        %610 = vmatprep.subr.bf16.mxu0 0
        %611 = vmatpush1.bf16.msra.mxu0 %v437
        %612 = vmatprep.subr.bf16.mxu0 0
        %613 = vmatpush1.bf16.msra.mxu0 %v444
        %614 = vmatprep.subr.bf16.mxu0 0
        %615 = vmatpush1.bf16.msra.mxu0 0
        %616 = vmatprep.subr.bf16.mxu0 0
        %617 = vmatpush1.bf16.msra.mxu0 0
        %618 = vmatprep.subr.bf16.mxu0 0
        %619 = vmatpush1.bf16.msra.mxu0 0
        %620 = vmatprep.subr.bf16.mxu0 0
        %621 = vmatpush1.bf16.msra.mxu0 0
        %622 = vmatprep.subr.bf16.mxu0 0
        %623 = vmatpush1.bf16.msra.mxu0 0
        %624 = vmatprep.subr.bf16.mxu0 0
        %625 = vmatpush1.bf16.msra.mxu0 0
        %626 = vmatprep.subr.bf16.mxu0 0
        %627 = vmatpush1.bf16.msra.mxu0 0
        %628 = vmatprep.subr.bf16.mxu0 0
        %629 = vmatpush1.bf16.msra.mxu0 0
        %630 = vmatprep.subr.bf16.mxu0 0
        %631 = vmatpush1.bf16.msra.mxu0 0
        %632 = vmatprep.subr.bf16.mxu0 0
        %633 = vmatpush1.bf16.msra.mxu0 0
        %634 = vmatprep.subr.bf16.mxu0 0
        %635 = vmatpush1.bf16.msra.mxu0 0
        %636 = vmatprep.subr.bf16.mxu0 0
        %637 = vmatpush1.bf16.msra.mxu0 0
        %638 = vmatprep.mubr.bf16.mxu0 0
        %639 = vmatmul.mubr.bf16.gmra.mrb[0].mxu0 %v475
        %v640 = vpop.f32.mrb[0].mxu0
        %v641 = vadd.f32 0.0, %v640
        %v642 = vpop.f32.mrb[0].mxu0
        %v643 = vpop.f32.mrb[0].mxu0
        %v644 = vadd.f32 0.0, %v643
        %v645 = vpop.f32.mrb[0].mxu0
        %646 = vdwg.mxu0
        %v647 = vld [vmem:[%s242] sm:$0xff]
        %v649 = vlaneseq
        %v650 = vshrl.u32 %v649, 7
        %v651 = vsub.s32 0, %v650
        %v652 = vrot.slane %v647, %v651
        %v653 = vlaneseq
        %v654 = vshrl.u32 %v653, 7
        %v655 = vsub.s32 1, %v654
        %v656 = vrot.slane %v647, %v655
        %v657 = vlaneseq
        %v658 = vshrl.u32 %v657, 7
        %v659 = vsub.s32 2, %v658
        %v660 = vrot.slane %v647, %v659
        %v661 = vlaneseq
        %v662 = vshrl.u32 %v661, 7
        %v663 = vsub.s32 3, %v662
        %v664 = vrot.slane %v647, %v663
        %v665 = vlaneseq
        %v666 = vshrl.u32 %v665, 7
        %v667 = vsub.s32 4, %v666
        %v668 = vrot.slane %v647, %v667
        %v669 = vlaneseq
        %v670 = vshrl.u32 %v669, 7
        %v671 = vsub.s32 5, %v670
        %v672 = vrot.slane %v647, %v671
        %v673 = vlaneseq
        %v674 = vshrl.u32 %v673, 7
        %v675 = vsub.s32 6, %v674
        %v676 = vrot.slane %v647, %v675
        %v684 = vmul.f32 %v512, %v652
        %v685 = vmul.f32 %v514, %v656
        %v686 = vmul.f32 %v555, %v660
        %v687 = vmul.f32 %v557, %v664
        %v688 = vmul.f32 %v598, %v668
        %v689 = vmul.f32 %v600, %v672
        %v690 = vmul.f32 %v641, %v676
        %v691 = vmul.f32 %v516, %v652
        %v692 = vmul.f32 %v518, %v656
        %v693 = vmul.f32 %v559, %v660
        %v694 = vmul.f32 %v561, %v664
        %v695 = vmul.f32 %v602, %v668
        %v696 = vmul.f32 %v604, %v672
        %v697 = vmul.f32 %v644, %v676
        %v698 = vld [vmem:[%s251] sm:$0xff]
        %v700 = vlaneseq
        %v701 = vshrl.u32 %v700, 7
        %v702 = vsub.s32 0, %v701
        %v703 = vrot.slane %v698, %v702
        %v704 = vlaneseq
        %v705 = vshrl.u32 %v704, 7
        %v706 = vsub.s32 1, %v705
        %v707 = vrot.slane %v698, %v706
        %v708 = vlaneseq
        %v709 = vshrl.u32 %v708, 7
        %v710 = vsub.s32 2, %v709
        %v711 = vrot.slane %v698, %v710
        %v712 = vlaneseq
        %v713 = vshrl.u32 %v712, 7
        %v714 = vsub.s32 3, %v713
        %v715 = vrot.slane %v698, %v714
        %v716 = vlaneseq
        %v717 = vshrl.u32 %v716, 7
        %v718 = vsub.s32 4, %v717
        %v719 = vrot.slane %v698, %v718
        %v720 = vlaneseq
        %v721 = vshrl.u32 %v720, 7
        %v722 = vsub.s32 5, %v721
        %v723 = vrot.slane %v698, %v722
        %v724 = vlaneseq
        %v725 = vshrl.u32 %v724, 7
        %v726 = vsub.s32 6, %v725
        %v727 = vrot.slane %v698, %v726
        %v735 = vadd.f32 %v684, %v703
        %v736 = vadd.f32 %v685, %v707
        %v737 = vadd.f32 %v686, %v711
        %v738 = vadd.f32 %v687, %v715
        %v739 = vadd.f32 %v688, %v719
        %v740 = vadd.f32 %v689, %v723
        %v741 = vadd.f32 %v690, %v727
        %v742 = vadd.f32 %v691, %v703
        %v743 = vadd.f32 %v692, %v707
        %v744 = vadd.f32 %v693, %v711
        %v745 = vadd.f32 %v694, %v715
        %v746 = vadd.f32 %v695, %v719
        %v747 = vadd.f32 %v696, %v723
        %v748 = vadd.f32 %v697, %v727
        %v749 = vmax.f32 %v735, 0.0
        %v750 = vmax.f32 %v736, 0.0
        %v751 = vmax.f32 %v737, 0.0
        %v752 = vmax.f32 %v738, 0.0
        %v753 = vmax.f32 %v739, 0.0
        %v754 = vmax.f32 %v740, 0.0
        %v755 = vmax.f32 %v741, 0.0
        %v756 = vmax.f32 %v742, 0.0
        %v757 = vmax.f32 %v743, 0.0
        %v758 = vmax.f32 %v744, 0.0
        %v759 = vmax.f32 %v745, 0.0
        %v760 = vmax.f32 %v746, 0.0
        %v761 = vmax.f32 %v747, 0.0
        %v762 = vmax.f32 %v748, 0.0
        %763 = vst [vmem:[%s284] sm:$0xff] %v749
        %764 = vst [vmem:[%s284 + $0x8] sm:$0xff] %v750
        %765 = vst [vmem:[%s284 + $0x10] sm:$0xff] %v751
        %766 = vst [vmem:[%s284 + $0x18] sm:$0xff] %v752
        %767 = vst [vmem:[%s284 + $0x20] sm:$0xff] %v753
        %768 = vst [vmem:[%s284 + $0x28] sm:$0xff] %v754
        %769 = vst [vmem:[%s284 + $0x30] sm:$0xff] %v755
        %770 = vst [vmem:[%s284 + $0x38] sm:$0xff] %v756
        %771 = vst [vmem:[%s284 + $0x40] sm:$0xff] %v757
        %772 = vst [vmem:[%s284 + $0x48] sm:$0xff] %v758
        %773 = vst [vmem:[%s284 + $0x50] sm:$0xff] %v759
        %774 = vst [vmem:[%s284 + $0x58] sm:$0xff] %v760
        %775 = vst [vmem:[%s284 + $0x60] sm:$0xff] %v761
        %776 = vst [vmem:[%s284 + $0x68] sm:$0xff] %v762
        %s777 = sand.u32 %s128, 1
        %s778 = sand.u32 %s128, 1
        %s779 = smul.addr %s778, 112
        %s780 = scalar_lea.vmem [#allocation7], %s779
        // Predicated region
        $region49: #{clustergan_dec_forward.3} parent=35 // pred_check
          %p781 = pneg %p138
        $region50: #{clustergan_dec_forward.3} parent=35 // pred_check_branch
          %783 = sbr.rel (%p781) target = $region52
        $region51: #{clustergan_dec_forward.3} parent=35 // pred_region
          %s784 = smul.u32 7, %s21
          %s785 = smul.addr %s784, 8
          %s786 = scalar_lea.vmem %s4, %s785
          // Predicated region
          $region53: #{clustergan_dec_forward.3} parent=51 // pred_check
            _
          $region54: #{clustergan_dec_forward.3} parent=51 // pred_check_branch
            %788 = sbr.rel (0) target = $region56
          $region55: #{clustergan_dec_forward.3} parent=51 // pred_region
            // Predicated region
            $region57: #{clustergan_dec_forward.3} parent=55 // pred_check
              _
            $region58: #{clustergan_dec_forward.3} parent=55 // pred_check_branch
              %790 = sbr.rel (0) target = $region60
            $region59: #{clustergan_dec_forward.3} parent=55 // pred_region
              loop: start=0, step=1, limit=1
              $region61: #{clustergan_dec_forward.3} parent=59 // loop_pre_header
                _
              $region62: #{clustergan_dec_forward.3} parent=59 // loop_header
                %s792 = sphi 0, %s796
                %p793 = scmp.ge.s32.totalorder %s792, 1
                %s797 = sphi %s780, %s780
                %s798 = sphi %s786, %s786
              $region63: #{clustergan_dec_forward.3} parent=59 // loop_header_branch
                %795 = sbr.rel (%p793) target = $region67
              $region64: #{clustergan_dec_forward.3} parent=59 // loop_body
                %v799 = vld [vmem:[%s797] sm:$0xff]
                %800 = vst [vmem:[%s798] sm:$0xff] %v799
                %v801 = vld [vmem:[%s797 + $0x8] sm:$0xff]
                %802 = vst [vmem:[%s798 + $0x8] sm:$0xff] %v801
                %v803 = vld [vmem:[%s797 + $0x10] sm:$0xff]
                %804 = vst [vmem:[%s798 + $0x10] sm:$0xff] %v803
                %v805 = vld [vmem:[%s797 + $0x18] sm:$0xff]
                %806 = vst [vmem:[%s798 + $0x18] sm:$0xff] %v805
                %v807 = vld [vmem:[%s797 + $0x20] sm:$0xff]
                %808 = vst [vmem:[%s798 + $0x20] sm:$0xff] %v807
                %v809 = vld [vmem:[%s797 + $0x28] sm:$0xff]
                %810 = vst [vmem:[%s798 + $0x28] sm:$0xff] %v809
                %v811 = vld [vmem:[%s797 + $0x30] sm:$0xff]
                %812 = vst [vmem:[%s798 + $0x30] sm:$0xff] %v811
                %v813 = vld [vmem:[%s797 + $0x38] sm:$0xff]
                %814 = vst [vmem:[%s798 + $0x188] sm:$0xff] %v813
                %v815 = vld [vmem:[%s797 + $0x40] sm:$0xff]
                %816 = vst [vmem:[%s798 + $0x190] sm:$0xff] %v815
                %v817 = vld [vmem:[%s797 + $0x48] sm:$0xff]
                %818 = vst [vmem:[%s798 + $0x198] sm:$0xff] %v817
                %v819 = vld [vmem:[%s797 + $0x50] sm:$0xff]
                %820 = vst [vmem:[%s798 + $0x1a0] sm:$0xff] %v819
                %v821 = vld [vmem:[%s797 + $0x58] sm:$0xff]
                %822 = vst [vmem:[%s798 + $0x1a8] sm:$0xff] %v821
                %v823 = vld [vmem:[%s797 + $0x60] sm:$0xff]
                %824 = vst [vmem:[%s798 + $0x1b0] sm:$0xff] %v823
                %v825 = vld [vmem:[%s797 + $0x68] sm:$0xff]
                %826 = vst [vmem:[%s798 + $0x1b8] sm:$0xff] %v825
              $region65: #{clustergan_dec_forward.3} parent=59 // loop_footer
                %s796 = sadd.s32 1, %s792
              $region66: #{clustergan_dec_forward.3} parent=59 // loop_footer_branch
                %791 = sbr.rel target = $region62
              $region67: #{clustergan_dec_forward.3} parent=59 // loop_exit
                _
            $region60: #{clustergan_dec_forward.3} parent=55 // pred_fallthru
              _
            // Predicated region
            $region68: #{clustergan_dec_forward.3} parent=55 // pred_check
              _
            $region69: #{clustergan_dec_forward.3} parent=55 // pred_check_branch
              %828 = sbr.rel target = $region71
            $region70: #{clustergan_dec_forward.3} parent=55 // pred_region
              _
            $region71: #{clustergan_dec_forward.3} parent=55 // pred_fallthru
              _
          $region56: #{clustergan_dec_forward.3} parent=51 // pred_fallthru
            _
          %829 = vnop
        $region52: #{clustergan_dec_forward.3} parent=35 // pred_fallthru
          _
      $region36: #{clustergan_dec_forward.3} parent=5 // pred_fallthru
        _
      %p830 = scmp.le.s32.totalorder 2, %s16
      // Predicated region
      $region72: #{clustergan_dec_forward.3} parent=5 // pred_check
        %p831 = pneg %p830
      $region73: #{clustergan_dec_forward.3} parent=5 // pred_check_branch
        %833 = sbr.rel (%p831) target = $region75
      $region74: #{clustergan_dec_forward.3} parent=5 // pred_region
        %s834 = ssub.s32 %s16, 2
        // Predicated region
        $region76: #{clustergan_dec_forward.3} parent=74 // pred_check
          %p835 = pneg %p144
        $region77: #{clustergan_dec_forward.3} parent=74 // pred_check_branch
          %837 = sbr.rel (%p835) target = $region79
        $region78: #{clustergan_dec_forward.3} parent=74 // pred_region
          %s838 = sand.u32 %s129, 1
          %s839 = sand.u32 %s129, 1
          %s840 = smul.addr %s839, 112
          %s841 = scalar_lea.vmem [#allocation7], %s840
        $region79: #{clustergan_dec_forward.3} parent=74 // pred_fallthru
          _
      $region75: #{clustergan_dec_forward.3} parent=5 // pred_fallthru
        _
    $region6: #{clustergan_dec_forward.3} parent=1 // loop_footer
      %s20 = sadd.s32 1, %s16
    $region7: #{clustergan_dec_forward.3} parent=1 // loop_footer_branch
      %15 = sbr.rel target = $region3
    $region8: #{clustergan_dec_forward.3} parent=1 // loop_exit
      _
    %842 = vsyncpa [#allocation3], 1
    %s843 = scalar_lea.sflag [#allocation3], 1
    %844 = vsyncpa %s843, 1
    %845 = vsyncpa [#allocation5], 1
    %s846 = scalar_lea.sflag [#allocation5], 1
    %847 = vsyncpa %s846, 1

// kernel: clustergan_dec_forward.4
$region0: #{clustergan_dec_forward.4}
  #allocation0 [shape = 'u32[]', space=smem, size = 0x4, offset = 0x4, fixed_abs, tag = 'smem constant byte address 0x4 - core index']
  #allocation1 [shape = 'u32[144,128]{1,0:T(1,128)}', space=vmem, size = 0x12000, scoped, tag = 'internal scratch']
  %s0 = inlined_call_operand.vmem [shape: f32[208,128], index: 0, kind: input, shape index: {}]
  %s1 = inlined_call_operand.vmem [shape: bf16[1152,256], index: 1, kind: input, shape index: {}]
  %s2 = inlined_call_operand.vmem [shape: f32[1,256], index: 2, kind: input, shape index: {}]
  %s3 = inlined_call_operand.vmem [shape: f32[1,256], index: 3, kind: input, shape index: {}]
  %s4 = inlined_call_operand.vmem [shape: f32[176,256], index: 4, kind: output, shape index: {}]
  %s5 = sld [smem:[#allocation0]]
  $region124: #{clustergan_dec_forward.4} parent=0
    _
  %s7 = ssub.s32 1, %s5
  %s8 = scalar_select 0, %s7, %s5
  $region1: #{clustergan_dec_forward.4} parent=0
    #allocation2 [shape = 'u8[589824]{0}', space=vmem, size = 0x90000, scoped, tag = 'input window, operand 1']
    #allocation3 [shape = 'u8[180224]{0}', space=vmem, size = 0x2c000, scoped, tag = 'output window, operand 0']
    loop: start=0, step=1, limit=4
    $region2: #{clustergan_dec_forward.4} parent=1 // loop_pre_header
      _
    $region3: #{clustergan_dec_forward.4} parent=1 // loop_header
      %s10 = sphi 0, %s14
      %p11 = scmp.ge.s32.totalorder %s10, 4
      %s18 = sphi 0, %s18
      %s20 = sphi 0, %s18
      %s21 = sphi 0, %s20
      %s35 = sphi 0, %s21
      %s41 = sphi 0, %s43
      %s44 = sphi 0, %s41
      %s45 = sphi 0, %s44
      %s61 = sphi 0, %s45
      %s67 = sphi 0, %s69
      %s70 = sphi 0, %s67
      %s71 = sphi 0, %s70
      %s87 = sphi 0, %s71
      %s93 = sphi 0, %s95
      %s96 = sphi 0, %s93
      %s97 = sphi 0, %s96
      %s113 = sphi 0, %s97
      %s119 = sphi 0, %s121
      %s122 = sphi 0, %s119
      %s123 = sphi 0, %s122
      %s139 = sphi 0, %s123
    $region4: #{clustergan_dec_forward.4} parent=1 // loop_header_branch
      %13 = sbr.rel (%p11) target = $region8
    $region5: #{clustergan_dec_forward.4} parent=1 // loop_body
      %s15 = ssub.s32 %s10, 1
      %s16 = ssub.s32 %s10, 2
      %s17 = sadd.s32 %s10, 1
      %s19 = sadd.s32 %s18, 1
      %p22 = scmp.eq.s32.totalorder %s10, 1
      %p23 = scmp.ne.s32.totalorder %s18, %s20
      %p24 = scmp.eq.s32.totalorder %s10, 0
      %p25 = por %p23, %p24
      %p26 = scmp.ne.s32.totalorder %s18, %s20
      %p27 = scmp.eq.s32.totalorder %s15, 1
      %p28 = por %p26, %p27
      %p29 = scmp.ne.s32.totalorder %s20, %s21
      %p30 = scmp.eq.s32.totalorder %s15, 0
      %p31 = por %p29, %p30
      %p32 = scmp.ne.s32.totalorder %s20, %s21
      %p33 = scmp.eq.s32.totalorder %s16, 1
      %p34 = por %p32, %p33
      %p36 = scmp.ne.s32.totalorder %s21, %s35
      %p37 = scmp.eq.s32.totalorder %s16, 0
      %p38 = por %p36, %p37
      %s39 = ssub.s32 %s10, %s17
      %p40 = scmp.eq.s32.totalorder %s39, 0
      %s42 = sadd.s32 %s41, 1
      %s43 = scalar_select %p40, %s41, %s42
      %p46 = pneg %p40
      %p47 = scmp.eq.s32.totalorder %s10, 1
      %p48 = por %p46, %p47
      %p49 = scmp.ne.s32.totalorder %s41, %s44
      %p50 = scmp.eq.s32.totalorder %s10, 0
      %p51 = por %p49, %p50
      %p52 = scmp.ne.s32.totalorder %s41, %s44
      %p53 = scmp.eq.s32.totalorder %s15, 1
      %p54 = por %p52, %p53
      %p55 = scmp.ne.s32.totalorder %s44, %s45
      %p56 = scmp.eq.s32.totalorder %s15, 0
      %p57 = por %p55, %p56
      %p58 = scmp.ne.s32.totalorder %s44, %s45
      %p59 = scmp.eq.s32.totalorder %s16, 1
      %p60 = por %p58, %p59
      %p62 = scmp.ne.s32.totalorder %s45, %s61
      %p63 = scmp.eq.s32.totalorder %s16, 0
      %p64 = por %p62, %p63
      %s65 = ssub.s32 %s10, %s17
      %p66 = scmp.eq.s32.totalorder %s65, 0
      %s68 = sadd.s32 %s67, 1
      %s69 = scalar_select %p66, %s67, %s68
      %p72 = pneg %p66
      %p73 = scmp.eq.s32.totalorder %s10, 1
      %p74 = por %p72, %p73
      %p75 = scmp.ne.s32.totalorder %s67, %s70
      %p76 = scmp.eq.s32.totalorder %s10, 0
      %p77 = por %p75, %p76
      %p78 = scmp.ne.s32.totalorder %s67, %s70
      %p79 = scmp.eq.s32.totalorder %s15, 1
      %p80 = por %p78, %p79
      %p81 = scmp.ne.s32.totalorder %s70, %s71
      %p82 = scmp.eq.s32.totalorder %s15, 0
      %p83 = por %p81, %p82
      %p84 = scmp.ne.s32.totalorder %s70, %s71
      %p85 = scmp.eq.s32.totalorder %s16, 1
      %p86 = por %p84, %p85
      %p88 = scmp.ne.s32.totalorder %s71, %s87
      %p89 = scmp.eq.s32.totalorder %s16, 0
      %p90 = por %p88, %p89
      %s91 = ssub.s32 %s10, %s17
      %p92 = scmp.eq.s32.totalorder %s91, 0
      %s94 = sadd.s32 %s93, 1
      %s95 = scalar_select %p92, %s93, %s94
      %p98 = pneg %p92
      %p99 = scmp.eq.s32.totalorder %s10, 1
      %p100 = por %p98, %p99
      %p101 = scmp.ne.s32.totalorder %s93, %s96
      %p102 = scmp.eq.s32.totalorder %s10, 0
      %p103 = por %p101, %p102
      %p104 = scmp.ne.s32.totalorder %s93, %s96
      %p105 = scmp.eq.s32.totalorder %s15, 1
      %p106 = por %p104, %p105
      %p107 = scmp.ne.s32.totalorder %s96, %s97
      %p108 = scmp.eq.s32.totalorder %s15, 0
      %p109 = por %p107, %p108
      %p110 = scmp.ne.s32.totalorder %s96, %s97
      %p111 = scmp.eq.s32.totalorder %s16, 1
      %p112 = por %p110, %p111
      %p114 = scmp.ne.s32.totalorder %s97, %s113
      %p115 = scmp.eq.s32.totalorder %s16, 0
      %p116 = por %p114, %p115
      %s117 = ssub.s32 %s10, %s17
      %p118 = scmp.eq.s32.totalorder %s117, 0
      %s120 = sadd.s32 %s119, 1
      %s121 = scalar_select %p118, %s119, %s120
      %p124 = pneg %p118
      %p125 = scmp.eq.s32.totalorder %s10, 1
      %p126 = por %p124, %p125
      %p127 = scmp.ne.s32.totalorder %s119, %s122
      %p128 = scmp.eq.s32.totalorder %s10, 0
      %p129 = por %p127, %p128
      %p130 = scmp.ne.s32.totalorder %s119, %s122
      %p131 = scmp.eq.s32.totalorder %s15, 1
      %p132 = por %p130, %p131
      %p133 = scmp.ne.s32.totalorder %s122, %s123
      %p134 = scmp.eq.s32.totalorder %s15, 0
      %p135 = por %p133, %p134
      %p136 = scmp.ne.s32.totalorder %s122, %s123
      %p137 = scmp.eq.s32.totalorder %s16, 1
      %p138 = por %p136, %p137
      %p140 = scmp.ne.s32.totalorder %s123, %s139
      %p141 = scmp.eq.s32.totalorder %s16, 0
      %p142 = por %p140, %p141
      %p143 = scmp.le.s32.totalorder 1, %s10
      %p144 = scmp.lt.s32.totalorder %s10, 3
      %p145 = pnand %p143, %p144
      %p146 = pneg %p145
      // Predicated region
      $region9: #{clustergan_dec_forward.4} parent=5 // pred_check
        _
      $region10: #{clustergan_dec_forward.4} parent=5 // pred_check_branch
        %148 = sbr.rel (%p145) target = $region12
      $region11: #{clustergan_dec_forward.4} parent=5 // pred_region
        %s149 = ssub.s32 %s10, 1
        // Predicated region
        $region13: #{clustergan_dec_forward.4} parent=11 // pred_check
          %p150 = pneg %p31
        $region14: #{clustergan_dec_forward.4} parent=11 // pred_check_branch
          %152 = sbr.rel (%p150) target = $region16
        $region15: #{clustergan_dec_forward.4} parent=11 // pred_region
          _
        $region16: #{clustergan_dec_forward.4} parent=11 // pred_fallthru
          _
      $region12: #{clustergan_dec_forward.4} parent=5 // pred_fallthru
        _
      %p153 = scmp.lt.s32.totalorder %s10, 2
      // Predicated region
      $region17: #{clustergan_dec_forward.4} parent=5 // pred_check
        %p154 = pneg %p153
      $region18: #{clustergan_dec_forward.4} parent=5 // pred_check_branch
        %156 = sbr.rel (%p154) target = $region20
      $region19: #{clustergan_dec_forward.4} parent=5 // pred_region
        // Predicated region
        $region21: #{clustergan_dec_forward.4} parent=19 // pred_check
          %p157 = pneg %p51
        $region22: #{clustergan_dec_forward.4} parent=19 // pred_check_branch
          %159 = sbr.rel (%p157) target = $region24
        $region23: #{clustergan_dec_forward.4} parent=19 // pred_region
          %s160 = sand.u32 %s41, 1
          %s161 = sand.u32 %s41, 1
          %s162 = smul.addr %s161, 576
          %s163 = scalar_lea.vmem [#allocation2], %s162
          %s164 = smul.addr %s10, 4
          %s165 = scalar_lea.vmem %s1, %s164
          // Predicated region
          $region25: #{clustergan_dec_forward.4} parent=23 // pred_check
            _
          $region26: #{clustergan_dec_forward.4} parent=23 // pred_check_branch
            %167 = sbr.rel (0) target = $region28
          $region27: #{clustergan_dec_forward.4} parent=23 // pred_region
            // Predicated region
            $region29: #{clustergan_dec_forward.4} parent=27 // pred_check
              _
            $region30: #{clustergan_dec_forward.4} parent=27 // pred_check_branch
              %169 = sbr.rel target = $region32
            $region31: #{clustergan_dec_forward.4} parent=27 // pred_region
              // Predicated region
              $region44: #{clustergan_dec_forward.4} parent=31 // pred_check
                _
              $region45: #{clustergan_dec_forward.4} parent=31 // pred_check_branch
                %470 = sbr.rel (0) target = $region47
              $region46: #{clustergan_dec_forward.4} parent=31 // pred_region
                loop: start=0, step=1, limit=1
                $region48: #{clustergan_dec_forward.4} parent=46 // loop_pre_header
                  _
                $region49: #{clustergan_dec_forward.4} parent=46 // loop_header
                  %s472 = sphi 0, %s476
                  %p473 = scmp.ge.s32.totalorder %s472, 1
                  %s477 = sphi %s165, %s165
                  %s478 = sphi %s163, %s163
                $region50: #{clustergan_dec_forward.4} parent=46 // loop_header_branch
                  %475 = sbr.rel (%p473) target = $region54
                $region51: #{clustergan_dec_forward.4} parent=46 // loop_body
                  _
                $region52: #{clustergan_dec_forward.4} parent=46 // loop_footer
                  %s476 = sadd.s32 1, %s472
                $region53: #{clustergan_dec_forward.4} parent=46 // loop_footer_branch
                  %471 = sbr.rel target = $region49
                $region54: #{clustergan_dec_forward.4} parent=46 // loop_exit
                  _
                loop: start=0, step=1, limit=1
                $region55: #{clustergan_dec_forward.4} parent=46 // loop_pre_header
                  _
                $region56: #{clustergan_dec_forward.4} parent=46 // loop_header
                  %s481 = sphi 0, %s485
                  %p482 = scmp.ge.s32.totalorder %s481, 1
                  %s486 = sphi %s165, %s165
                  %s487 = sphi %s163, %s163
                $region57: #{clustergan_dec_forward.4} parent=46 // loop_header_branch
                  %484 = sbr.rel (%p482) target = $region61
                $region58: #{clustergan_dec_forward.4} parent=46 // loop_body
                  %v488 = vld [vmem:[%s486] sm:$0xf]
                  %489 = vst [vmem:[%s487] sm:$0xf] %v488
                  %v490 = vld [vmem:[%s486 + $0x8] sm:$0xf]
                  %491 = vst [vmem:[%s487 + $0x4] sm:$0xf] %v490
                  %v492 = vld [vmem:[%s486 + $0x10] sm:$0xf]
                  %493 = vst [vmem:[%s487 + $0x8] sm:$0xf] %v492
                  %v494 = vld [vmem:[%s486 + $0x18] sm:$0xf]
                  %495 = vst [vmem:[%s487 + $0xc] sm:$0xf] %v494
                  %v496 = vld [vmem:[%s486 + $0x20] sm:$0xf]
                  %497 = vst [vmem:[%s487 + $0x10] sm:$0xf] %v496
                  %v498 = vld [vmem:[%s486 + $0x28] sm:$0xf]
                  %499 = vst [vmem:[%s487 + $0x14] sm:$0xf] %v498
                  %v500 = vld [vmem:[%s486 + $0x30] sm:$0xf]
                  %501 = vst [vmem:[%s487 + $0x18] sm:$0xf] %v500
                  %v502 = vld [vmem:[%s486 + $0x38] sm:$0xf]
                  %503 = vst [vmem:[%s487 + $0x1c] sm:$0xf] %v502
                  %v504 = vld [vmem:[%s486 + $0x40] sm:$0xf]
                  %505 = vst [vmem:[%s487 + $0x20] sm:$0xf] %v504
                  %v506 = vld [vmem:[%s486 + $0x48] sm:$0xf]
                  %507 = vst [vmem:[%s487 + $0x24] sm:$0xf] %v506
                  %v508 = vld [vmem:[%s486 + $0x50] sm:$0xf]
                  %509 = vst [vmem:[%s487 + $0x28] sm:$0xf] %v508
                  %v510 = vld [vmem:[%s486 + $0x58] sm:$0xf]
                  %511 = vst [vmem:[%s487 + $0x2c] sm:$0xf] %v510
                  %v512 = vld [vmem:[%s486 + $0x60] sm:$0xf]
                  %513 = vst [vmem:[%s487 + $0x30] sm:$0xf] %v512
                  %v514 = vld [vmem:[%s486 + $0x68] sm:$0xf]
                  %515 = vst [vmem:[%s487 + $0x34] sm:$0xf] %v514
                  %v516 = vld [vmem:[%s486 + $0x70] sm:$0xf]
                  %517 = vst [vmem:[%s487 + $0x38] sm:$0xf] %v516
                  %v518 = vld [vmem:[%s486 + $0x78] sm:$0xf]
                  %519 = vst [vmem:[%s487 + $0x3c] sm:$0xf] %v518
                  %v520 = vld [vmem:[%s486 + $0x80] sm:$0xf]
                  %521 = vst [vmem:[%s487 + $0x40] sm:$0xf] %v520
                  %v522 = vld [vmem:[%s486 + $0x88] sm:$0xf]
                  %523 = vst [vmem:[%s487 + $0x44] sm:$0xf] %v522
                  %v524 = vld [vmem:[%s486 + $0x90] sm:$0xf]
                  %525 = vst [vmem:[%s487 + $0x48] sm:$0xf] %v524
                  %v526 = vld [vmem:[%s486 + $0x98] sm:$0xf]
                  %527 = vst [vmem:[%s487 + $0x4c] sm:$0xf] %v526
                  %v528 = vld [vmem:[%s486 + $0xa0] sm:$0xf]
                  %529 = vst [vmem:[%s487 + $0x50] sm:$0xf] %v528
                  %v530 = vld [vmem:[%s486 + $0xa8] sm:$0xf]
                  %531 = vst [vmem:[%s487 + $0x54] sm:$0xf] %v530
                  %v532 = vld [vmem:[%s486 + $0xb0] sm:$0xf]
                  %533 = vst [vmem:[%s487 + $0x58] sm:$0xf] %v532
                  %v534 = vld [vmem:[%s486 + $0xb8] sm:$0xf]
                  %535 = vst [vmem:[%s487 + $0x5c] sm:$0xf] %v534
                  %v536 = vld [vmem:[%s486 + $0xc0] sm:$0xf]
                  %537 = vst [vmem:[%s487 + $0x60] sm:$0xf] %v536
                  %v538 = vld [vmem:[%s486 + $0xc8] sm:$0xf]
                  %539 = vst [vmem:[%s487 + $0x64] sm:$0xf] %v538
                  %v540 = vld [vmem:[%s486 + $0xd0] sm:$0xf]
                  %541 = vst [vmem:[%s487 + $0x68] sm:$0xf] %v540
                  %v542 = vld [vmem:[%s486 + $0xd8] sm:$0xf]
                  %543 = vst [vmem:[%s487 + $0x6c] sm:$0xf] %v542
                  %v544 = vld [vmem:[%s486 + $0xe0] sm:$0xf]
                  %545 = vst [vmem:[%s487 + $0x70] sm:$0xf] %v544
                  %v546 = vld [vmem:[%s486 + $0xe8] sm:$0xf]
                  %547 = vst [vmem:[%s487 + $0x74] sm:$0xf] %v546
                  %v548 = vld [vmem:[%s486 + $0xf0] sm:$0xf]
                  %549 = vst [vmem:[%s487 + $0x78] sm:$0xf] %v548
                  %v550 = vld [vmem:[%s486 + $0xf8] sm:$0xf]
                  %551 = vst [vmem:[%s487 + $0x7c] sm:$0xf] %v550
                  %v552 = vld [vmem:[%s486 + $0x100] sm:$0xf]
                  %553 = vst [vmem:[%s487 + $0x80] sm:$0xf] %v552
                  %v554 = vld [vmem:[%s486 + $0x108] sm:$0xf]
                  %555 = vst [vmem:[%s487 + $0x84] sm:$0xf] %v554
                  %v556 = vld [vmem:[%s486 + $0x110] sm:$0xf]
                  %557 = vst [vmem:[%s487 + $0x88] sm:$0xf] %v556
                  %v558 = vld [vmem:[%s486 + $0x118] sm:$0xf]
                  %559 = vst [vmem:[%s487 + $0x8c] sm:$0xf] %v558
                  %v560 = vld [vmem:[%s486 + $0x120] sm:$0xf]
                  %561 = vst [vmem:[%s487 + $0x90] sm:$0xf] %v560
                  %v562 = vld [vmem:[%s486 + $0x128] sm:$0xf]
                  %563 = vst [vmem:[%s487 + $0x94] sm:$0xf] %v562
                  %v564 = vld [vmem:[%s486 + $0x130] sm:$0xf]
                  %565 = vst [vmem:[%s487 + $0x98] sm:$0xf] %v564
                  %v566 = vld [vmem:[%s486 + $0x138] sm:$0xf]
                  %567 = vst [vmem:[%s487 + $0x9c] sm:$0xf] %v566
                  %v568 = vld [vmem:[%s486 + $0x140] sm:$0xf]
                  %569 = vst [vmem:[%s487 + $0xa0] sm:$0xf] %v568
                  %v570 = vld [vmem:[%s486 + $0x148] sm:$0xf]
                  %571 = vst [vmem:[%s487 + $0xa4] sm:$0xf] %v570
                  %v572 = vld [vmem:[%s486 + $0x150] sm:$0xf]
                  %573 = vst [vmem:[%s487 + $0xa8] sm:$0xf] %v572
                  %v574 = vld [vmem:[%s486 + $0x158] sm:$0xf]
                  %575 = vst [vmem:[%s487 + $0xac] sm:$0xf] %v574
                  %v576 = vld [vmem:[%s486 + $0x160] sm:$0xf]
                  %577 = vst [vmem:[%s487 + $0xb0] sm:$0xf] %v576
                  %v578 = vld [vmem:[%s486 + $0x168] sm:$0xf]
                  %579 = vst [vmem:[%s487 + $0xb4] sm:$0xf] %v578
                  %v580 = vld [vmem:[%s486 + $0x170] sm:$0xf]
                  %581 = vst [vmem:[%s487 + $0xb8] sm:$0xf] %v580
                  %v582 = vld [vmem:[%s486 + $0x178] sm:$0xf]
                  %583 = vst [vmem:[%s487 + $0xbc] sm:$0xf] %v582
                  %v584 = vld [vmem:[%s486 + $0x180] sm:$0xf]
                  %585 = vst [vmem:[%s487 + $0xc0] sm:$0xf] %v584
                  %v586 = vld [vmem:[%s486 + $0x188] sm:$0xf]
                  %587 = vst [vmem:[%s487 + $0xc4] sm:$0xf] %v586
                  %v588 = vld [vmem:[%s486 + $0x190] sm:$0xf]
                  %589 = vst [vmem:[%s487 + $0xc8] sm:$0xf] %v588
                  %v590 = vld [vmem:[%s486 + $0x198] sm:$0xf]
                  %591 = vst [vmem:[%s487 + $0xcc] sm:$0xf] %v590
                  %v592 = vld [vmem:[%s486 + $0x1a0] sm:$0xf]
                  %593 = vst [vmem:[%s487 + $0xd0] sm:$0xf] %v592
                  %v594 = vld [vmem:[%s486 + $0x1a8] sm:$0xf]
                  %595 = vst [vmem:[%s487 + $0xd4] sm:$0xf] %v594
                  %v596 = vld [vmem:[%s486 + $0x1b0] sm:$0xf]
                  %597 = vst [vmem:[%s487 + $0xd8] sm:$0xf] %v596
                  %v598 = vld [vmem:[%s486 + $0x1b8] sm:$0xf]
                  %599 = vst [vmem:[%s487 + $0xdc] sm:$0xf] %v598
                  %v600 = vld [vmem:[%s486 + $0x1c0] sm:$0xf]
                  %601 = vst [vmem:[%s487 + $0xe0] sm:$0xf] %v600
                  %v602 = vld [vmem:[%s486 + $0x1c8] sm:$0xf]
                  %603 = vst [vmem:[%s487 + $0xe4] sm:$0xf] %v602
                  %v604 = vld [vmem:[%s486 + $0x1d0] sm:$0xf]
                  %605 = vst [vmem:[%s487 + $0xe8] sm:$0xf] %v604
                  %v606 = vld [vmem:[%s486 + $0x1d8] sm:$0xf]
                  %607 = vst [vmem:[%s487 + $0xec] sm:$0xf] %v606
                  %v608 = vld [vmem:[%s486 + $0x1e0] sm:$0xf]
                  %609 = vst [vmem:[%s487 + $0xf0] sm:$0xf] %v608
                  %v610 = vld [vmem:[%s486 + $0x1e8] sm:$0xf]
                  %611 = vst [vmem:[%s487 + $0xf4] sm:$0xf] %v610
                  %v612 = vld [vmem:[%s486 + $0x1f0] sm:$0xf]
                  %613 = vst [vmem:[%s487 + $0xf8] sm:$0xf] %v612
                  %v614 = vld [vmem:[%s486 + $0x1f8] sm:$0xf]
                  %615 = vst [vmem:[%s487 + $0xfc] sm:$0xf] %v614
                  %v616 = vld [vmem:[%s486 + $0x200] sm:$0xf]
                  %617 = vst [vmem:[%s487 + $0x100] sm:$0xf] %v616
                  %v618 = vld [vmem:[%s486 + $0x208] sm:$0xf]
                  %619 = vst [vmem:[%s487 + $0x104] sm:$0xf] %v618
                  %v620 = vld [vmem:[%s486 + $0x210] sm:$0xf]
                  %621 = vst [vmem:[%s487 + $0x108] sm:$0xf] %v620
                  %v622 = vld [vmem:[%s486 + $0x218] sm:$0xf]
                  %623 = vst [vmem:[%s487 + $0x10c] sm:$0xf] %v622
                  %v624 = vld [vmem:[%s486 + $0x220] sm:$0xf]
                  %625 = vst [vmem:[%s487 + $0x110] sm:$0xf] %v624
                  %v626 = vld [vmem:[%s486 + $0x228] sm:$0xf]
                  %627 = vst [vmem:[%s487 + $0x114] sm:$0xf] %v626
                  %v628 = vld [vmem:[%s486 + $0x230] sm:$0xf]
                  %629 = vst [vmem:[%s487 + $0x118] sm:$0xf] %v628
                  %v630 = vld [vmem:[%s486 + $0x238] sm:$0xf]
                  %631 = vst [vmem:[%s487 + $0x11c] sm:$0xf] %v630
                  %v632 = vld [vmem:[%s486 + $0x240] sm:$0xf]
                  %633 = vst [vmem:[%s487 + $0x120] sm:$0xf] %v632
                  %v634 = vld [vmem:[%s486 + $0x248] sm:$0xf]
                  %635 = vst [vmem:[%s487 + $0x124] sm:$0xf] %v634
                  %v636 = vld [vmem:[%s486 + $0x250] sm:$0xf]
                  %637 = vst [vmem:[%s487 + $0x128] sm:$0xf] %v636
                  %v638 = vld [vmem:[%s486 + $0x258] sm:$0xf]
                  %639 = vst [vmem:[%s487 + $0x12c] sm:$0xf] %v638
                  %v640 = vld [vmem:[%s486 + $0x260] sm:$0xf]
                  %641 = vst [vmem:[%s487 + $0x130] sm:$0xf] %v640
                  %v642 = vld [vmem:[%s486 + $0x268] sm:$0xf]
                  %643 = vst [vmem:[%s487 + $0x134] sm:$0xf] %v642
                  %v644 = vld [vmem:[%s486 + $0x270] sm:$0xf]
                  %645 = vst [vmem:[%s487 + $0x138] sm:$0xf] %v644
                  %v646 = vld [vmem:[%s486 + $0x278] sm:$0xf]
                  %647 = vst [vmem:[%s487 + $0x13c] sm:$0xf] %v646
                  %v648 = vld [vmem:[%s486 + $0x280] sm:$0xf]
                  %649 = vst [vmem:[%s487 + $0x140] sm:$0xf] %v648
                  %v650 = vld [vmem:[%s486 + $0x288] sm:$0xf]
                  %651 = vst [vmem:[%s487 + $0x144] sm:$0xf] %v650
                  %v652 = vld [vmem:[%s486 + $0x290] sm:$0xf]
                  %653 = vst [vmem:[%s487 + $0x148] sm:$0xf] %v652
                  %v654 = vld [vmem:[%s486 + $0x298] sm:$0xf]
                  %655 = vst [vmem:[%s487 + $0x14c] sm:$0xf] %v654
                  %v656 = vld [vmem:[%s486 + $0x2a0] sm:$0xf]
                  %657 = vst [vmem:[%s487 + $0x150] sm:$0xf] %v656
                  %v658 = vld [vmem:[%s486 + $0x2a8] sm:$0xf]
                  %659 = vst [vmem:[%s487 + $0x154] sm:$0xf] %v658
                  %v660 = vld [vmem:[%s486 + $0x2b0] sm:$0xf]
                  %661 = vst [vmem:[%s487 + $0x158] sm:$0xf] %v660
                  %v662 = vld [vmem:[%s486 + $0x2b8] sm:$0xf]
                  %663 = vst [vmem:[%s487 + $0x15c] sm:$0xf] %v662
                  %v664 = vld [vmem:[%s486 + $0x2c0] sm:$0xf]
                  %665 = vst [vmem:[%s487 + $0x160] sm:$0xf] %v664
                  %v666 = vld [vmem:[%s486 + $0x2c8] sm:$0xf]
                  %667 = vst [vmem:[%s487 + $0x164] sm:$0xf] %v666
                  %v668 = vld [vmem:[%s486 + $0x2d0] sm:$0xf]
                  %669 = vst [vmem:[%s487 + $0x168] sm:$0xf] %v668
                  %v670 = vld [vmem:[%s486 + $0x2d8] sm:$0xf]
                  %671 = vst [vmem:[%s487 + $0x16c] sm:$0xf] %v670
                  %v672 = vld [vmem:[%s486 + $0x2e0] sm:$0xf]
                  %673 = vst [vmem:[%s487 + $0x170] sm:$0xf] %v672
                  %v674 = vld [vmem:[%s486 + $0x2e8] sm:$0xf]
                  %675 = vst [vmem:[%s487 + $0x174] sm:$0xf] %v674
                  %v676 = vld [vmem:[%s486 + $0x2f0] sm:$0xf]
                  %677 = vst [vmem:[%s487 + $0x178] sm:$0xf] %v676
                  %v678 = vld [vmem:[%s486 + $0x2f8] sm:$0xf]
                  %679 = vst [vmem:[%s487 + $0x17c] sm:$0xf] %v678
                  %v680 = vld [vmem:[%s486 + $0x300] sm:$0xf]
                  %681 = vst [vmem:[%s487 + $0x180] sm:$0xf] %v680
                  %v682 = vld [vmem:[%s486 + $0x308] sm:$0xf]
                  %683 = vst [vmem:[%s487 + $0x184] sm:$0xf] %v682
                  %v684 = vld [vmem:[%s486 + $0x310] sm:$0xf]
                  %685 = vst [vmem:[%s487 + $0x188] sm:$0xf] %v684
                  %v686 = vld [vmem:[%s486 + $0x318] sm:$0xf]
                  %687 = vst [vmem:[%s487 + $0x18c] sm:$0xf] %v686
                  %v688 = vld [vmem:[%s486 + $0x320] sm:$0xf]
                  %689 = vst [vmem:[%s487 + $0x190] sm:$0xf] %v688
                  %v690 = vld [vmem:[%s486 + $0x328] sm:$0xf]
                  %691 = vst [vmem:[%s487 + $0x194] sm:$0xf] %v690
                  %v692 = vld [vmem:[%s486 + $0x330] sm:$0xf]
                  %693 = vst [vmem:[%s487 + $0x198] sm:$0xf] %v692
                  %v694 = vld [vmem:[%s486 + $0x338] sm:$0xf]
                  %695 = vst [vmem:[%s487 + $0x19c] sm:$0xf] %v694
                  %v696 = vld [vmem:[%s486 + $0x340] sm:$0xf]
                  %697 = vst [vmem:[%s487 + $0x1a0] sm:$0xf] %v696
                  %v698 = vld [vmem:[%s486 + $0x348] sm:$0xf]
                  %699 = vst [vmem:[%s487 + $0x1a4] sm:$0xf] %v698
                  %v700 = vld [vmem:[%s486 + $0x350] sm:$0xf]
                  %701 = vst [vmem:[%s487 + $0x1a8] sm:$0xf] %v700
                  %v702 = vld [vmem:[%s486 + $0x358] sm:$0xf]
                  %703 = vst [vmem:[%s487 + $0x1ac] sm:$0xf] %v702
                  %v704 = vld [vmem:[%s486 + $0x360] sm:$0xf]
                  %705 = vst [vmem:[%s487 + $0x1b0] sm:$0xf] %v704
                  %v706 = vld [vmem:[%s486 + $0x368] sm:$0xf]
                  %707 = vst [vmem:[%s487 + $0x1b4] sm:$0xf] %v706
                  %v708 = vld [vmem:[%s486 + $0x370] sm:$0xf]
                  %709 = vst [vmem:[%s487 + $0x1b8] sm:$0xf] %v708
                  %v710 = vld [vmem:[%s486 + $0x378] sm:$0xf]
                  %711 = vst [vmem:[%s487 + $0x1bc] sm:$0xf] %v710
                  %v712 = vld [vmem:[%s486 + $0x380] sm:$0xf]
                  %713 = vst [vmem:[%s487 + $0x1c0] sm:$0xf] %v712
                  %v714 = vld [vmem:[%s486 + $0x388] sm:$0xf]
                  %715 = vst [vmem:[%s487 + $0x1c4] sm:$0xf] %v714
                  %v716 = vld [vmem:[%s486 + $0x390] sm:$0xf]
                  %717 = vst [vmem:[%s487 + $0x1c8] sm:$0xf] %v716
                  %v718 = vld [vmem:[%s486 + $0x398] sm:$0xf]
                  %719 = vst [vmem:[%s487 + $0x1cc] sm:$0xf] %v718
                  %v720 = vld [vmem:[%s486 + $0x3a0] sm:$0xf]
                  %721 = vst [vmem:[%s487 + $0x1d0] sm:$0xf] %v720
                  %v722 = vld [vmem:[%s486 + $0x3a8] sm:$0xf]
                  %723 = vst [vmem:[%s487 + $0x1d4] sm:$0xf] %v722
                  %v724 = vld [vmem:[%s486 + $0x3b0] sm:$0xf]
                  %725 = vst [vmem:[%s487 + $0x1d8] sm:$0xf] %v724
                  %v726 = vld [vmem:[%s486 + $0x3b8] sm:$0xf]
                  %727 = vst [vmem:[%s487 + $0x1dc] sm:$0xf] %v726
                  %v728 = vld [vmem:[%s486 + $0x3c0] sm:$0xf]
                  %729 = vst [vmem:[%s487 + $0x1e0] sm:$0xf] %v728
                  %v730 = vld [vmem:[%s486 + $0x3c8] sm:$0xf]
                  %731 = vst [vmem:[%s487 + $0x1e4] sm:$0xf] %v730
                  %v732 = vld [vmem:[%s486 + $0x3d0] sm:$0xf]
                  %733 = vst [vmem:[%s487 + $0x1e8] sm:$0xf] %v732
                  %v734 = vld [vmem:[%s486 + $0x3d8] sm:$0xf]
                  %735 = vst [vmem:[%s487 + $0x1ec] sm:$0xf] %v734
                  %v736 = vld [vmem:[%s486 + $0x3e0] sm:$0xf]
                  %737 = vst [vmem:[%s487 + $0x1f0] sm:$0xf] %v736
                  %v738 = vld [vmem:[%s486 + $0x3e8] sm:$0xf]
                  %739 = vst [vmem:[%s487 + $0x1f4] sm:$0xf] %v738
                  %v740 = vld [vmem:[%s486 + $0x3f0] sm:$0xf]
                  %741 = vst [vmem:[%s487 + $0x1f8] sm:$0xf] %v740
                  %v742 = vld [vmem:[%s486 + $0x3f8] sm:$0xf]
                  %743 = vst [vmem:[%s487 + $0x1fc] sm:$0xf] %v742
                  %v744 = vld [vmem:[%s486 + $0x400] sm:$0xf]
                  %745 = vst [vmem:[%s487 + $0x200] sm:$0xf] %v744
                  %v746 = vld [vmem:[%s486 + $0x408] sm:$0xf]
                  %747 = vst [vmem:[%s487 + $0x204] sm:$0xf] %v746
                  %v748 = vld [vmem:[%s486 + $0x410] sm:$0xf]
                  %749 = vst [vmem:[%s487 + $0x208] sm:$0xf] %v748
                  %v750 = vld [vmem:[%s486 + $0x418] sm:$0xf]
                  %751 = vst [vmem:[%s487 + $0x20c] sm:$0xf] %v750
                  %v752 = vld [vmem:[%s486 + $0x420] sm:$0xf]
                  %753 = vst [vmem:[%s487 + $0x210] sm:$0xf] %v752
                  %v754 = vld [vmem:[%s486 + $0x428] sm:$0xf]
                  %755 = vst [vmem:[%s487 + $0x214] sm:$0xf] %v754
                  %v756 = vld [vmem:[%s486 + $0x430] sm:$0xf]
                  %757 = vst [vmem:[%s487 + $0x218] sm:$0xf] %v756
                  %v758 = vld [vmem:[%s486 + $0x438] sm:$0xf]
                  %759 = vst [vmem:[%s487 + $0x21c] sm:$0xf] %v758
                  %v760 = vld [vmem:[%s486 + $0x440] sm:$0xf]
                  %761 = vst [vmem:[%s487 + $0x220] sm:$0xf] %v760
                  %v762 = vld [vmem:[%s486 + $0x448] sm:$0xf]
                  %763 = vst [vmem:[%s487 + $0x224] sm:$0xf] %v762
                  %v764 = vld [vmem:[%s486 + $0x450] sm:$0xf]
                  %765 = vst [vmem:[%s487 + $0x228] sm:$0xf] %v764
                  %v766 = vld [vmem:[%s486 + $0x458] sm:$0xf]
                  %767 = vst [vmem:[%s487 + $0x22c] sm:$0xf] %v766
                  %v768 = vld [vmem:[%s486 + $0x460] sm:$0xf]
                  %769 = vst [vmem:[%s487 + $0x230] sm:$0xf] %v768
                  %v770 = vld [vmem:[%s486 + $0x468] sm:$0xf]
                  %771 = vst [vmem:[%s487 + $0x234] sm:$0xf] %v770
                  %v772 = vld [vmem:[%s486 + $0x470] sm:$0xf]
                  %773 = vst [vmem:[%s487 + $0x238] sm:$0xf] %v772
                  %v774 = vld [vmem:[%s486 + $0x478] sm:$0xf]
                  %775 = vst [vmem:[%s487 + $0x23c] sm:$0xf] %v774
                $region59: #{clustergan_dec_forward.4} parent=46 // loop_footer
                  %s485 = sadd.s32 1, %s481
                $region60: #{clustergan_dec_forward.4} parent=46 // loop_footer_branch
                  %480 = sbr.rel target = $region56
                $region61: #{clustergan_dec_forward.4} parent=46 // loop_exit
                  _
              $region47: #{clustergan_dec_forward.4} parent=31 // pred_fallthru
                _
            $region32: #{clustergan_dec_forward.4} parent=27 // pred_fallthru
              _
            // Predicated region
            $region33: #{clustergan_dec_forward.4} parent=27 // pred_check
              _
            $region34: #{clustergan_dec_forward.4} parent=27 // pred_check_branch
              %171 = sbr.rel (0) target = $region36
            $region35: #{clustergan_dec_forward.4} parent=27 // pred_region
              loop: start=0, step=1, limit=1
              $region37: #{clustergan_dec_forward.4} parent=35 // loop_pre_header
                _
              $region38: #{clustergan_dec_forward.4} parent=35 // loop_header
                %s174 = sphi 0, %s178
                %p175 = scmp.ge.s32.totalorder %s174, 1
                %s179 = sphi %s165, %s165
                %s180 = sphi %s163, %s163
              $region39: #{clustergan_dec_forward.4} parent=35 // loop_header_branch
                %177 = sbr.rel (%p175) target = $region43
              $region40: #{clustergan_dec_forward.4} parent=35 // loop_body
                %v181 = vld [vmem:[%s179] sm:$0xf]
                %182 = vst [vmem:[%s180] sm:$0xf] %v181
                %v183 = vld [vmem:[%s179 + $0x8] sm:$0xf]
                %184 = vst [vmem:[%s180 + $0x4] sm:$0xf] %v183
                %v185 = vld [vmem:[%s179 + $0x10] sm:$0xf]
                %186 = vst [vmem:[%s180 + $0x8] sm:$0xf] %v185
                %v187 = vld [vmem:[%s179 + $0x18] sm:$0xf]
                %188 = vst [vmem:[%s180 + $0xc] sm:$0xf] %v187
                %v189 = vld [vmem:[%s179 + $0x20] sm:$0xf]
                %190 = vst [vmem:[%s180 + $0x10] sm:$0xf] %v189
                %v191 = vld [vmem:[%s179 + $0x28] sm:$0xf]
                %192 = vst [vmem:[%s180 + $0x14] sm:$0xf] %v191
                %v193 = vld [vmem:[%s179 + $0x30] sm:$0xf]
                %194 = vst [vmem:[%s180 + $0x18] sm:$0xf] %v193
                %v195 = vld [vmem:[%s179 + $0x38] sm:$0xf]
                %196 = vst [vmem:[%s180 + $0x1c] sm:$0xf] %v195
                %v197 = vld [vmem:[%s179 + $0x40] sm:$0xf]
                %198 = vst [vmem:[%s180 + $0x20] sm:$0xf] %v197
                %v199 = vld [vmem:[%s179 + $0x48] sm:$0xf]
                %200 = vst [vmem:[%s180 + $0x24] sm:$0xf] %v199
                %v201 = vld [vmem:[%s179 + $0x50] sm:$0xf]
                %202 = vst [vmem:[%s180 + $0x28] sm:$0xf] %v201
                %v203 = vld [vmem:[%s179 + $0x58] sm:$0xf]
                %204 = vst [vmem:[%s180 + $0x2c] sm:$0xf] %v203
                %v205 = vld [vmem:[%s179 + $0x60] sm:$0xf]
                %206 = vst [vmem:[%s180 + $0x30] sm:$0xf] %v205
                %v207 = vld [vmem:[%s179 + $0x68] sm:$0xf]
                %208 = vst [vmem:[%s180 + $0x34] sm:$0xf] %v207
                %v209 = vld [vmem:[%s179 + $0x70] sm:$0xf]
                %210 = vst [vmem:[%s180 + $0x38] sm:$0xf] %v209
                %v211 = vld [vmem:[%s179 + $0x78] sm:$0xf]
                %212 = vst [vmem:[%s180 + $0x3c] sm:$0xf] %v211
                %v213 = vld [vmem:[%s179 + $0x80] sm:$0xf]
                %214 = vst [vmem:[%s180 + $0x40] sm:$0xf] %v213
                %v215 = vld [vmem:[%s179 + $0x88] sm:$0xf]
                %216 = vst [vmem:[%s180 + $0x44] sm:$0xf] %v215
                %v217 = vld [vmem:[%s179 + $0x90] sm:$0xf]
                %218 = vst [vmem:[%s180 + $0x48] sm:$0xf] %v217
                %v219 = vld [vmem:[%s179 + $0x98] sm:$0xf]
                %220 = vst [vmem:[%s180 + $0x4c] sm:$0xf] %v219
                %v221 = vld [vmem:[%s179 + $0xa0] sm:$0xf]
                %222 = vst [vmem:[%s180 + $0x50] sm:$0xf] %v221
                %v223 = vld [vmem:[%s179 + $0xa8] sm:$0xf]
                %224 = vst [vmem:[%s180 + $0x54] sm:$0xf] %v223
                %v225 = vld [vmem:[%s179 + $0xb0] sm:$0xf]
                %226 = vst [vmem:[%s180 + $0x58] sm:$0xf] %v225
                %v227 = vld [vmem:[%s179 + $0xb8] sm:$0xf]
                %228 = vst [vmem:[%s180 + $0x5c] sm:$0xf] %v227
                %v229 = vld [vmem:[%s179 + $0xc0] sm:$0xf]
                %230 = vst [vmem:[%s180 + $0x60] sm:$0xf] %v229
                %v231 = vld [vmem:[%s179 + $0xc8] sm:$0xf]
                %232 = vst [vmem:[%s180 + $0x64] sm:$0xf] %v231
                %v233 = vld [vmem:[%s179 + $0xd0] sm:$0xf]
                %234 = vst [vmem:[%s180 + $0x68] sm:$0xf] %v233
                %v235 = vld [vmem:[%s179 + $0xd8] sm:$0xf]
                %236 = vst [vmem:[%s180 + $0x6c] sm:$0xf] %v235
                %v237 = vld [vmem:[%s179 + $0xe0] sm:$0xf]
                %238 = vst [vmem:[%s180 + $0x70] sm:$0xf] %v237
                %v239 = vld [vmem:[%s179 + $0xe8] sm:$0xf]
                %240 = vst [vmem:[%s180 + $0x74] sm:$0xf] %v239
                %v241 = vld [vmem:[%s179 + $0xf0] sm:$0xf]
                %242 = vst [vmem:[%s180 + $0x78] sm:$0xf] %v241
                %v243 = vld [vmem:[%s179 + $0xf8] sm:$0xf]
                %244 = vst [vmem:[%s180 + $0x7c] sm:$0xf] %v243
                %v245 = vld [vmem:[%s179 + $0x100] sm:$0xf]
                %246 = vst [vmem:[%s180 + $0x80] sm:$0xf] %v245
                %v247 = vld [vmem:[%s179 + $0x108] sm:$0xf]
                %248 = vst [vmem:[%s180 + $0x84] sm:$0xf] %v247
                %v249 = vld [vmem:[%s179 + $0x110] sm:$0xf]
                %250 = vst [vmem:[%s180 + $0x88] sm:$0xf] %v249
                %v251 = vld [vmem:[%s179 + $0x118] sm:$0xf]
                %252 = vst [vmem:[%s180 + $0x8c] sm:$0xf] %v251
                %v253 = vld [vmem:[%s179 + $0x120] sm:$0xf]
                %254 = vst [vmem:[%s180 + $0x90] sm:$0xf] %v253
                %v255 = vld [vmem:[%s179 + $0x128] sm:$0xf]
                %256 = vst [vmem:[%s180 + $0x94] sm:$0xf] %v255
                %v257 = vld [vmem:[%s179 + $0x130] sm:$0xf]
                %258 = vst [vmem:[%s180 + $0x98] sm:$0xf] %v257
                %v259 = vld [vmem:[%s179 + $0x138] sm:$0xf]
                %260 = vst [vmem:[%s180 + $0x9c] sm:$0xf] %v259
                %v261 = vld [vmem:[%s179 + $0x140] sm:$0xf]
                %262 = vst [vmem:[%s180 + $0xa0] sm:$0xf] %v261
                %v263 = vld [vmem:[%s179 + $0x148] sm:$0xf]
                %264 = vst [vmem:[%s180 + $0xa4] sm:$0xf] %v263
                %v265 = vld [vmem:[%s179 + $0x150] sm:$0xf]
                %266 = vst [vmem:[%s180 + $0xa8] sm:$0xf] %v265
                %v267 = vld [vmem:[%s179 + $0x158] sm:$0xf]
                %268 = vst [vmem:[%s180 + $0xac] sm:$0xf] %v267
                %v269 = vld [vmem:[%s179 + $0x160] sm:$0xf]
                %270 = vst [vmem:[%s180 + $0xb0] sm:$0xf] %v269
                %v271 = vld [vmem:[%s179 + $0x168] sm:$0xf]
                %272 = vst [vmem:[%s180 + $0xb4] sm:$0xf] %v271
                %v273 = vld [vmem:[%s179 + $0x170] sm:$0xf]
                %274 = vst [vmem:[%s180 + $0xb8] sm:$0xf] %v273
                %v275 = vld [vmem:[%s179 + $0x178] sm:$0xf]
                %276 = vst [vmem:[%s180 + $0xbc] sm:$0xf] %v275
                %v277 = vld [vmem:[%s179 + $0x180] sm:$0xf]
                %278 = vst [vmem:[%s180 + $0xc0] sm:$0xf] %v277
                %v279 = vld [vmem:[%s179 + $0x188] sm:$0xf]
                %280 = vst [vmem:[%s180 + $0xc4] sm:$0xf] %v279
                %v281 = vld [vmem:[%s179 + $0x190] sm:$0xf]
                %282 = vst [vmem:[%s180 + $0xc8] sm:$0xf] %v281
                %v283 = vld [vmem:[%s179 + $0x198] sm:$0xf]
                %284 = vst [vmem:[%s180 + $0xcc] sm:$0xf] %v283
                %v285 = vld [vmem:[%s179 + $0x1a0] sm:$0xf]
                %286 = vst [vmem:[%s180 + $0xd0] sm:$0xf] %v285
                %v287 = vld [vmem:[%s179 + $0x1a8] sm:$0xf]
                %288 = vst [vmem:[%s180 + $0xd4] sm:$0xf] %v287
                %v289 = vld [vmem:[%s179 + $0x1b0] sm:$0xf]
                %290 = vst [vmem:[%s180 + $0xd8] sm:$0xf] %v289
                %v291 = vld [vmem:[%s179 + $0x1b8] sm:$0xf]
                %292 = vst [vmem:[%s180 + $0xdc] sm:$0xf] %v291
                %v293 = vld [vmem:[%s179 + $0x1c0] sm:$0xf]
                %294 = vst [vmem:[%s180 + $0xe0] sm:$0xf] %v293
                %v295 = vld [vmem:[%s179 + $0x1c8] sm:$0xf]
                %296 = vst [vmem:[%s180 + $0xe4] sm:$0xf] %v295
                %v297 = vld [vmem:[%s179 + $0x1d0] sm:$0xf]
                %298 = vst [vmem:[%s180 + $0xe8] sm:$0xf] %v297
                %v299 = vld [vmem:[%s179 + $0x1d8] sm:$0xf]
                %300 = vst [vmem:[%s180 + $0xec] sm:$0xf] %v299
                %v301 = vld [vmem:[%s179 + $0x1e0] sm:$0xf]
                %302 = vst [vmem:[%s180 + $0xf0] sm:$0xf] %v301
                %v303 = vld [vmem:[%s179 + $0x1e8] sm:$0xf]
                %304 = vst [vmem:[%s180 + $0xf4] sm:$0xf] %v303
                %v305 = vld [vmem:[%s179 + $0x1f0] sm:$0xf]
                %306 = vst [vmem:[%s180 + $0xf8] sm:$0xf] %v305
                %v307 = vld [vmem:[%s179 + $0x1f8] sm:$0xf]
                %308 = vst [vmem:[%s180 + $0xfc] sm:$0xf] %v307
                %v309 = vld [vmem:[%s179 + $0x200] sm:$0xf]
                %310 = vst [vmem:[%s180 + $0x100] sm:$0xf] %v309
                %v311 = vld [vmem:[%s179 + $0x208] sm:$0xf]
                %312 = vst [vmem:[%s180 + $0x104] sm:$0xf] %v311
                %v313 = vld [vmem:[%s179 + $0x210] sm:$0xf]
                %314 = vst [vmem:[%s180 + $0x108] sm:$0xf] %v313
                %v315 = vld [vmem:[%s179 + $0x218] sm:$0xf]
                %316 = vst [vmem:[%s180 + $0x10c] sm:$0xf] %v315
                %v317 = vld [vmem:[%s179 + $0x220] sm:$0xf]
                %318 = vst [vmem:[%s180 + $0x110] sm:$0xf] %v317
                %v319 = vld [vmem:[%s179 + $0x228] sm:$0xf]
                %320 = vst [vmem:[%s180 + $0x114] sm:$0xf] %v319
                %v321 = vld [vmem:[%s179 + $0x230] sm:$0xf]
                %322 = vst [vmem:[%s180 + $0x118] sm:$0xf] %v321
                %v323 = vld [vmem:[%s179 + $0x238] sm:$0xf]
                %324 = vst [vmem:[%s180 + $0x11c] sm:$0xf] %v323
                %v325 = vld [vmem:[%s179 + $0x240] sm:$0xf]
                %326 = vst [vmem:[%s180 + $0x120] sm:$0xf] %v325
                %v327 = vld [vmem:[%s179 + $0x248] sm:$0xf]
                %328 = vst [vmem:[%s180 + $0x124] sm:$0xf] %v327
                %v329 = vld [vmem:[%s179 + $0x250] sm:$0xf]
                %330 = vst [vmem:[%s180 + $0x128] sm:$0xf] %v329
                %v331 = vld [vmem:[%s179 + $0x258] sm:$0xf]
                %332 = vst [vmem:[%s180 + $0x12c] sm:$0xf] %v331
                %v333 = vld [vmem:[%s179 + $0x260] sm:$0xf]
                %334 = vst [vmem:[%s180 + $0x130] sm:$0xf] %v333
                %v335 = vld [vmem:[%s179 + $0x268] sm:$0xf]
                %336 = vst [vmem:[%s180 + $0x134] sm:$0xf] %v335
                %v337 = vld [vmem:[%s179 + $0x270] sm:$0xf]
                %338 = vst [vmem:[%s180 + $0x138] sm:$0xf] %v337
                %v339 = vld [vmem:[%s179 + $0x278] sm:$0xf]
                %340 = vst [vmem:[%s180 + $0x13c] sm:$0xf] %v339
                %v341 = vld [vmem:[%s179 + $0x280] sm:$0xf]
                %342 = vst [vmem:[%s180 + $0x140] sm:$0xf] %v341
                %v343 = vld [vmem:[%s179 + $0x288] sm:$0xf]
                %344 = vst [vmem:[%s180 + $0x144] sm:$0xf] %v343
                %v345 = vld [vmem:[%s179 + $0x290] sm:$0xf]
                %346 = vst [vmem:[%s180 + $0x148] sm:$0xf] %v345
                %v347 = vld [vmem:[%s179 + $0x298] sm:$0xf]
                %348 = vst [vmem:[%s180 + $0x14c] sm:$0xf] %v347
                %v349 = vld [vmem:[%s179 + $0x2a0] sm:$0xf]
                %350 = vst [vmem:[%s180 + $0x150] sm:$0xf] %v349
                %v351 = vld [vmem:[%s179 + $0x2a8] sm:$0xf]
                %352 = vst [vmem:[%s180 + $0x154] sm:$0xf] %v351
                %v353 = vld [vmem:[%s179 + $0x2b0] sm:$0xf]
                %354 = vst [vmem:[%s180 + $0x158] sm:$0xf] %v353
                %v355 = vld [vmem:[%s179 + $0x2b8] sm:$0xf]
                %356 = vst [vmem:[%s180 + $0x15c] sm:$0xf] %v355
                %v357 = vld [vmem:[%s179 + $0x2c0] sm:$0xf]
                %358 = vst [vmem:[%s180 + $0x160] sm:$0xf] %v357
                %v359 = vld [vmem:[%s179 + $0x2c8] sm:$0xf]
                %360 = vst [vmem:[%s180 + $0x164] sm:$0xf] %v359
                %v361 = vld [vmem:[%s179 + $0x2d0] sm:$0xf]
                %362 = vst [vmem:[%s180 + $0x168] sm:$0xf] %v361
                %v363 = vld [vmem:[%s179 + $0x2d8] sm:$0xf]
                %364 = vst [vmem:[%s180 + $0x16c] sm:$0xf] %v363
                %v365 = vld [vmem:[%s179 + $0x2e0] sm:$0xf]
                %366 = vst [vmem:[%s180 + $0x170] sm:$0xf] %v365
                %v367 = vld [vmem:[%s179 + $0x2e8] sm:$0xf]
                %368 = vst [vmem:[%s180 + $0x174] sm:$0xf] %v367
                %v369 = vld [vmem:[%s179 + $0x2f0] sm:$0xf]
                %370 = vst [vmem:[%s180 + $0x178] sm:$0xf] %v369
                %v371 = vld [vmem:[%s179 + $0x2f8] sm:$0xf]
                %372 = vst [vmem:[%s180 + $0x17c] sm:$0xf] %v371
                %v373 = vld [vmem:[%s179 + $0x300] sm:$0xf]
                %374 = vst [vmem:[%s180 + $0x180] sm:$0xf] %v373
                %v375 = vld [vmem:[%s179 + $0x308] sm:$0xf]
                %376 = vst [vmem:[%s180 + $0x184] sm:$0xf] %v375
                %v377 = vld [vmem:[%s179 + $0x310] sm:$0xf]
                %378 = vst [vmem:[%s180 + $0x188] sm:$0xf] %v377
                %v379 = vld [vmem:[%s179 + $0x318] sm:$0xf]
                %380 = vst [vmem:[%s180 + $0x18c] sm:$0xf] %v379
                %v381 = vld [vmem:[%s179 + $0x320] sm:$0xf]
                %382 = vst [vmem:[%s180 + $0x190] sm:$0xf] %v381
                %v383 = vld [vmem:[%s179 + $0x328] sm:$0xf]
                %384 = vst [vmem:[%s180 + $0x194] sm:$0xf] %v383
                %v385 = vld [vmem:[%s179 + $0x330] sm:$0xf]
                %386 = vst [vmem:[%s180 + $0x198] sm:$0xf] %v385
                %v387 = vld [vmem:[%s179 + $0x338] sm:$0xf]
                %388 = vst [vmem:[%s180 + $0x19c] sm:$0xf] %v387
                %v389 = vld [vmem:[%s179 + $0x340] sm:$0xf]
                %390 = vst [vmem:[%s180 + $0x1a0] sm:$0xf] %v389
                %v391 = vld [vmem:[%s179 + $0x348] sm:$0xf]
                %392 = vst [vmem:[%s180 + $0x1a4] sm:$0xf] %v391
                %v393 = vld [vmem:[%s179 + $0x350] sm:$0xf]
                %394 = vst [vmem:[%s180 + $0x1a8] sm:$0xf] %v393
                %v395 = vld [vmem:[%s179 + $0x358] sm:$0xf]
                %396 = vst [vmem:[%s180 + $0x1ac] sm:$0xf] %v395
                %v397 = vld [vmem:[%s179 + $0x360] sm:$0xf]
                %398 = vst [vmem:[%s180 + $0x1b0] sm:$0xf] %v397
                %v399 = vld [vmem:[%s179 + $0x368] sm:$0xf]
                %400 = vst [vmem:[%s180 + $0x1b4] sm:$0xf] %v399
                %v401 = vld [vmem:[%s179 + $0x370] sm:$0xf]
                %402 = vst [vmem:[%s180 + $0x1b8] sm:$0xf] %v401
                %v403 = vld [vmem:[%s179 + $0x378] sm:$0xf]
                %404 = vst [vmem:[%s180 + $0x1bc] sm:$0xf] %v403
                %v405 = vld [vmem:[%s179 + $0x380] sm:$0xf]
                %406 = vst [vmem:[%s180 + $0x1c0] sm:$0xf] %v405
                %v407 = vld [vmem:[%s179 + $0x388] sm:$0xf]
                %408 = vst [vmem:[%s180 + $0x1c4] sm:$0xf] %v407
                %v409 = vld [vmem:[%s179 + $0x390] sm:$0xf]
                %410 = vst [vmem:[%s180 + $0x1c8] sm:$0xf] %v409
                %v411 = vld [vmem:[%s179 + $0x398] sm:$0xf]
                %412 = vst [vmem:[%s180 + $0x1cc] sm:$0xf] %v411
                %v413 = vld [vmem:[%s179 + $0x3a0] sm:$0xf]
                %414 = vst [vmem:[%s180 + $0x1d0] sm:$0xf] %v413
                %v415 = vld [vmem:[%s179 + $0x3a8] sm:$0xf]
                %416 = vst [vmem:[%s180 + $0x1d4] sm:$0xf] %v415
                %v417 = vld [vmem:[%s179 + $0x3b0] sm:$0xf]
                %418 = vst [vmem:[%s180 + $0x1d8] sm:$0xf] %v417
                %v419 = vld [vmem:[%s179 + $0x3b8] sm:$0xf]
                %420 = vst [vmem:[%s180 + $0x1dc] sm:$0xf] %v419
                %v421 = vld [vmem:[%s179 + $0x3c0] sm:$0xf]
                %422 = vst [vmem:[%s180 + $0x1e0] sm:$0xf] %v421
                %v423 = vld [vmem:[%s179 + $0x3c8] sm:$0xf]
                %424 = vst [vmem:[%s180 + $0x1e4] sm:$0xf] %v423
                %v425 = vld [vmem:[%s179 + $0x3d0] sm:$0xf]
                %426 = vst [vmem:[%s180 + $0x1e8] sm:$0xf] %v425
                %v427 = vld [vmem:[%s179 + $0x3d8] sm:$0xf]
                %428 = vst [vmem:[%s180 + $0x1ec] sm:$0xf] %v427
                %v429 = vld [vmem:[%s179 + $0x3e0] sm:$0xf]
                %430 = vst [vmem:[%s180 + $0x1f0] sm:$0xf] %v429
                %v431 = vld [vmem:[%s179 + $0x3e8] sm:$0xf]
                %432 = vst [vmem:[%s180 + $0x1f4] sm:$0xf] %v431
                %v433 = vld [vmem:[%s179 + $0x3f0] sm:$0xf]
                %434 = vst [vmem:[%s180 + $0x1f8] sm:$0xf] %v433
                %v435 = vld [vmem:[%s179 + $0x3f8] sm:$0xf]
                %436 = vst [vmem:[%s180 + $0x1fc] sm:$0xf] %v435
                %v437 = vld [vmem:[%s179 + $0x400] sm:$0xf]
                %438 = vst [vmem:[%s180 + $0x200] sm:$0xf] %v437
                %v439 = vld [vmem:[%s179 + $0x408] sm:$0xf]
                %440 = vst [vmem:[%s180 + $0x204] sm:$0xf] %v439
                %v441 = vld [vmem:[%s179 + $0x410] sm:$0xf]
                %442 = vst [vmem:[%s180 + $0x208] sm:$0xf] %v441
                %v443 = vld [vmem:[%s179 + $0x418] sm:$0xf]
                %444 = vst [vmem:[%s180 + $0x20c] sm:$0xf] %v443
                %v445 = vld [vmem:[%s179 + $0x420] sm:$0xf]
                %446 = vst [vmem:[%s180 + $0x210] sm:$0xf] %v445
                %v447 = vld [vmem:[%s179 + $0x428] sm:$0xf]
                %448 = vst [vmem:[%s180 + $0x214] sm:$0xf] %v447
                %v449 = vld [vmem:[%s179 + $0x430] sm:$0xf]
                %450 = vst [vmem:[%s180 + $0x218] sm:$0xf] %v449
                %v451 = vld [vmem:[%s179 + $0x438] sm:$0xf]
                %452 = vst [vmem:[%s180 + $0x21c] sm:$0xf] %v451
                %v453 = vld [vmem:[%s179 + $0x440] sm:$0xf]
                %454 = vst [vmem:[%s180 + $0x220] sm:$0xf] %v453
                %v455 = vld [vmem:[%s179 + $0x448] sm:$0xf]
                %456 = vst [vmem:[%s180 + $0x224] sm:$0xf] %v455
                %v457 = vld [vmem:[%s179 + $0x450] sm:$0xf]
                %458 = vst [vmem:[%s180 + $0x228] sm:$0xf] %v457
                %v459 = vld [vmem:[%s179 + $0x458] sm:$0xf]
                %460 = vst [vmem:[%s180 + $0x22c] sm:$0xf] %v459
                %v461 = vld [vmem:[%s179 + $0x460] sm:$0xf]
                %462 = vst [vmem:[%s180 + $0x230] sm:$0xf] %v461
                %v463 = vld [vmem:[%s179 + $0x468] sm:$0xf]
                %464 = vst [vmem:[%s180 + $0x234] sm:$0xf] %v463
                %v465 = vld [vmem:[%s179 + $0x470] sm:$0xf]
                %466 = vst [vmem:[%s180 + $0x238] sm:$0xf] %v465
                %v467 = vld [vmem:[%s179 + $0x478] sm:$0xf]
                %468 = vst [vmem:[%s180 + $0x23c] sm:$0xf] %v467
              $region41: #{clustergan_dec_forward.4} parent=35 // loop_footer
                %s178 = sadd.s32 1, %s174
              $region42: #{clustergan_dec_forward.4} parent=35 // loop_footer_branch
                %173 = sbr.rel target = $region38
              $region43: #{clustergan_dec_forward.4} parent=35 // loop_exit
                _
            $region36: #{clustergan_dec_forward.4} parent=27 // pred_fallthru
              _
          $region28: #{clustergan_dec_forward.4} parent=23 // pred_fallthru
            _
          %776 = vnop
        $region24: #{clustergan_dec_forward.4} parent=19 // pred_fallthru
          _
        // Predicated region
        $region62: #{clustergan_dec_forward.4} parent=19 // pred_check
          %p777 = pneg %p77
        $region63: #{clustergan_dec_forward.4} parent=19 // pred_check_branch
          %779 = sbr.rel (%p777) target = $region65
        $region64: #{clustergan_dec_forward.4} parent=19 // pred_region
          %p780 = scmp.lt.s32.totalorder %s10, 1
          %s781 = scalar_select %p780, %s10, 1
          %s782 = scalar_lea.vmem %s2, %s781
        $region65: #{clustergan_dec_forward.4} parent=19 // pred_fallthru
          _
        // Predicated region
        $region66: #{clustergan_dec_forward.4} parent=19 // pred_check
          %p783 = pneg %p103
        $region67: #{clustergan_dec_forward.4} parent=19 // pred_check_branch
          %785 = sbr.rel (%p783) target = $region69
        $region68: #{clustergan_dec_forward.4} parent=19 // pred_region
          %p786 = scmp.lt.s32.totalorder %s10, 1
          %s787 = scalar_select %p786, %s10, 1
          %s788 = scalar_lea.vmem %s3, %s787
        $region69: #{clustergan_dec_forward.4} parent=19 // pred_fallthru
          _
      $region20: #{clustergan_dec_forward.4} parent=5 // pred_fallthru
        _
      %p789 = scmp.le.s32.totalorder 1, %s10
      %p790 = scmp.lt.s32.totalorder %s10, 3
      %p791 = pnand %p789, %p790
      %p792 = pneg %p791
      // Predicated region
      $region70: #{clustergan_dec_forward.4} parent=5 // pred_check
        _
      $region71: #{clustergan_dec_forward.4} parent=5 // pred_check_branch
        %794 = sbr.rel (%p791) target = $region73
      $region72: #{clustergan_dec_forward.4} parent=5 // pred_region
        %s795 = ssub.s32 %s10, 1
        %s796 = sand.u32 %s44, 1
        %s797 = sand.u32 %s44, 1
        %s798 = smul.addr %s797, 576
        %s799 = scalar_lea.vmem [#allocation2], %s798
        // Predicated region
        $region74: #{clustergan_dec_forward.4} parent=72 // pred_check
          %p800 = pneg %p57
        $region75: #{clustergan_dec_forward.4} parent=72 // pred_check_branch
          %802 = sbr.rel (%p800) target = $region77
        $region76: #{clustergan_dec_forward.4} parent=72 // pred_region
          _
        $region77: #{clustergan_dec_forward.4} parent=72 // pred_fallthru
          _
        %p803 = pneg %p31
        %p804 = pneg %p28
        %s805 = sand.u32 %s44, 1
        %s806 = sand.u32 %s44, 1
        %s807 = smul.addr %s806, 576
        %s808 = scalar_lea.vmem [#allocation2], %s807
        %p809 = pneg %p57
        %p810 = pneg %p54
        %p811 = scmp.lt.s32.totalorder %s15, 1
        %s812 = scalar_select %p811, %s15, 1
        %s813 = scalar_lea.vmem %s2, %s812
        %p814 = pneg %p83
        %p815 = pneg %p80
        %p816 = scmp.lt.s32.totalorder %s15, 1
        %s817 = scalar_select %p816, %s15, 1
        %s818 = scalar_lea.vmem %s3, %s817
        %p819 = pneg %p109
        %p820 = pneg %p106
        %p821 = pneg %p135
        %p822 = pneg %p132
        %s823 = sand.u32 %s122, 1
        %s824 = sand.u32 %s122, 1
        %s825 = smul.addr %s824, 176
        %s826 = scalar_lea.vmem [#allocation3], %s825
        %p827 = scmp.lt.s32.totalorder %s15, 1
        %s828 = scalar_select %p827, %s15, 1
        %s829 = scalar_lea.vmem %s2, %s828
        %p830 = scmp.lt.s32.totalorder %s15, 1
        %s831 = scalar_select %p830, %s15, 1
        %s832 = scalar_lea.vmem %s3, %s831
        %v834 = vld [vmem:[%s0 + $0x6] sm:$0xff]
        %v835 = vld [vmem:[%s0 + $0xe] sm:$0xff]
        %v836 = vld [vmem:[%s0 + $0x16] sm:$0xff]
        %v837 = vld [vmem:[%s0 + $0x1e] sm:$0xff]
        %v838 = vld [vmem:[%s0 + $0x26] sm:$0xff]
        %v839 = vld [vmem:[%s0 + $0x2e] sm:$0xff]
        %v840 = vld [vmem:[%s0 + $0x36] sm:$0xff]
        %v841 = vld [vmem:[%s0 + $0x3e] sm:$0xff]
        %v842 = vld [vmem:[%s0 + $0x46] sm:$0xff]
        %v843 = vld [vmem:[%s0 + $0x4e] sm:$0xff]
        %v844 = vld [vmem:[%s0 + $0x56] sm:$0xff]
        %v845 = vld [vmem:[%s0 + $0x5e] sm:$0xff]
        %v846 = vld [vmem:[%s0 + $0x66] sm:$0xff]
        %v847 = vld [vmem:[%s0 + $0x6e] sm:$0xff]
        %v848 = vld [vmem:[%s0 + $0x76] sm:$0xff]
        %v849 = vld [vmem:[%s0 + $0x7e] sm:$0xff]
        %v850 = vld [vmem:[%s0 + $0x86] sm:$0xff]
        %v851 = vld [vmem:[%s0 + $0x8e] sm:$0xff]
        %v852 = vld [vmem:[%s0 + $0x96] sm:$0xff]
        %v853 = vld [vmem:[%s0 + $0x9e] sm:$0xff]
        %v854 = vld [vmem:[%s0 + $0xa6] sm:$0xff]
        %v855 = vld [vmem:[%s0 + $0xae] sm:$0xff]
        %v856 = vpack.c.bf16 %v835, %v834
        %v857 = vpack.c.bf16 %v837, %v836
        %v858 = vpack.c.bf16 %v839, %v838
        %v859 = vpack.c.bf16 %v841, %v840
        %v860 = vpack.c.bf16 %v843, %v842
        %v861 = vpack.c.bf16 %v845, %v844
        %v862 = vpack.c.bf16 %v847, %v846
        %v863 = vpack.c.bf16 %v849, %v848
        %v864 = vpack.c.bf16 %v851, %v850
        %v865 = vpack.c.bf16 %v853, %v852
        %v866 = vpack.c.bf16 %v855, %v854
        %v867 = vld [vmem:[%s799] sm:$0xf]
        %v868 = vld [vmem:[%s799 + $0x4] sm:$0xf]
        %v869 = vld [vmem:[%s799 + $0x8] sm:$0xf]
        %v870 = vld [vmem:[%s799 + $0xc] sm:$0xf]
        %v871 = vld [vmem:[%s799 + $0x10] sm:$0xf]
        %v872 = vld [vmem:[%s799 + $0x14] sm:$0xf]
        %v873 = vld [vmem:[%s799 + $0x18] sm:$0xf]
        %v874 = vld [vmem:[%s799 + $0x1c] sm:$0xf]
        %v875 = vld [vmem:[%s799 + $0x20] sm:$0xf]
        %v876 = vld [vmem:[%s799 + $0x24] sm:$0xf]
        %v877 = vld [vmem:[%s799 + $0x28] sm:$0xf]
        %v878 = vld [vmem:[%s799 + $0x2c] sm:$0xf]
        %v879 = vld [vmem:[%s799 + $0x30] sm:$0xf]
        %v880 = vld [vmem:[%s799 + $0x34] sm:$0xf]
        %v881 = vld [vmem:[%s799 + $0x38] sm:$0xf]
        %v882 = vld [vmem:[%s799 + $0x3c] sm:$0xf]
        %v883 = vld [vmem:[%s0 + $0x7] sm:$0xff]
        %v884 = vld [vmem:[%s0 + $0xf] sm:$0xff]
        %v885 = vld [vmem:[%s0 + $0x17] sm:$0xff]
        %v886 = vld [vmem:[%s0 + $0x1f] sm:$0xff]
        %v887 = vld [vmem:[%s0 + $0x27] sm:$0xff]
        %v888 = vld [vmem:[%s0 + $0x2f] sm:$0xff]
        %v889 = vld [vmem:[%s0 + $0x37] sm:$0xff]
        %v890 = vld [vmem:[%s0 + $0x3f] sm:$0xff]
        %v891 = vld [vmem:[%s0 + $0x47] sm:$0xff]
        %v892 = vld [vmem:[%s0 + $0x4f] sm:$0xff]
        %v893 = vld [vmem:[%s0 + $0x57] sm:$0xff]
        %v894 = vld [vmem:[%s0 + $0x5f] sm:$0xff]
        %v895 = vld [vmem:[%s0 + $0x67] sm:$0xff]
        %v896 = vld [vmem:[%s0 + $0x6f] sm:$0xff]
        %v897 = vld [vmem:[%s0 + $0x77] sm:$0xff]
        %v898 = vld [vmem:[%s0 + $0x7f] sm:$0xff]
        %v899 = vld [vmem:[%s0 + $0x87] sm:$0xff]
        %v900 = vld [vmem:[%s0 + $0x8f] sm:$0xff]
        %v901 = vld [vmem:[%s0 + $0x97] sm:$0xff]
        %v902 = vld [vmem:[%s0 + $0x9f] sm:$0xff]
        %v903 = vld [vmem:[%s0 + $0xa7] sm:$0xff]
        %v904 = vld [vmem:[%s0 + $0xaf] sm:$0xff]
        %v905 = vpack.c.bf16 %v884, %v883
        %v906 = vpack.c.bf16 %v886, %v885
        %v907 = vpack.c.bf16 %v888, %v887
        %v908 = vpack.c.bf16 %v890, %v889
        %v909 = vpack.c.bf16 %v892, %v891
        %v910 = vpack.c.bf16 %v894, %v893
        %v911 = vpack.c.bf16 %v896, %v895
        %v912 = vpack.c.bf16 %v898, %v897
        %v913 = vpack.c.bf16 %v900, %v899
        %v914 = vpack.c.bf16 %v902, %v901
        %v915 = vpack.c.bf16 %v904, %v903
        %v916 = vld [vmem:[%s799 + $0x40] sm:$0xf]
        %v917 = vld [vmem:[%s799 + $0x44] sm:$0xf]
        %v918 = vld [vmem:[%s799 + $0x48] sm:$0xf]
        %v919 = vld [vmem:[%s799 + $0x4c] sm:$0xf]
        %v920 = vld [vmem:[%s799 + $0x50] sm:$0xf]
        %v921 = vld [vmem:[%s799 + $0x54] sm:$0xf]
        %v922 = vld [vmem:[%s799 + $0x58] sm:$0xf]
        %v923 = vld [vmem:[%s799 + $0x5c] sm:$0xf]
        %v924 = vld [vmem:[%s799 + $0x60] sm:$0xf]
        %v925 = vld [vmem:[%s799 + $0x64] sm:$0xf]
        %v926 = vld [vmem:[%s799 + $0x68] sm:$0xf]
        %v927 = vld [vmem:[%s799 + $0x6c] sm:$0xf]
        %v928 = vld [vmem:[%s799 + $0x70] sm:$0xf]
        %v929 = vld [vmem:[%s799 + $0x74] sm:$0xf]
        %v930 = vld [vmem:[%s799 + $0x78] sm:$0xf]
        %v931 = vld [vmem:[%s799 + $0x7c] sm:$0xf]
        %v948 = vunpack.c.l.b16 %v916
        %v949 = vunpack.c.l.b16 %v917
        %v950 = vunpack.c.l.b16 %v918
        %v951 = vunpack.c.l.b16 %v919
        %v952 = vunpack.c.l.b16 %v920
        %v953 = vunpack.c.l.b16 %v921
        %v954 = vunpack.c.l.b16 %v922
        %v955 = vunpack.c.l.b16 %v923
        %v956 = vunpack.c.l.b16 %v924
        %v957 = vunpack.c.l.b16 %v925
        %v958 = vunpack.c.l.b16 %v926
        %v959 = vunpack.c.l.b16 %v927
        %v960 = vunpack.c.l.b16 %v928
        %v961 = vunpack.c.l.b16 %v929
        %v962 = vunpack.c.l.b16 %v930
        %v963 = vunpack.c.l.b16 %v931
        %v964 = vpack.c.b16 %v949, %v948
        %v965 = vpack.c.b16 %v951, %v950
        %v966 = vpack.c.b16 %v953, %v952
        %v967 = vpack.c.b16 %v955, %v954
        %v968 = vpack.c.b16 %v957, %v956
        %v969 = vpack.c.b16 %v959, %v958
        %v970 = vpack.c.b16 %v961, %v960
        %v971 = vpack.c.b16 %v963, %v962
        %980 = vmatprep.subr.bf16.mxu0 0
        %981 = vmatpush1.bf16.msra.mxu0 %v964
        %982 = vmatprep.subr.bf16.mxu0 0
        %983 = vmatpush1.bf16.msra.mxu0 %v965
        %984 = vmatprep.subr.bf16.mxu0 0
        %985 = vmatpush1.bf16.msra.mxu0 %v966
        %986 = vmatprep.subr.bf16.mxu0 0
        %987 = vmatpush1.bf16.msra.mxu0 %v967
        %988 = vmatprep.subr.bf16.mxu0 0
        %989 = vmatpush1.bf16.msra.mxu0 %v968
        %990 = vmatprep.subr.bf16.mxu0 0
        %991 = vmatpush1.bf16.msra.mxu0 %v969
        %992 = vmatprep.subr.bf16.mxu0 0
        %993 = vmatpush1.bf16.msra.mxu0 %v970
        %994 = vmatprep.subr.bf16.mxu0 0
        %995 = vmatpush1.bf16.msra.mxu0 %v971
        %996 = vmatprep.subr.bf16.mxu0 0
        %997 = vmatpush1.bf16.msra.mxu0 0
        %998 = vmatprep.subr.bf16.mxu0 0
        %999 = vmatpush1.bf16.msra.mxu0 0
        %1000 = vmatprep.subr.bf16.mxu0 0
        %1001 = vmatpush1.bf16.msra.mxu0 0
        %1002 = vmatprep.subr.bf16.mxu0 0
        %1003 = vmatpush1.bf16.msra.mxu0 0
        %1004 = vmatprep.subr.bf16.mxu0 0
        %1005 = vmatpush1.bf16.msra.mxu0 0
        %1006 = vmatprep.subr.bf16.mxu0 0
        %1007 = vmatpush1.bf16.msra.mxu0 0
        %1008 = vmatprep.subr.bf16.mxu0 0
        %1009 = vmatpush1.bf16.msra.mxu0 0
        %1010 = vmatprep.subr.bf16.mxu0 0
        %1011 = vmatpush1.bf16.msra.mxu0 0
        %1012 = vmatprep.mubr.bf16.mxu0 0
        %1013 = vmatmul.mubr.bf16.gmra.mrb[0].mxu0 %v905
        %v1014 = vpop.f32.mrb[0].mxu0
        %v1015 = vadd.f32 0.0, %v1014
        %v1016 = vpop.f32.mrb[0].mxu0
        %v1017 = vpop.f32.mrb[0].mxu0
        %v1018 = vadd.f32 0.0, %v1017
        %v1019 = vpop.f32.mrb[0].mxu0
        %1020 = vmatprep.mubr.bf16.mxu0 0
        %1021 = vmatmul.mubr.bf16.gmra.mrb[0].mxu0 %v906
        %v1022 = vpop.f32.mrb[0].mxu0
        %v1023 = vadd.f32 0.0, %v1022
        %v1024 = vpop.f32.mrb[0].mxu0
        %v1025 = vpop.f32.mrb[0].mxu0
        %v1026 = vadd.f32 0.0, %v1025
        %v1027 = vpop.f32.mrb[0].mxu0
        %1028 = vmatprep.mubr.bf16.mxu0 0
        %1029 = vmatmul.mubr.bf16.gmra.mrb[0].mxu0 %v907
        %v1030 = vpop.f32.mrb[0].mxu0
        %v1031 = vadd.f32 0.0, %v1030
        %v1032 = vpop.f32.mrb[0].mxu0
        %v1033 = vpop.f32.mrb[0].mxu0
        %v1034 = vadd.f32 0.0, %v1033
        %v1035 = vpop.f32.mrb[0].mxu0
        %1036 = vmatprep.mubr.bf16.mxu0 0
        %1037 = vmatmul.mubr.bf16.gmra.mrb[0].mxu0 %v908
        %v1038 = vpop.f32.mrb[0].mxu0
        %v1039 = vadd.f32 0.0, %v1038
        %v1040 = vpop.f32.mrb[0].mxu0
        %v1041 = vpop.f32.mrb[0].mxu0
        %v1042 = vadd.f32 0.0, %v1041
        %v1043 = vpop.f32.mrb[0].mxu0
        %1044 = vmatprep.mubr.bf16.mxu0 0
        %1045 = vmatmul.mubr.bf16.gmra.mrb[0].mxu0 %v909
        %v1046 = vpop.f32.mrb[0].mxu0
        %v1047 = vadd.f32 0.0, %v1046
        %v1048 = vpop.f32.mrb[0].mxu0
        %v1049 = vpop.f32.mrb[0].mxu0
        %v1050 = vadd.f32 0.0, %v1049
        %v1051 = vpop.f32.mrb[0].mxu0
        %1052 = vmatprep.mubr.bf16.mxu0 0
        %1053 = vmatmul.mubr.bf16.gmra.mrb[0].mxu0 %v910
        %v1054 = vpop.f32.mrb[0].mxu0
        %v1055 = vadd.f32 0.0, %v1054
        %v1056 = vpop.f32.mrb[0].mxu0
        %v1057 = vpop.f32.mrb[0].mxu0
        %v1058 = vadd.f32 0.0, %v1057
        %v1059 = vpop.f32.mrb[0].mxu0
        %1060 = vmatprep.mubr.bf16.mxu0 0
        %1061 = vmatmul.mubr.bf16.gmra.mrb[0].mxu0 %v911
        %v1062 = vpop.f32.mrb[0].mxu0
        %v1063 = vadd.f32 0.0, %v1062
        %v1064 = vpop.f32.mrb[0].mxu0
        %v1065 = vpop.f32.mrb[0].mxu0
        %v1066 = vadd.f32 0.0, %v1065
        %v1067 = vpop.f32.mrb[0].mxu0
        %1068 = vmatprep.mubr.bf16.mxu0 0
        %1069 = vmatmul.mubr.bf16.gmra.mrb[0].mxu0 %v912
        %v1070 = vpop.f32.mrb[0].mxu0
        %v1071 = vadd.f32 0.0, %v1070
        %v1072 = vpop.f32.mrb[0].mxu0
        %v1073 = vpop.f32.mrb[0].mxu0
        %v1074 = vadd.f32 0.0, %v1073
        %v1075 = vpop.f32.mrb[0].mxu0
        %1076 = vmatprep.mubr.bf16.mxu0 0
        %1077 = vmatmul.mubr.bf16.gmra.mrb[0].mxu0 %v913
        %v1078 = vpop.f32.mrb[0].mxu0
        %v1079 = vadd.f32 0.0, %v1078
        %v1080 = vpop.f32.mrb[0].mxu0
        %v1081 = vpop.f32.mrb[0].mxu0
        %v1082 = vadd.f32 0.0, %v1081
        %v1083 = vpop.f32.mrb[0].mxu0
        %1084 = vmatprep.mubr.bf16.mxu0 0
        %1085 = vmatmul.mubr.bf16.gmra.mrb[0].mxu0 %v914
        %v1086 = vpop.f32.mrb[0].mxu0
        %v1087 = vadd.f32 0.0, %v1086
        %v1088 = vpop.f32.mrb[0].mxu0
        %v1089 = vpop.f32.mrb[0].mxu0
        %v1090 = vadd.f32 0.0, %v1089
        %v1091 = vpop.f32.mrb[0].mxu0
        %1092 = vmatprep.mubr.bf16.mxu0 0
        %1093 = vmatmul.mubr.bf16.gmra.mrb[0].mxu0 %v915
        %v1094 = vpop.f32.mrb[0].mxu0
        %v1095 = vadd.f32 0.0, %v1094
        %v1096 = vpop.f32.mrb[0].mxu0
        %v1097 = vpop.f32.mrb[0].mxu0
        %v1098 = vadd.f32 0.0, %v1097
        %v1099 = vpop.f32.mrb[0].mxu0
        %1100 = vdwg.mxu0
        %v1117 = vunpack.c.l.b16 %v867
        %v1118 = vunpack.c.l.b16 %v868
        %v1119 = vunpack.c.l.b16 %v869
        %v1120 = vunpack.c.l.b16 %v870
        %v1121 = vunpack.c.l.b16 %v871
        %v1122 = vunpack.c.l.b16 %v872
        %v1123 = vunpack.c.l.b16 %v873
        %v1124 = vunpack.c.l.b16 %v874
        %v1125 = vunpack.c.l.b16 %v875
        %v1126 = vunpack.c.l.b16 %v876
        %v1127 = vunpack.c.l.b16 %v877
        %v1128 = vunpack.c.l.b16 %v878
        %v1129 = vunpack.c.l.b16 %v879
        %v1130 = vunpack.c.l.b16 %v880
        %v1131 = vunpack.c.l.b16 %v881
        %v1132 = vunpack.c.l.b16 %v882
        %v1133 = vpack.c.b16 %v1118, %v1117
        %v1134 = vpack.c.b16 %v1120, %v1119
        %v1135 = vpack.c.b16 %v1122, %v1121
        %v1136 = vpack.c.b16 %v1124, %v1123
        %v1137 = vpack.c.b16 %v1126, %v1125
        %v1138 = vpack.c.b16 %v1128, %v1127
        %v1139 = vpack.c.b16 %v1130, %v1129
        %v1140 = vpack.c.b16 %v1132, %v1131
        %1149 = vmatprep.subr.bf16.mxu0 0
        %1150 = vmatpush1.bf16.msra.mxu0 %v1133
        %1151 = vmatprep.subr.bf16.mxu0 0
        %1152 = vmatpush1.bf16.msra.mxu0 %v1134
        %1153 = vmatprep.subr.bf16.mxu0 0
        %1154 = vmatpush1.bf16.msra.mxu0 %v1135
        %1155 = vmatprep.subr.bf16.mxu0 0
        %1156 = vmatpush1.bf16.msra.mxu0 %v1136
        %1157 = vmatprep.subr.bf16.mxu0 0
        %1158 = vmatpush1.bf16.msra.mxu0 %v1137
        %1159 = vmatprep.subr.bf16.mxu0 0
        %1160 = vmatpush1.bf16.msra.mxu0 %v1138
        %1161 = vmatprep.subr.bf16.mxu0 0
        %1162 = vmatpush1.bf16.msra.mxu0 %v1139
        %1163 = vmatprep.subr.bf16.mxu0 0
        %1164 = vmatpush1.bf16.msra.mxu0 %v1140
        %1165 = vmatprep.subr.bf16.mxu0 0
        %1166 = vmatpush1.bf16.msra.mxu0 0
        %1167 = vmatprep.subr.bf16.mxu0 0
        %1168 = vmatpush1.bf16.msra.mxu0 0
        %1169 = vmatprep.subr.bf16.mxu0 0
        %1170 = vmatpush1.bf16.msra.mxu0 0
        %1171 = vmatprep.subr.bf16.mxu0 0
        %1172 = vmatpush1.bf16.msra.mxu0 0
        %1173 = vmatprep.subr.bf16.mxu0 0
        %1174 = vmatpush1.bf16.msra.mxu0 0
        %1175 = vmatprep.subr.bf16.mxu0 0
        %1176 = vmatpush1.bf16.msra.mxu0 0
        %1177 = vmatprep.subr.bf16.mxu0 0
        %1178 = vmatpush1.bf16.msra.mxu0 0
        %1179 = vmatprep.subr.bf16.mxu0 0
        %1180 = vmatpush1.bf16.msra.mxu0 0
        %1181 = vmatprep.mubr.bf16.mxu0 0
        %1182 = vmatmul.mubr.bf16.gmra.mrb[0].mxu0 %v856
        %v1183 = vpop.f32.mrb[0].mxu0
        %v1184 = vadd.f32 %v1015, %v1183
        %v1185 = vpop.f32.mrb[0].mxu0
        %v1186 = vpop.f32.mrb[0].mxu0
        %v1187 = vadd.f32 %v1018, %v1186
        %v1188 = vpop.f32.mrb[0].mxu0
        %1189 = vmatprep.mubr.bf16.mxu0 0
        %1190 = vmatmul.mubr.bf16.gmra.mrb[0].mxu0 %v857
        %v1191 = vpop.f32.mrb[0].mxu0
        %v1192 = vadd.f32 %v1023, %v1191
        %v1193 = vpop.f32.mrb[0].mxu0
        %v1194 = vpop.f32.mrb[0].mxu0
        %v1195 = vadd.f32 %v1026, %v1194
        %v1196 = vpop.f32.mrb[0].mxu0
        %1197 = vmatprep.mubr.bf16.mxu0 0
        %1198 = vmatmul.mubr.bf16.gmra.mrb[0].mxu0 %v858
        %v1199 = vpop.f32.mrb[0].mxu0
        %v1200 = vadd.f32 %v1031, %v1199
        %v1201 = vpop.f32.mrb[0].mxu0
        %v1202 = vpop.f32.mrb[0].mxu0
        %v1203 = vadd.f32 %v1034, %v1202
        %v1204 = vpop.f32.mrb[0].mxu0
        %1205 = vmatprep.mubr.bf16.mxu0 0
        %1206 = vmatmul.mubr.bf16.gmra.mrb[0].mxu0 %v859
        %v1207 = vpop.f32.mrb[0].mxu0
        %v1208 = vadd.f32 %v1039, %v1207
        %v1209 = vpop.f32.mrb[0].mxu0
        %v1210 = vpop.f32.mrb[0].mxu0
        %v1211 = vadd.f32 %v1042, %v1210
        %v1212 = vpop.f32.mrb[0].mxu0
        %1213 = vmatprep.mubr.bf16.mxu0 0
        %1214 = vmatmul.mubr.bf16.gmra.mrb[0].mxu0 %v860
        %v1215 = vpop.f32.mrb[0].mxu0
        %v1216 = vadd.f32 %v1047, %v1215
        %v1217 = vpop.f32.mrb[0].mxu0
        %v1218 = vpop.f32.mrb[0].mxu0
        %v1219 = vadd.f32 %v1050, %v1218
        %v1220 = vpop.f32.mrb[0].mxu0
        %1221 = vmatprep.mubr.bf16.mxu0 0
        %1222 = vmatmul.mubr.bf16.gmra.mrb[0].mxu0 %v861
        %v1223 = vpop.f32.mrb[0].mxu0
        %v1224 = vadd.f32 %v1055, %v1223
        %v1225 = vpop.f32.mrb[0].mxu0
        %v1226 = vpop.f32.mrb[0].mxu0
        %v1227 = vadd.f32 %v1058, %v1226
        %v1228 = vpop.f32.mrb[0].mxu0
        %1229 = vmatprep.mubr.bf16.mxu0 0
        %1230 = vmatmul.mubr.bf16.gmra.mrb[0].mxu0 %v862
        %v1231 = vpop.f32.mrb[0].mxu0
        %v1232 = vadd.f32 %v1063, %v1231
        %v1233 = vpop.f32.mrb[0].mxu0
        %v1234 = vpop.f32.mrb[0].mxu0
        %v1235 = vadd.f32 %v1066, %v1234
        %v1236 = vpop.f32.mrb[0].mxu0
        %1237 = vmatprep.mubr.bf16.mxu0 0
        %1238 = vmatmul.mubr.bf16.gmra.mrb[0].mxu0 %v863
        %v1239 = vpop.f32.mrb[0].mxu0
        %v1240 = vadd.f32 %v1071, %v1239
        %v1241 = vpop.f32.mrb[0].mxu0
        %v1242 = vpop.f32.mrb[0].mxu0
        %v1243 = vadd.f32 %v1074, %v1242
        %v1244 = vpop.f32.mrb[0].mxu0
        %1245 = vmatprep.mubr.bf16.mxu0 0
        %1246 = vmatmul.mubr.bf16.gmra.mrb[0].mxu0 %v864
        %v1247 = vpop.f32.mrb[0].mxu0
        %v1248 = vadd.f32 %v1079, %v1247
        %v1249 = vpop.f32.mrb[0].mxu0
        %v1250 = vpop.f32.mrb[0].mxu0
        %v1251 = vadd.f32 %v1082, %v1250
        %v1252 = vpop.f32.mrb[0].mxu0
        %1253 = vmatprep.mubr.bf16.mxu0 0
        %1254 = vmatmul.mubr.bf16.gmra.mrb[0].mxu0 %v865
        %v1255 = vpop.f32.mrb[0].mxu0
        %v1256 = vadd.f32 %v1087, %v1255
        %v1257 = vpop.f32.mrb[0].mxu0
        %v1258 = vpop.f32.mrb[0].mxu0
        %v1259 = vadd.f32 %v1090, %v1258
        %v1260 = vpop.f32.mrb[0].mxu0
        %1261 = vmatprep.mubr.bf16.mxu0 0
        %1262 = vmatmul.mubr.bf16.gmra.mrb[0].mxu0 %v866
        %v1263 = vpop.f32.mrb[0].mxu0
        %v1264 = vadd.f32 %v1095, %v1263
        %v1265 = vpop.f32.mrb[0].mxu0
        %v1266 = vpop.f32.mrb[0].mxu0
        %v1267 = vadd.f32 %v1098, %v1266
        %v1268 = vpop.f32.mrb[0].mxu0
        %1269 = vdwg.mxu0
        %v1270 = vld [vmem:[%s0 + $0x8] sm:$0xff]
        %v1271 = vld [vmem:[%s0 + $0x10] sm:$0xff]
        %v1272 = vld [vmem:[%s0 + $0x18] sm:$0xff]
        %v1273 = vld [vmem:[%s0 + $0x20] sm:$0xff]
        %v1274 = vld [vmem:[%s0 + $0x28] sm:$0xff]
        %v1275 = vld [vmem:[%s0 + $0x30] sm:$0xff]
        %v1276 = vld [vmem:[%s0 + $0x38] sm:$0xff]
        %v1277 = vld [vmem:[%s0 + $0x40] sm:$0xff]
        %v1278 = vld [vmem:[%s0 + $0x48] sm:$0xff]
        %v1279 = vld [vmem:[%s0 + $0x50] sm:$0xff]
        %v1280 = vld [vmem:[%s0 + $0x58] sm:$0xff]
        %v1281 = vld [vmem:[%s0 + $0x60] sm:$0xff]
        %v1282 = vld [vmem:[%s0 + $0x68] sm:$0xff]
        %v1283 = vld [vmem:[%s0 + $0x70] sm:$0xff]
        %v1284 = vld [vmem:[%s0 + $0x78] sm:$0xff]
        %v1285 = vld [vmem:[%s0 + $0x80] sm:$0xff]
        %v1286 = vld [vmem:[%s0 + $0x88] sm:$0xff]
        %v1287 = vld [vmem:[%s0 + $0x90] sm:$0xff]
        %v1288 = vld [vmem:[%s0 + $0x98] sm:$0xff]
        %v1289 = vld [vmem:[%s0 + $0xa0] sm:$0xff]
        %v1290 = vld [vmem:[%s0 + $0xa8] sm:$0xff]
        %v1291 = vld [vmem:[%s0 + $0xb0] sm:$0xff]
        %v1292 = vpack.c.bf16 %v1271, %v1270
        %v1293 = vpack.c.bf16 %v1273, %v1272
        %v1294 = vpack.c.bf16 %v1275, %v1274
        %v1295 = vpack.c.bf16 %v1277, %v1276
        %v1296 = vpack.c.bf16 %v1279, %v1278
        %v1297 = vpack.c.bf16 %v1281, %v1280
        %v1298 = vpack.c.bf16 %v1283, %v1282
        %v1299 = vpack.c.bf16 %v1285, %v1284
        %v1300 = vpack.c.bf16 %v1287, %v1286
        %v1301 = vpack.c.bf16 %v1289, %v1288
        %v1302 = vpack.c.bf16 %v1291, %v1290
        %v1303 = vld [vmem:[%s799 + $0x80] sm:$0xf]
        %v1304 = vld [vmem:[%s799 + $0x84] sm:$0xf]
        %v1305 = vld [vmem:[%s799 + $0x88] sm:$0xf]
        %v1306 = vld [vmem:[%s799 + $0x8c] sm:$0xf]
        %v1307 = vld [vmem:[%s799 + $0x90] sm:$0xf]
        %v1308 = vld [vmem:[%s799 + $0x94] sm:$0xf]
        %v1309 = vld [vmem:[%s799 + $0x98] sm:$0xf]
        %v1310 = vld [vmem:[%s799 + $0x9c] sm:$0xf]
        %v1311 = vld [vmem:[%s799 + $0xa0] sm:$0xf]
        %v1312 = vld [vmem:[%s799 + $0xa4] sm:$0xf]
        %v1313 = vld [vmem:[%s799 + $0xa8] sm:$0xf]
        %v1314 = vld [vmem:[%s799 + $0xac] sm:$0xf]
        %v1315 = vld [vmem:[%s799 + $0xb0] sm:$0xf]
        %v1316 = vld [vmem:[%s799 + $0xb4] sm:$0xf]
        %v1317 = vld [vmem:[%s799 + $0xb8] sm:$0xf]
        %v1318 = vld [vmem:[%s799 + $0xbc] sm:$0xf]
        %v1335 = vunpack.c.l.b16 %v1303
        %v1336 = vunpack.c.l.b16 %v1304
        %v1337 = vunpack.c.l.b16 %v1305
        %v1338 = vunpack.c.l.b16 %v1306
        %v1339 = vunpack.c.l.b16 %v1307
        %v1340 = vunpack.c.l.b16 %v1308
        %v1341 = vunpack.c.l.b16 %v1309
        %v1342 = vunpack.c.l.b16 %v1310
        %v1343 = vunpack.c.l.b16 %v1311
        %v1344 = vunpack.c.l.b16 %v1312
        %v1345 = vunpack.c.l.b16 %v1313
        %v1346 = vunpack.c.l.b16 %v1314
        %v1347 = vunpack.c.l.b16 %v1315
        %v1348 = vunpack.c.l.b16 %v1316
        %v1349 = vunpack.c.l.b16 %v1317
        %v1350 = vunpack.c.l.b16 %v1318
        %v1351 = vpack.c.b16 %v1336, %v1335
        %v1352 = vpack.c.b16 %v1338, %v1337
        %v1353 = vpack.c.b16 %v1340, %v1339
        %v1354 = vpack.c.b16 %v1342, %v1341
        %v1355 = vpack.c.b16 %v1344, %v1343
        %v1356 = vpack.c.b16 %v1346, %v1345
        %v1357 = vpack.c.b16 %v1348, %v1347
        %v1358 = vpack.c.b16 %v1350, %v1349
        %1367 = vmatprep.subr.bf16.mxu0 0
        %1368 = vmatpush1.bf16.msra.mxu0 %v1351
        %1369 = vmatprep.subr.bf16.mxu0 0
        %1370 = vmatpush1.bf16.msra.mxu0 %v1352
        %1371 = vmatprep.subr.bf16.mxu0 0
        %1372 = vmatpush1.bf16.msra.mxu0 %v1353
        %1373 = vmatprep.subr.bf16.mxu0 0
        %1374 = vmatpush1.bf16.msra.mxu0 %v1354
        %1375 = vmatprep.subr.bf16.mxu0 0
        %1376 = vmatpush1.bf16.msra.mxu0 %v1355
        %1377 = vmatprep.subr.bf16.mxu0 0
        %1378 = vmatpush1.bf16.msra.mxu0 %v1356
        %1379 = vmatprep.subr.bf16.mxu0 0
        %1380 = vmatpush1.bf16.msra.mxu0 %v1357
        %1381 = vmatprep.subr.bf16.mxu0 0
        %1382 = vmatpush1.bf16.msra.mxu0 %v1358
        %1383 = vmatprep.subr.bf16.mxu0 0
        %1384 = vmatpush1.bf16.msra.mxu0 0
        %1385 = vmatprep.subr.bf16.mxu0 0
        %1386 = vmatpush1.bf16.msra.mxu0 0
        %1387 = vmatprep.subr.bf16.mxu0 0
        %1388 = vmatpush1.bf16.msra.mxu0 0
        %1389 = vmatprep.subr.bf16.mxu0 0
        %1390 = vmatpush1.bf16.msra.mxu0 0
        %1391 = vmatprep.subr.bf16.mxu0 0
        %1392 = vmatpush1.bf16.msra.mxu0 0
        %1393 = vmatprep.subr.bf16.mxu0 0
        %1394 = vmatpush1.bf16.msra.mxu0 0
        %1395 = vmatprep.subr.bf16.mxu0 0
        %1396 = vmatpush1.bf16.msra.mxu0 0
        %1397 = vmatprep.subr.bf16.mxu0 0
        %1398 = vmatpush1.bf16.msra.mxu0 0
        %1399 = vmatprep.mubr.bf16.mxu0 0
        %1400 = vmatmul.mubr.bf16.gmra.mrb[0].mxu0 %v1292
        %v1401 = vpop.f32.mrb[0].mxu0
        %v1402 = vadd.f32 0.0, %v1401
        %v1403 = vpop.f32.mrb[0].mxu0
        %v1404 = vpop.f32.mrb[0].mxu0
        %v1405 = vadd.f32 0.0, %v1404
        %v1406 = vpop.f32.mrb[0].mxu0
        %1407 = vmatprep.mubr.bf16.mxu0 0
        %1408 = vmatmul.mubr.bf16.gmra.mrb[0].mxu0 %v1293
        %v1409 = vpop.f32.mrb[0].mxu0
        %v1410 = vadd.f32 0.0, %v1409
        %v1411 = vpop.f32.mrb[0].mxu0
        %v1412 = vpop.f32.mrb[0].mxu0
        %v1413 = vadd.f32 0.0, %v1412
        %v1414 = vpop.f32.mrb[0].mxu0
        %1415 = vmatprep.mubr.bf16.mxu0 0
        %1416 = vmatmul.mubr.bf16.gmra.mrb[0].mxu0 %v1294
        %v1417 = vpop.f32.mrb[0].mxu0
        %v1418 = vadd.f32 0.0, %v1417
        %v1419 = vpop.f32.mrb[0].mxu0
        %v1420 = vpop.f32.mrb[0].mxu0
        %v1421 = vadd.f32 0.0, %v1420
        %v1422 = vpop.f32.mrb[0].mxu0
        %1423 = vmatprep.mubr.bf16.mxu0 0
        %1424 = vmatmul.mubr.bf16.gmra.mrb[0].mxu0 %v1295
        %v1425 = vpop.f32.mrb[0].mxu0
        %v1426 = vadd.f32 0.0, %v1425
        %v1427 = vpop.f32.mrb[0].mxu0
        %v1428 = vpop.f32.mrb[0].mxu0
        %v1429 = vadd.f32 0.0, %v1428
        %v1430 = vpop.f32.mrb[0].mxu0
        %1431 = vmatprep.mubr.bf16.mxu0 0
        %1432 = vmatmul.mubr.bf16.gmra.mrb[0].mxu0 %v1296
        %v1433 = vpop.f32.mrb[0].mxu0
        %v1434 = vadd.f32 0.0, %v1433
        %v1435 = vpop.f32.mrb[0].mxu0
        %v1436 = vpop.f32.mrb[0].mxu0
        %v1437 = vadd.f32 0.0, %v1436
        %v1438 = vpop.f32.mrb[0].mxu0
        %1439 = vmatprep.mubr.bf16.mxu0 0
        %1440 = vmatmul.mubr.bf16.gmra.mrb[0].mxu0 %v1297
        %v1441 = vpop.f32.mrb[0].mxu0
        %v1442 = vadd.f32 0.0, %v1441
        %v1443 = vpop.f32.mrb[0].mxu0
        %v1444 = vpop.f32.mrb[0].mxu0
        %v1445 = vadd.f32 0.0, %v1444
        %v1446 = vpop.f32.mrb[0].mxu0
        %1447 = vmatprep.mubr.bf16.mxu0 0
        %1448 = vmatmul.mubr.bf16.gmra.mrb[0].mxu0 %v1298
        %v1449 = vpop.f32.mrb[0].mxu0
        %v1450 = vadd.f32 0.0, %v1449
        %v1451 = vpop.f32.mrb[0].mxu0
        %v1452 = vpop.f32.mrb[0].mxu0
        %v1453 = vadd.f32 0.0, %v1452
        %v1454 = vpop.f32.mrb[0].mxu0
        %1455 = vmatprep.mubr.bf16.mxu0 0
        %1456 = vmatmul.mubr.bf16.gmra.mrb[0].mxu0 %v1299
        %v1457 = vpop.f32.mrb[0].mxu0
        %v1458 = vadd.f32 0.0, %v1457
        %v1459 = vpop.f32.mrb[0].mxu0
        %v1460 = vpop.f32.mrb[0].mxu0
        %v1461 = vadd.f32 0.0, %v1460
        %v1462 = vpop.f32.mrb[0].mxu0
        %1463 = vmatprep.mubr.bf16.mxu0 0
        %1464 = vmatmul.mubr.bf16.gmra.mrb[0].mxu0 %v1300
        %v1465 = vpop.f32.mrb[0].mxu0
        %v1466 = vadd.f32 0.0, %v1465
        %v1467 = vpop.f32.mrb[0].mxu0
        %v1468 = vpop.f32.mrb[0].mxu0
        %v1469 = vadd.f32 0.0, %v1468
        %v1470 = vpop.f32.mrb[0].mxu0
        %1471 = vmatprep.mubr.bf16.mxu0 0
        %1472 = vmatmul.mubr.bf16.gmra.mrb[0].mxu0 %v1301
        %v1473 = vpop.f32.mrb[0].mxu0
        %v1474 = vadd.f32 0.0, %v1473
        %v1475 = vpop.f32.mrb[0].mxu0
        %v1476 = vpop.f32.mrb[0].mxu0
        %v1477 = vadd.f32 0.0, %v1476
        %v1478 = vpop.f32.mrb[0].mxu0
        %1479 = vmatprep.mubr.bf16.mxu0 0
        %1480 = vmatmul.mubr.bf16.gmra.mrb[0].mxu0 %v1302
        %v1481 = vpop.f32.mrb[0].mxu0
        %v1482 = vadd.f32 0.0, %v1481
        %v1483 = vpop.f32.mrb[0].mxu0
        %v1484 = vpop.f32.mrb[0].mxu0
        %v1485 = vadd.f32 0.0, %v1484
        %v1486 = vpop.f32.mrb[0].mxu0
        %1487 = vdwg.mxu0
        %v1488 = vadd.f32 %v1184, %v1402
        %v1489 = vadd.f32 %v1187, %v1405
        %v1490 = vadd.f32 %v1192, %v1410
        %v1491 = vadd.f32 %v1195, %v1413
        %v1492 = vadd.f32 %v1200, %v1418
        %v1493 = vadd.f32 %v1203, %v1421
        %v1494 = vadd.f32 %v1208, %v1426
        %v1495 = vadd.f32 %v1211, %v1429
        %v1496 = vadd.f32 %v1216, %v1434
        %v1497 = vadd.f32 %v1219, %v1437
        %v1498 = vadd.f32 %v1224, %v1442
        %v1499 = vadd.f32 %v1227, %v1445
        %v1500 = vadd.f32 %v1232, %v1450
        %v1501 = vadd.f32 %v1235, %v1453
        %v1502 = vadd.f32 %v1240, %v1458
        %v1503 = vadd.f32 %v1243, %v1461
        %v1504 = vadd.f32 %v1248, %v1466
        %v1505 = vadd.f32 %v1251, %v1469
        %v1506 = vadd.f32 %v1256, %v1474
        %v1507 = vadd.f32 %v1259, %v1477
        %v1508 = vadd.f32 %v1264, %v1482
        %v1509 = vadd.f32 %v1267, %v1485
        %v1510 = vld [vmem:[%s0 + $0xf] sm:$0xff]
        %v1511 = vld [vmem:[%s0 + $0x17] sm:$0xff]
        %v1512 = vld [vmem:[%s0 + $0x1f] sm:$0xff]
        %v1513 = vld [vmem:[%s0 + $0x27] sm:$0xff]
        %v1514 = vld [vmem:[%s0 + $0x2f] sm:$0xff]
        %v1515 = vld [vmem:[%s0 + $0x37] sm:$0xff]
        %v1516 = vld [vmem:[%s0 + $0x3f] sm:$0xff]
        %v1517 = vld [vmem:[%s0 + $0x47] sm:$0xff]
        %v1518 = vld [vmem:[%s0 + $0x4f] sm:$0xff]
        %v1519 = vld [vmem:[%s0 + $0x57] sm:$0xff]
        %v1520 = vld [vmem:[%s0 + $0x5f] sm:$0xff]
        %v1521 = vld [vmem:[%s0 + $0x67] sm:$0xff]
        %v1522 = vld [vmem:[%s0 + $0x6f] sm:$0xff]
        %v1523 = vld [vmem:[%s0 + $0x77] sm:$0xff]
        %v1524 = vld [vmem:[%s0 + $0x7f] sm:$0xff]
        %v1525 = vld [vmem:[%s0 + $0x87] sm:$0xff]
        %v1526 = vld [vmem:[%s0 + $0x8f] sm:$0xff]
        %v1527 = vld [vmem:[%s0 + $0x97] sm:$0xff]
        %v1528 = vld [vmem:[%s0 + $0x9f] sm:$0xff]
        %v1529 = vld [vmem:[%s0 + $0xa7] sm:$0xff]
        %v1530 = vld [vmem:[%s0 + $0xaf] sm:$0xff]
        %v1531 = vld [vmem:[%s0 + $0xb7] sm:$0xff]
        %v1532 = vpack.c.bf16 %v1511, %v1510
        %v1533 = vpack.c.bf16 %v1513, %v1512
        %v1534 = vpack.c.bf16 %v1515, %v1514
        %v1535 = vpack.c.bf16 %v1517, %v1516
        %v1536 = vpack.c.bf16 %v1519, %v1518
        %v1537 = vpack.c.bf16 %v1521, %v1520
        %v1538 = vpack.c.bf16 %v1523, %v1522
        %v1539 = vpack.c.bf16 %v1525, %v1524
        %v1540 = vpack.c.bf16 %v1527, %v1526
        %v1541 = vpack.c.bf16 %v1529, %v1528
        %v1542 = vpack.c.bf16 %v1531, %v1530
        %v1543 = vld [vmem:[%s799 + $0xc0] sm:$0xf]
        %v1544 = vld [vmem:[%s799 + $0xc4] sm:$0xf]
        %v1545 = vld [vmem:[%s799 + $0xc8] sm:$0xf]
        %v1546 = vld [vmem:[%s799 + $0xcc] sm:$0xf]
        %v1547 = vld [vmem:[%s799 + $0xd0] sm:$0xf]
        %v1548 = vld [vmem:[%s799 + $0xd4] sm:$0xf]
        %v1549 = vld [vmem:[%s799 + $0xd8] sm:$0xf]
        %v1550 = vld [vmem:[%s799 + $0xdc] sm:$0xf]
        %v1551 = vld [vmem:[%s799 + $0xe0] sm:$0xf]
        %v1552 = vld [vmem:[%s799 + $0xe4] sm:$0xf]
        %v1553 = vld [vmem:[%s799 + $0xe8] sm:$0xf]
        %v1554 = vld [vmem:[%s799 + $0xec] sm:$0xf]
        %v1555 = vld [vmem:[%s799 + $0xf0] sm:$0xf]
        %v1556 = vld [vmem:[%s799 + $0xf4] sm:$0xf]
        %v1557 = vld [vmem:[%s799 + $0xf8] sm:$0xf]
        %v1558 = vld [vmem:[%s799 + $0xfc] sm:$0xf]
        %v1575 = vunpack.c.l.b16 %v1543
        %v1576 = vunpack.c.l.b16 %v1544
        %v1577 = vunpack.c.l.b16 %v1545
        %v1578 = vunpack.c.l.b16 %v1546
        %v1579 = vunpack.c.l.b16 %v1547
        %v1580 = vunpack.c.l.b16 %v1548
        %v1581 = vunpack.c.l.b16 %v1549
        %v1582 = vunpack.c.l.b16 %v1550
        %v1583 = vunpack.c.l.b16 %v1551
        %v1584 = vunpack.c.l.b16 %v1552
        %v1585 = vunpack.c.l.b16 %v1553
        %v1586 = vunpack.c.l.b16 %v1554
        %v1587 = vunpack.c.l.b16 %v1555
        %v1588 = vunpack.c.l.b16 %v1556
        %v1589 = vunpack.c.l.b16 %v1557
        %v1590 = vunpack.c.l.b16 %v1558
        %v1591 = vpack.c.b16 %v1576, %v1575
        %v1592 = vpack.c.b16 %v1578, %v1577
        %v1593 = vpack.c.b16 %v1580, %v1579
        %v1594 = vpack.c.b16 %v1582, %v1581
        %v1595 = vpack.c.b16 %v1584, %v1583
        %v1596 = vpack.c.b16 %v1586, %v1585
        %v1597 = vpack.c.b16 %v1588, %v1587
        %v1598 = vpack.c.b16 %v1590, %v1589
        %1607 = vmatprep.subr.bf16.mxu0 0
        %1608 = vmatpush1.bf16.msra.mxu0 %v1591
        %1609 = vmatprep.subr.bf16.mxu0 0
        %1610 = vmatpush1.bf16.msra.mxu0 %v1592
        %1611 = vmatprep.subr.bf16.mxu0 0
        %1612 = vmatpush1.bf16.msra.mxu0 %v1593
        %1613 = vmatprep.subr.bf16.mxu0 0
        %1614 = vmatpush1.bf16.msra.mxu0 %v1594
        %1615 = vmatprep.subr.bf16.mxu0 0
        %1616 = vmatpush1.bf16.msra.mxu0 %v1595
        %1617 = vmatprep.subr.bf16.mxu0 0
        %1618 = vmatpush1.bf16.msra.mxu0 %v1596
        %1619 = vmatprep.subr.bf16.mxu0 0
        %1620 = vmatpush1.bf16.msra.mxu0 %v1597
        %1621 = vmatprep.subr.bf16.mxu0 0
        %1622 = vmatpush1.bf16.msra.mxu0 %v1598
        %1623 = vmatprep.subr.bf16.mxu0 0
        %1624 = vmatpush1.bf16.msra.mxu0 0
        %1625 = vmatprep.subr.bf16.mxu0 0
        %1626 = vmatpush1.bf16.msra.mxu0 0
        %1627 = vmatprep.subr.bf16.mxu0 0
        %1628 = vmatpush1.bf16.msra.mxu0 0
        %1629 = vmatprep.subr.bf16.mxu0 0
        %1630 = vmatpush1.bf16.msra.mxu0 0
        %1631 = vmatprep.subr.bf16.mxu0 0
        %1632 = vmatpush1.bf16.msra.mxu0 0
        %1633 = vmatprep.subr.bf16.mxu0 0
        %1634 = vmatpush1.bf16.msra.mxu0 0
        %1635 = vmatprep.subr.bf16.mxu0 0
        %1636 = vmatpush1.bf16.msra.mxu0 0
        %1637 = vmatprep.subr.bf16.mxu0 0
        %1638 = vmatpush1.bf16.msra.mxu0 0
        %1639 = vmatprep.mubr.bf16.mxu0 0
        %1640 = vmatmul.mubr.bf16.gmra.mrb[0].mxu0 %v1532
        %v1641 = vpop.f32.mrb[0].mxu0
        %v1642 = vadd.f32 0.0, %v1641
        %v1643 = vpop.f32.mrb[0].mxu0
        %v1644 = vpop.f32.mrb[0].mxu0
        %v1645 = vadd.f32 0.0, %v1644
        %v1646 = vpop.f32.mrb[0].mxu0
        %1647 = vmatprep.mubr.bf16.mxu0 0
        %1648 = vmatmul.mubr.bf16.gmra.mrb[0].mxu0 %v1533
        %v1649 = vpop.f32.mrb[0].mxu0
        %v1650 = vadd.f32 0.0, %v1649
        %v1651 = vpop.f32.mrb[0].mxu0
        %v1652 = vpop.f32.mrb[0].mxu0
        %v1653 = vadd.f32 0.0, %v1652
        %v1654 = vpop.f32.mrb[0].mxu0
        %1655 = vmatprep.mubr.bf16.mxu0 0
        %1656 = vmatmul.mubr.bf16.gmra.mrb[0].mxu0 %v1534
        %v1657 = vpop.f32.mrb[0].mxu0
        %v1658 = vadd.f32 0.0, %v1657
        %v1659 = vpop.f32.mrb[0].mxu0
        %v1660 = vpop.f32.mrb[0].mxu0
        %v1661 = vadd.f32 0.0, %v1660
        %v1662 = vpop.f32.mrb[0].mxu0
        %1663 = vmatprep.mubr.bf16.mxu0 0
        %1664 = vmatmul.mubr.bf16.gmra.mrb[0].mxu0 %v1535
        %v1665 = vpop.f32.mrb[0].mxu0
        %v1666 = vadd.f32 0.0, %v1665
        %v1667 = vpop.f32.mrb[0].mxu0
        %v1668 = vpop.f32.mrb[0].mxu0
        %v1669 = vadd.f32 0.0, %v1668
        %v1670 = vpop.f32.mrb[0].mxu0
        %1671 = vmatprep.mubr.bf16.mxu0 0
        %1672 = vmatmul.mubr.bf16.gmra.mrb[0].mxu0 %v1536
        %v1673 = vpop.f32.mrb[0].mxu0
        %v1674 = vadd.f32 0.0, %v1673
        %v1675 = vpop.f32.mrb[0].mxu0
        %v1676 = vpop.f32.mrb[0].mxu0
        %v1677 = vadd.f32 0.0, %v1676
        %v1678 = vpop.f32.mrb[0].mxu0
        %1679 = vmatprep.mubr.bf16.mxu0 0
        %1680 = vmatmul.mubr.bf16.gmra.mrb[0].mxu0 %v1537
        %v1681 = vpop.f32.mrb[0].mxu0
        %v1682 = vadd.f32 0.0, %v1681
        %v1683 = vpop.f32.mrb[0].mxu0
        %v1684 = vpop.f32.mrb[0].mxu0
        %v1685 = vadd.f32 0.0, %v1684
        %v1686 = vpop.f32.mrb[0].mxu0
        %1687 = vmatprep.mubr.bf16.mxu0 0
        %1688 = vmatmul.mubr.bf16.gmra.mrb[0].mxu0 %v1538
        %v1689 = vpop.f32.mrb[0].mxu0
        %v1690 = vadd.f32 0.0, %v1689
        %v1691 = vpop.f32.mrb[0].mxu0
        %v1692 = vpop.f32.mrb[0].mxu0
        %v1693 = vadd.f32 0.0, %v1692
        %v1694 = vpop.f32.mrb[0].mxu0
        %1695 = vmatprep.mubr.bf16.mxu0 0
        %1696 = vmatmul.mubr.bf16.gmra.mrb[0].mxu0 %v1539
        %v1697 = vpop.f32.mrb[0].mxu0
        %v1698 = vadd.f32 0.0, %v1697
        %v1699 = vpop.f32.mrb[0].mxu0
        %v1700 = vpop.f32.mrb[0].mxu0
        %v1701 = vadd.f32 0.0, %v1700
        %v1702 = vpop.f32.mrb[0].mxu0
        %1703 = vmatprep.mubr.bf16.mxu0 0
        %1704 = vmatmul.mubr.bf16.gmra.mrb[0].mxu0 %v1540
        %v1705 = vpop.f32.mrb[0].mxu0
        %v1706 = vadd.f32 0.0, %v1705
        %v1707 = vpop.f32.mrb[0].mxu0
        %v1708 = vpop.f32.mrb[0].mxu0
        %v1709 = vadd.f32 0.0, %v1708
        %v1710 = vpop.f32.mrb[0].mxu0
        %1711 = vmatprep.mubr.bf16.mxu0 0
        %1712 = vmatmul.mubr.bf16.gmra.mrb[0].mxu0 %v1541
        %v1713 = vpop.f32.mrb[0].mxu0
        %v1714 = vadd.f32 0.0, %v1713
        %v1715 = vpop.f32.mrb[0].mxu0
        %v1716 = vpop.f32.mrb[0].mxu0
        %v1717 = vadd.f32 0.0, %v1716
        %v1718 = vpop.f32.mrb[0].mxu0
        %1719 = vmatprep.mubr.bf16.mxu0 0
        %1720 = vmatmul.mubr.bf16.gmra.mrb[0].mxu0 %v1542
        %v1721 = vpop.f32.mrb[0].mxu0
        %v1722 = vadd.f32 0.0, %v1721
        %v1723 = vpop.f32.mrb[0].mxu0
        %v1724 = vpop.f32.mrb[0].mxu0
        %v1725 = vadd.f32 0.0, %v1724
        %v1726 = vpop.f32.mrb[0].mxu0
        %1727 = vdwg.mxu0
        %v1728 = vadd.f32 %v1488, %v1642
        %v1729 = vadd.f32 %v1489, %v1645
        %v1730 = vadd.f32 %v1490, %v1650
        %v1731 = vadd.f32 %v1491, %v1653
        %v1732 = vadd.f32 %v1492, %v1658
        %v1733 = vadd.f32 %v1493, %v1661
        %v1734 = vadd.f32 %v1494, %v1666
        %v1735 = vadd.f32 %v1495, %v1669
        %v1736 = vadd.f32 %v1496, %v1674
        %v1737 = vadd.f32 %v1497, %v1677
        %v1738 = vadd.f32 %v1498, %v1682
        %v1739 = vadd.f32 %v1499, %v1685
        %v1740 = vadd.f32 %v1500, %v1690
        %v1741 = vadd.f32 %v1501, %v1693
        %v1742 = vadd.f32 %v1502, %v1698
        %v1743 = vadd.f32 %v1503, %v1701
        %v1744 = vadd.f32 %v1504, %v1706
        %v1745 = vadd.f32 %v1505, %v1709
        %v1746 = vadd.f32 %v1506, %v1714
        %v1747 = vadd.f32 %v1507, %v1717
        %v1748 = vadd.f32 %v1508, %v1722
        %v1749 = vadd.f32 %v1509, %v1725
        %v1750 = vld [vmem:[%s0 + $0x10] sm:$0xff]
        %v1751 = vld [vmem:[%s0 + $0x18] sm:$0xff]
        %v1752 = vld [vmem:[%s0 + $0x20] sm:$0xff]
        %v1753 = vld [vmem:[%s0 + $0x28] sm:$0xff]
        %v1754 = vld [vmem:[%s0 + $0x30] sm:$0xff]
        %v1755 = vld [vmem:[%s0 + $0x38] sm:$0xff]
        %v1756 = vld [vmem:[%s0 + $0x40] sm:$0xff]
        %v1757 = vld [vmem:[%s0 + $0x48] sm:$0xff]
        %v1758 = vld [vmem:[%s0 + $0x50] sm:$0xff]
        %v1759 = vld [vmem:[%s0 + $0x58] sm:$0xff]
        %v1760 = vld [vmem:[%s0 + $0x60] sm:$0xff]
        %v1761 = vld [vmem:[%s0 + $0x68] sm:$0xff]
        %v1762 = vld [vmem:[%s0 + $0x70] sm:$0xff]
        %v1763 = vld [vmem:[%s0 + $0x78] sm:$0xff]
        %v1764 = vld [vmem:[%s0 + $0x80] sm:$0xff]
        %v1765 = vld [vmem:[%s0 + $0x88] sm:$0xff]
        %v1766 = vld [vmem:[%s0 + $0x90] sm:$0xff]
        %v1767 = vld [vmem:[%s0 + $0x98] sm:$0xff]
        %v1768 = vld [vmem:[%s0 + $0xa0] sm:$0xff]
        %v1769 = vld [vmem:[%s0 + $0xa8] sm:$0xff]
        %v1770 = vld [vmem:[%s0 + $0xb0] sm:$0xff]
        %v1771 = vld [vmem:[%s0 + $0xb8] sm:$0xff]
        %v1772 = vpack.c.bf16 %v1751, %v1750
        %v1773 = vpack.c.bf16 %v1753, %v1752
        %v1774 = vpack.c.bf16 %v1755, %v1754
        %v1775 = vpack.c.bf16 %v1757, %v1756
        %v1776 = vpack.c.bf16 %v1759, %v1758
        %v1777 = vpack.c.bf16 %v1761, %v1760
        %v1778 = vpack.c.bf16 %v1763, %v1762
        %v1779 = vpack.c.bf16 %v1765, %v1764
        %v1780 = vpack.c.bf16 %v1767, %v1766
        %v1781 = vpack.c.bf16 %v1769, %v1768
        %v1782 = vpack.c.bf16 %v1771, %v1770
        %v1783 = vld [vmem:[%s799 + $0x100] sm:$0xf]
        %v1784 = vld [vmem:[%s799 + $0x104] sm:$0xf]
        %v1785 = vld [vmem:[%s799 + $0x108] sm:$0xf]
        %v1786 = vld [vmem:[%s799 + $0x10c] sm:$0xf]
        %v1787 = vld [vmem:[%s799 + $0x110] sm:$0xf]
        %v1788 = vld [vmem:[%s799 + $0x114] sm:$0xf]
        %v1789 = vld [vmem:[%s799 + $0x118] sm:$0xf]
        %v1790 = vld [vmem:[%s799 + $0x11c] sm:$0xf]
        %v1791 = vld [vmem:[%s799 + $0x120] sm:$0xf]
        %v1792 = vld [vmem:[%s799 + $0x124] sm:$0xf]
        %v1793 = vld [vmem:[%s799 + $0x128] sm:$0xf]
        %v1794 = vld [vmem:[%s799 + $0x12c] sm:$0xf]
        %v1795 = vld [vmem:[%s799 + $0x130] sm:$0xf]
        %v1796 = vld [vmem:[%s799 + $0x134] sm:$0xf]
        %v1797 = vld [vmem:[%s799 + $0x138] sm:$0xf]
        %v1798 = vld [vmem:[%s799 + $0x13c] sm:$0xf]
        %v1815 = vunpack.c.l.b16 %v1783
        %v1816 = vunpack.c.l.b16 %v1784
        %v1817 = vunpack.c.l.b16 %v1785
        %v1818 = vunpack.c.l.b16 %v1786
        %v1819 = vunpack.c.l.b16 %v1787
        %v1820 = vunpack.c.l.b16 %v1788
        %v1821 = vunpack.c.l.b16 %v1789
        %v1822 = vunpack.c.l.b16 %v1790
        %v1823 = vunpack.c.l.b16 %v1791
        %v1824 = vunpack.c.l.b16 %v1792
        %v1825 = vunpack.c.l.b16 %v1793
        %v1826 = vunpack.c.l.b16 %v1794
        %v1827 = vunpack.c.l.b16 %v1795
        %v1828 = vunpack.c.l.b16 %v1796
        %v1829 = vunpack.c.l.b16 %v1797
        %v1830 = vunpack.c.l.b16 %v1798
        %v1831 = vpack.c.b16 %v1816, %v1815
        %v1832 = vpack.c.b16 %v1818, %v1817
        %v1833 = vpack.c.b16 %v1820, %v1819
        %v1834 = vpack.c.b16 %v1822, %v1821
        %v1835 = vpack.c.b16 %v1824, %v1823
        %v1836 = vpack.c.b16 %v1826, %v1825
        %v1837 = vpack.c.b16 %v1828, %v1827
        %v1838 = vpack.c.b16 %v1830, %v1829
        %1847 = vmatprep.subr.bf16.mxu0 0
        %1848 = vmatpush1.bf16.msra.mxu0 %v1831
        %1849 = vmatprep.subr.bf16.mxu0 0
        %1850 = vmatpush1.bf16.msra.mxu0 %v1832
        %1851 = vmatprep.subr.bf16.mxu0 0
        %1852 = vmatpush1.bf16.msra.mxu0 %v1833
        %1853 = vmatprep.subr.bf16.mxu0 0
        %1854 = vmatpush1.bf16.msra.mxu0 %v1834
        %1855 = vmatprep.subr.bf16.mxu0 0
        %1856 = vmatpush1.bf16.msra.mxu0 %v1835
        %1857 = vmatprep.subr.bf16.mxu0 0
        %1858 = vmatpush1.bf16.msra.mxu0 %v1836
        %1859 = vmatprep.subr.bf16.mxu0 0
        %1860 = vmatpush1.bf16.msra.mxu0 %v1837
        %1861 = vmatprep.subr.bf16.mxu0 0
        %1862 = vmatpush1.bf16.msra.mxu0 %v1838
        %1863 = vmatprep.subr.bf16.mxu0 0
        %1864 = vmatpush1.bf16.msra.mxu0 0
        %1865 = vmatprep.subr.bf16.mxu0 0
        %1866 = vmatpush1.bf16.msra.mxu0 0
        %1867 = vmatprep.subr.bf16.mxu0 0
        %1868 = vmatpush1.bf16.msra.mxu0 0
        %1869 = vmatprep.subr.bf16.mxu0 0
        %1870 = vmatpush1.bf16.msra.mxu0 0
        %1871 = vmatprep.subr.bf16.mxu0 0
        %1872 = vmatpush1.bf16.msra.mxu0 0
        %1873 = vmatprep.subr.bf16.mxu0 0
        %1874 = vmatpush1.bf16.msra.mxu0 0
        %1875 = vmatprep.subr.bf16.mxu0 0
        %1876 = vmatpush1.bf16.msra.mxu0 0
        %1877 = vmatprep.subr.bf16.mxu0 0
        %1878 = vmatpush1.bf16.msra.mxu0 0
        %1879 = vmatprep.mubr.bf16.mxu0 0
        %1880 = vmatmul.mubr.bf16.gmra.mrb[0].mxu0 %v1772
        %v1881 = vpop.f32.mrb[0].mxu0
        %v1882 = vadd.f32 0.0, %v1881
        %v1883 = vpop.f32.mrb[0].mxu0
        %v1884 = vpop.f32.mrb[0].mxu0
        %v1885 = vadd.f32 0.0, %v1884
        %v1886 = vpop.f32.mrb[0].mxu0
        %1887 = vmatprep.mubr.bf16.mxu0 0
        %1888 = vmatmul.mubr.bf16.gmra.mrb[0].mxu0 %v1773
        %v1889 = vpop.f32.mrb[0].mxu0
        %v1890 = vadd.f32 0.0, %v1889
        %v1891 = vpop.f32.mrb[0].mxu0
        %v1892 = vpop.f32.mrb[0].mxu0
        %v1893 = vadd.f32 0.0, %v1892
        %v1894 = vpop.f32.mrb[0].mxu0
        %1895 = vmatprep.mubr.bf16.mxu0 0
        %1896 = vmatmul.mubr.bf16.gmra.mrb[0].mxu0 %v1774
        %v1897 = vpop.f32.mrb[0].mxu0
        %v1898 = vadd.f32 0.0, %v1897
        %v1899 = vpop.f32.mrb[0].mxu0
        %v1900 = vpop.f32.mrb[0].mxu0
        %v1901 = vadd.f32 0.0, %v1900
        %v1902 = vpop.f32.mrb[0].mxu0
        %1903 = vmatprep.mubr.bf16.mxu0 0
        %1904 = vmatmul.mubr.bf16.gmra.mrb[0].mxu0 %v1775
        %v1905 = vpop.f32.mrb[0].mxu0
        %v1906 = vadd.f32 0.0, %v1905
        %v1907 = vpop.f32.mrb[0].mxu0
        %v1908 = vpop.f32.mrb[0].mxu0
        %v1909 = vadd.f32 0.0, %v1908
        %v1910 = vpop.f32.mrb[0].mxu0
        %1911 = vmatprep.mubr.bf16.mxu0 0
        %1912 = vmatmul.mubr.bf16.gmra.mrb[0].mxu0 %v1776
        %v1913 = vpop.f32.mrb[0].mxu0
        %v1914 = vadd.f32 0.0, %v1913
        %v1915 = vpop.f32.mrb[0].mxu0
        %v1916 = vpop.f32.mrb[0].mxu0
        %v1917 = vadd.f32 0.0, %v1916
        %v1918 = vpop.f32.mrb[0].mxu0
        %1919 = vmatprep.mubr.bf16.mxu0 0
        %1920 = vmatmul.mubr.bf16.gmra.mrb[0].mxu0 %v1777
        %v1921 = vpop.f32.mrb[0].mxu0
        %v1922 = vadd.f32 0.0, %v1921
        %v1923 = vpop.f32.mrb[0].mxu0
        %v1924 = vpop.f32.mrb[0].mxu0
        %v1925 = vadd.f32 0.0, %v1924
        %v1926 = vpop.f32.mrb[0].mxu0
        %1927 = vmatprep.mubr.bf16.mxu0 0
        %1928 = vmatmul.mubr.bf16.gmra.mrb[0].mxu0 %v1778
        %v1929 = vpop.f32.mrb[0].mxu0
        %v1930 = vadd.f32 0.0, %v1929
        %v1931 = vpop.f32.mrb[0].mxu0
        %v1932 = vpop.f32.mrb[0].mxu0
        %v1933 = vadd.f32 0.0, %v1932
        %v1934 = vpop.f32.mrb[0].mxu0
        %1935 = vmatprep.mubr.bf16.mxu0 0
        %1936 = vmatmul.mubr.bf16.gmra.mrb[0].mxu0 %v1779
        %v1937 = vpop.f32.mrb[0].mxu0
        %v1938 = vadd.f32 0.0, %v1937
        %v1939 = vpop.f32.mrb[0].mxu0
        %v1940 = vpop.f32.mrb[0].mxu0
        %v1941 = vadd.f32 0.0, %v1940
        %v1942 = vpop.f32.mrb[0].mxu0
        %1943 = vmatprep.mubr.bf16.mxu0 0
        %1944 = vmatmul.mubr.bf16.gmra.mrb[0].mxu0 %v1780
        %v1945 = vpop.f32.mrb[0].mxu0
        %v1946 = vadd.f32 0.0, %v1945
        %v1947 = vpop.f32.mrb[0].mxu0
        %v1948 = vpop.f32.mrb[0].mxu0
        %v1949 = vadd.f32 0.0, %v1948
        %v1950 = vpop.f32.mrb[0].mxu0
        %1951 = vmatprep.mubr.bf16.mxu0 0
        %1952 = vmatmul.mubr.bf16.gmra.mrb[0].mxu0 %v1781
        %v1953 = vpop.f32.mrb[0].mxu0
        %v1954 = vadd.f32 0.0, %v1953
        %v1955 = vpop.f32.mrb[0].mxu0
        %v1956 = vpop.f32.mrb[0].mxu0
        %v1957 = vadd.f32 0.0, %v1956
        %v1958 = vpop.f32.mrb[0].mxu0
        %1959 = vmatprep.mubr.bf16.mxu0 0
        %1960 = vmatmul.mubr.bf16.gmra.mrb[0].mxu0 %v1782
        %v1961 = vpop.f32.mrb[0].mxu0
        %v1962 = vadd.f32 0.0, %v1961
        %v1963 = vpop.f32.mrb[0].mxu0
        %v1964 = vpop.f32.mrb[0].mxu0
        %v1965 = vadd.f32 0.0, %v1964
        %v1966 = vpop.f32.mrb[0].mxu0
        %1967 = vdwg.mxu0
        %v1968 = vadd.f32 %v1728, %v1882
        %v1969 = vadd.f32 %v1729, %v1885
        %v1970 = vadd.f32 %v1730, %v1890
        %v1971 = vadd.f32 %v1731, %v1893
        %v1972 = vadd.f32 %v1732, %v1898
        %v1973 = vadd.f32 %v1733, %v1901
        %v1974 = vadd.f32 %v1734, %v1906
        %v1975 = vadd.f32 %v1735, %v1909
        %v1976 = vadd.f32 %v1736, %v1914
        %v1977 = vadd.f32 %v1737, %v1917
        %v1978 = vadd.f32 %v1738, %v1922
        %v1979 = vadd.f32 %v1739, %v1925
        %v1980 = vadd.f32 %v1740, %v1930
        %v1981 = vadd.f32 %v1741, %v1933
        %v1982 = vadd.f32 %v1742, %v1938
        %v1983 = vadd.f32 %v1743, %v1941
        %v1984 = vadd.f32 %v1744, %v1946
        %v1985 = vadd.f32 %v1745, %v1949
        %v1986 = vadd.f32 %v1746, %v1954
        %v1987 = vadd.f32 %v1747, %v1957
        %v1988 = vadd.f32 %v1748, %v1962
        %v1989 = vadd.f32 %v1749, %v1965
        %v1990 = vld [vmem:[%s0 + $0x11] sm:$0xff]
        %v1991 = vld [vmem:[%s0 + $0x19] sm:$0xff]
        %v1992 = vld [vmem:[%s0 + $0x21] sm:$0xff]
        %v1993 = vld [vmem:[%s0 + $0x29] sm:$0xff]
        %v1994 = vld [vmem:[%s0 + $0x31] sm:$0xff]
        %v1995 = vld [vmem:[%s0 + $0x39] sm:$0xff]
        %v1996 = vld [vmem:[%s0 + $0x41] sm:$0xff]
        %v1997 = vld [vmem:[%s0 + $0x49] sm:$0xff]
        %v1998 = vld [vmem:[%s0 + $0x51] sm:$0xff]
        %v1999 = vld [vmem:[%s0 + $0x59] sm:$0xff]
        %v2000 = vld [vmem:[%s0 + $0x61] sm:$0xff]
        %v2001 = vld [vmem:[%s0 + $0x69] sm:$0xff]
        %v2002 = vld [vmem:[%s0 + $0x71] sm:$0xff]
        %v2003 = vld [vmem:[%s0 + $0x79] sm:$0xff]
        %v2004 = vld [vmem:[%s0 + $0x81] sm:$0xff]
        %v2005 = vld [vmem:[%s0 + $0x89] sm:$0xff]
        %v2006 = vld [vmem:[%s0 + $0x91] sm:$0xff]
        %v2007 = vld [vmem:[%s0 + $0x99] sm:$0xff]
        %v2008 = vld [vmem:[%s0 + $0xa1] sm:$0xff]
        %v2009 = vld [vmem:[%s0 + $0xa9] sm:$0xff]
        %v2010 = vld [vmem:[%s0 + $0xb1] sm:$0xff]
        %v2011 = vld [vmem:[%s0 + $0xb9] sm:$0xff]
        %v2012 = vpack.c.bf16 %v1991, %v1990
        %v2013 = vpack.c.bf16 %v1993, %v1992
        %v2014 = vpack.c.bf16 %v1995, %v1994
        %v2015 = vpack.c.bf16 %v1997, %v1996
        %v2016 = vpack.c.bf16 %v1999, %v1998
        %v2017 = vpack.c.bf16 %v2001, %v2000
        %v2018 = vpack.c.bf16 %v2003, %v2002
        %v2019 = vpack.c.bf16 %v2005, %v2004
        %v2020 = vpack.c.bf16 %v2007, %v2006
        %v2021 = vpack.c.bf16 %v2009, %v2008
        %v2022 = vpack.c.bf16 %v2011, %v2010
        %v2023 = vld [vmem:[%s799 + $0x140] sm:$0xf]
        %v2024 = vld [vmem:[%s799 + $0x144] sm:$0xf]
        %v2025 = vld [vmem:[%s799 + $0x148] sm:$0xf]
        %v2026 = vld [vmem:[%s799 + $0x14c] sm:$0xf]
        %v2027 = vld [vmem:[%s799 + $0x150] sm:$0xf]
        %v2028 = vld [vmem:[%s799 + $0x154] sm:$0xf]
        %v2029 = vld [vmem:[%s799 + $0x158] sm:$0xf]
        %v2030 = vld [vmem:[%s799 + $0x15c] sm:$0xf]
        %v2031 = vld [vmem:[%s799 + $0x160] sm:$0xf]
        %v2032 = vld [vmem:[%s799 + $0x164] sm:$0xf]
        %v2033 = vld [vmem:[%s799 + $0x168] sm:$0xf]
        %v2034 = vld [vmem:[%s799 + $0x16c] sm:$0xf]
        %v2035 = vld [vmem:[%s799 + $0x170] sm:$0xf]
        %v2036 = vld [vmem:[%s799 + $0x174] sm:$0xf]
        %v2037 = vld [vmem:[%s799 + $0x178] sm:$0xf]
        %v2038 = vld [vmem:[%s799 + $0x17c] sm:$0xf]
        %v2055 = vunpack.c.l.b16 %v2023
        %v2056 = vunpack.c.l.b16 %v2024
        %v2057 = vunpack.c.l.b16 %v2025
        %v2058 = vunpack.c.l.b16 %v2026
        %v2059 = vunpack.c.l.b16 %v2027
        %v2060 = vunpack.c.l.b16 %v2028
        %v2061 = vunpack.c.l.b16 %v2029
        %v2062 = vunpack.c.l.b16 %v2030
        %v2063 = vunpack.c.l.b16 %v2031
        %v2064 = vunpack.c.l.b16 %v2032
        %v2065 = vunpack.c.l.b16 %v2033
        %v2066 = vunpack.c.l.b16 %v2034
        %v2067 = vunpack.c.l.b16 %v2035
        %v2068 = vunpack.c.l.b16 %v2036
        %v2069 = vunpack.c.l.b16 %v2037
        %v2070 = vunpack.c.l.b16 %v2038
        %v2071 = vpack.c.b16 %v2056, %v2055
        %v2072 = vpack.c.b16 %v2058, %v2057
        %v2073 = vpack.c.b16 %v2060, %v2059
        %v2074 = vpack.c.b16 %v2062, %v2061
        %v2075 = vpack.c.b16 %v2064, %v2063
        %v2076 = vpack.c.b16 %v2066, %v2065
        %v2077 = vpack.c.b16 %v2068, %v2067
        %v2078 = vpack.c.b16 %v2070, %v2069
        %2087 = vmatprep.subr.bf16.mxu0 0
        %2088 = vmatpush1.bf16.msra.mxu0 %v2071
        %2089 = vmatprep.subr.bf16.mxu0 0
        %2090 = vmatpush1.bf16.msra.mxu0 %v2072
        %2091 = vmatprep.subr.bf16.mxu0 0
        %2092 = vmatpush1.bf16.msra.mxu0 %v2073
        %2093 = vmatprep.subr.bf16.mxu0 0
        %2094 = vmatpush1.bf16.msra.mxu0 %v2074
        %2095 = vmatprep.subr.bf16.mxu0 0
        %2096 = vmatpush1.bf16.msra.mxu0 %v2075
        %2097 = vmatprep.subr.bf16.mxu0 0
        %2098 = vmatpush1.bf16.msra.mxu0 %v2076
        %2099 = vmatprep.subr.bf16.mxu0 0
        %2100 = vmatpush1.bf16.msra.mxu0 %v2077
        %2101 = vmatprep.subr.bf16.mxu0 0
        %2102 = vmatpush1.bf16.msra.mxu0 %v2078
        %2103 = vmatprep.subr.bf16.mxu0 0
        %2104 = vmatpush1.bf16.msra.mxu0 0
        %2105 = vmatprep.subr.bf16.mxu0 0
        %2106 = vmatpush1.bf16.msra.mxu0 0
        %2107 = vmatprep.subr.bf16.mxu0 0
        %2108 = vmatpush1.bf16.msra.mxu0 0
        %2109 = vmatprep.subr.bf16.mxu0 0
        %2110 = vmatpush1.bf16.msra.mxu0 0
        %2111 = vmatprep.subr.bf16.mxu0 0
        %2112 = vmatpush1.bf16.msra.mxu0 0
        %2113 = vmatprep.subr.bf16.mxu0 0
        %2114 = vmatpush1.bf16.msra.mxu0 0
        %2115 = vmatprep.subr.bf16.mxu0 0
        %2116 = vmatpush1.bf16.msra.mxu0 0
        %2117 = vmatprep.subr.bf16.mxu0 0
        %2118 = vmatpush1.bf16.msra.mxu0 0
        %2119 = vmatprep.mubr.bf16.mxu0 0
        %2120 = vmatmul.mubr.bf16.gmra.mrb[0].mxu0 %v2012
        %v2121 = vpop.f32.mrb[0].mxu0
        %v2122 = vadd.f32 0.0, %v2121
        %v2123 = vpop.f32.mrb[0].mxu0
        %v2124 = vpop.f32.mrb[0].mxu0
        %v2125 = vadd.f32 0.0, %v2124
        %v2126 = vpop.f32.mrb[0].mxu0
        %2127 = vmatprep.mubr.bf16.mxu0 0
        %2128 = vmatmul.mubr.bf16.gmra.mrb[0].mxu0 %v2013
        %v2129 = vpop.f32.mrb[0].mxu0
        %v2130 = vadd.f32 0.0, %v2129
        %v2131 = vpop.f32.mrb[0].mxu0
        %v2132 = vpop.f32.mrb[0].mxu0
        %v2133 = vadd.f32 0.0, %v2132
        %v2134 = vpop.f32.mrb[0].mxu0
        %2135 = vmatprep.mubr.bf16.mxu0 0
        %2136 = vmatmul.mubr.bf16.gmra.mrb[0].mxu0 %v2014
        %v2137 = vpop.f32.mrb[0].mxu0
        %v2138 = vadd.f32 0.0, %v2137
        %v2139 = vpop.f32.mrb[0].mxu0
        %v2140 = vpop.f32.mrb[0].mxu0
        %v2141 = vadd.f32 0.0, %v2140
        %v2142 = vpop.f32.mrb[0].mxu0
        %2143 = vmatprep.mubr.bf16.mxu0 0
        %2144 = vmatmul.mubr.bf16.gmra.mrb[0].mxu0 %v2015
        %v2145 = vpop.f32.mrb[0].mxu0
        %v2146 = vadd.f32 0.0, %v2145
        %v2147 = vpop.f32.mrb[0].mxu0
        %v2148 = vpop.f32.mrb[0].mxu0
        %v2149 = vadd.f32 0.0, %v2148
        %v2150 = vpop.f32.mrb[0].mxu0
        %2151 = vmatprep.mubr.bf16.mxu0 0
        %2152 = vmatmul.mubr.bf16.gmra.mrb[0].mxu0 %v2016
        %v2153 = vpop.f32.mrb[0].mxu0
        %v2154 = vadd.f32 0.0, %v2153
        %v2155 = vpop.f32.mrb[0].mxu0
        %v2156 = vpop.f32.mrb[0].mxu0
        %v2157 = vadd.f32 0.0, %v2156
        %v2158 = vpop.f32.mrb[0].mxu0
        %2159 = vmatprep.mubr.bf16.mxu0 0
        %2160 = vmatmul.mubr.bf16.gmra.mrb[0].mxu0 %v2017
        %v2161 = vpop.f32.mrb[0].mxu0
        %v2162 = vadd.f32 0.0, %v2161
        %v2163 = vpop.f32.mrb[0].mxu0
        %v2164 = vpop.f32.mrb[0].mxu0
        %v2165 = vadd.f32 0.0, %v2164
        %v2166 = vpop.f32.mrb[0].mxu0
        %2167 = vmatprep.mubr.bf16.mxu0 0
        %2168 = vmatmul.mubr.bf16.gmra.mrb[0].mxu0 %v2018
        %v2169 = vpop.f32.mrb[0].mxu0
        %v2170 = vadd.f32 0.0, %v2169
        %v2171 = vpop.f32.mrb[0].mxu0
        %v2172 = vpop.f32.mrb[0].mxu0
        %v2173 = vadd.f32 0.0, %v2172
        %v2174 = vpop.f32.mrb[0].mxu0
        %2175 = vmatprep.mubr.bf16.mxu0 0
        %2176 = vmatmul.mubr.bf16.gmra.mrb[0].mxu0 %v2019
        %v2177 = vpop.f32.mrb[0].mxu0
        %v2178 = vadd.f32 0.0, %v2177
        %v2179 = vpop.f32.mrb[0].mxu0
        %v2180 = vpop.f32.mrb[0].mxu0
        %v2181 = vadd.f32 0.0, %v2180
        %v2182 = vpop.f32.mrb[0].mxu0
        %2183 = vmatprep.mubr.bf16.mxu0 0
        %2184 = vmatmul.mubr.bf16.gmra.mrb[0].mxu0 %v2020
        %v2185 = vpop.f32.mrb[0].mxu0
        %v2186 = vadd.f32 0.0, %v2185
        %v2187 = vpop.f32.mrb[0].mxu0
        %v2188 = vpop.f32.mrb[0].mxu0
        %v2189 = vadd.f32 0.0, %v2188
        %v2190 = vpop.f32.mrb[0].mxu0
        %2191 = vmatprep.mubr.bf16.mxu0 0
        %2192 = vmatmul.mubr.bf16.gmra.mrb[0].mxu0 %v2021
        %v2193 = vpop.f32.mrb[0].mxu0
        %v2194 = vadd.f32 0.0, %v2193
        %v2195 = vpop.f32.mrb[0].mxu0
        %v2196 = vpop.f32.mrb[0].mxu0
        %v2197 = vadd.f32 0.0, %v2196
        %v2198 = vpop.f32.mrb[0].mxu0
        %2199 = vmatprep.mubr.bf16.mxu0 0
        %2200 = vmatmul.mubr.bf16.gmra.mrb[0].mxu0 %v2022
        %v2201 = vpop.f32.mrb[0].mxu0
        %v2202 = vadd.f32 0.0, %v2201
        %v2203 = vpop.f32.mrb[0].mxu0
        %v2204 = vpop.f32.mrb[0].mxu0
        %v2205 = vadd.f32 0.0, %v2204
        %v2206 = vpop.f32.mrb[0].mxu0
        %2207 = vdwg.mxu0
        %v2208 = vadd.f32 %v1968, %v2122
        %v2209 = vadd.f32 %v1969, %v2125
        %v2210 = vadd.f32 %v1970, %v2130
        %v2211 = vadd.f32 %v1971, %v2133
        %v2212 = vadd.f32 %v1972, %v2138
        %v2213 = vadd.f32 %v1973, %v2141
        %v2214 = vadd.f32 %v1974, %v2146
        %v2215 = vadd.f32 %v1975, %v2149
        %v2216 = vadd.f32 %v1976, %v2154
        %v2217 = vadd.f32 %v1977, %v2157
        %v2218 = vadd.f32 %v1978, %v2162
        %v2219 = vadd.f32 %v1979, %v2165
        %v2220 = vadd.f32 %v1980, %v2170
        %v2221 = vadd.f32 %v1981, %v2173
        %v2222 = vadd.f32 %v1982, %v2178
        %v2223 = vadd.f32 %v1983, %v2181
        %v2224 = vadd.f32 %v1984, %v2186
        %v2225 = vadd.f32 %v1985, %v2189
        %v2226 = vadd.f32 %v1986, %v2194
        %v2227 = vadd.f32 %v1987, %v2197
        %v2228 = vadd.f32 %v1988, %v2202
        %v2229 = vadd.f32 %v1989, %v2205
        %v2230 = vld [vmem:[%s0 + $0x18] sm:$0xff]
        %v2231 = vld [vmem:[%s0 + $0x20] sm:$0xff]
        %v2232 = vld [vmem:[%s0 + $0x28] sm:$0xff]
        %v2233 = vld [vmem:[%s0 + $0x30] sm:$0xff]
        %v2234 = vld [vmem:[%s0 + $0x38] sm:$0xff]
        %v2235 = vld [vmem:[%s0 + $0x40] sm:$0xff]
        %v2236 = vld [vmem:[%s0 + $0x48] sm:$0xff]
        %v2237 = vld [vmem:[%s0 + $0x50] sm:$0xff]
        %v2238 = vld [vmem:[%s0 + $0x58] sm:$0xff]
        %v2239 = vld [vmem:[%s0 + $0x60] sm:$0xff]
        %v2240 = vld [vmem:[%s0 + $0x68] sm:$0xff]
        %v2241 = vld [vmem:[%s0 + $0x70] sm:$0xff]
        %v2242 = vld [vmem:[%s0 + $0x78] sm:$0xff]
        %v2243 = vld [vmem:[%s0 + $0x80] sm:$0xff]
        %v2244 = vld [vmem:[%s0 + $0x88] sm:$0xff]
        %v2245 = vld [vmem:[%s0 + $0x90] sm:$0xff]
        %v2246 = vld [vmem:[%s0 + $0x98] sm:$0xff]
        %v2247 = vld [vmem:[%s0 + $0xa0] sm:$0xff]
        %v2248 = vld [vmem:[%s0 + $0xa8] sm:$0xff]
        %v2249 = vld [vmem:[%s0 + $0xb0] sm:$0xff]
        %v2250 = vld [vmem:[%s0 + $0xb8] sm:$0xff]
        %v2251 = vld [vmem:[%s0 + $0xc0] sm:$0xff]
        %v2252 = vpack.c.bf16 %v2231, %v2230
        %v2253 = vpack.c.bf16 %v2233, %v2232
        %v2254 = vpack.c.bf16 %v2235, %v2234
        %v2255 = vpack.c.bf16 %v2237, %v2236
        %v2256 = vpack.c.bf16 %v2239, %v2238
        %v2257 = vpack.c.bf16 %v2241, %v2240
        %v2258 = vpack.c.bf16 %v2243, %v2242
        %v2259 = vpack.c.bf16 %v2245, %v2244
        %v2260 = vpack.c.bf16 %v2247, %v2246
        %v2261 = vpack.c.bf16 %v2249, %v2248
        %v2262 = vpack.c.bf16 %v2251, %v2250
        %v2263 = vld [vmem:[%s799 + $0x180] sm:$0xf]
        %v2264 = vld [vmem:[%s799 + $0x184] sm:$0xf]
        %v2265 = vld [vmem:[%s799 + $0x188] sm:$0xf]
        %v2266 = vld [vmem:[%s799 + $0x18c] sm:$0xf]
        %v2267 = vld [vmem:[%s799 + $0x190] sm:$0xf]
        %v2268 = vld [vmem:[%s799 + $0x194] sm:$0xf]
        %v2269 = vld [vmem:[%s799 + $0x198] sm:$0xf]
        %v2270 = vld [vmem:[%s799 + $0x19c] sm:$0xf]
        %v2271 = vld [vmem:[%s799 + $0x1a0] sm:$0xf]
        %v2272 = vld [vmem:[%s799 + $0x1a4] sm:$0xf]
        %v2273 = vld [vmem:[%s799 + $0x1a8] sm:$0xf]
        %v2274 = vld [vmem:[%s799 + $0x1ac] sm:$0xf]
        %v2275 = vld [vmem:[%s799 + $0x1b0] sm:$0xf]
        %v2276 = vld [vmem:[%s799 + $0x1b4] sm:$0xf]
        %v2277 = vld [vmem:[%s799 + $0x1b8] sm:$0xf]
        %v2278 = vld [vmem:[%s799 + $0x1bc] sm:$0xf]
        %v2295 = vunpack.c.l.b16 %v2263
        %v2296 = vunpack.c.l.b16 %v2264
        %v2297 = vunpack.c.l.b16 %v2265
        %v2298 = vunpack.c.l.b16 %v2266
        %v2299 = vunpack.c.l.b16 %v2267
        %v2300 = vunpack.c.l.b16 %v2268
        %v2301 = vunpack.c.l.b16 %v2269
        %v2302 = vunpack.c.l.b16 %v2270
        %v2303 = vunpack.c.l.b16 %v2271
        %v2304 = vunpack.c.l.b16 %v2272
        %v2305 = vunpack.c.l.b16 %v2273
        %v2306 = vunpack.c.l.b16 %v2274
        %v2307 = vunpack.c.l.b16 %v2275
        %v2308 = vunpack.c.l.b16 %v2276
        %v2309 = vunpack.c.l.b16 %v2277
        %v2310 = vunpack.c.l.b16 %v2278
        %v2311 = vpack.c.b16 %v2296, %v2295
        %v2312 = vpack.c.b16 %v2298, %v2297
        %v2313 = vpack.c.b16 %v2300, %v2299
        %v2314 = vpack.c.b16 %v2302, %v2301
        %v2315 = vpack.c.b16 %v2304, %v2303
        %v2316 = vpack.c.b16 %v2306, %v2305
        %v2317 = vpack.c.b16 %v2308, %v2307
        %v2318 = vpack.c.b16 %v2310, %v2309
        %2327 = vmatprep.subr.bf16.mxu0 0
        %2328 = vmatpush1.bf16.msra.mxu0 %v2311
        %2329 = vmatprep.subr.bf16.mxu0 0
        %2330 = vmatpush1.bf16.msra.mxu0 %v2312
        %2331 = vmatprep.subr.bf16.mxu0 0
        %2332 = vmatpush1.bf16.msra.mxu0 %v2313
        %2333 = vmatprep.subr.bf16.mxu0 0
        %2334 = vmatpush1.bf16.msra.mxu0 %v2314
        %2335 = vmatprep.subr.bf16.mxu0 0
        %2336 = vmatpush1.bf16.msra.mxu0 %v2315
        %2337 = vmatprep.subr.bf16.mxu0 0
        %2338 = vmatpush1.bf16.msra.mxu0 %v2316
        %2339 = vmatprep.subr.bf16.mxu0 0
        %2340 = vmatpush1.bf16.msra.mxu0 %v2317
        %2341 = vmatprep.subr.bf16.mxu0 0
        %2342 = vmatpush1.bf16.msra.mxu0 %v2318
        %2343 = vmatprep.subr.bf16.mxu0 0
        %2344 = vmatpush1.bf16.msra.mxu0 0
        %2345 = vmatprep.subr.bf16.mxu0 0
        %2346 = vmatpush1.bf16.msra.mxu0 0
        %2347 = vmatprep.subr.bf16.mxu0 0
        %2348 = vmatpush1.bf16.msra.mxu0 0
        %2349 = vmatprep.subr.bf16.mxu0 0
        %2350 = vmatpush1.bf16.msra.mxu0 0
        %2351 = vmatprep.subr.bf16.mxu0 0
        %2352 = vmatpush1.bf16.msra.mxu0 0
        %2353 = vmatprep.subr.bf16.mxu0 0
        %2354 = vmatpush1.bf16.msra.mxu0 0
        %2355 = vmatprep.subr.bf16.mxu0 0
        %2356 = vmatpush1.bf16.msra.mxu0 0
        %2357 = vmatprep.subr.bf16.mxu0 0
        %2358 = vmatpush1.bf16.msra.mxu0 0
        %2359 = vmatprep.mubr.bf16.mxu0 0
        %2360 = vmatmul.mubr.bf16.gmra.mrb[0].mxu0 %v2252
        %v2361 = vpop.f32.mrb[0].mxu0
        %v2362 = vadd.f32 0.0, %v2361
        %v2363 = vpop.f32.mrb[0].mxu0
        %v2364 = vpop.f32.mrb[0].mxu0
        %v2365 = vadd.f32 0.0, %v2364
        %v2366 = vpop.f32.mrb[0].mxu0
        %2367 = vmatprep.mubr.bf16.mxu0 0
        %2368 = vmatmul.mubr.bf16.gmra.mrb[0].mxu0 %v2253
        %v2369 = vpop.f32.mrb[0].mxu0
        %v2370 = vadd.f32 0.0, %v2369
        %v2371 = vpop.f32.mrb[0].mxu0
        %v2372 = vpop.f32.mrb[0].mxu0
        %v2373 = vadd.f32 0.0, %v2372
        %v2374 = vpop.f32.mrb[0].mxu0
        %2375 = vmatprep.mubr.bf16.mxu0 0
        %2376 = vmatmul.mubr.bf16.gmra.mrb[0].mxu0 %v2254
        %v2377 = vpop.f32.mrb[0].mxu0
        %v2378 = vadd.f32 0.0, %v2377
        %v2379 = vpop.f32.mrb[0].mxu0
        %v2380 = vpop.f32.mrb[0].mxu0
        %v2381 = vadd.f32 0.0, %v2380
        %v2382 = vpop.f32.mrb[0].mxu0
        %2383 = vmatprep.mubr.bf16.mxu0 0
        %2384 = vmatmul.mubr.bf16.gmra.mrb[0].mxu0 %v2255
        %v2385 = vpop.f32.mrb[0].mxu0
        %v2386 = vadd.f32 0.0, %v2385
        %v2387 = vpop.f32.mrb[0].mxu0
        %v2388 = vpop.f32.mrb[0].mxu0
        %v2389 = vadd.f32 0.0, %v2388
        %v2390 = vpop.f32.mrb[0].mxu0
        %2391 = vmatprep.mubr.bf16.mxu0 0
        %2392 = vmatmul.mubr.bf16.gmra.mrb[0].mxu0 %v2256
        %v2393 = vpop.f32.mrb[0].mxu0
        %v2394 = vadd.f32 0.0, %v2393
        %v2395 = vpop.f32.mrb[0].mxu0
        %v2396 = vpop.f32.mrb[0].mxu0
        %v2397 = vadd.f32 0.0, %v2396
        %v2398 = vpop.f32.mrb[0].mxu0
        %2399 = vmatprep.mubr.bf16.mxu0 0
        %2400 = vmatmul.mubr.bf16.gmra.mrb[0].mxu0 %v2257
        %v2401 = vpop.f32.mrb[0].mxu0
        %v2402 = vadd.f32 0.0, %v2401
        %v2403 = vpop.f32.mrb[0].mxu0
        %v2404 = vpop.f32.mrb[0].mxu0
        %v2405 = vadd.f32 0.0, %v2404
        %v2406 = vpop.f32.mrb[0].mxu0
        %2407 = vmatprep.mubr.bf16.mxu0 0
        %2408 = vmatmul.mubr.bf16.gmra.mrb[0].mxu0 %v2258
        %v2409 = vpop.f32.mrb[0].mxu0
        %v2410 = vadd.f32 0.0, %v2409
        %v2411 = vpop.f32.mrb[0].mxu0
        %v2412 = vpop.f32.mrb[0].mxu0
        %v2413 = vadd.f32 0.0, %v2412
        %v2414 = vpop.f32.mrb[0].mxu0
        %2415 = vmatprep.mubr.bf16.mxu0 0
        %2416 = vmatmul.mubr.bf16.gmra.mrb[0].mxu0 %v2259
        %v2417 = vpop.f32.mrb[0].mxu0
        %v2418 = vadd.f32 0.0, %v2417
        %v2419 = vpop.f32.mrb[0].mxu0
        %v2420 = vpop.f32.mrb[0].mxu0
        %v2421 = vadd.f32 0.0, %v2420
        %v2422 = vpop.f32.mrb[0].mxu0
        %2423 = vmatprep.mubr.bf16.mxu0 0
        %2424 = vmatmul.mubr.bf16.gmra.mrb[0].mxu0 %v2260
        %v2425 = vpop.f32.mrb[0].mxu0
        %v2426 = vadd.f32 0.0, %v2425
        %v2427 = vpop.f32.mrb[0].mxu0
        %v2428 = vpop.f32.mrb[0].mxu0
        %v2429 = vadd.f32 0.0, %v2428
        %v2430 = vpop.f32.mrb[0].mxu0
        %2431 = vmatprep.mubr.bf16.mxu0 0
        %2432 = vmatmul.mubr.bf16.gmra.mrb[0].mxu0 %v2261
        %v2433 = vpop.f32.mrb[0].mxu0
        %v2434 = vadd.f32 0.0, %v2433
        %v2435 = vpop.f32.mrb[0].mxu0
        %v2436 = vpop.f32.mrb[0].mxu0
        %v2437 = vadd.f32 0.0, %v2436
        %v2438 = vpop.f32.mrb[0].mxu0
        %2439 = vmatprep.mubr.bf16.mxu0 0
        %2440 = vmatmul.mubr.bf16.gmra.mrb[0].mxu0 %v2262
        %v2441 = vpop.f32.mrb[0].mxu0
        %v2442 = vadd.f32 0.0, %v2441
        %v2443 = vpop.f32.mrb[0].mxu0
        %v2444 = vpop.f32.mrb[0].mxu0
        %v2445 = vadd.f32 0.0, %v2444
        %v2446 = vpop.f32.mrb[0].mxu0
        %2447 = vdwg.mxu0
        %v2448 = vadd.f32 %v2208, %v2362
        %v2449 = vadd.f32 %v2209, %v2365
        %v2450 = vadd.f32 %v2210, %v2370
        %v2451 = vadd.f32 %v2211, %v2373
        %v2452 = vadd.f32 %v2212, %v2378
        %v2453 = vadd.f32 %v2213, %v2381
        %v2454 = vadd.f32 %v2214, %v2386
        %v2455 = vadd.f32 %v2215, %v2389
        %v2456 = vadd.f32 %v2216, %v2394
        %v2457 = vadd.f32 %v2217, %v2397
        %v2458 = vadd.f32 %v2218, %v2402
        %v2459 = vadd.f32 %v2219, %v2405
        %v2460 = vadd.f32 %v2220, %v2410
        %v2461 = vadd.f32 %v2221, %v2413
        %v2462 = vadd.f32 %v2222, %v2418
        %v2463 = vadd.f32 %v2223, %v2421
        %v2464 = vadd.f32 %v2224, %v2426
        %v2465 = vadd.f32 %v2225, %v2429
        %v2466 = vadd.f32 %v2226, %v2434
        %v2467 = vadd.f32 %v2227, %v2437
        %v2468 = vadd.f32 %v2228, %v2442
        %v2469 = vadd.f32 %v2229, %v2445
        %v2470 = vld [vmem:[%s0 + $0x19] sm:$0xff]
        %v2471 = vld [vmem:[%s0 + $0x21] sm:$0xff]
        %v2472 = vld [vmem:[%s0 + $0x29] sm:$0xff]
        %v2473 = vld [vmem:[%s0 + $0x31] sm:$0xff]
        %v2474 = vld [vmem:[%s0 + $0x39] sm:$0xff]
        %v2475 = vld [vmem:[%s0 + $0x41] sm:$0xff]
        %v2476 = vld [vmem:[%s0 + $0x49] sm:$0xff]
        %v2477 = vld [vmem:[%s0 + $0x51] sm:$0xff]
        %v2478 = vld [vmem:[%s0 + $0x59] sm:$0xff]
        %v2479 = vld [vmem:[%s0 + $0x61] sm:$0xff]
        %v2480 = vld [vmem:[%s0 + $0x69] sm:$0xff]
        %v2481 = vld [vmem:[%s0 + $0x71] sm:$0xff]
        %v2482 = vld [vmem:[%s0 + $0x79] sm:$0xff]
        %v2483 = vld [vmem:[%s0 + $0x81] sm:$0xff]
        %v2484 = vld [vmem:[%s0 + $0x89] sm:$0xff]
        %v2485 = vld [vmem:[%s0 + $0x91] sm:$0xff]
        %v2486 = vld [vmem:[%s0 + $0x99] sm:$0xff]
        %v2487 = vld [vmem:[%s0 + $0xa1] sm:$0xff]
        %v2488 = vld [vmem:[%s0 + $0xa9] sm:$0xff]
        %v2489 = vld [vmem:[%s0 + $0xb1] sm:$0xff]
        %v2490 = vld [vmem:[%s0 + $0xb9] sm:$0xff]
        %v2491 = vld [vmem:[%s0 + $0xc1] sm:$0xff]
        %v2492 = vpack.c.bf16 %v2471, %v2470
        %v2493 = vpack.c.bf16 %v2473, %v2472
        %v2494 = vpack.c.bf16 %v2475, %v2474
        %v2495 = vpack.c.bf16 %v2477, %v2476
        %v2496 = vpack.c.bf16 %v2479, %v2478
        %v2497 = vpack.c.bf16 %v2481, %v2480
        %v2498 = vpack.c.bf16 %v2483, %v2482
        %v2499 = vpack.c.bf16 %v2485, %v2484
        %v2500 = vpack.c.bf16 %v2487, %v2486
        %v2501 = vpack.c.bf16 %v2489, %v2488
        %v2502 = vpack.c.bf16 %v2491, %v2490
        %v2503 = vld [vmem:[%s799 + $0x1c0] sm:$0xf]
        %v2504 = vld [vmem:[%s799 + $0x1c4] sm:$0xf]
        %v2505 = vld [vmem:[%s799 + $0x1c8] sm:$0xf]
        %v2506 = vld [vmem:[%s799 + $0x1cc] sm:$0xf]
        %v2507 = vld [vmem:[%s799 + $0x1d0] sm:$0xf]
        %v2508 = vld [vmem:[%s799 + $0x1d4] sm:$0xf]
        %v2509 = vld [vmem:[%s799 + $0x1d8] sm:$0xf]
        %v2510 = vld [vmem:[%s799 + $0x1dc] sm:$0xf]
        %v2511 = vld [vmem:[%s799 + $0x1e0] sm:$0xf]
        %v2512 = vld [vmem:[%s799 + $0x1e4] sm:$0xf]
        %v2513 = vld [vmem:[%s799 + $0x1e8] sm:$0xf]
        %v2514 = vld [vmem:[%s799 + $0x1ec] sm:$0xf]
        %v2515 = vld [vmem:[%s799 + $0x1f0] sm:$0xf]
        %v2516 = vld [vmem:[%s799 + $0x1f4] sm:$0xf]
        %v2517 = vld [vmem:[%s799 + $0x1f8] sm:$0xf]
        %v2518 = vld [vmem:[%s799 + $0x1fc] sm:$0xf]
        %v2535 = vunpack.c.l.b16 %v2503
        %v2536 = vunpack.c.l.b16 %v2504
        %v2537 = vunpack.c.l.b16 %v2505
        %v2538 = vunpack.c.l.b16 %v2506
        %v2539 = vunpack.c.l.b16 %v2507
        %v2540 = vunpack.c.l.b16 %v2508
        %v2541 = vunpack.c.l.b16 %v2509
        %v2542 = vunpack.c.l.b16 %v2510
        %v2543 = vunpack.c.l.b16 %v2511
        %v2544 = vunpack.c.l.b16 %v2512
        %v2545 = vunpack.c.l.b16 %v2513
        %v2546 = vunpack.c.l.b16 %v2514
        %v2547 = vunpack.c.l.b16 %v2515
        %v2548 = vunpack.c.l.b16 %v2516
        %v2549 = vunpack.c.l.b16 %v2517
        %v2550 = vunpack.c.l.b16 %v2518
        %v2551 = vpack.c.b16 %v2536, %v2535
        %v2552 = vpack.c.b16 %v2538, %v2537
        %v2553 = vpack.c.b16 %v2540, %v2539
        %v2554 = vpack.c.b16 %v2542, %v2541
        %v2555 = vpack.c.b16 %v2544, %v2543
        %v2556 = vpack.c.b16 %v2546, %v2545
        %v2557 = vpack.c.b16 %v2548, %v2547
        %v2558 = vpack.c.b16 %v2550, %v2549
        %2567 = vmatprep.subr.bf16.mxu0 0
        %2568 = vmatpush1.bf16.msra.mxu0 %v2551
        %2569 = vmatprep.subr.bf16.mxu0 0
        %2570 = vmatpush1.bf16.msra.mxu0 %v2552
        %2571 = vmatprep.subr.bf16.mxu0 0
        %2572 = vmatpush1.bf16.msra.mxu0 %v2553
        %2573 = vmatprep.subr.bf16.mxu0 0
        %2574 = vmatpush1.bf16.msra.mxu0 %v2554
        %2575 = vmatprep.subr.bf16.mxu0 0
        %2576 = vmatpush1.bf16.msra.mxu0 %v2555
        %2577 = vmatprep.subr.bf16.mxu0 0
        %2578 = vmatpush1.bf16.msra.mxu0 %v2556
        %2579 = vmatprep.subr.bf16.mxu0 0
        %2580 = vmatpush1.bf16.msra.mxu0 %v2557
        %2581 = vmatprep.subr.bf16.mxu0 0
        %2582 = vmatpush1.bf16.msra.mxu0 %v2558
        %2583 = vmatprep.subr.bf16.mxu0 0
        %2584 = vmatpush1.bf16.msra.mxu0 0
        %2585 = vmatprep.subr.bf16.mxu0 0
        %2586 = vmatpush1.bf16.msra.mxu0 0
        %2587 = vmatprep.subr.bf16.mxu0 0
        %2588 = vmatpush1.bf16.msra.mxu0 0
        %2589 = vmatprep.subr.bf16.mxu0 0
        %2590 = vmatpush1.bf16.msra.mxu0 0
        %2591 = vmatprep.subr.bf16.mxu0 0
        %2592 = vmatpush1.bf16.msra.mxu0 0
        %2593 = vmatprep.subr.bf16.mxu0 0
        %2594 = vmatpush1.bf16.msra.mxu0 0
        %2595 = vmatprep.subr.bf16.mxu0 0
        %2596 = vmatpush1.bf16.msra.mxu0 0
        %2597 = vmatprep.subr.bf16.mxu0 0
        %2598 = vmatpush1.bf16.msra.mxu0 0
        %2599 = vmatprep.mubr.bf16.mxu0 0
        %2600 = vmatmul.mubr.bf16.gmra.mrb[0].mxu0 %v2492
        %v2601 = vpop.f32.mrb[0].mxu0
        %v2602 = vadd.f32 0.0, %v2601
        %v2603 = vpop.f32.mrb[0].mxu0
        %v2604 = vpop.f32.mrb[0].mxu0
        %v2605 = vadd.f32 0.0, %v2604
        %v2606 = vpop.f32.mrb[0].mxu0
        %2607 = vmatprep.mubr.bf16.mxu0 0
        %2608 = vmatmul.mubr.bf16.gmra.mrb[0].mxu0 %v2493
        %v2609 = vpop.f32.mrb[0].mxu0
        %v2610 = vadd.f32 0.0, %v2609
        %v2611 = vpop.f32.mrb[0].mxu0
        %v2612 = vpop.f32.mrb[0].mxu0
        %v2613 = vadd.f32 0.0, %v2612
        %v2614 = vpop.f32.mrb[0].mxu0
        %2615 = vmatprep.mubr.bf16.mxu0 0
        %2616 = vmatmul.mubr.bf16.gmra.mrb[0].mxu0 %v2494
        %v2617 = vpop.f32.mrb[0].mxu0
        %v2618 = vadd.f32 0.0, %v2617
        %v2619 = vpop.f32.mrb[0].mxu0
        %v2620 = vpop.f32.mrb[0].mxu0
        %v2621 = vadd.f32 0.0, %v2620
        %v2622 = vpop.f32.mrb[0].mxu0
        %2623 = vmatprep.mubr.bf16.mxu0 0
        %2624 = vmatmul.mubr.bf16.gmra.mrb[0].mxu0 %v2495
        %v2625 = vpop.f32.mrb[0].mxu0
        %v2626 = vadd.f32 0.0, %v2625
        %v2627 = vpop.f32.mrb[0].mxu0
        %v2628 = vpop.f32.mrb[0].mxu0
        %v2629 = vadd.f32 0.0, %v2628
        %v2630 = vpop.f32.mrb[0].mxu0
        %2631 = vmatprep.mubr.bf16.mxu0 0
        %2632 = vmatmul.mubr.bf16.gmra.mrb[0].mxu0 %v2496
        %v2633 = vpop.f32.mrb[0].mxu0
        %v2634 = vadd.f32 0.0, %v2633
        %v2635 = vpop.f32.mrb[0].mxu0
        %v2636 = vpop.f32.mrb[0].mxu0
        %v2637 = vadd.f32 0.0, %v2636
        %v2638 = vpop.f32.mrb[0].mxu0
        %2639 = vmatprep.mubr.bf16.mxu0 0
        %2640 = vmatmul.mubr.bf16.gmra.mrb[0].mxu0 %v2497
        %v2641 = vpop.f32.mrb[0].mxu0
        %v2642 = vadd.f32 0.0, %v2641
        %v2643 = vpop.f32.mrb[0].mxu0
        %v2644 = vpop.f32.mrb[0].mxu0
        %v2645 = vadd.f32 0.0, %v2644
        %v2646 = vpop.f32.mrb[0].mxu0
        %2647 = vmatprep.mubr.bf16.mxu0 0
        %2648 = vmatmul.mubr.bf16.gmra.mrb[0].mxu0 %v2498
        %v2649 = vpop.f32.mrb[0].mxu0
        %v2650 = vadd.f32 0.0, %v2649
        %v2651 = vpop.f32.mrb[0].mxu0
        %v2652 = vpop.f32.mrb[0].mxu0
        %v2653 = vadd.f32 0.0, %v2652
        %v2654 = vpop.f32.mrb[0].mxu0
        %2655 = vmatprep.mubr.bf16.mxu0 0
        %2656 = vmatmul.mubr.bf16.gmra.mrb[0].mxu0 %v2499
        %v2657 = vpop.f32.mrb[0].mxu0
        %v2658 = vadd.f32 0.0, %v2657
        %v2659 = vpop.f32.mrb[0].mxu0
        %v2660 = vpop.f32.mrb[0].mxu0
        %v2661 = vadd.f32 0.0, %v2660
        %v2662 = vpop.f32.mrb[0].mxu0
        %2663 = vmatprep.mubr.bf16.mxu0 0
        %2664 = vmatmul.mubr.bf16.gmra.mrb[0].mxu0 %v2500
        %v2665 = vpop.f32.mrb[0].mxu0
        %v2666 = vadd.f32 0.0, %v2665
        %v2667 = vpop.f32.mrb[0].mxu0
        %v2668 = vpop.f32.mrb[0].mxu0
        %v2669 = vadd.f32 0.0, %v2668
        %v2670 = vpop.f32.mrb[0].mxu0
        %2671 = vmatprep.mubr.bf16.mxu0 0
        %2672 = vmatmul.mubr.bf16.gmra.mrb[0].mxu0 %v2501
        %v2673 = vpop.f32.mrb[0].mxu0
        %v2674 = vadd.f32 0.0, %v2673
        %v2675 = vpop.f32.mrb[0].mxu0
        %v2676 = vpop.f32.mrb[0].mxu0
        %v2677 = vadd.f32 0.0, %v2676
        %v2678 = vpop.f32.mrb[0].mxu0
        %2679 = vmatprep.mubr.bf16.mxu0 0
        %2680 = vmatmul.mubr.bf16.gmra.mrb[0].mxu0 %v2502
        %v2681 = vpop.f32.mrb[0].mxu0
        %v2682 = vadd.f32 0.0, %v2681
        %v2683 = vpop.f32.mrb[0].mxu0
        %v2684 = vpop.f32.mrb[0].mxu0
        %v2685 = vadd.f32 0.0, %v2684
        %v2686 = vpop.f32.mrb[0].mxu0
        %2687 = vdwg.mxu0
        %v2688 = vadd.f32 %v2448, %v2602
        %v2689 = vadd.f32 %v2449, %v2605
        %v2690 = vadd.f32 %v2450, %v2610
        %v2691 = vadd.f32 %v2451, %v2613
        %v2692 = vadd.f32 %v2452, %v2618
        %v2693 = vadd.f32 %v2453, %v2621
        %v2694 = vadd.f32 %v2454, %v2626
        %v2695 = vadd.f32 %v2455, %v2629
        %v2696 = vadd.f32 %v2456, %v2634
        %v2697 = vadd.f32 %v2457, %v2637
        %v2698 = vadd.f32 %v2458, %v2642
        %v2699 = vadd.f32 %v2459, %v2645
        %v2700 = vadd.f32 %v2460, %v2650
        %v2701 = vadd.f32 %v2461, %v2653
        %v2702 = vadd.f32 %v2462, %v2658
        %v2703 = vadd.f32 %v2463, %v2661
        %v2704 = vadd.f32 %v2464, %v2666
        %v2705 = vadd.f32 %v2465, %v2669
        %v2706 = vadd.f32 %v2466, %v2674
        %v2707 = vadd.f32 %v2467, %v2677
        %v2708 = vadd.f32 %v2468, %v2682
        %v2709 = vadd.f32 %v2469, %v2685
        %v2710 = vld [vmem:[%s0 + $0x1a] sm:$0xff]
        %v2711 = vld [vmem:[%s0 + $0x22] sm:$0xff]
        %v2712 = vld [vmem:[%s0 + $0x2a] sm:$0xff]
        %v2713 = vld [vmem:[%s0 + $0x32] sm:$0xff]
        %v2714 = vld [vmem:[%s0 + $0x3a] sm:$0xff]
        %v2715 = vld [vmem:[%s0 + $0x42] sm:$0xff]
        %v2716 = vld [vmem:[%s0 + $0x4a] sm:$0xff]
        %v2717 = vld [vmem:[%s0 + $0x52] sm:$0xff]
        %v2718 = vld [vmem:[%s0 + $0x5a] sm:$0xff]
        %v2719 = vld [vmem:[%s0 + $0x62] sm:$0xff]
        %v2720 = vld [vmem:[%s0 + $0x6a] sm:$0xff]
        %v2721 = vld [vmem:[%s0 + $0x72] sm:$0xff]
        %v2722 = vld [vmem:[%s0 + $0x7a] sm:$0xff]
        %v2723 = vld [vmem:[%s0 + $0x82] sm:$0xff]
        %v2724 = vld [vmem:[%s0 + $0x8a] sm:$0xff]
        %v2725 = vld [vmem:[%s0 + $0x92] sm:$0xff]
        %v2726 = vld [vmem:[%s0 + $0x9a] sm:$0xff]
        %v2727 = vld [vmem:[%s0 + $0xa2] sm:$0xff]
        %v2728 = vld [vmem:[%s0 + $0xaa] sm:$0xff]
        %v2729 = vld [vmem:[%s0 + $0xb2] sm:$0xff]
        %v2730 = vld [vmem:[%s0 + $0xba] sm:$0xff]
        %v2731 = vld [vmem:[%s0 + $0xc2] sm:$0xff]
        %v2732 = vpack.c.bf16 %v2711, %v2710
        %v2733 = vpack.c.bf16 %v2713, %v2712
        %v2734 = vpack.c.bf16 %v2715, %v2714
        %v2735 = vpack.c.bf16 %v2717, %v2716
        %v2736 = vpack.c.bf16 %v2719, %v2718
        %v2737 = vpack.c.bf16 %v2721, %v2720
        %v2738 = vpack.c.bf16 %v2723, %v2722
        %v2739 = vpack.c.bf16 %v2725, %v2724
        %v2740 = vpack.c.bf16 %v2727, %v2726
        %v2741 = vpack.c.bf16 %v2729, %v2728
        %v2742 = vpack.c.bf16 %v2731, %v2730
        %v2743 = vld [vmem:[%s799 + $0x200] sm:$0xf]
        %v2744 = vld [vmem:[%s799 + $0x204] sm:$0xf]
        %v2745 = vld [vmem:[%s799 + $0x208] sm:$0xf]
        %v2746 = vld [vmem:[%s799 + $0x20c] sm:$0xf]
        %v2747 = vld [vmem:[%s799 + $0x210] sm:$0xf]
        %v2748 = vld [vmem:[%s799 + $0x214] sm:$0xf]
        %v2749 = vld [vmem:[%s799 + $0x218] sm:$0xf]
        %v2750 = vld [vmem:[%s799 + $0x21c] sm:$0xf]
        %v2751 = vld [vmem:[%s799 + $0x220] sm:$0xf]
        %v2752 = vld [vmem:[%s799 + $0x224] sm:$0xf]
        %v2753 = vld [vmem:[%s799 + $0x228] sm:$0xf]
        %v2754 = vld [vmem:[%s799 + $0x22c] sm:$0xf]
        %v2755 = vld [vmem:[%s799 + $0x230] sm:$0xf]
        %v2756 = vld [vmem:[%s799 + $0x234] sm:$0xf]
        %v2757 = vld [vmem:[%s799 + $0x238] sm:$0xf]
        %v2758 = vld [vmem:[%s799 + $0x23c] sm:$0xf]
        %v2775 = vunpack.c.l.b16 %v2743
        %v2776 = vunpack.c.l.b16 %v2744
        %v2777 = vunpack.c.l.b16 %v2745
        %v2778 = vunpack.c.l.b16 %v2746
        %v2779 = vunpack.c.l.b16 %v2747
        %v2780 = vunpack.c.l.b16 %v2748
        %v2781 = vunpack.c.l.b16 %v2749
        %v2782 = vunpack.c.l.b16 %v2750
        %v2783 = vunpack.c.l.b16 %v2751
        %v2784 = vunpack.c.l.b16 %v2752
        %v2785 = vunpack.c.l.b16 %v2753
        %v2786 = vunpack.c.l.b16 %v2754
        %v2787 = vunpack.c.l.b16 %v2755
        %v2788 = vunpack.c.l.b16 %v2756
        %v2789 = vunpack.c.l.b16 %v2757
        %v2790 = vunpack.c.l.b16 %v2758
        %v2791 = vpack.c.b16 %v2776, %v2775
        %v2792 = vpack.c.b16 %v2778, %v2777
        %v2793 = vpack.c.b16 %v2780, %v2779
        %v2794 = vpack.c.b16 %v2782, %v2781
        %v2795 = vpack.c.b16 %v2784, %v2783
        %v2796 = vpack.c.b16 %v2786, %v2785
        %v2797 = vpack.c.b16 %v2788, %v2787
        %v2798 = vpack.c.b16 %v2790, %v2789
        %2807 = vmatprep.subr.bf16.mxu0 0
        %2808 = vmatpush1.bf16.msra.mxu0 %v2791
        %2809 = vmatprep.subr.bf16.mxu0 0
        %2810 = vmatpush1.bf16.msra.mxu0 %v2792
        %2811 = vmatprep.subr.bf16.mxu0 0
        %2812 = vmatpush1.bf16.msra.mxu0 %v2793
        %2813 = vmatprep.subr.bf16.mxu0 0
        %2814 = vmatpush1.bf16.msra.mxu0 %v2794
        %2815 = vmatprep.subr.bf16.mxu0 0
        %2816 = vmatpush1.bf16.msra.mxu0 %v2795
        %2817 = vmatprep.subr.bf16.mxu0 0
        %2818 = vmatpush1.bf16.msra.mxu0 %v2796
        %2819 = vmatprep.subr.bf16.mxu0 0
        %2820 = vmatpush1.bf16.msra.mxu0 %v2797
        %2821 = vmatprep.subr.bf16.mxu0 0
        %2822 = vmatpush1.bf16.msra.mxu0 %v2798
        %2823 = vmatprep.subr.bf16.mxu0 0
        %2824 = vmatpush1.bf16.msra.mxu0 0
        %2825 = vmatprep.subr.bf16.mxu0 0
        %2826 = vmatpush1.bf16.msra.mxu0 0
        %2827 = vmatprep.subr.bf16.mxu0 0
        %2828 = vmatpush1.bf16.msra.mxu0 0
        %2829 = vmatprep.subr.bf16.mxu0 0
        %2830 = vmatpush1.bf16.msra.mxu0 0
        %2831 = vmatprep.subr.bf16.mxu0 0
        %2832 = vmatpush1.bf16.msra.mxu0 0
        %2833 = vmatprep.subr.bf16.mxu0 0
        %2834 = vmatpush1.bf16.msra.mxu0 0
        %2835 = vmatprep.subr.bf16.mxu0 0
        %2836 = vmatpush1.bf16.msra.mxu0 0
        %2837 = vmatprep.subr.bf16.mxu0 0
        %2838 = vmatpush1.bf16.msra.mxu0 0
        %2839 = vmatprep.mubr.bf16.mxu0 0
        %2840 = vmatmul.mubr.bf16.gmra.mrb[0].mxu0 %v2732
        %v2841 = vpop.f32.mrb[0].mxu0
        %v2842 = vadd.f32 0.0, %v2841
        %v2843 = vpop.f32.mrb[0].mxu0
        %v2844 = vpop.f32.mrb[0].mxu0
        %v2845 = vadd.f32 0.0, %v2844
        %v2846 = vpop.f32.mrb[0].mxu0
        %2847 = vmatprep.mubr.bf16.mxu0 0
        %2848 = vmatmul.mubr.bf16.gmra.mrb[0].mxu0 %v2733
        %v2849 = vpop.f32.mrb[0].mxu0
        %v2850 = vadd.f32 0.0, %v2849
        %v2851 = vpop.f32.mrb[0].mxu0
        %v2852 = vpop.f32.mrb[0].mxu0
        %v2853 = vadd.f32 0.0, %v2852
        %v2854 = vpop.f32.mrb[0].mxu0
        %2855 = vmatprep.mubr.bf16.mxu0 0
        %2856 = vmatmul.mubr.bf16.gmra.mrb[0].mxu0 %v2734
        %v2857 = vpop.f32.mrb[0].mxu0
        %v2858 = vadd.f32 0.0, %v2857
        %v2859 = vpop.f32.mrb[0].mxu0
        %v2860 = vpop.f32.mrb[0].mxu0
        %v2861 = vadd.f32 0.0, %v2860
        %v2862 = vpop.f32.mrb[0].mxu0
        %2863 = vmatprep.mubr.bf16.mxu0 0
        %2864 = vmatmul.mubr.bf16.gmra.mrb[0].mxu0 %v2735
        %v2865 = vpop.f32.mrb[0].mxu0
        %v2866 = vadd.f32 0.0, %v2865
        %v2867 = vpop.f32.mrb[0].mxu0
        %v2868 = vpop.f32.mrb[0].mxu0
        %v2869 = vadd.f32 0.0, %v2868
        %v2870 = vpop.f32.mrb[0].mxu0
        %2871 = vmatprep.mubr.bf16.mxu0 0
        %2872 = vmatmul.mubr.bf16.gmra.mrb[0].mxu0 %v2736
        %v2873 = vpop.f32.mrb[0].mxu0
        %v2874 = vadd.f32 0.0, %v2873
        %v2875 = vpop.f32.mrb[0].mxu0
        %v2876 = vpop.f32.mrb[0].mxu0
        %v2877 = vadd.f32 0.0, %v2876
        %v2878 = vpop.f32.mrb[0].mxu0
        %2879 = vmatprep.mubr.bf16.mxu0 0
        %2880 = vmatmul.mubr.bf16.gmra.mrb[0].mxu0 %v2737
        %v2881 = vpop.f32.mrb[0].mxu0
        %v2882 = vadd.f32 0.0, %v2881
        %v2883 = vpop.f32.mrb[0].mxu0
        %v2884 = vpop.f32.mrb[0].mxu0
        %v2885 = vadd.f32 0.0, %v2884
        %v2886 = vpop.f32.mrb[0].mxu0
        %2887 = vmatprep.mubr.bf16.mxu0 0
        %2888 = vmatmul.mubr.bf16.gmra.mrb[0].mxu0 %v2738
        %v2889 = vpop.f32.mrb[0].mxu0
        %v2890 = vadd.f32 0.0, %v2889
        %v2891 = vpop.f32.mrb[0].mxu0
        %v2892 = vpop.f32.mrb[0].mxu0
        %v2893 = vadd.f32 0.0, %v2892
        %v2894 = vpop.f32.mrb[0].mxu0
        %2895 = vmatprep.mubr.bf16.mxu0 0
        %2896 = vmatmul.mubr.bf16.gmra.mrb[0].mxu0 %v2739
        %v2897 = vpop.f32.mrb[0].mxu0
        %v2898 = vadd.f32 0.0, %v2897
        %v2899 = vpop.f32.mrb[0].mxu0
        %v2900 = vpop.f32.mrb[0].mxu0
        %v2901 = vadd.f32 0.0, %v2900
        %v2902 = vpop.f32.mrb[0].mxu0
        %2903 = vmatprep.mubr.bf16.mxu0 0
        %2904 = vmatmul.mubr.bf16.gmra.mrb[0].mxu0 %v2740
        %v2905 = vpop.f32.mrb[0].mxu0
        %v2906 = vadd.f32 0.0, %v2905
        %v2907 = vpop.f32.mrb[0].mxu0
        %v2908 = vpop.f32.mrb[0].mxu0
        %v2909 = vadd.f32 0.0, %v2908
        %v2910 = vpop.f32.mrb[0].mxu0
        %2911 = vmatprep.mubr.bf16.mxu0 0
        %2912 = vmatmul.mubr.bf16.gmra.mrb[0].mxu0 %v2741
        %v2913 = vpop.f32.mrb[0].mxu0
        %v2914 = vadd.f32 0.0, %v2913
        %v2915 = vpop.f32.mrb[0].mxu0
        %v2916 = vpop.f32.mrb[0].mxu0
        %v2917 = vadd.f32 0.0, %v2916
        %v2918 = vpop.f32.mrb[0].mxu0
        %2919 = vmatprep.mubr.bf16.mxu0 0
        %2920 = vmatmul.mubr.bf16.gmra.mrb[0].mxu0 %v2742
        %v2921 = vpop.f32.mrb[0].mxu0
        %v2922 = vadd.f32 0.0, %v2921
        %v2923 = vpop.f32.mrb[0].mxu0
        %v2924 = vpop.f32.mrb[0].mxu0
        %v2925 = vadd.f32 0.0, %v2924
        %v2926 = vpop.f32.mrb[0].mxu0
        %2927 = vdwg.mxu0
        %v2928 = vadd.f32 %v2688, %v2842
        %v2929 = vadd.f32 %v2689, %v2845
        %v2930 = vadd.f32 %v2690, %v2850
        %v2931 = vadd.f32 %v2691, %v2853
        %v2932 = vadd.f32 %v2692, %v2858
        %v2933 = vadd.f32 %v2693, %v2861
        %v2934 = vadd.f32 %v2694, %v2866
        %v2935 = vadd.f32 %v2695, %v2869
        %v2936 = vadd.f32 %v2696, %v2874
        %v2937 = vadd.f32 %v2697, %v2877
        %v2938 = vadd.f32 %v2698, %v2882
        %v2939 = vadd.f32 %v2699, %v2885
        %v2940 = vadd.f32 %v2700, %v2890
        %v2941 = vadd.f32 %v2701, %v2893
        %v2942 = vadd.f32 %v2702, %v2898
        %v2943 = vadd.f32 %v2703, %v2901
        %v2944 = vadd.f32 %v2704, %v2906
        %v2945 = vadd.f32 %v2705, %v2909
        %v2946 = vadd.f32 %v2706, %v2914
        %v2947 = vadd.f32 %v2707, %v2917
        %v2948 = vadd.f32 %v2708, %v2922
        %v2949 = vadd.f32 %v2709, %v2925
        %v2950 = vld [vmem:[%s829] sm:$0x1]
        %v2952 = vlaneseq
        %v2953 = vshrl.u32 %v2952, 7
        %v2954 = vsub.s32 0, %v2953
        %v2955 = vrot.slane %v2950, %v2954
        %v2957 = vmul.f32 %v2928, %v2955
        %v2958 = vmul.f32 %v2929, %v2955
        %v2959 = vmul.f32 %v2930, %v2955
        %v2960 = vmul.f32 %v2931, %v2955
        %v2961 = vmul.f32 %v2932, %v2955
        %v2962 = vmul.f32 %v2933, %v2955
        %v2963 = vmul.f32 %v2934, %v2955
        %v2964 = vmul.f32 %v2935, %v2955
        %v2965 = vmul.f32 %v2936, %v2955
        %v2966 = vmul.f32 %v2937, %v2955
        %v2967 = vmul.f32 %v2938, %v2955
        %v2968 = vmul.f32 %v2939, %v2955
        %v2969 = vmul.f32 %v2940, %v2955
        %v2970 = vmul.f32 %v2941, %v2955
        %v2971 = vmul.f32 %v2942, %v2955
        %v2972 = vmul.f32 %v2943, %v2955
        %v2973 = vmul.f32 %v2944, %v2955
        %v2974 = vmul.f32 %v2945, %v2955
        %v2975 = vmul.f32 %v2946, %v2955
        %v2976 = vmul.f32 %v2947, %v2955
        %v2977 = vmul.f32 %v2948, %v2955
        %v2978 = vmul.f32 %v2949, %v2955
        %v2979 = vld [vmem:[%s832] sm:$0x1]
        %v2981 = vlaneseq
        %v2982 = vshrl.u32 %v2981, 7
        %v2983 = vsub.s32 0, %v2982
        %v2984 = vrot.slane %v2979, %v2983
        %v2986 = vadd.f32 %v2957, %v2984
        %v2987 = vadd.f32 %v2958, %v2984
        %v2988 = vadd.f32 %v2959, %v2984
        %v2989 = vadd.f32 %v2960, %v2984
        %v2990 = vadd.f32 %v2961, %v2984
        %v2991 = vadd.f32 %v2962, %v2984
        %v2992 = vadd.f32 %v2963, %v2984
        %v2993 = vadd.f32 %v2964, %v2984
        %v2994 = vadd.f32 %v2965, %v2984
        %v2995 = vadd.f32 %v2966, %v2984
        %v2996 = vadd.f32 %v2967, %v2984
        %v2997 = vadd.f32 %v2968, %v2984
        %v2998 = vadd.f32 %v2969, %v2984
        %v2999 = vadd.f32 %v2970, %v2984
        %v3000 = vadd.f32 %v2971, %v2984
        %v3001 = vadd.f32 %v2972, %v2984
        %v3002 = vadd.f32 %v2973, %v2984
        %v3003 = vadd.f32 %v2974, %v2984
        %v3004 = vadd.f32 %v2975, %v2984
        %v3005 = vadd.f32 %v2976, %v2984
        %v3006 = vadd.f32 %v2977, %v2984
        %v3007 = vadd.f32 %v2978, %v2984
        %v3008 = vmax.f32 %v2986, 0.0
        %v3009 = vmax.f32 %v2987, 0.0
        %v3010 = vmax.f32 %v2988, 0.0
        %v3011 = vmax.f32 %v2989, 0.0
        %v3012 = vmax.f32 %v2990, 0.0
        %v3013 = vmax.f32 %v2991, 0.0
        %v3014 = vmax.f32 %v2992, 0.0
        %v3015 = vmax.f32 %v2993, 0.0
        %v3016 = vmax.f32 %v2994, 0.0
        %v3017 = vmax.f32 %v2995, 0.0
        %v3018 = vmax.f32 %v2996, 0.0
        %v3019 = vmax.f32 %v2997, 0.0
        %v3020 = vmax.f32 %v2998, 0.0
        %v3021 = vmax.f32 %v2999, 0.0
        %v3022 = vmax.f32 %v3000, 0.0
        %v3023 = vmax.f32 %v3001, 0.0
        %v3024 = vmax.f32 %v3002, 0.0
        %v3025 = vmax.f32 %v3003, 0.0
        %v3026 = vmax.f32 %v3004, 0.0
        %v3027 = vmax.f32 %v3005, 0.0
        %v3028 = vmax.f32 %v3006, 0.0
        %v3029 = vmax.f32 %v3007, 0.0
        %3030 = vst [vmem:[%s826] sm:$0xff] %v3008
        %3031 = vst [vmem:[%s826 + $0x8] sm:$0xff] %v3009
        %3032 = vst [vmem:[%s826 + $0x10] sm:$0xff] %v3010
        %3033 = vst [vmem:[%s826 + $0x18] sm:$0xff] %v3011
        %3034 = vst [vmem:[%s826 + $0x20] sm:$0xff] %v3012
        %3035 = vst [vmem:[%s826 + $0x28] sm:$0xff] %v3013
        %3036 = vst [vmem:[%s826 + $0x30] sm:$0xff] %v3014
        %3037 = vst [vmem:[%s826 + $0x38] sm:$0xff] %v3015
        %3038 = vst [vmem:[%s826 + $0x40] sm:$0xff] %v3016
        %3039 = vst [vmem:[%s826 + $0x48] sm:$0xff] %v3017
        %3040 = vst [vmem:[%s826 + $0x50] sm:$0xff] %v3018
        %3041 = vst [vmem:[%s826 + $0x58] sm:$0xff] %v3019
        %3042 = vst [vmem:[%s826 + $0x60] sm:$0xff] %v3020
        %3043 = vst [vmem:[%s826 + $0x68] sm:$0xff] %v3021
        %3044 = vst [vmem:[%s826 + $0x70] sm:$0xff] %v3022
        %3045 = vst [vmem:[%s826 + $0x78] sm:$0xff] %v3023
        %3046 = vst [vmem:[%s826 + $0x80] sm:$0xff] %v3024
        %3047 = vst [vmem:[%s826 + $0x88] sm:$0xff] %v3025
        %3048 = vst [vmem:[%s826 + $0x90] sm:$0xff] %v3026
        %3049 = vst [vmem:[%s826 + $0x98] sm:$0xff] %v3027
        %3050 = vst [vmem:[%s826 + $0xa0] sm:$0xff] %v3028
        %3051 = vst [vmem:[%s826 + $0xa8] sm:$0xff] %v3029
        %s3052 = sand.u32 %s122, 1
        %s3053 = sand.u32 %s122, 1
        %s3054 = smul.addr %s3053, 176
        %s3055 = scalar_lea.vmem [#allocation3], %s3054
        // Predicated region
        $region78: #{clustergan_dec_forward.4} parent=72 // pred_check
          %p3056 = pneg %p132
        $region79: #{clustergan_dec_forward.4} parent=72 // pred_check_branch
          %3058 = sbr.rel (%p3056) target = $region81
        $region80: #{clustergan_dec_forward.4} parent=72 // pred_region
          %s3059 = smul.addr %s15, 8
          %s3060 = scalar_lea.vmem %s4, %s3059
          // Predicated region
          $region82: #{clustergan_dec_forward.4} parent=80 // pred_check
            _
          $region83: #{clustergan_dec_forward.4} parent=80 // pred_check_branch
            %3062 = sbr.rel (0) target = $region85
          $region84: #{clustergan_dec_forward.4} parent=80 // pred_region
            // Predicated region
            $region86: #{clustergan_dec_forward.4} parent=84 // pred_check
              _
            $region87: #{clustergan_dec_forward.4} parent=84 // pred_check_branch
              %3064 = sbr.rel (0) target = $region89
            $region88: #{clustergan_dec_forward.4} parent=84 // pred_region
              // Predicated region
              $region101: #{clustergan_dec_forward.4} parent=88 // pred_check
                _
              $region102: #{clustergan_dec_forward.4} parent=88 // pred_check_branch
                %3121 = sbr.rel (0) target = $region104
              $region103: #{clustergan_dec_forward.4} parent=88 // pred_region
                loop: start=0, step=1, limit=1
                $region105: #{clustergan_dec_forward.4} parent=103 // loop_pre_header
                  _
                $region106: #{clustergan_dec_forward.4} parent=103 // loop_header
                  %s3123 = sphi 0, %s3127
                  %p3124 = scmp.ge.s32.totalorder %s3123, 1
                  %s3128 = sphi %s3055, %s3055
                  %s3129 = sphi %s3060, %s3060
                $region107: #{clustergan_dec_forward.4} parent=103 // loop_header_branch
                  %3126 = sbr.rel (%p3124) target = $region111
                $region108: #{clustergan_dec_forward.4} parent=103 // loop_body
                  %v3130 = vld [vmem:[%s3128] sm:$0xff]
                  %3131 = vst [vmem:[%s3129] sm:$0xff] %v3130
                  %v3132 = vld [vmem:[%s3128 + $0x8] sm:$0xff]
                  %3133 = vst [vmem:[%s3129 + $0x10] sm:$0xff] %v3132
                  %v3134 = vld [vmem:[%s3128 + $0x10] sm:$0xff]
                  %3135 = vst [vmem:[%s3129 + $0x20] sm:$0xff] %v3134
                  %v3136 = vld [vmem:[%s3128 + $0x18] sm:$0xff]
                  %3137 = vst [vmem:[%s3129 + $0x30] sm:$0xff] %v3136
                  %v3138 = vld [vmem:[%s3128 + $0x20] sm:$0xff]
                  %3139 = vst [vmem:[%s3129 + $0x40] sm:$0xff] %v3138
                  %v3140 = vld [vmem:[%s3128 + $0x28] sm:$0xff]
                  %3141 = vst [vmem:[%s3129 + $0x50] sm:$0xff] %v3140
                  %v3142 = vld [vmem:[%s3128 + $0x30] sm:$0xff]
                  %3143 = vst [vmem:[%s3129 + $0x60] sm:$0xff] %v3142
                  %v3144 = vld [vmem:[%s3128 + $0x38] sm:$0xff]
                  %3145 = vst [vmem:[%s3129 + $0x70] sm:$0xff] %v3144
                  %v3146 = vld [vmem:[%s3128 + $0x40] sm:$0xff]
                  %3147 = vst [vmem:[%s3129 + $0x80] sm:$0xff] %v3146
                  %v3148 = vld [vmem:[%s3128 + $0x48] sm:$0xff]
                  %3149 = vst [vmem:[%s3129 + $0x90] sm:$0xff] %v3148
                  %v3150 = vld [vmem:[%s3128 + $0x50] sm:$0xff]
                  %3151 = vst [vmem:[%s3129 + $0xa0] sm:$0xff] %v3150
                  %v3152 = vld [vmem:[%s3128 + $0x58] sm:$0xff]
                  %3153 = vst [vmem:[%s3129 + $0xb0] sm:$0xff] %v3152
                  %v3154 = vld [vmem:[%s3128 + $0x60] sm:$0xff]
                  %3155 = vst [vmem:[%s3129 + $0xc0] sm:$0xff] %v3154
                  %v3156 = vld [vmem:[%s3128 + $0x68] sm:$0xff]
                  %3157 = vst [vmem:[%s3129 + $0xd0] sm:$0xff] %v3156
                  %v3158 = vld [vmem:[%s3128 + $0x70] sm:$0xff]
                  %3159 = vst [vmem:[%s3129 + $0xe0] sm:$0xff] %v3158
                  %v3160 = vld [vmem:[%s3128 + $0x78] sm:$0xff]
                  %3161 = vst [vmem:[%s3129 + $0xf0] sm:$0xff] %v3160
                  %v3162 = vld [vmem:[%s3128 + $0x80] sm:$0xff]
                  %3163 = vst [vmem:[%s3129 + $0x100] sm:$0xff] %v3162
                  %v3164 = vld [vmem:[%s3128 + $0x88] sm:$0xff]
                  %3165 = vst [vmem:[%s3129 + $0x110] sm:$0xff] %v3164
                  %v3166 = vld [vmem:[%s3128 + $0x90] sm:$0xff]
                  %3167 = vst [vmem:[%s3129 + $0x120] sm:$0xff] %v3166
                  %v3168 = vld [vmem:[%s3128 + $0x98] sm:$0xff]
                  %3169 = vst [vmem:[%s3129 + $0x130] sm:$0xff] %v3168
                  %v3170 = vld [vmem:[%s3128 + $0xa0] sm:$0xff]
                  %3171 = vst [vmem:[%s3129 + $0x140] sm:$0xff] %v3170
                  %v3172 = vld [vmem:[%s3128 + $0xa8] sm:$0xff]
                  %3173 = vst [vmem:[%s3129 + $0x150] sm:$0xff] %v3172
                $region109: #{clustergan_dec_forward.4} parent=103 // loop_footer
                  %s3127 = sadd.s32 1, %s3123
                $region110: #{clustergan_dec_forward.4} parent=103 // loop_footer_branch
                  %3122 = sbr.rel target = $region106
                $region111: #{clustergan_dec_forward.4} parent=103 // loop_exit
                  _
              $region104: #{clustergan_dec_forward.4} parent=88 // pred_fallthru
                _
              // Predicated region
              $region112: #{clustergan_dec_forward.4} parent=88 // pred_check
                _
              $region113: #{clustergan_dec_forward.4} parent=88 // pred_check_branch
                %3175 = sbr.rel target = $region115
              $region114: #{clustergan_dec_forward.4} parent=88 // pred_region
                _
              $region115: #{clustergan_dec_forward.4} parent=88 // pred_fallthru
                _
            $region89: #{clustergan_dec_forward.4} parent=84 // pred_fallthru
              _
            // Predicated region
            $region90: #{clustergan_dec_forward.4} parent=84 // pred_check
              _
            $region91: #{clustergan_dec_forward.4} parent=84 // pred_check_branch
              %3066 = sbr.rel target = $region93
            $region92: #{clustergan_dec_forward.4} parent=84 // pred_region
              loop: start=0, step=1, limit=1
              $region94: #{clustergan_dec_forward.4} parent=92 // loop_pre_header
                _
              $region95: #{clustergan_dec_forward.4} parent=92 // loop_header
                %s3069 = sphi 0, %s3073
                %p3070 = scmp.ge.s32.totalorder %s3069, 1
                %s3074 = sphi %s3055, %s3055
                %s3075 = sphi %s3060, %s3060
              $region96: #{clustergan_dec_forward.4} parent=92 // loop_header_branch
                %3072 = sbr.rel (%p3070) target = $region100
              $region97: #{clustergan_dec_forward.4} parent=92 // loop_body
                %v3076 = vld [vmem:[%s3074] sm:$0xff]
                %3077 = vst [vmem:[%s3075] sm:$0xff] %v3076
                %v3078 = vld [vmem:[%s3074 + $0x8] sm:$0xff]
                %3079 = vst [vmem:[%s3075 + $0x10] sm:$0xff] %v3078
                %v3080 = vld [vmem:[%s3074 + $0x10] sm:$0xff]
                %3081 = vst [vmem:[%s3075 + $0x20] sm:$0xff] %v3080
                %v3082 = vld [vmem:[%s3074 + $0x18] sm:$0xff]
                %3083 = vst [vmem:[%s3075 + $0x30] sm:$0xff] %v3082
                %v3084 = vld [vmem:[%s3074 + $0x20] sm:$0xff]
                %3085 = vst [vmem:[%s3075 + $0x40] sm:$0xff] %v3084
                %v3086 = vld [vmem:[%s3074 + $0x28] sm:$0xff]
                %3087 = vst [vmem:[%s3075 + $0x50] sm:$0xff] %v3086
                %v3088 = vld [vmem:[%s3074 + $0x30] sm:$0xff]
                %3089 = vst [vmem:[%s3075 + $0x60] sm:$0xff] %v3088
                %v3090 = vld [vmem:[%s3074 + $0x38] sm:$0xff]
                %3091 = vst [vmem:[%s3075 + $0x70] sm:$0xff] %v3090
                %v3092 = vld [vmem:[%s3074 + $0x40] sm:$0xff]
                %3093 = vst [vmem:[%s3075 + $0x80] sm:$0xff] %v3092
                %v3094 = vld [vmem:[%s3074 + $0x48] sm:$0xff]
                %3095 = vst [vmem:[%s3075 + $0x90] sm:$0xff] %v3094
                %v3096 = vld [vmem:[%s3074 + $0x50] sm:$0xff]
                %3097 = vst [vmem:[%s3075 + $0xa0] sm:$0xff] %v3096
                %v3098 = vld [vmem:[%s3074 + $0x58] sm:$0xff]
                %3099 = vst [vmem:[%s3075 + $0xb0] sm:$0xff] %v3098
                %v3100 = vld [vmem:[%s3074 + $0x60] sm:$0xff]
                %3101 = vst [vmem:[%s3075 + $0xc0] sm:$0xff] %v3100
                %v3102 = vld [vmem:[%s3074 + $0x68] sm:$0xff]
                %3103 = vst [vmem:[%s3075 + $0xd0] sm:$0xff] %v3102
                %v3104 = vld [vmem:[%s3074 + $0x70] sm:$0xff]
                %3105 = vst [vmem:[%s3075 + $0xe0] sm:$0xff] %v3104
                %v3106 = vld [vmem:[%s3074 + $0x78] sm:$0xff]
                %3107 = vst [vmem:[%s3075 + $0xf0] sm:$0xff] %v3106
                %v3108 = vld [vmem:[%s3074 + $0x80] sm:$0xff]
                %3109 = vst [vmem:[%s3075 + $0x100] sm:$0xff] %v3108
                %v3110 = vld [vmem:[%s3074 + $0x88] sm:$0xff]
                %3111 = vst [vmem:[%s3075 + $0x110] sm:$0xff] %v3110
                %v3112 = vld [vmem:[%s3074 + $0x90] sm:$0xff]
                %3113 = vst [vmem:[%s3075 + $0x120] sm:$0xff] %v3112
                %v3114 = vld [vmem:[%s3074 + $0x98] sm:$0xff]
                %3115 = vst [vmem:[%s3075 + $0x130] sm:$0xff] %v3114
                %v3116 = vld [vmem:[%s3074 + $0xa0] sm:$0xff]
                %3117 = vst [vmem:[%s3075 + $0x140] sm:$0xff] %v3116
                %v3118 = vld [vmem:[%s3074 + $0xa8] sm:$0xff]
                %3119 = vst [vmem:[%s3075 + $0x150] sm:$0xff] %v3118
              $region98: #{clustergan_dec_forward.4} parent=92 // loop_footer
                %s3073 = sadd.s32 1, %s3069
              $region99: #{clustergan_dec_forward.4} parent=92 // loop_footer_branch
                %3068 = sbr.rel target = $region95
              $region100: #{clustergan_dec_forward.4} parent=92 // loop_exit
                _
            $region93: #{clustergan_dec_forward.4} parent=84 // pred_fallthru
              _
          $region85: #{clustergan_dec_forward.4} parent=80 // pred_fallthru
            _
          %3176 = vnop
        $region81: #{clustergan_dec_forward.4} parent=72 // pred_fallthru
          _
      $region73: #{clustergan_dec_forward.4} parent=5 // pred_fallthru
        _
      %p3177 = scmp.le.s32.totalorder 2, %s10
      // Predicated region
      $region116: #{clustergan_dec_forward.4} parent=5 // pred_check
        %p3178 = pneg %p3177
      $region117: #{clustergan_dec_forward.4} parent=5 // pred_check_branch
        %3180 = sbr.rel (%p3178) target = $region119
      $region118: #{clustergan_dec_forward.4} parent=5 // pred_region
        %s3181 = ssub.s32 %s10, 2
        // Predicated region
        $region120: #{clustergan_dec_forward.4} parent=118 // pred_check
          %p3182 = pneg %p138
        $region121: #{clustergan_dec_forward.4} parent=118 // pred_check_branch
          %3184 = sbr.rel (%p3182) target = $region123
        $region122: #{clustergan_dec_forward.4} parent=118 // pred_region
          %s3185 = sand.u32 %s123, 1
          %s3186 = sand.u32 %s123, 1
          %s3187 = smul.addr %s3186, 176
          %s3188 = scalar_lea.vmem [#allocation3], %s3187
        $region123: #{clustergan_dec_forward.4} parent=118 // pred_fallthru
          _
      $region119: #{clustergan_dec_forward.4} parent=5 // pred_fallthru
        _
    $region6: #{clustergan_dec_forward.4} parent=1 // loop_footer
      %s14 = sadd.s32 1, %s10
    $region7: #{clustergan_dec_forward.4} parent=1 // loop_footer_branch
      %9 = sbr.rel target = $region3
    $region8: #{clustergan_dec_forward.4} parent=1 // loop_exit
      _

// kernel: clustergan_dec_forward.5
$region0: #{clustergan_dec_forward.5}
  #allocation0 [shape = 'u32[]', space=smem, size = 0x4, offset = 0x4, fixed_abs, tag = 'smem constant byte address 0x4 - core index']
  #allocation1 [shape = 'u32[144,128]{1,0:T(1,128)}', space=vmem, size = 0x12000, scoped, tag = 'internal scratch']
  %s0 = inlined_call_operand.vmem [shape: f32[560,64], index: 0, kind: input, shape index: {}]
  %s1 = inlined_call_operand.vmem [shape: bf16[576,128], index: 1, kind: input, shape index: {}]
  %s2 = inlined_call_operand.vmem [shape: f32[1,128], index: 2, kind: input, shape index: {}]
  %s3 = inlined_call_operand.vmem [shape: f32[1,128], index: 3, kind: input, shape index: {}]
  %s4 = inlined_call_operand.vmem [shape: f32[512,128], index: 4, kind: output, shape index: {}]
  %s5 = sld [smem:[#allocation0]]
  $region26: #{clustergan_dec_forward.5} parent=0
    _
  %s7 = ssub.s32 1, %s5
  %s8 = scalar_select 0, %s7, %s5
  // Predicated region
  $region2: #{clustergan_dec_forward.5} parent=0 // pred_check
    _
  $region3: #{clustergan_dec_forward.5} parent=0 // pred_check_branch
    %10 = sbr.rel (0) target = $region5
  $region4: #{clustergan_dec_forward.5} parent=0 // pred_region
    _
  $region5: #{clustergan_dec_forward.5} parent=0 // pred_fallthru
    _
  // Predicated region
  $region6: #{clustergan_dec_forward.5} parent=0 // pred_check
    _
  $region7: #{clustergan_dec_forward.5} parent=0 // pred_check_branch
    %12 = sbr.rel (0) target = $region9
  $region8: #{clustergan_dec_forward.5} parent=0 // pred_region
    _
  $region9: #{clustergan_dec_forward.5} parent=0 // pred_fallthru
    _
  // Predicated region
  $region10: #{clustergan_dec_forward.5} parent=0 // pred_check
    _
  $region11: #{clustergan_dec_forward.5} parent=0 // pred_check_branch
    %14 = sbr.rel (0) target = $region13
  $region12: #{clustergan_dec_forward.5} parent=0 // pred_region
    _
  $region13: #{clustergan_dec_forward.5} parent=0 // pred_fallthru
    _
  // Predicated region
  $region14: #{clustergan_dec_forward.5} parent=0 // pred_check
    _
  $region15: #{clustergan_dec_forward.5} parent=0 // pred_check_branch
    %16 = sbr.rel (0) target = $region17
  $region16: #{clustergan_dec_forward.5} parent=0 // pred_region
    _
  $region17: #{clustergan_dec_forward.5} parent=0 // pred_fallthru
    _
  %v18 = vld [vmem:[%s0 + $0x7] sm:$0xff]
  %v19 = vld [vmem:[%s0 + $0xf] sm:$0xff]
  %v20 = vld [vmem:[%s0 + $0x17] sm:$0xff]
  %v21 = vld [vmem:[%s0 + $0x1f] sm:$0xff]
  %v22 = vld [vmem:[%s0 + $0x27] sm:$0xff]
  %v23 = vld [vmem:[%s0 + $0x2f] sm:$0xff]
  %v24 = vld [vmem:[%s0 + $0x37] sm:$0xff]
  %v25 = vld [vmem:[%s0 + $0x3f] sm:$0xff]
  %v26 = vld [vmem:[%s0 + $0x47] sm:$0xff]
  %v27 = vld [vmem:[%s0 + $0x4f] sm:$0xff]
  %v28 = vld [vmem:[%s0 + $0x57] sm:$0xff]
  %v29 = vld [vmem:[%s0 + $0x5f] sm:$0xff]
  %v30 = vld [vmem:[%s0 + $0x67] sm:$0xff]
  %v31 = vld [vmem:[%s0 + $0x6f] sm:$0xff]
  %v32 = vld [vmem:[%s0 + $0x77] sm:$0xff]
  %v33 = vld [vmem:[%s0 + $0x7f] sm:$0xff]
  %v34 = vld [vmem:[%s0 + $0x87] sm:$0xff]
  %v35 = vld [vmem:[%s0 + $0x8f] sm:$0xff]
  %v36 = vld [vmem:[%s0 + $0x97] sm:$0xff]
  %v37 = vld [vmem:[%s0 + $0x9f] sm:$0xff]
  %v38 = vld [vmem:[%s0 + $0xa7] sm:$0xff]
  %v39 = vld [vmem:[%s0 + $0xaf] sm:$0xff]
  %v40 = vld [vmem:[%s0 + $0xb7] sm:$0xff]
  %v41 = vld [vmem:[%s0 + $0xbf] sm:$0xff]
  %v42 = vld [vmem:[%s0 + $0xc7] sm:$0xff]
  %v43 = vld [vmem:[%s0 + $0xcf] sm:$0xff]
  %v44 = vld [vmem:[%s0 + $0xd7] sm:$0xff]
  %v45 = vld [vmem:[%s0 + $0xdf] sm:$0xff]
  %v46 = vld [vmem:[%s0 + $0xe7] sm:$0xff]
  %v47 = vld [vmem:[%s0 + $0xef] sm:$0xff]
  %v48 = vld [vmem:[%s0 + $0xf7] sm:$0xff]
  %v49 = vld [vmem:[%s0 + $0xff] sm:$0xff]
  %v50 = vld [vmem:[%s0 + $0x107] sm:$0xff]
  %v51 = vld [vmem:[%s0 + $0x10f] sm:$0xff]
  %v52 = vld [vmem:[%s0 + $0x117] sm:$0xff]
  %v53 = vld [vmem:[%s0 + $0x11f] sm:$0xff]
  %v54 = vld [vmem:[%s0 + $0x127] sm:$0xff]
  %v55 = vld [vmem:[%s0 + $0x12f] sm:$0xff]
  %v56 = vld [vmem:[%s0 + $0x137] sm:$0xff]
  %v57 = vld [vmem:[%s0 + $0x13f] sm:$0xff]
  %v58 = vld [vmem:[%s0 + $0x147] sm:$0xff]
  %v59 = vld [vmem:[%s0 + $0x14f] sm:$0xff]
  %v60 = vld [vmem:[%s0 + $0x157] sm:$0xff]
  %v61 = vld [vmem:[%s0 + $0x15f] sm:$0xff]
  %v62 = vld [vmem:[%s0 + $0x167] sm:$0xff]
  %v63 = vld [vmem:[%s0 + $0x16f] sm:$0xff]
  %v64 = vld [vmem:[%s0 + $0x177] sm:$0xff]
  %v65 = vld [vmem:[%s0 + $0x17f] sm:$0xff]
  %v66 = vld [vmem:[%s0 + $0x187] sm:$0xff]
  %v67 = vld [vmem:[%s0 + $0x18f] sm:$0xff]
  %v68 = vld [vmem:[%s0 + $0x197] sm:$0xff]
  %v69 = vld [vmem:[%s0 + $0x19f] sm:$0xff]
  %v70 = vld [vmem:[%s0 + $0x1a7] sm:$0xff]
  %v71 = vld [vmem:[%s0 + $0x1af] sm:$0xff]
  %v72 = vld [vmem:[%s0 + $0x1b7] sm:$0xff]
  %v73 = vld [vmem:[%s0 + $0x1bf] sm:$0xff]
  %v74 = vld [vmem:[%s0 + $0x1c7] sm:$0xff]
  %v75 = vld [vmem:[%s0 + $0x1cf] sm:$0xff]
  %v76 = vld [vmem:[%s0 + $0x1d7] sm:$0xff]
  %v77 = vld [vmem:[%s0 + $0x1df] sm:$0xff]
  %v78 = vld [vmem:[%s0 + $0x1e7] sm:$0xff]
  %v79 = vld [vmem:[%s0 + $0x1ef] sm:$0xff]
  %v80 = vld [vmem:[%s0 + $0x1f7] sm:$0xff]
  %v81 = vld [vmem:[%s0 + $0x1ff] sm:$0xff]
  %v82 = vpack.c.bf16 %v19, %v18
  %v83 = vpack.c.bf16 %v21, %v20
  %v84 = vpack.c.bf16 %v23, %v22
  %v85 = vpack.c.bf16 %v25, %v24
  %v86 = vpack.c.bf16 %v27, %v26
  %v87 = vpack.c.bf16 %v29, %v28
  %v88 = vpack.c.bf16 %v31, %v30
  %v89 = vpack.c.bf16 %v33, %v32
  %v90 = vpack.c.bf16 %v35, %v34
  %v91 = vpack.c.bf16 %v37, %v36
  %v92 = vpack.c.bf16 %v39, %v38
  %v93 = vpack.c.bf16 %v41, %v40
  %v94 = vpack.c.bf16 %v43, %v42
  %v95 = vpack.c.bf16 %v45, %v44
  %v96 = vpack.c.bf16 %v47, %v46
  %v97 = vpack.c.bf16 %v49, %v48
  %v98 = vpack.c.bf16 %v51, %v50
  %v99 = vpack.c.bf16 %v53, %v52
  %v100 = vpack.c.bf16 %v55, %v54
  %v101 = vpack.c.bf16 %v57, %v56
  %v102 = vpack.c.bf16 %v59, %v58
  %v103 = vpack.c.bf16 %v61, %v60
  %v104 = vpack.c.bf16 %v63, %v62
  %v105 = vpack.c.bf16 %v65, %v64
  %v106 = vpack.c.bf16 %v67, %v66
  %v107 = vpack.c.bf16 %v69, %v68
  %v108 = vpack.c.bf16 %v71, %v70
  %v109 = vpack.c.bf16 %v73, %v72
  %v110 = vpack.c.bf16 %v75, %v74
  %v111 = vpack.c.bf16 %v77, %v76
  %v112 = vpack.c.bf16 %v79, %v78
  %v113 = vpack.c.bf16 %v81, %v80
  %v114 = vld [vmem:[%s1] sm:$0xf]
  %v115 = vld [vmem:[%s1 + $0x4] sm:$0xf]
  %v116 = vld [vmem:[%s1 + $0x8] sm:$0xf]
  %v117 = vld [vmem:[%s1 + $0xc] sm:$0xf]
  %v118 = vld [vmem:[%s1 + $0x10] sm:$0xf]
  %v119 = vld [vmem:[%s1 + $0x14] sm:$0xf]
  %v120 = vld [vmem:[%s1 + $0x18] sm:$0xf]
  %v121 = vld [vmem:[%s1 + $0x1c] sm:$0xf]
  %v122 = vld [vmem:[%s0 + $0x8] sm:$0xff]
  %v123 = vld [vmem:[%s0 + $0x10] sm:$0xff]
  %v124 = vld [vmem:[%s0 + $0x18] sm:$0xff]
  %v125 = vld [vmem:[%s0 + $0x20] sm:$0xff]
  %v126 = vld [vmem:[%s0 + $0x28] sm:$0xff]
  %v127 = vld [vmem:[%s0 + $0x30] sm:$0xff]
  %v128 = vld [vmem:[%s0 + $0x38] sm:$0xff]
  %v129 = vld [vmem:[%s0 + $0x40] sm:$0xff]
  %v130 = vld [vmem:[%s0 + $0x48] sm:$0xff]
  %v131 = vld [vmem:[%s0 + $0x50] sm:$0xff]
  %v132 = vld [vmem:[%s0 + $0x58] sm:$0xff]
  %v133 = vld [vmem:[%s0 + $0x60] sm:$0xff]
  %v134 = vld [vmem:[%s0 + $0x68] sm:$0xff]
  %v135 = vld [vmem:[%s0 + $0x70] sm:$0xff]
  %v136 = vld [vmem:[%s0 + $0x78] sm:$0xff]
  %v137 = vld [vmem:[%s0 + $0x80] sm:$0xff]
  %v138 = vld [vmem:[%s0 + $0x88] sm:$0xff]
  %v139 = vld [vmem:[%s0 + $0x90] sm:$0xff]
  %v140 = vld [vmem:[%s0 + $0x98] sm:$0xff]
  %v141 = vld [vmem:[%s0 + $0xa0] sm:$0xff]
  %v142 = vld [vmem:[%s0 + $0xa8] sm:$0xff]
  %v143 = vld [vmem:[%s0 + $0xb0] sm:$0xff]
  %v144 = vld [vmem:[%s0 + $0xb8] sm:$0xff]
  %v145 = vld [vmem:[%s0 + $0xc0] sm:$0xff]
  %v146 = vld [vmem:[%s0 + $0xc8] sm:$0xff]
  %v147 = vld [vmem:[%s0 + $0xd0] sm:$0xff]
  %v148 = vld [vmem:[%s0 + $0xd8] sm:$0xff]
  %v149 = vld [vmem:[%s0 + $0xe0] sm:$0xff]
  %v150 = vld [vmem:[%s0 + $0xe8] sm:$0xff]
  %v151 = vld [vmem:[%s0 + $0xf0] sm:$0xff]
  %v152 = vld [vmem:[%s0 + $0xf8] sm:$0xff]
  %v153 = vld [vmem:[%s0 + $0x100] sm:$0xff]
  %v154 = vld [vmem:[%s0 + $0x108] sm:$0xff]
  %v155 = vld [vmem:[%s0 + $0x110] sm:$0xff]
  %v156 = vld [vmem:[%s0 + $0x118] sm:$0xff]
  %v157 = vld [vmem:[%s0 + $0x120] sm:$0xff]
  %v158 = vld [vmem:[%s0 + $0x128] sm:$0xff]
  %v159 = vld [vmem:[%s0 + $0x130] sm:$0xff]
  %v160 = vld [vmem:[%s0 + $0x138] sm:$0xff]
  %v161 = vld [vmem:[%s0 + $0x140] sm:$0xff]
  %v162 = vld [vmem:[%s0 + $0x148] sm:$0xff]
  %v163 = vld [vmem:[%s0 + $0x150] sm:$0xff]
  %v164 = vld [vmem:[%s0 + $0x158] sm:$0xff]
  %v165 = vld [vmem:[%s0 + $0x160] sm:$0xff]
  %v166 = vld [vmem:[%s0 + $0x168] sm:$0xff]
  %v167 = vld [vmem:[%s0 + $0x170] sm:$0xff]
  %v168 = vld [vmem:[%s0 + $0x178] sm:$0xff]
  %v169 = vld [vmem:[%s0 + $0x180] sm:$0xff]
  %v170 = vld [vmem:[%s0 + $0x188] sm:$0xff]
  %v171 = vld [vmem:[%s0 + $0x190] sm:$0xff]
  %v172 = vld [vmem:[%s0 + $0x198] sm:$0xff]
  %v173 = vld [vmem:[%s0 + $0x1a0] sm:$0xff]
  %v174 = vld [vmem:[%s0 + $0x1a8] sm:$0xff]
  %v175 = vld [vmem:[%s0 + $0x1b0] sm:$0xff]
  %v176 = vld [vmem:[%s0 + $0x1b8] sm:$0xff]
  %v177 = vld [vmem:[%s0 + $0x1c0] sm:$0xff]
  %v178 = vld [vmem:[%s0 + $0x1c8] sm:$0xff]
  %v179 = vld [vmem:[%s0 + $0x1d0] sm:$0xff]
  %v180 = vld [vmem:[%s0 + $0x1d8] sm:$0xff]
  %v181 = vld [vmem:[%s0 + $0x1e0] sm:$0xff]
  %v182 = vld [vmem:[%s0 + $0x1e8] sm:$0xff]
  %v183 = vld [vmem:[%s0 + $0x1f0] sm:$0xff]
  %v184 = vld [vmem:[%s0 + $0x1f8] sm:$0xff]
  %v185 = vld [vmem:[%s0 + $0x200] sm:$0xff]
  %v186 = vpack.c.bf16 %v123, %v122
  %v187 = vpack.c.bf16 %v125, %v124
  %v188 = vpack.c.bf16 %v127, %v126
  %v189 = vpack.c.bf16 %v129, %v128
  %v190 = vpack.c.bf16 %v131, %v130
  %v191 = vpack.c.bf16 %v133, %v132
  %v192 = vpack.c.bf16 %v135, %v134
  %v193 = vpack.c.bf16 %v137, %v136
  %v194 = vpack.c.bf16 %v139, %v138
  %v195 = vpack.c.bf16 %v141, %v140
  %v196 = vpack.c.bf16 %v143, %v142
  %v197 = vpack.c.bf16 %v145, %v144
  %v198 = vpack.c.bf16 %v147, %v146
  %v199 = vpack.c.bf16 %v149, %v148
  %v200 = vpack.c.bf16 %v151, %v150
  %v201 = vpack.c.bf16 %v153, %v152
  %v202 = vpack.c.bf16 %v155, %v154
  %v203 = vpack.c.bf16 %v157, %v156
  %v204 = vpack.c.bf16 %v159, %v158
  %v205 = vpack.c.bf16 %v161, %v160
  %v206 = vpack.c.bf16 %v163, %v162
  %v207 = vpack.c.bf16 %v165, %v164
  %v208 = vpack.c.bf16 %v167, %v166
  %v209 = vpack.c.bf16 %v169, %v168
  %v210 = vpack.c.bf16 %v171, %v170
  %v211 = vpack.c.bf16 %v173, %v172
  %v212 = vpack.c.bf16 %v175, %v174
  %v213 = vpack.c.bf16 %v177, %v176
  %v214 = vpack.c.bf16 %v179, %v178
  %v215 = vpack.c.bf16 %v181, %v180
  %v216 = vpack.c.bf16 %v183, %v182
  %v217 = vpack.c.bf16 %v185, %v184
  %v218 = vld [vmem:[%s1 + $0x20] sm:$0xf]
  %v219 = vld [vmem:[%s1 + $0x24] sm:$0xf]
  %v220 = vld [vmem:[%s1 + $0x28] sm:$0xf]
  %v221 = vld [vmem:[%s1 + $0x2c] sm:$0xf]
  %v222 = vld [vmem:[%s1 + $0x30] sm:$0xf]
  %v223 = vld [vmem:[%s1 + $0x34] sm:$0xf]
  %v224 = vld [vmem:[%s1 + $0x38] sm:$0xf]
  %v225 = vld [vmem:[%s1 + $0x3c] sm:$0xf]
  %v234 = vunpack.c.l.b16 %v218
  %v235 = vunpack.c.l.b16 %v219
  %v236 = vunpack.c.l.b16 %v220
  %v237 = vunpack.c.l.b16 %v221
  %v238 = vunpack.c.l.b16 %v222
  %v239 = vunpack.c.l.b16 %v223
  %v240 = vunpack.c.l.b16 %v224
  %v241 = vunpack.c.l.b16 %v225
  %v242 = vpack.c.b16 %v235, %v234
  %v243 = vpack.c.b16 %v237, %v236
  %v244 = vpack.c.b16 %v239, %v238
  %v245 = vpack.c.b16 %v241, %v240
  %vm250 = vcmask 523264
  %v252 = vsel %vm250, %v186, 0
  %v255 = vsel %vm250, %v187, 0
  %v258 = vsel %vm250, %v188, 0
  %v261 = vsel %vm250, %v189, 0
  %v264 = vsel %vm250, %v190, 0
  %v267 = vsel %vm250, %v191, 0
  %v270 = vsel %vm250, %v192, 0
  %v273 = vsel %vm250, %v193, 0
  %v276 = vsel %vm250, %v194, 0
  %v279 = vsel %vm250, %v195, 0
  %v282 = vsel %vm250, %v196, 0
  %v285 = vsel %vm250, %v197, 0
  %v288 = vsel %vm250, %v198, 0
  %v291 = vsel %vm250, %v199, 0
  %v294 = vsel %vm250, %v200, 0
  %v297 = vsel %vm250, %v201, 0
  %v300 = vsel %vm250, %v202, 0
  %v303 = vsel %vm250, %v203, 0
  %v306 = vsel %vm250, %v204, 0
  %v309 = vsel %vm250, %v205, 0
  %v312 = vsel %vm250, %v206, 0
  %v315 = vsel %vm250, %v207, 0
  %v318 = vsel %vm250, %v208, 0
  %v321 = vsel %vm250, %v209, 0
  %v324 = vsel %vm250, %v210, 0
  %v327 = vsel %vm250, %v211, 0
  %v330 = vsel %vm250, %v212, 0
  %v333 = vsel %vm250, %v213, 0
  %v336 = vsel %vm250, %v214, 0
  %v339 = vsel %vm250, %v215, 0
  %v342 = vsel %vm250, %v216, 0
  %v345 = vsel %vm250, %v217, 0
  %347 = vmatprep.subr.bf16.mxu0 0
  %348 = vmatpush1.bf16.msra.mxu0 %v242
  %349 = vmatprep.subr.bf16.mxu0 0
  %350 = vmatpush1.bf16.msra.mxu0 %v243
  %351 = vmatprep.subr.bf16.mxu0 0
  %352 = vmatpush1.bf16.msra.mxu0 %v244
  %353 = vmatprep.subr.bf16.mxu0 0
  %354 = vmatpush1.bf16.msra.mxu0 %v245
  %355 = vmatprep.subr.bf16.mxu0 0
  %356 = vmatpush1.bf16.msra.mxu0 0
  %357 = vmatprep.subr.bf16.mxu0 0
  %358 = vmatpush1.bf16.msra.mxu0 0
  %359 = vmatprep.subr.bf16.mxu0 0
  %360 = vmatpush1.bf16.msra.mxu0 0
  %361 = vmatprep.subr.bf16.mxu0 0
  %362 = vmatpush1.bf16.msra.mxu0 0
  %363 = vmatprep.subr.bf16.mxu0 0
  %364 = vmatpush1.bf16.msra.mxu0 0
  %365 = vmatprep.subr.bf16.mxu0 0
  %366 = vmatpush1.bf16.msra.mxu0 0
  %367 = vmatprep.subr.bf16.mxu0 0
  %368 = vmatpush1.bf16.msra.mxu0 0
  %369 = vmatprep.subr.bf16.mxu0 0
  %370 = vmatpush1.bf16.msra.mxu0 0
  %371 = vmatprep.subr.bf16.mxu0 0
  %372 = vmatpush1.bf16.msra.mxu0 0
  %373 = vmatprep.subr.bf16.mxu0 0
  %374 = vmatpush1.bf16.msra.mxu0 0
  %375 = vmatprep.subr.bf16.mxu0 0
  %376 = vmatpush1.bf16.msra.mxu0 0
  %377 = vmatprep.subr.bf16.mxu0 0
  %378 = vmatpush1.bf16.msra.mxu0 0
  %379 = vmatprep.mubr.bf16.mxu0 0
  %380 = vmatmul.mubr.bf16.gmra.mrb[0].mxu0 %v252
  %v381 = vpop.f32.mrb[0].mxu0
  %v382 = vadd.f32 0.0, %v381
  %v383 = vpop.f32.mrb[0].mxu0
  %v384 = vpop.f32.mrb[0].mxu0
  %v385 = vadd.f32 0.0, %v384
  %v386 = vpop.f32.mrb[0].mxu0
  %387 = vmatprep.mubr.bf16.mxu0 0
  %388 = vmatmul.mubr.bf16.gmra.mrb[0].mxu0 %v255
  %v389 = vpop.f32.mrb[0].mxu0
  %v390 = vadd.f32 0.0, %v389
  %v391 = vpop.f32.mrb[0].mxu0
  %v392 = vpop.f32.mrb[0].mxu0
  %v393 = vadd.f32 0.0, %v392
  %v394 = vpop.f32.mrb[0].mxu0
  %395 = vmatprep.mubr.bf16.mxu0 0
  %396 = vmatmul.mubr.bf16.gmra.mrb[0].mxu0 %v258
  %v397 = vpop.f32.mrb[0].mxu0
  %v398 = vadd.f32 0.0, %v397
  %v399 = vpop.f32.mrb[0].mxu0
  %v400 = vpop.f32.mrb[0].mxu0
  %v401 = vadd.f32 0.0, %v400
  %v402 = vpop.f32.mrb[0].mxu0
  %403 = vmatprep.mubr.bf16.mxu0 0
  %404 = vmatmul.mubr.bf16.gmra.mrb[0].mxu0 %v261
  %v405 = vpop.f32.mrb[0].mxu0
  %v406 = vadd.f32 0.0, %v405
  %v407 = vpop.f32.mrb[0].mxu0
  %v408 = vpop.f32.mrb[0].mxu0
  %v409 = vadd.f32 0.0, %v408
  %v410 = vpop.f32.mrb[0].mxu0
  %411 = vmatprep.mubr.bf16.mxu0 0
  %412 = vmatmul.mubr.bf16.gmra.mrb[0].mxu0 %v264
  %v413 = vpop.f32.mrb[0].mxu0
  %v414 = vadd.f32 0.0, %v413
  %v415 = vpop.f32.mrb[0].mxu0
  %v416 = vpop.f32.mrb[0].mxu0
  %v417 = vadd.f32 0.0, %v416
  %v418 = vpop.f32.mrb[0].mxu0
  %419 = vmatprep.mubr.bf16.mxu0 0
  %420 = vmatmul.mubr.bf16.gmra.mrb[0].mxu0 %v267
  %v421 = vpop.f32.mrb[0].mxu0
  %v422 = vadd.f32 0.0, %v421
  %v423 = vpop.f32.mrb[0].mxu0
  %v424 = vpop.f32.mrb[0].mxu0
  %v425 = vadd.f32 0.0, %v424
  %v426 = vpop.f32.mrb[0].mxu0
  %427 = vmatprep.mubr.bf16.mxu0 0
  %428 = vmatmul.mubr.bf16.gmra.mrb[0].mxu0 %v270
  %v429 = vpop.f32.mrb[0].mxu0
  %v430 = vadd.f32 0.0, %v429
  %v431 = vpop.f32.mrb[0].mxu0
  %v432 = vpop.f32.mrb[0].mxu0
  %v433 = vadd.f32 0.0, %v432
  %v434 = vpop.f32.mrb[0].mxu0
  %435 = vmatprep.mubr.bf16.mxu0 0
  %436 = vmatmul.mubr.bf16.gmra.mrb[0].mxu0 %v273
  %v437 = vpop.f32.mrb[0].mxu0
  %v438 = vadd.f32 0.0, %v437
  %v439 = vpop.f32.mrb[0].mxu0
  %v440 = vpop.f32.mrb[0].mxu0
  %v441 = vadd.f32 0.0, %v440
  %v442 = vpop.f32.mrb[0].mxu0
  %443 = vmatprep.mubr.bf16.mxu0 0
  %444 = vmatmul.mubr.bf16.gmra.mrb[0].mxu0 %v276
  %v445 = vpop.f32.mrb[0].mxu0
  %v446 = vadd.f32 0.0, %v445
  %v447 = vpop.f32.mrb[0].mxu0
  %v448 = vpop.f32.mrb[0].mxu0
  %v449 = vadd.f32 0.0, %v448
  %v450 = vpop.f32.mrb[0].mxu0
  %451 = vmatprep.mubr.bf16.mxu0 0
  %452 = vmatmul.mubr.bf16.gmra.mrb[0].mxu0 %v279
  %v453 = vpop.f32.mrb[0].mxu0
  %v454 = vadd.f32 0.0, %v453
  %v455 = vpop.f32.mrb[0].mxu0
  %v456 = vpop.f32.mrb[0].mxu0
  %v457 = vadd.f32 0.0, %v456
  %v458 = vpop.f32.mrb[0].mxu0
  %459 = vmatprep.mubr.bf16.mxu0 0
  %460 = vmatmul.mubr.bf16.gmra.mrb[0].mxu0 %v282
  %v461 = vpop.f32.mrb[0].mxu0
  %v462 = vadd.f32 0.0, %v461
  %v463 = vpop.f32.mrb[0].mxu0
  %v464 = vpop.f32.mrb[0].mxu0
  %v465 = vadd.f32 0.0, %v464
  %v466 = vpop.f32.mrb[0].mxu0
  %467 = vmatprep.mubr.bf16.mxu0 0
  %468 = vmatmul.mubr.bf16.gmra.mrb[0].mxu0 %v285
  %v469 = vpop.f32.mrb[0].mxu0
  %v470 = vadd.f32 0.0, %v469
  %v471 = vpop.f32.mrb[0].mxu0
  %v472 = vpop.f32.mrb[0].mxu0
  %v473 = vadd.f32 0.0, %v472
  %v474 = vpop.f32.mrb[0].mxu0
  %475 = vmatprep.mubr.bf16.mxu0 0
  %476 = vmatmul.mubr.bf16.gmra.mrb[0].mxu0 %v288
  %v477 = vpop.f32.mrb[0].mxu0
  %v478 = vadd.f32 0.0, %v477
  %v479 = vpop.f32.mrb[0].mxu0
  %v480 = vpop.f32.mrb[0].mxu0
  %v481 = vadd.f32 0.0, %v480
  %v482 = vpop.f32.mrb[0].mxu0
  %483 = vmatprep.mubr.bf16.mxu0 0
  %484 = vmatmul.mubr.bf16.gmra.mrb[0].mxu0 %v291
  %v485 = vpop.f32.mrb[0].mxu0
  %v486 = vadd.f32 0.0, %v485
  %v487 = vpop.f32.mrb[0].mxu0
  %v488 = vpop.f32.mrb[0].mxu0
  %v489 = vadd.f32 0.0, %v488
  %v490 = vpop.f32.mrb[0].mxu0
  %491 = vmatprep.mubr.bf16.mxu0 0
  %492 = vmatmul.mubr.bf16.gmra.mrb[0].mxu0 %v294
  %v493 = vpop.f32.mrb[0].mxu0
  %v494 = vadd.f32 0.0, %v493
  %v495 = vpop.f32.mrb[0].mxu0
  %v496 = vpop.f32.mrb[0].mxu0
  %v497 = vadd.f32 0.0, %v496
  %v498 = vpop.f32.mrb[0].mxu0
  %499 = vmatprep.mubr.bf16.mxu0 0
  %500 = vmatmul.mubr.bf16.gmra.mrb[0].mxu0 %v297
  %v501 = vpop.f32.mrb[0].mxu0
  %v502 = vadd.f32 0.0, %v501
  %v503 = vpop.f32.mrb[0].mxu0
  %v504 = vpop.f32.mrb[0].mxu0
  %v505 = vadd.f32 0.0, %v504
  %v506 = vpop.f32.mrb[0].mxu0
  %507 = vmatprep.mubr.bf16.mxu0 0
  %508 = vmatmul.mubr.bf16.gmra.mrb[0].mxu0 %v300
  %v509 = vpop.f32.mrb[0].mxu0
  %v510 = vadd.f32 0.0, %v509
  %v511 = vpop.f32.mrb[0].mxu0
  %v512 = vpop.f32.mrb[0].mxu0
  %v513 = vadd.f32 0.0, %v512
  %v514 = vpop.f32.mrb[0].mxu0
  %515 = vmatprep.mubr.bf16.mxu0 0
  %516 = vmatmul.mubr.bf16.gmra.mrb[0].mxu0 %v303
  %v517 = vpop.f32.mrb[0].mxu0
  %v518 = vadd.f32 0.0, %v517
  %v519 = vpop.f32.mrb[0].mxu0
  %v520 = vpop.f32.mrb[0].mxu0
  %v521 = vadd.f32 0.0, %v520
  %v522 = vpop.f32.mrb[0].mxu0
  %523 = vmatprep.mubr.bf16.mxu0 0
  %524 = vmatmul.mubr.bf16.gmra.mrb[0].mxu0 %v306
  %v525 = vpop.f32.mrb[0].mxu0
  %v526 = vadd.f32 0.0, %v525
  %v527 = vpop.f32.mrb[0].mxu0
  %v528 = vpop.f32.mrb[0].mxu0
  %v529 = vadd.f32 0.0, %v528
  %v530 = vpop.f32.mrb[0].mxu0
  %531 = vmatprep.mubr.bf16.mxu0 0
  %532 = vmatmul.mubr.bf16.gmra.mrb[0].mxu0 %v309
  %v533 = vpop.f32.mrb[0].mxu0
  %v534 = vadd.f32 0.0, %v533
  %v535 = vpop.f32.mrb[0].mxu0
  %v536 = vpop.f32.mrb[0].mxu0
  %v537 = vadd.f32 0.0, %v536
  %v538 = vpop.f32.mrb[0].mxu0
  %539 = vmatprep.mubr.bf16.mxu0 0
  %540 = vmatmul.mubr.bf16.gmra.mrb[0].mxu0 %v312
  %v541 = vpop.f32.mrb[0].mxu0
  %v542 = vadd.f32 0.0, %v541
  %v543 = vpop.f32.mrb[0].mxu0
  %v544 = vpop.f32.mrb[0].mxu0
  %v545 = vadd.f32 0.0, %v544
  %v546 = vpop.f32.mrb[0].mxu0
  %547 = vmatprep.mubr.bf16.mxu0 0
  %548 = vmatmul.mubr.bf16.gmra.mrb[0].mxu0 %v315
  %v549 = vpop.f32.mrb[0].mxu0
  %v550 = vadd.f32 0.0, %v549
  %v551 = vpop.f32.mrb[0].mxu0
  %v552 = vpop.f32.mrb[0].mxu0
  %v553 = vadd.f32 0.0, %v552
  %v554 = vpop.f32.mrb[0].mxu0
  %555 = vmatprep.mubr.bf16.mxu0 0
  %556 = vmatmul.mubr.bf16.gmra.mrb[0].mxu0 %v318
  %v557 = vpop.f32.mrb[0].mxu0
  %v558 = vadd.f32 0.0, %v557
  %v559 = vpop.f32.mrb[0].mxu0
  %v560 = vpop.f32.mrb[0].mxu0
  %v561 = vadd.f32 0.0, %v560
  %v562 = vpop.f32.mrb[0].mxu0
  %563 = vmatprep.mubr.bf16.mxu0 0
  %564 = vmatmul.mubr.bf16.gmra.mrb[0].mxu0 %v321
  %v565 = vpop.f32.mrb[0].mxu0
  %v566 = vadd.f32 0.0, %v565
  %v567 = vpop.f32.mrb[0].mxu0
  %v568 = vpop.f32.mrb[0].mxu0
  %v569 = vadd.f32 0.0, %v568
  %v570 = vpop.f32.mrb[0].mxu0
  %571 = vmatprep.mubr.bf16.mxu0 0
  %572 = vmatmul.mubr.bf16.gmra.mrb[0].mxu0 %v324
  %v573 = vpop.f32.mrb[0].mxu0
  %v574 = vadd.f32 0.0, %v573
  %v575 = vpop.f32.mrb[0].mxu0
  %v576 = vpop.f32.mrb[0].mxu0
  %v577 = vadd.f32 0.0, %v576
  %v578 = vpop.f32.mrb[0].mxu0
  %579 = vmatprep.mubr.bf16.mxu0 0
  %580 = vmatmul.mubr.bf16.gmra.mrb[0].mxu0 %v327
  %v581 = vpop.f32.mrb[0].mxu0
  %v582 = vadd.f32 0.0, %v581
  %v583 = vpop.f32.mrb[0].mxu0
  %v584 = vpop.f32.mrb[0].mxu0
  %v585 = vadd.f32 0.0, %v584
  %v586 = vpop.f32.mrb[0].mxu0
  %587 = vmatprep.mubr.bf16.mxu0 0
  %588 = vmatmul.mubr.bf16.gmra.mrb[0].mxu0 %v330
  %v589 = vpop.f32.mrb[0].mxu0
  %v590 = vadd.f32 0.0, %v589
  %v591 = vpop.f32.mrb[0].mxu0
  %v592 = vpop.f32.mrb[0].mxu0
  %v593 = vadd.f32 0.0, %v592
  %v594 = vpop.f32.mrb[0].mxu0
  %595 = vmatprep.mubr.bf16.mxu0 0
  %596 = vmatmul.mubr.bf16.gmra.mrb[0].mxu0 %v333
  %v597 = vpop.f32.mrb[0].mxu0
  %v598 = vadd.f32 0.0, %v597
  %v599 = vpop.f32.mrb[0].mxu0
  %v600 = vpop.f32.mrb[0].mxu0
  %v601 = vadd.f32 0.0, %v600
  %v602 = vpop.f32.mrb[0].mxu0
  %603 = vmatprep.mubr.bf16.mxu0 0
  %604 = vmatmul.mubr.bf16.gmra.mrb[0].mxu0 %v336
  %v605 = vpop.f32.mrb[0].mxu0
  %v606 = vadd.f32 0.0, %v605
  %v607 = vpop.f32.mrb[0].mxu0
  %v608 = vpop.f32.mrb[0].mxu0
  %v609 = vadd.f32 0.0, %v608
  %v610 = vpop.f32.mrb[0].mxu0
  %611 = vmatprep.mubr.bf16.mxu0 0
  %612 = vmatmul.mubr.bf16.gmra.mrb[0].mxu0 %v339
  %v613 = vpop.f32.mrb[0].mxu0
  %v614 = vadd.f32 0.0, %v613
  %v615 = vpop.f32.mrb[0].mxu0
  %v616 = vpop.f32.mrb[0].mxu0
  %v617 = vadd.f32 0.0, %v616
  %v618 = vpop.f32.mrb[0].mxu0
  %619 = vmatprep.mubr.bf16.mxu0 0
  %620 = vmatmul.mubr.bf16.gmra.mrb[0].mxu0 %v342
  %v621 = vpop.f32.mrb[0].mxu0
  %v622 = vadd.f32 0.0, %v621
  %v623 = vpop.f32.mrb[0].mxu0
  %v624 = vpop.f32.mrb[0].mxu0
  %v625 = vadd.f32 0.0, %v624
  %v626 = vpop.f32.mrb[0].mxu0
  %627 = vmatprep.mubr.bf16.mxu0 0
  %628 = vmatmul.mubr.bf16.gmra.mrb[0].mxu0 %v345
  %v629 = vpop.f32.mrb[0].mxu0
  %v630 = vadd.f32 0.0, %v629
  %v631 = vpop.f32.mrb[0].mxu0
  %v632 = vpop.f32.mrb[0].mxu0
  %v633 = vadd.f32 0.0, %v632
  %v634 = vpop.f32.mrb[0].mxu0
  %635 = vdwg.mxu0
  %v644 = vunpack.c.l.b16 %v114
  %v645 = vunpack.c.l.b16 %v115
  %v646 = vunpack.c.l.b16 %v116
  %v647 = vunpack.c.l.b16 %v117
  %v648 = vunpack.c.l.b16 %v118
  %v649 = vunpack.c.l.b16 %v119
  %v650 = vunpack.c.l.b16 %v120
  %v651 = vunpack.c.l.b16 %v121
  %v652 = vpack.c.b16 %v645, %v644
  %v653 = vpack.c.b16 %v647, %v646
  %v654 = vpack.c.b16 %v649, %v648
  %v655 = vpack.c.b16 %v651, %v650
  %v661 = vsel %vm250, %v82, 0
  %v664 = vsel %vm250, %v83, 0
  %v667 = vsel %vm250, %v84, 0
  %v670 = vsel %vm250, %v85, 0
  %v673 = vsel %vm250, %v86, 0
  %v676 = vsel %vm250, %v87, 0
  %v679 = vsel %vm250, %v88, 0
  %v682 = vsel %vm250, %v89, 0
  %v685 = vsel %vm250, %v90, 0
  %v688 = vsel %vm250, %v91, 0
  %v691 = vsel %vm250, %v92, 0
  %v694 = vsel %vm250, %v93, 0
  %v697 = vsel %vm250, %v94, 0
  %v700 = vsel %vm250, %v95, 0
  %v703 = vsel %vm250, %v96, 0
  %v706 = vsel %vm250, %v97, 0
  %v709 = vsel %vm250, %v98, 0
  %v712 = vsel %vm250, %v99, 0
  %v715 = vsel %vm250, %v100, 0
  %v718 = vsel %vm250, %v101, 0
  %v721 = vsel %vm250, %v102, 0
  %v724 = vsel %vm250, %v103, 0
  %v727 = vsel %vm250, %v104, 0
  %v730 = vsel %vm250, %v105, 0
  %v733 = vsel %vm250, %v106, 0
  %v736 = vsel %vm250, %v107, 0
  %v739 = vsel %vm250, %v108, 0
  %v742 = vsel %vm250, %v109, 0
  %v745 = vsel %vm250, %v110, 0
  %v748 = vsel %vm250, %v111, 0
  %v751 = vsel %vm250, %v112, 0
  %v754 = vsel %vm250, %v113, 0
  %756 = vmatprep.subr.bf16.mxu0 0
  %757 = vmatpush1.bf16.msra.mxu0 %v652
  %758 = vmatprep.subr.bf16.mxu0 0
  %759 = vmatpush1.bf16.msra.mxu0 %v653
  %760 = vmatprep.subr.bf16.mxu0 0
  %761 = vmatpush1.bf16.msra.mxu0 %v654
  %762 = vmatprep.subr.bf16.mxu0 0
  %763 = vmatpush1.bf16.msra.mxu0 %v655
  %764 = vmatprep.subr.bf16.mxu0 0
  %765 = vmatpush1.bf16.msra.mxu0 0
  %766 = vmatprep.subr.bf16.mxu0 0
  %767 = vmatpush1.bf16.msra.mxu0 0
  %768 = vmatprep.subr.bf16.mxu0 0
  %769 = vmatpush1.bf16.msra.mxu0 0
  %770 = vmatprep.subr.bf16.mxu0 0
  %771 = vmatpush1.bf16.msra.mxu0 0
  %772 = vmatprep.subr.bf16.mxu0 0
  %773 = vmatpush1.bf16.msra.mxu0 0
  %774 = vmatprep.subr.bf16.mxu0 0
  %775 = vmatpush1.bf16.msra.mxu0 0
  %776 = vmatprep.subr.bf16.mxu0 0
  %777 = vmatpush1.bf16.msra.mxu0 0
  %778 = vmatprep.subr.bf16.mxu0 0
  %779 = vmatpush1.bf16.msra.mxu0 0
  %780 = vmatprep.subr.bf16.mxu0 0
  %781 = vmatpush1.bf16.msra.mxu0 0
  %782 = vmatprep.subr.bf16.mxu0 0
  %783 = vmatpush1.bf16.msra.mxu0 0
  %784 = vmatprep.subr.bf16.mxu0 0
  %785 = vmatpush1.bf16.msra.mxu0 0
  %786 = vmatprep.subr.bf16.mxu0 0
  %787 = vmatpush1.bf16.msra.mxu0 0
  %788 = vmatprep.mubr.bf16.mxu0 0
  %789 = vmatmul.mubr.bf16.gmra.mrb[0].mxu0 %v661
  %v790 = vpop.f32.mrb[0].mxu0
  %v791 = vadd.f32 %v382, %v790
  %v792 = vpop.f32.mrb[0].mxu0
  %v793 = vpop.f32.mrb[0].mxu0
  %v794 = vadd.f32 %v385, %v793
  %v795 = vpop.f32.mrb[0].mxu0
  %796 = vmatprep.mubr.bf16.mxu0 0
  %797 = vmatmul.mubr.bf16.gmra.mrb[0].mxu0 %v664
  %v798 = vpop.f32.mrb[0].mxu0
  %v799 = vadd.f32 %v390, %v798
  %v800 = vpop.f32.mrb[0].mxu0
  %v801 = vpop.f32.mrb[0].mxu0
  %v802 = vadd.f32 %v393, %v801
  %v803 = vpop.f32.mrb[0].mxu0
  %804 = vmatprep.mubr.bf16.mxu0 0
  %805 = vmatmul.mubr.bf16.gmra.mrb[0].mxu0 %v667
  %v806 = vpop.f32.mrb[0].mxu0
  %v807 = vadd.f32 %v398, %v806
  %v808 = vpop.f32.mrb[0].mxu0
  %v809 = vpop.f32.mrb[0].mxu0
  %v810 = vadd.f32 %v401, %v809
  %v811 = vpop.f32.mrb[0].mxu0
  %812 = vmatprep.mubr.bf16.mxu0 0
  %813 = vmatmul.mubr.bf16.gmra.mrb[0].mxu0 %v670
  %v814 = vpop.f32.mrb[0].mxu0
  %v815 = vadd.f32 %v406, %v814
  %v816 = vpop.f32.mrb[0].mxu0
  %v817 = vpop.f32.mrb[0].mxu0
  %v818 = vadd.f32 %v409, %v817
  %v819 = vpop.f32.mrb[0].mxu0
  %820 = vmatprep.mubr.bf16.mxu0 0
  %821 = vmatmul.mubr.bf16.gmra.mrb[0].mxu0 %v673
  %v822 = vpop.f32.mrb[0].mxu0
  %v823 = vadd.f32 %v414, %v822
  %v824 = vpop.f32.mrb[0].mxu0
  %v825 = vpop.f32.mrb[0].mxu0
  %v826 = vadd.f32 %v417, %v825
  %v827 = vpop.f32.mrb[0].mxu0
  %828 = vmatprep.mubr.bf16.mxu0 0
  %829 = vmatmul.mubr.bf16.gmra.mrb[0].mxu0 %v676
  %v830 = vpop.f32.mrb[0].mxu0
  %v831 = vadd.f32 %v422, %v830
  %v832 = vpop.f32.mrb[0].mxu0
  %v833 = vpop.f32.mrb[0].mxu0
  %v834 = vadd.f32 %v425, %v833
  %v835 = vpop.f32.mrb[0].mxu0
  %836 = vmatprep.mubr.bf16.mxu0 0
  %837 = vmatmul.mubr.bf16.gmra.mrb[0].mxu0 %v679
  %v838 = vpop.f32.mrb[0].mxu0
  %v839 = vadd.f32 %v430, %v838
  %v840 = vpop.f32.mrb[0].mxu0
  %v841 = vpop.f32.mrb[0].mxu0
  %v842 = vadd.f32 %v433, %v841
  %v843 = vpop.f32.mrb[0].mxu0
  %844 = vmatprep.mubr.bf16.mxu0 0
  %845 = vmatmul.mubr.bf16.gmra.mrb[0].mxu0 %v682
  %v846 = vpop.f32.mrb[0].mxu0
  %v847 = vadd.f32 %v438, %v846
  %v848 = vpop.f32.mrb[0].mxu0
  %v849 = vpop.f32.mrb[0].mxu0
  %v850 = vadd.f32 %v441, %v849
  %v851 = vpop.f32.mrb[0].mxu0
  %852 = vmatprep.mubr.bf16.mxu0 0
  %853 = vmatmul.mubr.bf16.gmra.mrb[0].mxu0 %v685
  %v854 = vpop.f32.mrb[0].mxu0
  %v855 = vadd.f32 %v446, %v854
  %v856 = vpop.f32.mrb[0].mxu0
  %v857 = vpop.f32.mrb[0].mxu0
  %v858 = vadd.f32 %v449, %v857
  %v859 = vpop.f32.mrb[0].mxu0
  %860 = vmatprep.mubr.bf16.mxu0 0
  %861 = vmatmul.mubr.bf16.gmra.mrb[0].mxu0 %v688
  %v862 = vpop.f32.mrb[0].mxu0
  %v863 = vadd.f32 %v454, %v862
  %v864 = vpop.f32.mrb[0].mxu0
  %v865 = vpop.f32.mrb[0].mxu0
  %v866 = vadd.f32 %v457, %v865
  %v867 = vpop.f32.mrb[0].mxu0
  %868 = vmatprep.mubr.bf16.mxu0 0
  %869 = vmatmul.mubr.bf16.gmra.mrb[0].mxu0 %v691
  %v870 = vpop.f32.mrb[0].mxu0
  %v871 = vadd.f32 %v462, %v870
  %v872 = vpop.f32.mrb[0].mxu0
  %v873 = vpop.f32.mrb[0].mxu0
  %v874 = vadd.f32 %v465, %v873
  %v875 = vpop.f32.mrb[0].mxu0
  %876 = vmatprep.mubr.bf16.mxu0 0
  %877 = vmatmul.mubr.bf16.gmra.mrb[0].mxu0 %v694
  %v878 = vpop.f32.mrb[0].mxu0
  %v879 = vadd.f32 %v470, %v878
  %v880 = vpop.f32.mrb[0].mxu0
  %v881 = vpop.f32.mrb[0].mxu0
  %v882 = vadd.f32 %v473, %v881
  %v883 = vpop.f32.mrb[0].mxu0
  %884 = vmatprep.mubr.bf16.mxu0 0
  %885 = vmatmul.mubr.bf16.gmra.mrb[0].mxu0 %v697
  %v886 = vpop.f32.mrb[0].mxu0
  %v887 = vadd.f32 %v478, %v886
  %v888 = vpop.f32.mrb[0].mxu0
  %v889 = vpop.f32.mrb[0].mxu0
  %v890 = vadd.f32 %v481, %v889
  %v891 = vpop.f32.mrb[0].mxu0
  %892 = vmatprep.mubr.bf16.mxu0 0
  %893 = vmatmul.mubr.bf16.gmra.mrb[0].mxu0 %v700
  %v894 = vpop.f32.mrb[0].mxu0
  %v895 = vadd.f32 %v486, %v894
  %v896 = vpop.f32.mrb[0].mxu0
  %v897 = vpop.f32.mrb[0].mxu0
  %v898 = vadd.f32 %v489, %v897
  %v899 = vpop.f32.mrb[0].mxu0
  %900 = vmatprep.mubr.bf16.mxu0 0
  %901 = vmatmul.mubr.bf16.gmra.mrb[0].mxu0 %v703
  %v902 = vpop.f32.mrb[0].mxu0
  %v903 = vadd.f32 %v494, %v902
  %v904 = vpop.f32.mrb[0].mxu0
  %v905 = vpop.f32.mrb[0].mxu0
  %v906 = vadd.f32 %v497, %v905
  %v907 = vpop.f32.mrb[0].mxu0
  %908 = vmatprep.mubr.bf16.mxu0 0
  %909 = vmatmul.mubr.bf16.gmra.mrb[0].mxu0 %v706
  %v910 = vpop.f32.mrb[0].mxu0
  %v911 = vadd.f32 %v502, %v910
  %v912 = vpop.f32.mrb[0].mxu0
  %v913 = vpop.f32.mrb[0].mxu0
  %v914 = vadd.f32 %v505, %v913
  %v915 = vpop.f32.mrb[0].mxu0
  %916 = vmatprep.mubr.bf16.mxu0 0
  %917 = vmatmul.mubr.bf16.gmra.mrb[0].mxu0 %v709
  %v918 = vpop.f32.mrb[0].mxu0
  %v919 = vadd.f32 %v510, %v918
  %v920 = vpop.f32.mrb[0].mxu0
  %v921 = vpop.f32.mrb[0].mxu0
  %v922 = vadd.f32 %v513, %v921
  %v923 = vpop.f32.mrb[0].mxu0
  %924 = vmatprep.mubr.bf16.mxu0 0
  %925 = vmatmul.mubr.bf16.gmra.mrb[0].mxu0 %v712
  %v926 = vpop.f32.mrb[0].mxu0
  %v927 = vadd.f32 %v518, %v926
  %v928 = vpop.f32.mrb[0].mxu0
  %v929 = vpop.f32.mrb[0].mxu0
  %v930 = vadd.f32 %v521, %v929
  %v931 = vpop.f32.mrb[0].mxu0
  %932 = vmatprep.mubr.bf16.mxu0 0
  %933 = vmatmul.mubr.bf16.gmra.mrb[0].mxu0 %v715
  %v934 = vpop.f32.mrb[0].mxu0
  %v935 = vadd.f32 %v526, %v934
  %v936 = vpop.f32.mrb[0].mxu0
  %v937 = vpop.f32.mrb[0].mxu0
  %v938 = vadd.f32 %v529, %v937
  %v939 = vpop.f32.mrb[0].mxu0
  %940 = vmatprep.mubr.bf16.mxu0 0
  %941 = vmatmul.mubr.bf16.gmra.mrb[0].mxu0 %v718
  %v942 = vpop.f32.mrb[0].mxu0
  %v943 = vadd.f32 %v534, %v942
  %v944 = vpop.f32.mrb[0].mxu0
  %v945 = vpop.f32.mrb[0].mxu0
  %v946 = vadd.f32 %v537, %v945
  %v947 = vpop.f32.mrb[0].mxu0
  %948 = vmatprep.mubr.bf16.mxu0 0
  %949 = vmatmul.mubr.bf16.gmra.mrb[0].mxu0 %v721
  %v950 = vpop.f32.mrb[0].mxu0
  %v951 = vadd.f32 %v542, %v950
  %v952 = vpop.f32.mrb[0].mxu0
  %v953 = vpop.f32.mrb[0].mxu0
  %v954 = vadd.f32 %v545, %v953
  %v955 = vpop.f32.mrb[0].mxu0
  %956 = vmatprep.mubr.bf16.mxu0 0
  %957 = vmatmul.mubr.bf16.gmra.mrb[0].mxu0 %v724
  %v958 = vpop.f32.mrb[0].mxu0
  %v959 = vadd.f32 %v550, %v958
  %v960 = vpop.f32.mrb[0].mxu0
  %v961 = vpop.f32.mrb[0].mxu0
  %v962 = vadd.f32 %v553, %v961
  %v963 = vpop.f32.mrb[0].mxu0
  %964 = vmatprep.mubr.bf16.mxu0 0
  %965 = vmatmul.mubr.bf16.gmra.mrb[0].mxu0 %v727
  %v966 = vpop.f32.mrb[0].mxu0
  %v967 = vadd.f32 %v558, %v966
  %v968 = vpop.f32.mrb[0].mxu0
  %v969 = vpop.f32.mrb[0].mxu0
  %v970 = vadd.f32 %v561, %v969
  %v971 = vpop.f32.mrb[0].mxu0
  %972 = vmatprep.mubr.bf16.mxu0 0
  %973 = vmatmul.mubr.bf16.gmra.mrb[0].mxu0 %v730
  %v974 = vpop.f32.mrb[0].mxu0
  %v975 = vadd.f32 %v566, %v974
  %v976 = vpop.f32.mrb[0].mxu0
  %v977 = vpop.f32.mrb[0].mxu0
  %v978 = vadd.f32 %v569, %v977
  %v979 = vpop.f32.mrb[0].mxu0
  %980 = vmatprep.mubr.bf16.mxu0 0
  %981 = vmatmul.mubr.bf16.gmra.mrb[0].mxu0 %v733
  %v982 = vpop.f32.mrb[0].mxu0
  %v983 = vadd.f32 %v574, %v982
  %v984 = vpop.f32.mrb[0].mxu0
  %v985 = vpop.f32.mrb[0].mxu0
  %v986 = vadd.f32 %v577, %v985
  %v987 = vpop.f32.mrb[0].mxu0
  %988 = vmatprep.mubr.bf16.mxu0 0
  %989 = vmatmul.mubr.bf16.gmra.mrb[0].mxu0 %v736
  %v990 = vpop.f32.mrb[0].mxu0
  %v991 = vadd.f32 %v582, %v990
  %v992 = vpop.f32.mrb[0].mxu0
  %v993 = vpop.f32.mrb[0].mxu0
  %v994 = vadd.f32 %v585, %v993
  %v995 = vpop.f32.mrb[0].mxu0
  %996 = vmatprep.mubr.bf16.mxu0 0
  %997 = vmatmul.mubr.bf16.gmra.mrb[0].mxu0 %v739
  %v998 = vpop.f32.mrb[0].mxu0
  %v999 = vadd.f32 %v590, %v998
  %v1000 = vpop.f32.mrb[0].mxu0
  %v1001 = vpop.f32.mrb[0].mxu0
  %v1002 = vadd.f32 %v593, %v1001
  %v1003 = vpop.f32.mrb[0].mxu0
  %1004 = vmatprep.mubr.bf16.mxu0 0
  %1005 = vmatmul.mubr.bf16.gmra.mrb[0].mxu0 %v742
  %v1006 = vpop.f32.mrb[0].mxu0
  %v1007 = vadd.f32 %v598, %v1006
  %v1008 = vpop.f32.mrb[0].mxu0
  %v1009 = vpop.f32.mrb[0].mxu0
  %v1010 = vadd.f32 %v601, %v1009
  %v1011 = vpop.f32.mrb[0].mxu0
  %1012 = vmatprep.mubr.bf16.mxu0 0
  %1013 = vmatmul.mubr.bf16.gmra.mrb[0].mxu0 %v745
  %v1014 = vpop.f32.mrb[0].mxu0
  %v1015 = vadd.f32 %v606, %v1014
  %v1016 = vpop.f32.mrb[0].mxu0
  %v1017 = vpop.f32.mrb[0].mxu0
  %v1018 = vadd.f32 %v609, %v1017
  %v1019 = vpop.f32.mrb[0].mxu0
  %1020 = vmatprep.mubr.bf16.mxu0 0
  %1021 = vmatmul.mubr.bf16.gmra.mrb[0].mxu0 %v748
  %v1022 = vpop.f32.mrb[0].mxu0
  %v1023 = vadd.f32 %v614, %v1022
  %v1024 = vpop.f32.mrb[0].mxu0
  %v1025 = vpop.f32.mrb[0].mxu0
  %v1026 = vadd.f32 %v617, %v1025
  %v1027 = vpop.f32.mrb[0].mxu0
  %1028 = vmatprep.mubr.bf16.mxu0 0
  %1029 = vmatmul.mubr.bf16.gmra.mrb[0].mxu0 %v751
  %v1030 = vpop.f32.mrb[0].mxu0
  %v1031 = vadd.f32 %v622, %v1030
  %v1032 = vpop.f32.mrb[0].mxu0
  %v1033 = vpop.f32.mrb[0].mxu0
  %v1034 = vadd.f32 %v625, %v1033
  %v1035 = vpop.f32.mrb[0].mxu0
  %1036 = vmatprep.mubr.bf16.mxu0 0
  %1037 = vmatmul.mubr.bf16.gmra.mrb[0].mxu0 %v754
  %v1038 = vpop.f32.mrb[0].mxu0
  %v1039 = vadd.f32 %v630, %v1038
  %v1040 = vpop.f32.mrb[0].mxu0
  %v1041 = vpop.f32.mrb[0].mxu0
  %v1042 = vadd.f32 %v633, %v1041
  %v1043 = vpop.f32.mrb[0].mxu0
  %1044 = vdwg.mxu0
  %v1045 = vld [vmem:[%s0 + $0x9] sm:$0xff]
  %v1046 = vld [vmem:[%s0 + $0x11] sm:$0xff]
  %v1047 = vld [vmem:[%s0 + $0x19] sm:$0xff]
  %v1048 = vld [vmem:[%s0 + $0x21] sm:$0xff]
  %v1049 = vld [vmem:[%s0 + $0x29] sm:$0xff]
  %v1050 = vld [vmem:[%s0 + $0x31] sm:$0xff]
  %v1051 = vld [vmem:[%s0 + $0x39] sm:$0xff]
  %v1052 = vld [vmem:[%s0 + $0x41] sm:$0xff]
  %v1053 = vld [vmem:[%s0 + $0x49] sm:$0xff]
  %v1054 = vld [vmem:[%s0 + $0x51] sm:$0xff]
  %v1055 = vld [vmem:[%s0 + $0x59] sm:$0xff]
  %v1056 = vld [vmem:[%s0 + $0x61] sm:$0xff]
  %v1057 = vld [vmem:[%s0 + $0x69] sm:$0xff]
  %v1058 = vld [vmem:[%s0 + $0x71] sm:$0xff]
  %v1059 = vld [vmem:[%s0 + $0x79] sm:$0xff]
  %v1060 = vld [vmem:[%s0 + $0x81] sm:$0xff]
  %v1061 = vld [vmem:[%s0 + $0x89] sm:$0xff]
  %v1062 = vld [vmem:[%s0 + $0x91] sm:$0xff]
  %v1063 = vld [vmem:[%s0 + $0x99] sm:$0xff]
  %v1064 = vld [vmem:[%s0 + $0xa1] sm:$0xff]
  %v1065 = vld [vmem:[%s0 + $0xa9] sm:$0xff]
  %v1066 = vld [vmem:[%s0 + $0xb1] sm:$0xff]
  %v1067 = vld [vmem:[%s0 + $0xb9] sm:$0xff]
  %v1068 = vld [vmem:[%s0 + $0xc1] sm:$0xff]
  %v1069 = vld [vmem:[%s0 + $0xc9] sm:$0xff]
  %v1070 = vld [vmem:[%s0 + $0xd1] sm:$0xff]
  %v1071 = vld [vmem:[%s0 + $0xd9] sm:$0xff]
  %v1072 = vld [vmem:[%s0 + $0xe1] sm:$0xff]
  %v1073 = vld [vmem:[%s0 + $0xe9] sm:$0xff]
  %v1074 = vld [vmem:[%s0 + $0xf1] sm:$0xff]
  %v1075 = vld [vmem:[%s0 + $0xf9] sm:$0xff]
  %v1076 = vld [vmem:[%s0 + $0x101] sm:$0xff]
  %v1077 = vld [vmem:[%s0 + $0x109] sm:$0xff]
  %v1078 = vld [vmem:[%s0 + $0x111] sm:$0xff]
  %v1079 = vld [vmem:[%s0 + $0x119] sm:$0xff]
  %v1080 = vld [vmem:[%s0 + $0x121] sm:$0xff]
  %v1081 = vld [vmem:[%s0 + $0x129] sm:$0xff]
  %v1082 = vld [vmem:[%s0 + $0x131] sm:$0xff]
  %v1083 = vld [vmem:[%s0 + $0x139] sm:$0xff]
  %v1084 = vld [vmem:[%s0 + $0x141] sm:$0xff]
  %v1085 = vld [vmem:[%s0 + $0x149] sm:$0xff]
  %v1086 = vld [vmem:[%s0 + $0x151] sm:$0xff]
  %v1087 = vld [vmem:[%s0 + $0x159] sm:$0xff]
  %v1088 = vld [vmem:[%s0 + $0x161] sm:$0xff]
  %v1089 = vld [vmem:[%s0 + $0x169] sm:$0xff]
  %v1090 = vld [vmem:[%s0 + $0x171] sm:$0xff]
  %v1091 = vld [vmem:[%s0 + $0x179] sm:$0xff]
  %v1092 = vld [vmem:[%s0 + $0x181] sm:$0xff]
  %v1093 = vld [vmem:[%s0 + $0x189] sm:$0xff]
  %v1094 = vld [vmem:[%s0 + $0x191] sm:$0xff]
  %v1095 = vld [vmem:[%s0 + $0x199] sm:$0xff]
  %v1096 = vld [vmem:[%s0 + $0x1a1] sm:$0xff]
  %v1097 = vld [vmem:[%s0 + $0x1a9] sm:$0xff]
  %v1098 = vld [vmem:[%s0 + $0x1b1] sm:$0xff]
  %v1099 = vld [vmem:[%s0 + $0x1b9] sm:$0xff]
  %v1100 = vld [vmem:[%s0 + $0x1c1] sm:$0xff]
  %v1101 = vld [vmem:[%s0 + $0x1c9] sm:$0xff]
  %v1102 = vld [vmem:[%s0 + $0x1d1] sm:$0xff]
  %v1103 = vld [vmem:[%s0 + $0x1d9] sm:$0xff]
  %v1104 = vld [vmem:[%s0 + $0x1e1] sm:$0xff]
  %v1105 = vld [vmem:[%s0 + $0x1e9] sm:$0xff]
  %v1106 = vld [vmem:[%s0 + $0x1f1] sm:$0xff]
  %v1107 = vld [vmem:[%s0 + $0x1f9] sm:$0xff]
  %v1108 = vld [vmem:[%s0 + $0x201] sm:$0xff]
  %v1109 = vpack.c.bf16 %v1046, %v1045
  %v1110 = vpack.c.bf16 %v1048, %v1047
  %v1111 = vpack.c.bf16 %v1050, %v1049
  %v1112 = vpack.c.bf16 %v1052, %v1051
  %v1113 = vpack.c.bf16 %v1054, %v1053
  %v1114 = vpack.c.bf16 %v1056, %v1055
  %v1115 = vpack.c.bf16 %v1058, %v1057
  %v1116 = vpack.c.bf16 %v1060, %v1059
  %v1117 = vpack.c.bf16 %v1062, %v1061
  %v1118 = vpack.c.bf16 %v1064, %v1063
  %v1119 = vpack.c.bf16 %v1066, %v1065
  %v1120 = vpack.c.bf16 %v1068, %v1067
  %v1121 = vpack.c.bf16 %v1070, %v1069
  %v1122 = vpack.c.bf16 %v1072, %v1071
  %v1123 = vpack.c.bf16 %v1074, %v1073
  %v1124 = vpack.c.bf16 %v1076, %v1075
  %v1125 = vpack.c.bf16 %v1078, %v1077
  %v1126 = vpack.c.bf16 %v1080, %v1079
  %v1127 = vpack.c.bf16 %v1082, %v1081
  %v1128 = vpack.c.bf16 %v1084, %v1083
  %v1129 = vpack.c.bf16 %v1086, %v1085
  %v1130 = vpack.c.bf16 %v1088, %v1087
  %v1131 = vpack.c.bf16 %v1090, %v1089
  %v1132 = vpack.c.bf16 %v1092, %v1091
  %v1133 = vpack.c.bf16 %v1094, %v1093
  %v1134 = vpack.c.bf16 %v1096, %v1095
  %v1135 = vpack.c.bf16 %v1098, %v1097
  %v1136 = vpack.c.bf16 %v1100, %v1099
  %v1137 = vpack.c.bf16 %v1102, %v1101
  %v1138 = vpack.c.bf16 %v1104, %v1103
  %v1139 = vpack.c.bf16 %v1106, %v1105
  %v1140 = vpack.c.bf16 %v1108, %v1107
  %v1141 = vld [vmem:[%s1 + $0x40] sm:$0xf]
  %v1142 = vld [vmem:[%s1 + $0x44] sm:$0xf]
  %v1143 = vld [vmem:[%s1 + $0x48] sm:$0xf]
  %v1144 = vld [vmem:[%s1 + $0x4c] sm:$0xf]
  %v1145 = vld [vmem:[%s1 + $0x50] sm:$0xf]
  %v1146 = vld [vmem:[%s1 + $0x54] sm:$0xf]
  %v1147 = vld [vmem:[%s1 + $0x58] sm:$0xf]
  %v1148 = vld [vmem:[%s1 + $0x5c] sm:$0xf]
  %v1157 = vunpack.c.l.b16 %v1141
  %v1158 = vunpack.c.l.b16 %v1142
  %v1159 = vunpack.c.l.b16 %v1143
  %v1160 = vunpack.c.l.b16 %v1144
  %v1161 = vunpack.c.l.b16 %v1145
  %v1162 = vunpack.c.l.b16 %v1146
  %v1163 = vunpack.c.l.b16 %v1147
  %v1164 = vunpack.c.l.b16 %v1148
  %v1165 = vpack.c.b16 %v1158, %v1157
  %v1166 = vpack.c.b16 %v1160, %v1159
  %v1167 = vpack.c.b16 %v1162, %v1161
  %v1168 = vpack.c.b16 %v1164, %v1163
  %v1174 = vsel %vm250, %v1109, 0
  %v1177 = vsel %vm250, %v1110, 0
  %v1180 = vsel %vm250, %v1111, 0
  %v1183 = vsel %vm250, %v1112, 0
  %v1186 = vsel %vm250, %v1113, 0
  %v1189 = vsel %vm250, %v1114, 0
  %v1192 = vsel %vm250, %v1115, 0
  %v1195 = vsel %vm250, %v1116, 0
  %v1198 = vsel %vm250, %v1117, 0
  %v1201 = vsel %vm250, %v1118, 0
  %v1204 = vsel %vm250, %v1119, 0
  %v1207 = vsel %vm250, %v1120, 0
  %v1210 = vsel %vm250, %v1121, 0
  %v1213 = vsel %vm250, %v1122, 0
  %v1216 = vsel %vm250, %v1123, 0
  %v1219 = vsel %vm250, %v1124, 0
  %v1222 = vsel %vm250, %v1125, 0
  %v1225 = vsel %vm250, %v1126, 0
  %v1228 = vsel %vm250, %v1127, 0
  %v1231 = vsel %vm250, %v1128, 0
  %v1234 = vsel %vm250, %v1129, 0
  %v1237 = vsel %vm250, %v1130, 0
  %v1240 = vsel %vm250, %v1131, 0
  %v1243 = vsel %vm250, %v1132, 0
  %v1246 = vsel %vm250, %v1133, 0
  %v1249 = vsel %vm250, %v1134, 0
  %v1252 = vsel %vm250, %v1135, 0
  %v1255 = vsel %vm250, %v1136, 0
  %v1258 = vsel %vm250, %v1137, 0
  %v1261 = vsel %vm250, %v1138, 0
  %v1264 = vsel %vm250, %v1139, 0
  %v1267 = vsel %vm250, %v1140, 0
  %1269 = vmatprep.subr.bf16.mxu0 0
  %1270 = vmatpush1.bf16.msra.mxu0 %v1165
  %1271 = vmatprep.subr.bf16.mxu0 0
  %1272 = vmatpush1.bf16.msra.mxu0 %v1166
  %1273 = vmatprep.subr.bf16.mxu0 0
  %1274 = vmatpush1.bf16.msra.mxu0 %v1167
  %1275 = vmatprep.subr.bf16.mxu0 0
  %1276 = vmatpush1.bf16.msra.mxu0 %v1168
  %1277 = vmatprep.subr.bf16.mxu0 0
  %1278 = vmatpush1.bf16.msra.mxu0 0
  %1279 = vmatprep.subr.bf16.mxu0 0
  %1280 = vmatpush1.bf16.msra.mxu0 0
  %1281 = vmatprep.subr.bf16.mxu0 0
  %1282 = vmatpush1.bf16.msra.mxu0 0
  %1283 = vmatprep.subr.bf16.mxu0 0
  %1284 = vmatpush1.bf16.msra.mxu0 0
  %1285 = vmatprep.subr.bf16.mxu0 0
  %1286 = vmatpush1.bf16.msra.mxu0 0
  %1287 = vmatprep.subr.bf16.mxu0 0
  %1288 = vmatpush1.bf16.msra.mxu0 0
  %1289 = vmatprep.subr.bf16.mxu0 0
  %1290 = vmatpush1.bf16.msra.mxu0 0
  %1291 = vmatprep.subr.bf16.mxu0 0
  %1292 = vmatpush1.bf16.msra.mxu0 0
  %1293 = vmatprep.subr.bf16.mxu0 0
  %1294 = vmatpush1.bf16.msra.mxu0 0
  %1295 = vmatprep.subr.bf16.mxu0 0
  %1296 = vmatpush1.bf16.msra.mxu0 0
  %1297 = vmatprep.subr.bf16.mxu0 0
  %1298 = vmatpush1.bf16.msra.mxu0 0
  %1299 = vmatprep.subr.bf16.mxu0 0
  %1300 = vmatpush1.bf16.msra.mxu0 0
  %1301 = vmatprep.mubr.bf16.mxu0 0
  %1302 = vmatmul.mubr.bf16.gmra.mrb[0].mxu0 %v1174
  %v1303 = vpop.f32.mrb[0].mxu0
  %v1304 = vadd.f32 0.0, %v1303
  %v1305 = vpop.f32.mrb[0].mxu0
  %v1306 = vpop.f32.mrb[0].mxu0
  %v1307 = vadd.f32 0.0, %v1306
  %v1308 = vpop.f32.mrb[0].mxu0
  %1309 = vmatprep.mubr.bf16.mxu0 0
  %1310 = vmatmul.mubr.bf16.gmra.mrb[0].mxu0 %v1177
  %v1311 = vpop.f32.mrb[0].mxu0
  %v1312 = vadd.f32 0.0, %v1311
  %v1313 = vpop.f32.mrb[0].mxu0
  %v1314 = vpop.f32.mrb[0].mxu0
  %v1315 = vadd.f32 0.0, %v1314
  %v1316 = vpop.f32.mrb[0].mxu0
  %1317 = vmatprep.mubr.bf16.mxu0 0
  %1318 = vmatmul.mubr.bf16.gmra.mrb[0].mxu0 %v1180
  %v1319 = vpop.f32.mrb[0].mxu0
  %v1320 = vadd.f32 0.0, %v1319
  %v1321 = vpop.f32.mrb[0].mxu0
  %v1322 = vpop.f32.mrb[0].mxu0
  %v1323 = vadd.f32 0.0, %v1322
  %v1324 = vpop.f32.mrb[0].mxu0
  %1325 = vmatprep.mubr.bf16.mxu0 0
  %1326 = vmatmul.mubr.bf16.gmra.mrb[0].mxu0 %v1183
  %v1327 = vpop.f32.mrb[0].mxu0
  %v1328 = vadd.f32 0.0, %v1327
  %v1329 = vpop.f32.mrb[0].mxu0
  %v1330 = vpop.f32.mrb[0].mxu0
  %v1331 = vadd.f32 0.0, %v1330
  %v1332 = vpop.f32.mrb[0].mxu0
  %1333 = vmatprep.mubr.bf16.mxu0 0
  %1334 = vmatmul.mubr.bf16.gmra.mrb[0].mxu0 %v1186
  %v1335 = vpop.f32.mrb[0].mxu0
  %v1336 = vadd.f32 0.0, %v1335
  %v1337 = vpop.f32.mrb[0].mxu0
  %v1338 = vpop.f32.mrb[0].mxu0
  %v1339 = vadd.f32 0.0, %v1338
  %v1340 = vpop.f32.mrb[0].mxu0
  %1341 = vmatprep.mubr.bf16.mxu0 0
  %1342 = vmatmul.mubr.bf16.gmra.mrb[0].mxu0 %v1189
  %v1343 = vpop.f32.mrb[0].mxu0
  %v1344 = vadd.f32 0.0, %v1343
  %v1345 = vpop.f32.mrb[0].mxu0
  %v1346 = vpop.f32.mrb[0].mxu0
  %v1347 = vadd.f32 0.0, %v1346
  %v1348 = vpop.f32.mrb[0].mxu0
  %1349 = vmatprep.mubr.bf16.mxu0 0
  %1350 = vmatmul.mubr.bf16.gmra.mrb[0].mxu0 %v1192
  %v1351 = vpop.f32.mrb[0].mxu0
  %v1352 = vadd.f32 0.0, %v1351
  %v1353 = vpop.f32.mrb[0].mxu0
  %v1354 = vpop.f32.mrb[0].mxu0
  %v1355 = vadd.f32 0.0, %v1354
  %v1356 = vpop.f32.mrb[0].mxu0
  %1357 = vmatprep.mubr.bf16.mxu0 0
  %1358 = vmatmul.mubr.bf16.gmra.mrb[0].mxu0 %v1195
  %v1359 = vpop.f32.mrb[0].mxu0
  %v1360 = vadd.f32 0.0, %v1359
  %v1361 = vpop.f32.mrb[0].mxu0
  %v1362 = vpop.f32.mrb[0].mxu0
  %v1363 = vadd.f32 0.0, %v1362
  %v1364 = vpop.f32.mrb[0].mxu0
  %1365 = vmatprep.mubr.bf16.mxu0 0
  %1366 = vmatmul.mubr.bf16.gmra.mrb[0].mxu0 %v1198
  %v1367 = vpop.f32.mrb[0].mxu0
  %v1368 = vadd.f32 0.0, %v1367
  %v1369 = vpop.f32.mrb[0].mxu0
  %v1370 = vpop.f32.mrb[0].mxu0
  %v1371 = vadd.f32 0.0, %v1370
  %v1372 = vpop.f32.mrb[0].mxu0
  %1373 = vmatprep.mubr.bf16.mxu0 0
  %1374 = vmatmul.mubr.bf16.gmra.mrb[0].mxu0 %v1201
  %v1375 = vpop.f32.mrb[0].mxu0
  %v1376 = vadd.f32 0.0, %v1375
  %v1377 = vpop.f32.mrb[0].mxu0
  %v1378 = vpop.f32.mrb[0].mxu0
  %v1379 = vadd.f32 0.0, %v1378
  %v1380 = vpop.f32.mrb[0].mxu0
  %1381 = vmatprep.mubr.bf16.mxu0 0
  %1382 = vmatmul.mubr.bf16.gmra.mrb[0].mxu0 %v1204
  %v1383 = vpop.f32.mrb[0].mxu0
  %v1384 = vadd.f32 0.0, %v1383
  %v1385 = vpop.f32.mrb[0].mxu0
  %v1386 = vpop.f32.mrb[0].mxu0
  %v1387 = vadd.f32 0.0, %v1386
  %v1388 = vpop.f32.mrb[0].mxu0
  %1389 = vmatprep.mubr.bf16.mxu0 0
  %1390 = vmatmul.mubr.bf16.gmra.mrb[0].mxu0 %v1207
  %v1391 = vpop.f32.mrb[0].mxu0
  %v1392 = vadd.f32 0.0, %v1391
  %v1393 = vpop.f32.mrb[0].mxu0
  %v1394 = vpop.f32.mrb[0].mxu0
  %v1395 = vadd.f32 0.0, %v1394
  %v1396 = vpop.f32.mrb[0].mxu0
  %1397 = vmatprep.mubr.bf16.mxu0 0
  %1398 = vmatmul.mubr.bf16.gmra.mrb[0].mxu0 %v1210
  %v1399 = vpop.f32.mrb[0].mxu0
  %v1400 = vadd.f32 0.0, %v1399
  %v1401 = vpop.f32.mrb[0].mxu0
  %v1402 = vpop.f32.mrb[0].mxu0
  %v1403 = vadd.f32 0.0, %v1402
  %v1404 = vpop.f32.mrb[0].mxu0
  %1405 = vmatprep.mubr.bf16.mxu0 0
  %1406 = vmatmul.mubr.bf16.gmra.mrb[0].mxu0 %v1213
  %v1407 = vpop.f32.mrb[0].mxu0
  %v1408 = vadd.f32 0.0, %v1407
  %v1409 = vpop.f32.mrb[0].mxu0
  %v1410 = vpop.f32.mrb[0].mxu0
  %v1411 = vadd.f32 0.0, %v1410
  %v1412 = vpop.f32.mrb[0].mxu0
  %1413 = vmatprep.mubr.bf16.mxu0 0
  %1414 = vmatmul.mubr.bf16.gmra.mrb[0].mxu0 %v1216
  %v1415 = vpop.f32.mrb[0].mxu0
  %v1416 = vadd.f32 0.0, %v1415
  %v1417 = vpop.f32.mrb[0].mxu0
  %v1418 = vpop.f32.mrb[0].mxu0
  %v1419 = vadd.f32 0.0, %v1418
  %v1420 = vpop.f32.mrb[0].mxu0
  %1421 = vmatprep.mubr.bf16.mxu0 0
  %1422 = vmatmul.mubr.bf16.gmra.mrb[0].mxu0 %v1219
  %v1423 = vpop.f32.mrb[0].mxu0
  %v1424 = vadd.f32 0.0, %v1423
  %v1425 = vpop.f32.mrb[0].mxu0
  %v1426 = vpop.f32.mrb[0].mxu0
  %v1427 = vadd.f32 0.0, %v1426
  %v1428 = vpop.f32.mrb[0].mxu0
  %1429 = vmatprep.mubr.bf16.mxu0 0
  %1430 = vmatmul.mubr.bf16.gmra.mrb[0].mxu0 %v1222
  %v1431 = vpop.f32.mrb[0].mxu0
  %v1432 = vadd.f32 0.0, %v1431
  %v1433 = vpop.f32.mrb[0].mxu0
  %v1434 = vpop.f32.mrb[0].mxu0
  %v1435 = vadd.f32 0.0, %v1434
  %v1436 = vpop.f32.mrb[0].mxu0
  %1437 = vmatprep.mubr.bf16.mxu0 0
  %1438 = vmatmul.mubr.bf16.gmra.mrb[0].mxu0 %v1225
  %v1439 = vpop.f32.mrb[0].mxu0
  %v1440 = vadd.f32 0.0, %v1439
  %v1441 = vpop.f32.mrb[0].mxu0
  %v1442 = vpop.f32.mrb[0].mxu0
  %v1443 = vadd.f32 0.0, %v1442
  %v1444 = vpop.f32.mrb[0].mxu0
  %1445 = vmatprep.mubr.bf16.mxu0 0
  %1446 = vmatmul.mubr.bf16.gmra.mrb[0].mxu0 %v1228
  %v1447 = vpop.f32.mrb[0].mxu0
  %v1448 = vadd.f32 0.0, %v1447
  %v1449 = vpop.f32.mrb[0].mxu0
  %v1450 = vpop.f32.mrb[0].mxu0
  %v1451 = vadd.f32 0.0, %v1450
  %v1452 = vpop.f32.mrb[0].mxu0
  %1453 = vmatprep.mubr.bf16.mxu0 0
  %1454 = vmatmul.mubr.bf16.gmra.mrb[0].mxu0 %v1231
  %v1455 = vpop.f32.mrb[0].mxu0
  %v1456 = vadd.f32 0.0, %v1455
  %v1457 = vpop.f32.mrb[0].mxu0
  %v1458 = vpop.f32.mrb[0].mxu0
  %v1459 = vadd.f32 0.0, %v1458
  %v1460 = vpop.f32.mrb[0].mxu0
  %1461 = vmatprep.mubr.bf16.mxu0 0
  %1462 = vmatmul.mubr.bf16.gmra.mrb[0].mxu0 %v1234
  %v1463 = vpop.f32.mrb[0].mxu0
  %v1464 = vadd.f32 0.0, %v1463
  %v1465 = vpop.f32.mrb[0].mxu0
  %v1466 = vpop.f32.mrb[0].mxu0
  %v1467 = vadd.f32 0.0, %v1466
  %v1468 = vpop.f32.mrb[0].mxu0
  %1469 = vmatprep.mubr.bf16.mxu0 0
  %1470 = vmatmul.mubr.bf16.gmra.mrb[0].mxu0 %v1237
  %v1471 = vpop.f32.mrb[0].mxu0
  %v1472 = vadd.f32 0.0, %v1471
  %v1473 = vpop.f32.mrb[0].mxu0
  %v1474 = vpop.f32.mrb[0].mxu0
  %v1475 = vadd.f32 0.0, %v1474
  %v1476 = vpop.f32.mrb[0].mxu0
  %1477 = vmatprep.mubr.bf16.mxu0 0
  %1478 = vmatmul.mubr.bf16.gmra.mrb[0].mxu0 %v1240
  %v1479 = vpop.f32.mrb[0].mxu0
  %v1480 = vadd.f32 0.0, %v1479
  %v1481 = vpop.f32.mrb[0].mxu0
  %v1482 = vpop.f32.mrb[0].mxu0
  %v1483 = vadd.f32 0.0, %v1482
  %v1484 = vpop.f32.mrb[0].mxu0
  %1485 = vmatprep.mubr.bf16.mxu0 0
  %1486 = vmatmul.mubr.bf16.gmra.mrb[0].mxu0 %v1243
  %v1487 = vpop.f32.mrb[0].mxu0
  %v1488 = vadd.f32 0.0, %v1487
  %v1489 = vpop.f32.mrb[0].mxu0
  %v1490 = vpop.f32.mrb[0].mxu0
  %v1491 = vadd.f32 0.0, %v1490
  %v1492 = vpop.f32.mrb[0].mxu0
  %1493 = vmatprep.mubr.bf16.mxu0 0
  %1494 = vmatmul.mubr.bf16.gmra.mrb[0].mxu0 %v1246
  %v1495 = vpop.f32.mrb[0].mxu0
  %v1496 = vadd.f32 0.0, %v1495
  %v1497 = vpop.f32.mrb[0].mxu0
  %v1498 = vpop.f32.mrb[0].mxu0
  %v1499 = vadd.f32 0.0, %v1498
  %v1500 = vpop.f32.mrb[0].mxu0
  %1501 = vmatprep.mubr.bf16.mxu0 0
  %1502 = vmatmul.mubr.bf16.gmra.mrb[0].mxu0 %v1249
  %v1503 = vpop.f32.mrb[0].mxu0
  %v1504 = vadd.f32 0.0, %v1503
  %v1505 = vpop.f32.mrb[0].mxu0
  %v1506 = vpop.f32.mrb[0].mxu0
  %v1507 = vadd.f32 0.0, %v1506
  %v1508 = vpop.f32.mrb[0].mxu0
  %1509 = vmatprep.mubr.bf16.mxu0 0
  %1510 = vmatmul.mubr.bf16.gmra.mrb[0].mxu0 %v1252
  %v1511 = vpop.f32.mrb[0].mxu0
  %v1512 = vadd.f32 0.0, %v1511
  %v1513 = vpop.f32.mrb[0].mxu0
  %v1514 = vpop.f32.mrb[0].mxu0
  %v1515 = vadd.f32 0.0, %v1514
  %v1516 = vpop.f32.mrb[0].mxu0
  %1517 = vmatprep.mubr.bf16.mxu0 0
  %1518 = vmatmul.mubr.bf16.gmra.mrb[0].mxu0 %v1255
  %v1519 = vpop.f32.mrb[0].mxu0
  %v1520 = vadd.f32 0.0, %v1519
  %v1521 = vpop.f32.mrb[0].mxu0
  %v1522 = vpop.f32.mrb[0].mxu0
  %v1523 = vadd.f32 0.0, %v1522
  %v1524 = vpop.f32.mrb[0].mxu0
  %1525 = vmatprep.mubr.bf16.mxu0 0
  %1526 = vmatmul.mubr.bf16.gmra.mrb[0].mxu0 %v1258
  %v1527 = vpop.f32.mrb[0].mxu0
  %v1528 = vadd.f32 0.0, %v1527
  %v1529 = vpop.f32.mrb[0].mxu0
  %v1530 = vpop.f32.mrb[0].mxu0
  %v1531 = vadd.f32 0.0, %v1530
  %v1532 = vpop.f32.mrb[0].mxu0
  %1533 = vmatprep.mubr.bf16.mxu0 0
  %1534 = vmatmul.mubr.bf16.gmra.mrb[0].mxu0 %v1261
  %v1535 = vpop.f32.mrb[0].mxu0
  %v1536 = vadd.f32 0.0, %v1535
  %v1537 = vpop.f32.mrb[0].mxu0
  %v1538 = vpop.f32.mrb[0].mxu0
  %v1539 = vadd.f32 0.0, %v1538
  %v1540 = vpop.f32.mrb[0].mxu0
  %1541 = vmatprep.mubr.bf16.mxu0 0
  %1542 = vmatmul.mubr.bf16.gmra.mrb[0].mxu0 %v1264
  %v1543 = vpop.f32.mrb[0].mxu0
  %v1544 = vadd.f32 0.0, %v1543
  %v1545 = vpop.f32.mrb[0].mxu0
  %v1546 = vpop.f32.mrb[0].mxu0
  %v1547 = vadd.f32 0.0, %v1546
  %v1548 = vpop.f32.mrb[0].mxu0
  %1549 = vmatprep.mubr.bf16.mxu0 0
  %1550 = vmatmul.mubr.bf16.gmra.mrb[0].mxu0 %v1267
  %v1551 = vpop.f32.mrb[0].mxu0
  %v1552 = vadd.f32 0.0, %v1551
  %v1553 = vpop.f32.mrb[0].mxu0
  %v1554 = vpop.f32.mrb[0].mxu0
  %v1555 = vadd.f32 0.0, %v1554
  %v1556 = vpop.f32.mrb[0].mxu0
  %1557 = vdwg.mxu0
  %v1558 = vadd.f32 %v791, %v1304
  %v1559 = vadd.f32 %v794, %v1307
  %v1560 = vadd.f32 %v799, %v1312
  %v1561 = vadd.f32 %v802, %v1315
  %v1562 = vadd.f32 %v807, %v1320
  %v1563 = vadd.f32 %v810, %v1323
  %v1564 = vadd.f32 %v815, %v1328
  %v1565 = vadd.f32 %v818, %v1331
  %v1566 = vadd.f32 %v823, %v1336
  %v1567 = vadd.f32 %v826, %v1339
  %v1568 = vadd.f32 %v831, %v1344
  %v1569 = vadd.f32 %v834, %v1347
  %v1570 = vadd.f32 %v839, %v1352
  %v1571 = vadd.f32 %v842, %v1355
  %v1572 = vadd.f32 %v847, %v1360
  %v1573 = vadd.f32 %v850, %v1363
  %v1574 = vadd.f32 %v855, %v1368
  %v1575 = vadd.f32 %v858, %v1371
  %v1576 = vadd.f32 %v863, %v1376
  %v1577 = vadd.f32 %v866, %v1379
  %v1578 = vadd.f32 %v871, %v1384
  %v1579 = vadd.f32 %v874, %v1387
  %v1580 = vadd.f32 %v879, %v1392
  %v1581 = vadd.f32 %v882, %v1395
  %v1582 = vadd.f32 %v887, %v1400
  %v1583 = vadd.f32 %v890, %v1403
  %v1584 = vadd.f32 %v895, %v1408
  %v1585 = vadd.f32 %v898, %v1411
  %v1586 = vadd.f32 %v903, %v1416
  %v1587 = vadd.f32 %v906, %v1419
  %v1588 = vadd.f32 %v911, %v1424
  %v1589 = vadd.f32 %v914, %v1427
  %v1590 = vadd.f32 %v919, %v1432
  %v1591 = vadd.f32 %v922, %v1435
  %v1592 = vadd.f32 %v927, %v1440
  %v1593 = vadd.f32 %v930, %v1443
  %v1594 = vadd.f32 %v935, %v1448
  %v1595 = vadd.f32 %v938, %v1451
  %v1596 = vadd.f32 %v943, %v1456
  %v1597 = vadd.f32 %v946, %v1459
  %v1598 = vadd.f32 %v951, %v1464
  %v1599 = vadd.f32 %v954, %v1467
  %v1600 = vadd.f32 %v959, %v1472
  %v1601 = vadd.f32 %v962, %v1475
  %v1602 = vadd.f32 %v967, %v1480
  %v1603 = vadd.f32 %v970, %v1483
  %v1604 = vadd.f32 %v975, %v1488
  %v1605 = vadd.f32 %v978, %v1491
  %v1606 = vadd.f32 %v983, %v1496
  %v1607 = vadd.f32 %v986, %v1499
  %v1608 = vadd.f32 %v991, %v1504
  %v1609 = vadd.f32 %v994, %v1507
  %v1610 = vadd.f32 %v999, %v1512
  %v1611 = vadd.f32 %v1002, %v1515
  %v1612 = vadd.f32 %v1007, %v1520
  %v1613 = vadd.f32 %v1010, %v1523
  %v1614 = vadd.f32 %v1015, %v1528
  %v1615 = vadd.f32 %v1018, %v1531
  %v1616 = vadd.f32 %v1023, %v1536
  %v1617 = vadd.f32 %v1026, %v1539
  %v1618 = vadd.f32 %v1031, %v1544
  %v1619 = vadd.f32 %v1034, %v1547
  %v1620 = vadd.f32 %v1039, %v1552
  %v1621 = vadd.f32 %v1042, %v1555
  %v1622 = vld [vmem:[%s0 + $0x17] sm:$0xff]
  %v1623 = vld [vmem:[%s0 + $0x1f] sm:$0xff]
  %v1624 = vld [vmem:[%s0 + $0x27] sm:$0xff]
  %v1625 = vld [vmem:[%s0 + $0x2f] sm:$0xff]
  %v1626 = vld [vmem:[%s0 + $0x37] sm:$0xff]
  %v1627 = vld [vmem:[%s0 + $0x3f] sm:$0xff]
  %v1628 = vld [vmem:[%s0 + $0x47] sm:$0xff]
  %v1629 = vld [vmem:[%s0 + $0x4f] sm:$0xff]
  %v1630 = vld [vmem:[%s0 + $0x57] sm:$0xff]
  %v1631 = vld [vmem:[%s0 + $0x5f] sm:$0xff]
  %v1632 = vld [vmem:[%s0 + $0x67] sm:$0xff]
  %v1633 = vld [vmem:[%s0 + $0x6f] sm:$0xff]
  %v1634 = vld [vmem:[%s0 + $0x77] sm:$0xff]
  %v1635 = vld [vmem:[%s0 + $0x7f] sm:$0xff]
  %v1636 = vld [vmem:[%s0 + $0x87] sm:$0xff]
  %v1637 = vld [vmem:[%s0 + $0x8f] sm:$0xff]
  %v1638 = vld [vmem:[%s0 + $0x97] sm:$0xff]
  %v1639 = vld [vmem:[%s0 + $0x9f] sm:$0xff]
  %v1640 = vld [vmem:[%s0 + $0xa7] sm:$0xff]
  %v1641 = vld [vmem:[%s0 + $0xaf] sm:$0xff]
  %v1642 = vld [vmem:[%s0 + $0xb7] sm:$0xff]
  %v1643 = vld [vmem:[%s0 + $0xbf] sm:$0xff]
  %v1644 = vld [vmem:[%s0 + $0xc7] sm:$0xff]
  %v1645 = vld [vmem:[%s0 + $0xcf] sm:$0xff]
  %v1646 = vld [vmem:[%s0 + $0xd7] sm:$0xff]
  %v1647 = vld [vmem:[%s0 + $0xdf] sm:$0xff]
  %v1648 = vld [vmem:[%s0 + $0xe7] sm:$0xff]
  %v1649 = vld [vmem:[%s0 + $0xef] sm:$0xff]
  %v1650 = vld [vmem:[%s0 + $0xf7] sm:$0xff]
  %v1651 = vld [vmem:[%s0 + $0xff] sm:$0xff]
  %v1652 = vld [vmem:[%s0 + $0x107] sm:$0xff]
  %v1653 = vld [vmem:[%s0 + $0x10f] sm:$0xff]
  %v1654 = vld [vmem:[%s0 + $0x117] sm:$0xff]
  %v1655 = vld [vmem:[%s0 + $0x11f] sm:$0xff]
  %v1656 = vld [vmem:[%s0 + $0x127] sm:$0xff]
  %v1657 = vld [vmem:[%s0 + $0x12f] sm:$0xff]
  %v1658 = vld [vmem:[%s0 + $0x137] sm:$0xff]
  %v1659 = vld [vmem:[%s0 + $0x13f] sm:$0xff]
  %v1660 = vld [vmem:[%s0 + $0x147] sm:$0xff]
  %v1661 = vld [vmem:[%s0 + $0x14f] sm:$0xff]
  %v1662 = vld [vmem:[%s0 + $0x157] sm:$0xff]
  %v1663 = vld [vmem:[%s0 + $0x15f] sm:$0xff]
  %v1664 = vld [vmem:[%s0 + $0x167] sm:$0xff]
  %v1665 = vld [vmem:[%s0 + $0x16f] sm:$0xff]
  %v1666 = vld [vmem:[%s0 + $0x177] sm:$0xff]
  %v1667 = vld [vmem:[%s0 + $0x17f] sm:$0xff]
  %v1668 = vld [vmem:[%s0 + $0x187] sm:$0xff]
  %v1669 = vld [vmem:[%s0 + $0x18f] sm:$0xff]
  %v1670 = vld [vmem:[%s0 + $0x197] sm:$0xff]
  %v1671 = vld [vmem:[%s0 + $0x19f] sm:$0xff]
  %v1672 = vld [vmem:[%s0 + $0x1a7] sm:$0xff]
  %v1673 = vld [vmem:[%s0 + $0x1af] sm:$0xff]
  %v1674 = vld [vmem:[%s0 + $0x1b7] sm:$0xff]
  %v1675 = vld [vmem:[%s0 + $0x1bf] sm:$0xff]
  %v1676 = vld [vmem:[%s0 + $0x1c7] sm:$0xff]
  %v1677 = vld [vmem:[%s0 + $0x1cf] sm:$0xff]
  %v1678 = vld [vmem:[%s0 + $0x1d7] sm:$0xff]
  %v1679 = vld [vmem:[%s0 + $0x1df] sm:$0xff]
  %v1680 = vld [vmem:[%s0 + $0x1e7] sm:$0xff]
  %v1681 = vld [vmem:[%s0 + $0x1ef] sm:$0xff]
  %v1682 = vld [vmem:[%s0 + $0x1f7] sm:$0xff]
  %v1683 = vld [vmem:[%s0 + $0x1ff] sm:$0xff]
  %v1684 = vld [vmem:[%s0 + $0x207] sm:$0xff]
  %v1685 = vld [vmem:[%s0 + $0x20f] sm:$0xff]
  %v1686 = vpack.c.bf16 %v1623, %v1622
  %v1687 = vpack.c.bf16 %v1625, %v1624
  %v1688 = vpack.c.bf16 %v1627, %v1626
  %v1689 = vpack.c.bf16 %v1629, %v1628
  %v1690 = vpack.c.bf16 %v1631, %v1630
  %v1691 = vpack.c.bf16 %v1633, %v1632
  %v1692 = vpack.c.bf16 %v1635, %v1634
  %v1693 = vpack.c.bf16 %v1637, %v1636
  %v1694 = vpack.c.bf16 %v1639, %v1638
  %v1695 = vpack.c.bf16 %v1641, %v1640
  %v1696 = vpack.c.bf16 %v1643, %v1642
  %v1697 = vpack.c.bf16 %v1645, %v1644
  %v1698 = vpack.c.bf16 %v1647, %v1646
  %v1699 = vpack.c.bf16 %v1649, %v1648
  %v1700 = vpack.c.bf16 %v1651, %v1650
  %v1701 = vpack.c.bf16 %v1653, %v1652
  %v1702 = vpack.c.bf16 %v1655, %v1654
  %v1703 = vpack.c.bf16 %v1657, %v1656
  %v1704 = vpack.c.bf16 %v1659, %v1658
  %v1705 = vpack.c.bf16 %v1661, %v1660
  %v1706 = vpack.c.bf16 %v1663, %v1662
  %v1707 = vpack.c.bf16 %v1665, %v1664
  %v1708 = vpack.c.bf16 %v1667, %v1666
  %v1709 = vpack.c.bf16 %v1669, %v1668
  %v1710 = vpack.c.bf16 %v1671, %v1670
  %v1711 = vpack.c.bf16 %v1673, %v1672
  %v1712 = vpack.c.bf16 %v1675, %v1674
  %v1713 = vpack.c.bf16 %v1677, %v1676
  %v1714 = vpack.c.bf16 %v1679, %v1678
  %v1715 = vpack.c.bf16 %v1681, %v1680
  %v1716 = vpack.c.bf16 %v1683, %v1682
  %v1717 = vpack.c.bf16 %v1685, %v1684
  %v1718 = vld [vmem:[%s1 + $0x60] sm:$0xf]
  %v1719 = vld [vmem:[%s1 + $0x64] sm:$0xf]
  %v1720 = vld [vmem:[%s1 + $0x68] sm:$0xf]
  %v1721 = vld [vmem:[%s1 + $0x6c] sm:$0xf]
  %v1722 = vld [vmem:[%s1 + $0x70] sm:$0xf]
  %v1723 = vld [vmem:[%s1 + $0x74] sm:$0xf]
  %v1724 = vld [vmem:[%s1 + $0x78] sm:$0xf]
  %v1725 = vld [vmem:[%s1 + $0x7c] sm:$0xf]
  %v1734 = vunpack.c.l.b16 %v1718
  %v1735 = vunpack.c.l.b16 %v1719
  %v1736 = vunpack.c.l.b16 %v1720
  %v1737 = vunpack.c.l.b16 %v1721
  %v1738 = vunpack.c.l.b16 %v1722
  %v1739 = vunpack.c.l.b16 %v1723
  %v1740 = vunpack.c.l.b16 %v1724
  %v1741 = vunpack.c.l.b16 %v1725
  %v1742 = vpack.c.b16 %v1735, %v1734
  %v1743 = vpack.c.b16 %v1737, %v1736
  %v1744 = vpack.c.b16 %v1739, %v1738
  %v1745 = vpack.c.b16 %v1741, %v1740
  %v1751 = vsel %vm250, %v1686, 0
  %v1754 = vsel %vm250, %v1687, 0
  %v1757 = vsel %vm250, %v1688, 0
  %v1760 = vsel %vm250, %v1689, 0
  %v1763 = vsel %vm250, %v1690, 0
  %v1766 = vsel %vm250, %v1691, 0
  %v1769 = vsel %vm250, %v1692, 0
  %v1772 = vsel %vm250, %v1693, 0
  %v1775 = vsel %vm250, %v1694, 0
  %v1778 = vsel %vm250, %v1695, 0
  %v1781 = vsel %vm250, %v1696, 0
  %v1784 = vsel %vm250, %v1697, 0
  %v1787 = vsel %vm250, %v1698, 0
  %v1790 = vsel %vm250, %v1699, 0
  %v1793 = vsel %vm250, %v1700, 0
  %v1796 = vsel %vm250, %v1701, 0
  %v1799 = vsel %vm250, %v1702, 0
  %v1802 = vsel %vm250, %v1703, 0
  %v1805 = vsel %vm250, %v1704, 0
  %v1808 = vsel %vm250, %v1705, 0
  %v1811 = vsel %vm250, %v1706, 0
  %v1814 = vsel %vm250, %v1707, 0
  %v1817 = vsel %vm250, %v1708, 0
  %v1820 = vsel %vm250, %v1709, 0
  %v1823 = vsel %vm250, %v1710, 0
  %v1826 = vsel %vm250, %v1711, 0
  %v1829 = vsel %vm250, %v1712, 0
  %v1832 = vsel %vm250, %v1713, 0
  %v1835 = vsel %vm250, %v1714, 0
  %v1838 = vsel %vm250, %v1715, 0
  %v1841 = vsel %vm250, %v1716, 0
  %v1844 = vsel %vm250, %v1717, 0
  %1846 = vmatprep.subr.bf16.mxu0 0
  %1847 = vmatpush1.bf16.msra.mxu0 %v1742
  %1848 = vmatprep.subr.bf16.mxu0 0
  %1849 = vmatpush1.bf16.msra.mxu0 %v1743
  %1850 = vmatprep.subr.bf16.mxu0 0
  %1851 = vmatpush1.bf16.msra.mxu0 %v1744
  %1852 = vmatprep.subr.bf16.mxu0 0
  %1853 = vmatpush1.bf16.msra.mxu0 %v1745
  %1854 = vmatprep.subr.bf16.mxu0 0
  %1855 = vmatpush1.bf16.msra.mxu0 0
  %1856 = vmatprep.subr.bf16.mxu0 0
  %1857 = vmatpush1.bf16.msra.mxu0 0
  %1858 = vmatprep.subr.bf16.mxu0 0
  %1859 = vmatpush1.bf16.msra.mxu0 0
  %1860 = vmatprep.subr.bf16.mxu0 0
  %1861 = vmatpush1.bf16.msra.mxu0 0
  %1862 = vmatprep.subr.bf16.mxu0 0
  %1863 = vmatpush1.bf16.msra.mxu0 0
  %1864 = vmatprep.subr.bf16.mxu0 0
  %1865 = vmatpush1.bf16.msra.mxu0 0
  %1866 = vmatprep.subr.bf16.mxu0 0
  %1867 = vmatpush1.bf16.msra.mxu0 0
  %1868 = vmatprep.subr.bf16.mxu0 0
  %1869 = vmatpush1.bf16.msra.mxu0 0
  %1870 = vmatprep.subr.bf16.mxu0 0
  %1871 = vmatpush1.bf16.msra.mxu0 0
  %1872 = vmatprep.subr.bf16.mxu0 0
  %1873 = vmatpush1.bf16.msra.mxu0 0
  %1874 = vmatprep.subr.bf16.mxu0 0
  %1875 = vmatpush1.bf16.msra.mxu0 0
  %1876 = vmatprep.subr.bf16.mxu0 0
  %1877 = vmatpush1.bf16.msra.mxu0 0
  %1878 = vmatprep.mubr.bf16.mxu0 0
  %1879 = vmatmul.mubr.bf16.gmra.mrb[0].mxu0 %v1751
  %v1880 = vpop.f32.mrb[0].mxu0
  %v1881 = vadd.f32 0.0, %v1880
  %v1882 = vpop.f32.mrb[0].mxu0
  %v1883 = vpop.f32.mrb[0].mxu0
  %v1884 = vadd.f32 0.0, %v1883
  %v1885 = vpop.f32.mrb[0].mxu0
  %1886 = vmatprep.mubr.bf16.mxu0 0
  %1887 = vmatmul.mubr.bf16.gmra.mrb[0].mxu0 %v1754
  %v1888 = vpop.f32.mrb[0].mxu0
  %v1889 = vadd.f32 0.0, %v1888
  %v1890 = vpop.f32.mrb[0].mxu0
  %v1891 = vpop.f32.mrb[0].mxu0
  %v1892 = vadd.f32 0.0, %v1891
  %v1893 = vpop.f32.mrb[0].mxu0
  %1894 = vmatprep.mubr.bf16.mxu0 0
  %1895 = vmatmul.mubr.bf16.gmra.mrb[0].mxu0 %v1757
  %v1896 = vpop.f32.mrb[0].mxu0
  %v1897 = vadd.f32 0.0, %v1896
  %v1898 = vpop.f32.mrb[0].mxu0
  %v1899 = vpop.f32.mrb[0].mxu0
  %v1900 = vadd.f32 0.0, %v1899
  %v1901 = vpop.f32.mrb[0].mxu0
  %1902 = vmatprep.mubr.bf16.mxu0 0
  %1903 = vmatmul.mubr.bf16.gmra.mrb[0].mxu0 %v1760
  %v1904 = vpop.f32.mrb[0].mxu0
  %v1905 = vadd.f32 0.0, %v1904
  %v1906 = vpop.f32.mrb[0].mxu0
  %v1907 = vpop.f32.mrb[0].mxu0
  %v1908 = vadd.f32 0.0, %v1907
  %v1909 = vpop.f32.mrb[0].mxu0
  %1910 = vmatprep.mubr.bf16.mxu0 0
  %1911 = vmatmul.mubr.bf16.gmra.mrb[0].mxu0 %v1763
  %v1912 = vpop.f32.mrb[0].mxu0
  %v1913 = vadd.f32 0.0, %v1912
  %v1914 = vpop.f32.mrb[0].mxu0
  %v1915 = vpop.f32.mrb[0].mxu0
  %v1916 = vadd.f32 0.0, %v1915
  %v1917 = vpop.f32.mrb[0].mxu0
  %1918 = vmatprep.mubr.bf16.mxu0 0
  %1919 = vmatmul.mubr.bf16.gmra.mrb[0].mxu0 %v1766
  %v1920 = vpop.f32.mrb[0].mxu0
  %v1921 = vadd.f32 0.0, %v1920
  %v1922 = vpop.f32.mrb[0].mxu0
  %v1923 = vpop.f32.mrb[0].mxu0
  %v1924 = vadd.f32 0.0, %v1923
  %v1925 = vpop.f32.mrb[0].mxu0
  %1926 = vmatprep.mubr.bf16.mxu0 0
  %1927 = vmatmul.mubr.bf16.gmra.mrb[0].mxu0 %v1769
  %v1928 = vpop.f32.mrb[0].mxu0
  %v1929 = vadd.f32 0.0, %v1928
  %v1930 = vpop.f32.mrb[0].mxu0
  %v1931 = vpop.f32.mrb[0].mxu0
  %v1932 = vadd.f32 0.0, %v1931
  %v1933 = vpop.f32.mrb[0].mxu0
  %1934 = vmatprep.mubr.bf16.mxu0 0
  %1935 = vmatmul.mubr.bf16.gmra.mrb[0].mxu0 %v1772
  %v1936 = vpop.f32.mrb[0].mxu0
  %v1937 = vadd.f32 0.0, %v1936
  %v1938 = vpop.f32.mrb[0].mxu0
  %v1939 = vpop.f32.mrb[0].mxu0
  %v1940 = vadd.f32 0.0, %v1939
  %v1941 = vpop.f32.mrb[0].mxu0
  %1942 = vmatprep.mubr.bf16.mxu0 0
  %1943 = vmatmul.mubr.bf16.gmra.mrb[0].mxu0 %v1775
  %v1944 = vpop.f32.mrb[0].mxu0
  %v1945 = vadd.f32 0.0, %v1944
  %v1946 = vpop.f32.mrb[0].mxu0
  %v1947 = vpop.f32.mrb[0].mxu0
  %v1948 = vadd.f32 0.0, %v1947
  %v1949 = vpop.f32.mrb[0].mxu0
  %1950 = vmatprep.mubr.bf16.mxu0 0
  %1951 = vmatmul.mubr.bf16.gmra.mrb[0].mxu0 %v1778
  %v1952 = vpop.f32.mrb[0].mxu0
  %v1953 = vadd.f32 0.0, %v1952
  %v1954 = vpop.f32.mrb[0].mxu0
  %v1955 = vpop.f32.mrb[0].mxu0
  %v1956 = vadd.f32 0.0, %v1955
  %v1957 = vpop.f32.mrb[0].mxu0
  %1958 = vmatprep.mubr.bf16.mxu0 0
  %1959 = vmatmul.mubr.bf16.gmra.mrb[0].mxu0 %v1781
  %v1960 = vpop.f32.mrb[0].mxu0
  %v1961 = vadd.f32 0.0, %v1960
  %v1962 = vpop.f32.mrb[0].mxu0
  %v1963 = vpop.f32.mrb[0].mxu0
  %v1964 = vadd.f32 0.0, %v1963
  %v1965 = vpop.f32.mrb[0].mxu0
  %1966 = vmatprep.mubr.bf16.mxu0 0
  %1967 = vmatmul.mubr.bf16.gmra.mrb[0].mxu0 %v1784
  %v1968 = vpop.f32.mrb[0].mxu0
  %v1969 = vadd.f32 0.0, %v1968
  %v1970 = vpop.f32.mrb[0].mxu0
  %v1971 = vpop.f32.mrb[0].mxu0
  %v1972 = vadd.f32 0.0, %v1971
  %v1973 = vpop.f32.mrb[0].mxu0
  %1974 = vmatprep.mubr.bf16.mxu0 0
  %1975 = vmatmul.mubr.bf16.gmra.mrb[0].mxu0 %v1787
  %v1976 = vpop.f32.mrb[0].mxu0
  %v1977 = vadd.f32 0.0, %v1976
  %v1978 = vpop.f32.mrb[0].mxu0
  %v1979 = vpop.f32.mrb[0].mxu0
  %v1980 = vadd.f32 0.0, %v1979
  %v1981 = vpop.f32.mrb[0].mxu0
  %1982 = vmatprep.mubr.bf16.mxu0 0
  %1983 = vmatmul.mubr.bf16.gmra.mrb[0].mxu0 %v1790
  %v1984 = vpop.f32.mrb[0].mxu0
  %v1985 = vadd.f32 0.0, %v1984
  %v1986 = vpop.f32.mrb[0].mxu0
  %v1987 = vpop.f32.mrb[0].mxu0
  %v1988 = vadd.f32 0.0, %v1987
  %v1989 = vpop.f32.mrb[0].mxu0
  %1990 = vmatprep.mubr.bf16.mxu0 0
  %1991 = vmatmul.mubr.bf16.gmra.mrb[0].mxu0 %v1793
  %v1992 = vpop.f32.mrb[0].mxu0
  %v1993 = vadd.f32 0.0, %v1992
  %v1994 = vpop.f32.mrb[0].mxu0
  %v1995 = vpop.f32.mrb[0].mxu0
  %v1996 = vadd.f32 0.0, %v1995
  %v1997 = vpop.f32.mrb[0].mxu0
  %1998 = vmatprep.mubr.bf16.mxu0 0
  %1999 = vmatmul.mubr.bf16.gmra.mrb[0].mxu0 %v1796
  %v2000 = vpop.f32.mrb[0].mxu0
  %v2001 = vadd.f32 0.0, %v2000
  %v2002 = vpop.f32.mrb[0].mxu0
  %v2003 = vpop.f32.mrb[0].mxu0
  %v2004 = vadd.f32 0.0, %v2003
  %v2005 = vpop.f32.mrb[0].mxu0
  %2006 = vmatprep.mubr.bf16.mxu0 0
  %2007 = vmatmul.mubr.bf16.gmra.mrb[0].mxu0 %v1799
  %v2008 = vpop.f32.mrb[0].mxu0
  %v2009 = vadd.f32 0.0, %v2008
  %v2010 = vpop.f32.mrb[0].mxu0
  %v2011 = vpop.f32.mrb[0].mxu0
  %v2012 = vadd.f32 0.0, %v2011
  %v2013 = vpop.f32.mrb[0].mxu0
  %2014 = vmatprep.mubr.bf16.mxu0 0
  %2015 = vmatmul.mubr.bf16.gmra.mrb[0].mxu0 %v1802
  %v2016 = vpop.f32.mrb[0].mxu0
  %v2017 = vadd.f32 0.0, %v2016
  %v2018 = vpop.f32.mrb[0].mxu0
  %v2019 = vpop.f32.mrb[0].mxu0
  %v2020 = vadd.f32 0.0, %v2019
  %v2021 = vpop.f32.mrb[0].mxu0
  %2022 = vmatprep.mubr.bf16.mxu0 0
  %2023 = vmatmul.mubr.bf16.gmra.mrb[0].mxu0 %v1805
  %v2024 = vpop.f32.mrb[0].mxu0
  %v2025 = vadd.f32 0.0, %v2024
  %v2026 = vpop.f32.mrb[0].mxu0
  %v2027 = vpop.f32.mrb[0].mxu0
  %v2028 = vadd.f32 0.0, %v2027
  %v2029 = vpop.f32.mrb[0].mxu0
  %2030 = vmatprep.mubr.bf16.mxu0 0
  %2031 = vmatmul.mubr.bf16.gmra.mrb[0].mxu0 %v1808
  %v2032 = vpop.f32.mrb[0].mxu0
  %v2033 = vadd.f32 0.0, %v2032
  %v2034 = vpop.f32.mrb[0].mxu0
  %v2035 = vpop.f32.mrb[0].mxu0
  %v2036 = vadd.f32 0.0, %v2035
  %v2037 = vpop.f32.mrb[0].mxu0
  %2038 = vmatprep.mubr.bf16.mxu0 0
  %2039 = vmatmul.mubr.bf16.gmra.mrb[0].mxu0 %v1811
  %v2040 = vpop.f32.mrb[0].mxu0
  %v2041 = vadd.f32 0.0, %v2040
  %v2042 = vpop.f32.mrb[0].mxu0
  %v2043 = vpop.f32.mrb[0].mxu0
  %v2044 = vadd.f32 0.0, %v2043
  %v2045 = vpop.f32.mrb[0].mxu0
  %2046 = vmatprep.mubr.bf16.mxu0 0
  %2047 = vmatmul.mubr.bf16.gmra.mrb[0].mxu0 %v1814
  %v2048 = vpop.f32.mrb[0].mxu0
  %v2049 = vadd.f32 0.0, %v2048
  %v2050 = vpop.f32.mrb[0].mxu0
  %v2051 = vpop.f32.mrb[0].mxu0
  %v2052 = vadd.f32 0.0, %v2051
  %v2053 = vpop.f32.mrb[0].mxu0
  %2054 = vmatprep.mubr.bf16.mxu0 0
  %2055 = vmatmul.mubr.bf16.gmra.mrb[0].mxu0 %v1817
  %v2056 = vpop.f32.mrb[0].mxu0
  %v2057 = vadd.f32 0.0, %v2056
  %v2058 = vpop.f32.mrb[0].mxu0
  %v2059 = vpop.f32.mrb[0].mxu0
  %v2060 = vadd.f32 0.0, %v2059
  %v2061 = vpop.f32.mrb[0].mxu0
  %2062 = vmatprep.mubr.bf16.mxu0 0
  %2063 = vmatmul.mubr.bf16.gmra.mrb[0].mxu0 %v1820
  %v2064 = vpop.f32.mrb[0].mxu0
  %v2065 = vadd.f32 0.0, %v2064
  %v2066 = vpop.f32.mrb[0].mxu0
  %v2067 = vpop.f32.mrb[0].mxu0
  %v2068 = vadd.f32 0.0, %v2067
  %v2069 = vpop.f32.mrb[0].mxu0
  %2070 = vmatprep.mubr.bf16.mxu0 0
  %2071 = vmatmul.mubr.bf16.gmra.mrb[0].mxu0 %v1823
  %v2072 = vpop.f32.mrb[0].mxu0
  %v2073 = vadd.f32 0.0, %v2072
  %v2074 = vpop.f32.mrb[0].mxu0
  %v2075 = vpop.f32.mrb[0].mxu0
  %v2076 = vadd.f32 0.0, %v2075
  %v2077 = vpop.f32.mrb[0].mxu0
  %2078 = vmatprep.mubr.bf16.mxu0 0
  %2079 = vmatmul.mubr.bf16.gmra.mrb[0].mxu0 %v1826
  %v2080 = vpop.f32.mrb[0].mxu0
  %v2081 = vadd.f32 0.0, %v2080
  %v2082 = vpop.f32.mrb[0].mxu0
  %v2083 = vpop.f32.mrb[0].mxu0
  %v2084 = vadd.f32 0.0, %v2083
  %v2085 = vpop.f32.mrb[0].mxu0
  %2086 = vmatprep.mubr.bf16.mxu0 0
  %2087 = vmatmul.mubr.bf16.gmra.mrb[0].mxu0 %v1829
  %v2088 = vpop.f32.mrb[0].mxu0
  %v2089 = vadd.f32 0.0, %v2088
  %v2090 = vpop.f32.mrb[0].mxu0
  %v2091 = vpop.f32.mrb[0].mxu0
  %v2092 = vadd.f32 0.0, %v2091
  %v2093 = vpop.f32.mrb[0].mxu0
  %2094 = vmatprep.mubr.bf16.mxu0 0
  %2095 = vmatmul.mubr.bf16.gmra.mrb[0].mxu0 %v1832
  %v2096 = vpop.f32.mrb[0].mxu0
  %v2097 = vadd.f32 0.0, %v2096
  %v2098 = vpop.f32.mrb[0].mxu0
  %v2099 = vpop.f32.mrb[0].mxu0
  %v2100 = vadd.f32 0.0, %v2099
  %v2101 = vpop.f32.mrb[0].mxu0
  %2102 = vmatprep.mubr.bf16.mxu0 0
  %2103 = vmatmul.mubr.bf16.gmra.mrb[0].mxu0 %v1835
  %v2104 = vpop.f32.mrb[0].mxu0
  %v2105 = vadd.f32 0.0, %v2104
  %v2106 = vpop.f32.mrb[0].mxu0
  %v2107 = vpop.f32.mrb[0].mxu0
  %v2108 = vadd.f32 0.0, %v2107
  %v2109 = vpop.f32.mrb[0].mxu0
  %2110 = vmatprep.mubr.bf16.mxu0 0
  %2111 = vmatmul.mubr.bf16.gmra.mrb[0].mxu0 %v1838
  %v2112 = vpop.f32.mrb[0].mxu0
  %v2113 = vadd.f32 0.0, %v2112
  %v2114 = vpop.f32.mrb[0].mxu0
  %v2115 = vpop.f32.mrb[0].mxu0
  %v2116 = vadd.f32 0.0, %v2115
  %v2117 = vpop.f32.mrb[0].mxu0
  %2118 = vmatprep.mubr.bf16.mxu0 0
  %2119 = vmatmul.mubr.bf16.gmra.mrb[0].mxu0 %v1841
  %v2120 = vpop.f32.mrb[0].mxu0
  %v2121 = vadd.f32 0.0, %v2120
  %v2122 = vpop.f32.mrb[0].mxu0
  %v2123 = vpop.f32.mrb[0].mxu0
  %v2124 = vadd.f32 0.0, %v2123
  %v2125 = vpop.f32.mrb[0].mxu0
  %2126 = vmatprep.mubr.bf16.mxu0 0
  %2127 = vmatmul.mubr.bf16.gmra.mrb[0].mxu0 %v1844
  %v2128 = vpop.f32.mrb[0].mxu0
  %v2129 = vadd.f32 0.0, %v2128
  %v2130 = vpop.f32.mrb[0].mxu0
  %v2131 = vpop.f32.mrb[0].mxu0
  %v2132 = vadd.f32 0.0, %v2131
  %v2133 = vpop.f32.mrb[0].mxu0
  %2134 = vdwg.mxu0
  %v2135 = vadd.f32 %v1558, %v1881
  %v2136 = vadd.f32 %v1559, %v1884
  %v2137 = vadd.f32 %v1560, %v1889
  %v2138 = vadd.f32 %v1561, %v1892
  %v2139 = vadd.f32 %v1562, %v1897
  %v2140 = vadd.f32 %v1563, %v1900
  %v2141 = vadd.f32 %v1564, %v1905
  %v2142 = vadd.f32 %v1565, %v1908
  %v2143 = vadd.f32 %v1566, %v1913
  %v2144 = vadd.f32 %v1567, %v1916
  %v2145 = vadd.f32 %v1568, %v1921
  %v2146 = vadd.f32 %v1569, %v1924
  %v2147 = vadd.f32 %v1570, %v1929
  %v2148 = vadd.f32 %v1571, %v1932
  %v2149 = vadd.f32 %v1572, %v1937
  %v2150 = vadd.f32 %v1573, %v1940
  %v2151 = vadd.f32 %v1574, %v1945
  %v2152 = vadd.f32 %v1575, %v1948
  %v2153 = vadd.f32 %v1576, %v1953
  %v2154 = vadd.f32 %v1577, %v1956
  %v2155 = vadd.f32 %v1578, %v1961
  %v2156 = vadd.f32 %v1579, %v1964
  %v2157 = vadd.f32 %v1580, %v1969
  %v2158 = vadd.f32 %v1581, %v1972
  %v2159 = vadd.f32 %v1582, %v1977
  %v2160 = vadd.f32 %v1583, %v1980
  %v2161 = vadd.f32 %v1584, %v1985
  %v2162 = vadd.f32 %v1585, %v1988
  %v2163 = vadd.f32 %v1586, %v1993
  %v2164 = vadd.f32 %v1587, %v1996
  %v2165 = vadd.f32 %v1588, %v2001
  %v2166 = vadd.f32 %v1589, %v2004
  %v2167 = vadd.f32 %v1590, %v2009
  %v2168 = vadd.f32 %v1591, %v2012
  %v2169 = vadd.f32 %v1592, %v2017
  %v2170 = vadd.f32 %v1593, %v2020
  %v2171 = vadd.f32 %v1594, %v2025
  %v2172 = vadd.f32 %v1595, %v2028
  %v2173 = vadd.f32 %v1596, %v2033
  %v2174 = vadd.f32 %v1597, %v2036
  %v2175 = vadd.f32 %v1598, %v2041
  %v2176 = vadd.f32 %v1599, %v2044
  %v2177 = vadd.f32 %v1600, %v2049
  %v2178 = vadd.f32 %v1601, %v2052
  %v2179 = vadd.f32 %v1602, %v2057
  %v2180 = vadd.f32 %v1603, %v2060
  %v2181 = vadd.f32 %v1604, %v2065
  %v2182 = vadd.f32 %v1605, %v2068
  %v2183 = vadd.f32 %v1606, %v2073
  %v2184 = vadd.f32 %v1607, %v2076
  %v2185 = vadd.f32 %v1608, %v2081
  %v2186 = vadd.f32 %v1609, %v2084
  %v2187 = vadd.f32 %v1610, %v2089
  %v2188 = vadd.f32 %v1611, %v2092
  %v2189 = vadd.f32 %v1612, %v2097
  %v2190 = vadd.f32 %v1613, %v2100
  %v2191 = vadd.f32 %v1614, %v2105
  %v2192 = vadd.f32 %v1615, %v2108
  %v2193 = vadd.f32 %v1616, %v2113
  %v2194 = vadd.f32 %v1617, %v2116
  %v2195 = vadd.f32 %v1618, %v2121
  %v2196 = vadd.f32 %v1619, %v2124
  %v2197 = vadd.f32 %v1620, %v2129
  %v2198 = vadd.f32 %v1621, %v2132
  %v2199 = vld [vmem:[%s0 + $0x18] sm:$0xff]
  %v2200 = vld [vmem:[%s0 + $0x20] sm:$0xff]
  %v2201 = vld [vmem:[%s0 + $0x28] sm:$0xff]
  %v2202 = vld [vmem:[%s0 + $0x30] sm:$0xff]
  %v2203 = vld [vmem:[%s0 + $0x38] sm:$0xff]
  %v2204 = vld [vmem:[%s0 + $0x40] sm:$0xff]
  %v2205 = vld [vmem:[%s0 + $0x48] sm:$0xff]
  %v2206 = vld [vmem:[%s0 + $0x50] sm:$0xff]
  %v2207 = vld [vmem:[%s0 + $0x58] sm:$0xff]
  %v2208 = vld [vmem:[%s0 + $0x60] sm:$0xff]
  %v2209 = vld [vmem:[%s0 + $0x68] sm:$0xff]
  %v2210 = vld [vmem:[%s0 + $0x70] sm:$0xff]
  %v2211 = vld [vmem:[%s0 + $0x78] sm:$0xff]
  %v2212 = vld [vmem:[%s0 + $0x80] sm:$0xff]
  %v2213 = vld [vmem:[%s0 + $0x88] sm:$0xff]
  %v2214 = vld [vmem:[%s0 + $0x90] sm:$0xff]
  %v2215 = vld [vmem:[%s0 + $0x98] sm:$0xff]
  %v2216 = vld [vmem:[%s0 + $0xa0] sm:$0xff]
  %v2217 = vld [vmem:[%s0 + $0xa8] sm:$0xff]
  %v2218 = vld [vmem:[%s0 + $0xb0] sm:$0xff]
  %v2219 = vld [vmem:[%s0 + $0xb8] sm:$0xff]
  %v2220 = vld [vmem:[%s0 + $0xc0] sm:$0xff]
  %v2221 = vld [vmem:[%s0 + $0xc8] sm:$0xff]
  %v2222 = vld [vmem:[%s0 + $0xd0] sm:$0xff]
  %v2223 = vld [vmem:[%s0 + $0xd8] sm:$0xff]
  %v2224 = vld [vmem:[%s0 + $0xe0] sm:$0xff]
  %v2225 = vld [vmem:[%s0 + $0xe8] sm:$0xff]
  %v2226 = vld [vmem:[%s0 + $0xf0] sm:$0xff]
  %v2227 = vld [vmem:[%s0 + $0xf8] sm:$0xff]
  %v2228 = vld [vmem:[%s0 + $0x100] sm:$0xff]
  %v2229 = vld [vmem:[%s0 + $0x108] sm:$0xff]
  %v2230 = vld [vmem:[%s0 + $0x110] sm:$0xff]
  %v2231 = vld [vmem:[%s0 + $0x118] sm:$0xff]
  %v2232 = vld [vmem:[%s0 + $0x120] sm:$0xff]
  %v2233 = vld [vmem:[%s0 + $0x128] sm:$0xff]
  %v2234 = vld [vmem:[%s0 + $0x130] sm:$0xff]
  %v2235 = vld [vmem:[%s0 + $0x138] sm:$0xff]
  %v2236 = vld [vmem:[%s0 + $0x140] sm:$0xff]
  %v2237 = vld [vmem:[%s0 + $0x148] sm:$0xff]
  %v2238 = vld [vmem:[%s0 + $0x150] sm:$0xff]
  %v2239 = vld [vmem:[%s0 + $0x158] sm:$0xff]
  %v2240 = vld [vmem:[%s0 + $0x160] sm:$0xff]
  %v2241 = vld [vmem:[%s0 + $0x168] sm:$0xff]
  %v2242 = vld [vmem:[%s0 + $0x170] sm:$0xff]
  %v2243 = vld [vmem:[%s0 + $0x178] sm:$0xff]
  %v2244 = vld [vmem:[%s0 + $0x180] sm:$0xff]
  %v2245 = vld [vmem:[%s0 + $0x188] sm:$0xff]
  %v2246 = vld [vmem:[%s0 + $0x190] sm:$0xff]
  %v2247 = vld [vmem:[%s0 + $0x198] sm:$0xff]
  %v2248 = vld [vmem:[%s0 + $0x1a0] sm:$0xff]
  %v2249 = vld [vmem:[%s0 + $0x1a8] sm:$0xff]
  %v2250 = vld [vmem:[%s0 + $0x1b0] sm:$0xff]
  %v2251 = vld [vmem:[%s0 + $0x1b8] sm:$0xff]
  %v2252 = vld [vmem:[%s0 + $0x1c0] sm:$0xff]
  %v2253 = vld [vmem:[%s0 + $0x1c8] sm:$0xff]
  %v2254 = vld [vmem:[%s0 + $0x1d0] sm:$0xff]
  %v2255 = vld [vmem:[%s0 + $0x1d8] sm:$0xff]
  %v2256 = vld [vmem:[%s0 + $0x1e0] sm:$0xff]
  %v2257 = vld [vmem:[%s0 + $0x1e8] sm:$0xff]
  %v2258 = vld [vmem:[%s0 + $0x1f0] sm:$0xff]
  %v2259 = vld [vmem:[%s0 + $0x1f8] sm:$0xff]
  %v2260 = vld [vmem:[%s0 + $0x200] sm:$0xff]
  %v2261 = vld [vmem:[%s0 + $0x208] sm:$0xff]
  %v2262 = vld [vmem:[%s0 + $0x210] sm:$0xff]
  %v2263 = vpack.c.bf16 %v2200, %v2199
  %v2264 = vpack.c.bf16 %v2202, %v2201
  %v2265 = vpack.c.bf16 %v2204, %v2203
  %v2266 = vpack.c.bf16 %v2206, %v2205
  %v2267 = vpack.c.bf16 %v2208, %v2207
  %v2268 = vpack.c.bf16 %v2210, %v2209
  %v2269 = vpack.c.bf16 %v2212, %v2211
  %v2270 = vpack.c.bf16 %v2214, %v2213
  %v2271 = vpack.c.bf16 %v2216, %v2215
  %v2272 = vpack.c.bf16 %v2218, %v2217
  %v2273 = vpack.c.bf16 %v2220, %v2219
  %v2274 = vpack.c.bf16 %v2222, %v2221
  %v2275 = vpack.c.bf16 %v2224, %v2223
  %v2276 = vpack.c.bf16 %v2226, %v2225
  %v2277 = vpack.c.bf16 %v2228, %v2227
  %v2278 = vpack.c.bf16 %v2230, %v2229
  %v2279 = vpack.c.bf16 %v2232, %v2231
  %v2280 = vpack.c.bf16 %v2234, %v2233
  %v2281 = vpack.c.bf16 %v2236, %v2235
  %v2282 = vpack.c.bf16 %v2238, %v2237
  %v2283 = vpack.c.bf16 %v2240, %v2239
  %v2284 = vpack.c.bf16 %v2242, %v2241
  %v2285 = vpack.c.bf16 %v2244, %v2243
  %v2286 = vpack.c.bf16 %v2246, %v2245
  %v2287 = vpack.c.bf16 %v2248, %v2247
  %v2288 = vpack.c.bf16 %v2250, %v2249
  %v2289 = vpack.c.bf16 %v2252, %v2251
  %v2290 = vpack.c.bf16 %v2254, %v2253
  %v2291 = vpack.c.bf16 %v2256, %v2255
  %v2292 = vpack.c.bf16 %v2258, %v2257
  %v2293 = vpack.c.bf16 %v2260, %v2259
  %v2294 = vpack.c.bf16 %v2262, %v2261
  %v2295 = vld [vmem:[%s1 + $0x80] sm:$0xf]
  %v2296 = vld [vmem:[%s1 + $0x84] sm:$0xf]
  %v2297 = vld [vmem:[%s1 + $0x88] sm:$0xf]
  %v2298 = vld [vmem:[%s1 + $0x8c] sm:$0xf]
  %v2299 = vld [vmem:[%s1 + $0x90] sm:$0xf]
  %v2300 = vld [vmem:[%s1 + $0x94] sm:$0xf]
  %v2301 = vld [vmem:[%s1 + $0x98] sm:$0xf]
  %v2302 = vld [vmem:[%s1 + $0x9c] sm:$0xf]
  %v2311 = vunpack.c.l.b16 %v2295
  %v2312 = vunpack.c.l.b16 %v2296
  %v2313 = vunpack.c.l.b16 %v2297
  %v2314 = vunpack.c.l.b16 %v2298
  %v2315 = vunpack.c.l.b16 %v2299
  %v2316 = vunpack.c.l.b16 %v2300
  %v2317 = vunpack.c.l.b16 %v2301
  %v2318 = vunpack.c.l.b16 %v2302
  %v2319 = vpack.c.b16 %v2312, %v2311
  %v2320 = vpack.c.b16 %v2314, %v2313
  %v2321 = vpack.c.b16 %v2316, %v2315
  %v2322 = vpack.c.b16 %v2318, %v2317
  %v2328 = vsel %vm250, %v2263, 0
  %v2331 = vsel %vm250, %v2264, 0
  %v2334 = vsel %vm250, %v2265, 0
  %v2337 = vsel %vm250, %v2266, 0
  %v2340 = vsel %vm250, %v2267, 0
  %v2343 = vsel %vm250, %v2268, 0
  %v2346 = vsel %vm250, %v2269, 0
  %v2349 = vsel %vm250, %v2270, 0
  %v2352 = vsel %vm250, %v2271, 0
  %v2355 = vsel %vm250, %v2272, 0
  %v2358 = vsel %vm250, %v2273, 0
  %v2361 = vsel %vm250, %v2274, 0
  %v2364 = vsel %vm250, %v2275, 0
  %v2367 = vsel %vm250, %v2276, 0
  %v2370 = vsel %vm250, %v2277, 0
  %v2373 = vsel %vm250, %v2278, 0
  %v2376 = vsel %vm250, %v2279, 0
  %v2379 = vsel %vm250, %v2280, 0
  %v2382 = vsel %vm250, %v2281, 0
  %v2385 = vsel %vm250, %v2282, 0
  %v2388 = vsel %vm250, %v2283, 0
  %v2391 = vsel %vm250, %v2284, 0
  %v2394 = vsel %vm250, %v2285, 0
  %v2397 = vsel %vm250, %v2286, 0
  %v2400 = vsel %vm250, %v2287, 0
  %v2403 = vsel %vm250, %v2288, 0
  %v2406 = vsel %vm250, %v2289, 0
  %v2409 = vsel %vm250, %v2290, 0
  %v2412 = vsel %vm250, %v2291, 0
  %v2415 = vsel %vm250, %v2292, 0
  %v2418 = vsel %vm250, %v2293, 0
  %v2421 = vsel %vm250, %v2294, 0
  %2423 = vmatprep.subr.bf16.mxu0 0
  %2424 = vmatpush1.bf16.msra.mxu0 %v2319
  %2425 = vmatprep.subr.bf16.mxu0 0
  %2426 = vmatpush1.bf16.msra.mxu0 %v2320
  %2427 = vmatprep.subr.bf16.mxu0 0
  %2428 = vmatpush1.bf16.msra.mxu0 %v2321
  %2429 = vmatprep.subr.bf16.mxu0 0
  %2430 = vmatpush1.bf16.msra.mxu0 %v2322
  %2431 = vmatprep.subr.bf16.mxu0 0
  %2432 = vmatpush1.bf16.msra.mxu0 0
  %2433 = vmatprep.subr.bf16.mxu0 0
  %2434 = vmatpush1.bf16.msra.mxu0 0
  %2435 = vmatprep.subr.bf16.mxu0 0
  %2436 = vmatpush1.bf16.msra.mxu0 0
  %2437 = vmatprep.subr.bf16.mxu0 0
  %2438 = vmatpush1.bf16.msra.mxu0 0
  %2439 = vmatprep.subr.bf16.mxu0 0
  %2440 = vmatpush1.bf16.msra.mxu0 0
  %2441 = vmatprep.subr.bf16.mxu0 0
  %2442 = vmatpush1.bf16.msra.mxu0 0
  %2443 = vmatprep.subr.bf16.mxu0 0
  %2444 = vmatpush1.bf16.msra.mxu0 0
  %2445 = vmatprep.subr.bf16.mxu0 0
  %2446 = vmatpush1.bf16.msra.mxu0 0
  %2447 = vmatprep.subr.bf16.mxu0 0
  %2448 = vmatpush1.bf16.msra.mxu0 0
  %2449 = vmatprep.subr.bf16.mxu0 0
  %2450 = vmatpush1.bf16.msra.mxu0 0
  %2451 = vmatprep.subr.bf16.mxu0 0
  %2452 = vmatpush1.bf16.msra.mxu0 0
  %2453 = vmatprep.subr.bf16.mxu0 0
  %2454 = vmatpush1.bf16.msra.mxu0 0
  %2455 = vmatprep.mubr.bf16.mxu0 0
  %2456 = vmatmul.mubr.bf16.gmra.mrb[0].mxu0 %v2328
  %v2457 = vpop.f32.mrb[0].mxu0
  %v2458 = vadd.f32 0.0, %v2457
  %v2459 = vpop.f32.mrb[0].mxu0
  %v2460 = vpop.f32.mrb[0].mxu0
  %v2461 = vadd.f32 0.0, %v2460
  %v2462 = vpop.f32.mrb[0].mxu0
  %2463 = vmatprep.mubr.bf16.mxu0 0
  %2464 = vmatmul.mubr.bf16.gmra.mrb[0].mxu0 %v2331
  %v2465 = vpop.f32.mrb[0].mxu0
  %v2466 = vadd.f32 0.0, %v2465
  %v2467 = vpop.f32.mrb[0].mxu0
  %v2468 = vpop.f32.mrb[0].mxu0
  %v2469 = vadd.f32 0.0, %v2468
  %v2470 = vpop.f32.mrb[0].mxu0
  %2471 = vmatprep.mubr.bf16.mxu0 0
  %2472 = vmatmul.mubr.bf16.gmra.mrb[0].mxu0 %v2334
  %v2473 = vpop.f32.mrb[0].mxu0
  %v2474 = vadd.f32 0.0, %v2473
  %v2475 = vpop.f32.mrb[0].mxu0
  %v2476 = vpop.f32.mrb[0].mxu0
  %v2477 = vadd.f32 0.0, %v2476
  %v2478 = vpop.f32.mrb[0].mxu0
  %2479 = vmatprep.mubr.bf16.mxu0 0
  %2480 = vmatmul.mubr.bf16.gmra.mrb[0].mxu0 %v2337
  %v2481 = vpop.f32.mrb[0].mxu0
  %v2482 = vadd.f32 0.0, %v2481
  %v2483 = vpop.f32.mrb[0].mxu0
  %v2484 = vpop.f32.mrb[0].mxu0
  %v2485 = vadd.f32 0.0, %v2484
  %v2486 = vpop.f32.mrb[0].mxu0
  %2487 = vmatprep.mubr.bf16.mxu0 0
  %2488 = vmatmul.mubr.bf16.gmra.mrb[0].mxu0 %v2340
  %v2489 = vpop.f32.mrb[0].mxu0
  %v2490 = vadd.f32 0.0, %v2489
  %v2491 = vpop.f32.mrb[0].mxu0
  %v2492 = vpop.f32.mrb[0].mxu0
  %v2493 = vadd.f32 0.0, %v2492
  %v2494 = vpop.f32.mrb[0].mxu0
  %2495 = vmatprep.mubr.bf16.mxu0 0
  %2496 = vmatmul.mubr.bf16.gmra.mrb[0].mxu0 %v2343
  %v2497 = vpop.f32.mrb[0].mxu0
  %v2498 = vadd.f32 0.0, %v2497
  %v2499 = vpop.f32.mrb[0].mxu0
  %v2500 = vpop.f32.mrb[0].mxu0
  %v2501 = vadd.f32 0.0, %v2500
  %v2502 = vpop.f32.mrb[0].mxu0
  %2503 = vmatprep.mubr.bf16.mxu0 0
  %2504 = vmatmul.mubr.bf16.gmra.mrb[0].mxu0 %v2346
  %v2505 = vpop.f32.mrb[0].mxu0
  %v2506 = vadd.f32 0.0, %v2505
  %v2507 = vpop.f32.mrb[0].mxu0
  %v2508 = vpop.f32.mrb[0].mxu0
  %v2509 = vadd.f32 0.0, %v2508
  %v2510 = vpop.f32.mrb[0].mxu0
  %2511 = vmatprep.mubr.bf16.mxu0 0
  %2512 = vmatmul.mubr.bf16.gmra.mrb[0].mxu0 %v2349
  %v2513 = vpop.f32.mrb[0].mxu0
  %v2514 = vadd.f32 0.0, %v2513
  %v2515 = vpop.f32.mrb[0].mxu0
  %v2516 = vpop.f32.mrb[0].mxu0
  %v2517 = vadd.f32 0.0, %v2516
  %v2518 = vpop.f32.mrb[0].mxu0
  %2519 = vmatprep.mubr.bf16.mxu0 0
  %2520 = vmatmul.mubr.bf16.gmra.mrb[0].mxu0 %v2352
  %v2521 = vpop.f32.mrb[0].mxu0
  %v2522 = vadd.f32 0.0, %v2521
  %v2523 = vpop.f32.mrb[0].mxu0
  %v2524 = vpop.f32.mrb[0].mxu0
  %v2525 = vadd.f32 0.0, %v2524
  %v2526 = vpop.f32.mrb[0].mxu0
  %2527 = vmatprep.mubr.bf16.mxu0 0
  %2528 = vmatmul.mubr.bf16.gmra.mrb[0].mxu0 %v2355
  %v2529 = vpop.f32.mrb[0].mxu0
  %v2530 = vadd.f32 0.0, %v2529
  %v2531 = vpop.f32.mrb[0].mxu0
  %v2532 = vpop.f32.mrb[0].mxu0
  %v2533 = vadd.f32 0.0, %v2532
  %v2534 = vpop.f32.mrb[0].mxu0
  %2535 = vmatprep.mubr.bf16.mxu0 0
  %2536 = vmatmul.mubr.bf16.gmra.mrb[0].mxu0 %v2358
  %v2537 = vpop.f32.mrb[0].mxu0
  %v2538 = vadd.f32 0.0, %v2537
  %v2539 = vpop.f32.mrb[0].mxu0
  %v2540 = vpop.f32.mrb[0].mxu0
  %v2541 = vadd.f32 0.0, %v2540
  %v2542 = vpop.f32.mrb[0].mxu0
  %2543 = vmatprep.mubr.bf16.mxu0 0
  %2544 = vmatmul.mubr.bf16.gmra.mrb[0].mxu0 %v2361
  %v2545 = vpop.f32.mrb[0].mxu0
  %v2546 = vadd.f32 0.0, %v2545
  %v2547 = vpop.f32.mrb[0].mxu0
  %v2548 = vpop.f32.mrb[0].mxu0
  %v2549 = vadd.f32 0.0, %v2548
  %v2550 = vpop.f32.mrb[0].mxu0
  %2551 = vmatprep.mubr.bf16.mxu0 0
  %2552 = vmatmul.mubr.bf16.gmra.mrb[0].mxu0 %v2364
  %v2553 = vpop.f32.mrb[0].mxu0
  %v2554 = vadd.f32 0.0, %v2553
  %v2555 = vpop.f32.mrb[0].mxu0
  %v2556 = vpop.f32.mrb[0].mxu0
  %v2557 = vadd.f32 0.0, %v2556
  %v2558 = vpop.f32.mrb[0].mxu0
  %2559 = vmatprep.mubr.bf16.mxu0 0
  %2560 = vmatmul.mubr.bf16.gmra.mrb[0].mxu0 %v2367
  %v2561 = vpop.f32.mrb[0].mxu0
  %v2562 = vadd.f32 0.0, %v2561
  %v2563 = vpop.f32.mrb[0].mxu0
  %v2564 = vpop.f32.mrb[0].mxu0
  %v2565 = vadd.f32 0.0, %v2564
  %v2566 = vpop.f32.mrb[0].mxu0
  %2567 = vmatprep.mubr.bf16.mxu0 0
  %2568 = vmatmul.mubr.bf16.gmra.mrb[0].mxu0 %v2370
  %v2569 = vpop.f32.mrb[0].mxu0
  %v2570 = vadd.f32 0.0, %v2569
  %v2571 = vpop.f32.mrb[0].mxu0
  %v2572 = vpop.f32.mrb[0].mxu0
  %v2573 = vadd.f32 0.0, %v2572
  %v2574 = vpop.f32.mrb[0].mxu0
  %2575 = vmatprep.mubr.bf16.mxu0 0
  %2576 = vmatmul.mubr.bf16.gmra.mrb[0].mxu0 %v2373
  %v2577 = vpop.f32.mrb[0].mxu0
  %v2578 = vadd.f32 0.0, %v2577
  %v2579 = vpop.f32.mrb[0].mxu0
  %v2580 = vpop.f32.mrb[0].mxu0
  %v2581 = vadd.f32 0.0, %v2580
  %v2582 = vpop.f32.mrb[0].mxu0
  %2583 = vmatprep.mubr.bf16.mxu0 0
  %2584 = vmatmul.mubr.bf16.gmra.mrb[0].mxu0 %v2376
  %v2585 = vpop.f32.mrb[0].mxu0
  %v2586 = vadd.f32 0.0, %v2585
  %v2587 = vpop.f32.mrb[0].mxu0
  %v2588 = vpop.f32.mrb[0].mxu0
  %v2589 = vadd.f32 0.0, %v2588
  %v2590 = vpop.f32.mrb[0].mxu0
  %2591 = vmatprep.mubr.bf16.mxu0 0
  %2592 = vmatmul.mubr.bf16.gmra.mrb[0].mxu0 %v2379
  %v2593 = vpop.f32.mrb[0].mxu0
  %v2594 = vadd.f32 0.0, %v2593
  %v2595 = vpop.f32.mrb[0].mxu0
  %v2596 = vpop.f32.mrb[0].mxu0
  %v2597 = vadd.f32 0.0, %v2596
  %v2598 = vpop.f32.mrb[0].mxu0
  %2599 = vmatprep.mubr.bf16.mxu0 0
  %2600 = vmatmul.mubr.bf16.gmra.mrb[0].mxu0 %v2382
  %v2601 = vpop.f32.mrb[0].mxu0
  %v2602 = vadd.f32 0.0, %v2601
  %v2603 = vpop.f32.mrb[0].mxu0
  %v2604 = vpop.f32.mrb[0].mxu0
  %v2605 = vadd.f32 0.0, %v2604
  %v2606 = vpop.f32.mrb[0].mxu0
  %2607 = vmatprep.mubr.bf16.mxu0 0
  %2608 = vmatmul.mubr.bf16.gmra.mrb[0].mxu0 %v2385
  %v2609 = vpop.f32.mrb[0].mxu0
  %v2610 = vadd.f32 0.0, %v2609
  %v2611 = vpop.f32.mrb[0].mxu0
  %v2612 = vpop.f32.mrb[0].mxu0
  %v2613 = vadd.f32 0.0, %v2612
  %v2614 = vpop.f32.mrb[0].mxu0
  %2615 = vmatprep.mubr.bf16.mxu0 0
  %2616 = vmatmul.mubr.bf16.gmra.mrb[0].mxu0 %v2388
  %v2617 = vpop.f32.mrb[0].mxu0
  %v2618 = vadd.f32 0.0, %v2617
  %v2619 = vpop.f32.mrb[0].mxu0
  %v2620 = vpop.f32.mrb[0].mxu0
  %v2621 = vadd.f32 0.0, %v2620
  %v2622 = vpop.f32.mrb[0].mxu0
  %2623 = vmatprep.mubr.bf16.mxu0 0
  %2624 = vmatmul.mubr.bf16.gmra.mrb[0].mxu0 %v2391
  %v2625 = vpop.f32.mrb[0].mxu0
  %v2626 = vadd.f32 0.0, %v2625
  %v2627 = vpop.f32.mrb[0].mxu0
  %v2628 = vpop.f32.mrb[0].mxu0
  %v2629 = vadd.f32 0.0, %v2628
  %v2630 = vpop.f32.mrb[0].mxu0
  %2631 = vmatprep.mubr.bf16.mxu0 0
  %2632 = vmatmul.mubr.bf16.gmra.mrb[0].mxu0 %v2394
  %v2633 = vpop.f32.mrb[0].mxu0
  %v2634 = vadd.f32 0.0, %v2633
  %v2635 = vpop.f32.mrb[0].mxu0
  %v2636 = vpop.f32.mrb[0].mxu0
  %v2637 = vadd.f32 0.0, %v2636
  %v2638 = vpop.f32.mrb[0].mxu0
  %2639 = vmatprep.mubr.bf16.mxu0 0
  %2640 = vmatmul.mubr.bf16.gmra.mrb[0].mxu0 %v2397
  %v2641 = vpop.f32.mrb[0].mxu0
  %v2642 = vadd.f32 0.0, %v2641
  %v2643 = vpop.f32.mrb[0].mxu0
  %v2644 = vpop.f32.mrb[0].mxu0
  %v2645 = vadd.f32 0.0, %v2644
  %v2646 = vpop.f32.mrb[0].mxu0
  %2647 = vmatprep.mubr.bf16.mxu0 0
  %2648 = vmatmul.mubr.bf16.gmra.mrb[0].mxu0 %v2400
  %v2649 = vpop.f32.mrb[0].mxu0
  %v2650 = vadd.f32 0.0, %v2649
  %v2651 = vpop.f32.mrb[0].mxu0
  %v2652 = vpop.f32.mrb[0].mxu0
  %v2653 = vadd.f32 0.0, %v2652
  %v2654 = vpop.f32.mrb[0].mxu0
  %2655 = vmatprep.mubr.bf16.mxu0 0
  %2656 = vmatmul.mubr.bf16.gmra.mrb[0].mxu0 %v2403
  %v2657 = vpop.f32.mrb[0].mxu0
  %v2658 = vadd.f32 0.0, %v2657
  %v2659 = vpop.f32.mrb[0].mxu0
  %v2660 = vpop.f32.mrb[0].mxu0
  %v2661 = vadd.f32 0.0, %v2660
  %v2662 = vpop.f32.mrb[0].mxu0
  %2663 = vmatprep.mubr.bf16.mxu0 0
  %2664 = vmatmul.mubr.bf16.gmra.mrb[0].mxu0 %v2406
  %v2665 = vpop.f32.mrb[0].mxu0
  %v2666 = vadd.f32 0.0, %v2665
  %v2667 = vpop.f32.mrb[0].mxu0
  %v2668 = vpop.f32.mrb[0].mxu0
  %v2669 = vadd.f32 0.0, %v2668
  %v2670 = vpop.f32.mrb[0].mxu0
  %2671 = vmatprep.mubr.bf16.mxu0 0
  %2672 = vmatmul.mubr.bf16.gmra.mrb[0].mxu0 %v2409
  %v2673 = vpop.f32.mrb[0].mxu0
  %v2674 = vadd.f32 0.0, %v2673
  %v2675 = vpop.f32.mrb[0].mxu0
  %v2676 = vpop.f32.mrb[0].mxu0
  %v2677 = vadd.f32 0.0, %v2676
  %v2678 = vpop.f32.mrb[0].mxu0
  %2679 = vmatprep.mubr.bf16.mxu0 0
  %2680 = vmatmul.mubr.bf16.gmra.mrb[0].mxu0 %v2412
  %v2681 = vpop.f32.mrb[0].mxu0
  %v2682 = vadd.f32 0.0, %v2681
  %v2683 = vpop.f32.mrb[0].mxu0
  %v2684 = vpop.f32.mrb[0].mxu0
  %v2685 = vadd.f32 0.0, %v2684
  %v2686 = vpop.f32.mrb[0].mxu0
  %2687 = vmatprep.mubr.bf16.mxu0 0
  %2688 = vmatmul.mubr.bf16.gmra.mrb[0].mxu0 %v2415
  %v2689 = vpop.f32.mrb[0].mxu0
  %v2690 = vadd.f32 0.0, %v2689
  %v2691 = vpop.f32.mrb[0].mxu0
  %v2692 = vpop.f32.mrb[0].mxu0
  %v2693 = vadd.f32 0.0, %v2692
  %v2694 = vpop.f32.mrb[0].mxu0
  %2695 = vmatprep.mubr.bf16.mxu0 0
  %2696 = vmatmul.mubr.bf16.gmra.mrb[0].mxu0 %v2418
  %v2697 = vpop.f32.mrb[0].mxu0
  %v2698 = vadd.f32 0.0, %v2697
  %v2699 = vpop.f32.mrb[0].mxu0
  %v2700 = vpop.f32.mrb[0].mxu0
  %v2701 = vadd.f32 0.0, %v2700
  %v2702 = vpop.f32.mrb[0].mxu0
  %2703 = vmatprep.mubr.bf16.mxu0 0
  %2704 = vmatmul.mubr.bf16.gmra.mrb[0].mxu0 %v2421
  %v2705 = vpop.f32.mrb[0].mxu0
  %v2706 = vadd.f32 0.0, %v2705
  %v2707 = vpop.f32.mrb[0].mxu0
  %v2708 = vpop.f32.mrb[0].mxu0
  %v2709 = vadd.f32 0.0, %v2708
  %v2710 = vpop.f32.mrb[0].mxu0
  %2711 = vdwg.mxu0
  %v2712 = vadd.f32 %v2135, %v2458
  %v2713 = vadd.f32 %v2136, %v2461
  %v2714 = vadd.f32 %v2137, %v2466
  %v2715 = vadd.f32 %v2138, %v2469
  %v2716 = vadd.f32 %v2139, %v2474
  %v2717 = vadd.f32 %v2140, %v2477
  %v2718 = vadd.f32 %v2141, %v2482
  %v2719 = vadd.f32 %v2142, %v2485
  %v2720 = vadd.f32 %v2143, %v2490
  %v2721 = vadd.f32 %v2144, %v2493
  %v2722 = vadd.f32 %v2145, %v2498
  %v2723 = vadd.f32 %v2146, %v2501
  %v2724 = vadd.f32 %v2147, %v2506
  %v2725 = vadd.f32 %v2148, %v2509
  %v2726 = vadd.f32 %v2149, %v2514
  %v2727 = vadd.f32 %v2150, %v2517
  %v2728 = vadd.f32 %v2151, %v2522
  %v2729 = vadd.f32 %v2152, %v2525
  %v2730 = vadd.f32 %v2153, %v2530
  %v2731 = vadd.f32 %v2154, %v2533
  %v2732 = vadd.f32 %v2155, %v2538
  %v2733 = vadd.f32 %v2156, %v2541
  %v2734 = vadd.f32 %v2157, %v2546
  %v2735 = vadd.f32 %v2158, %v2549
  %v2736 = vadd.f32 %v2159, %v2554
  %v2737 = vadd.f32 %v2160, %v2557
  %v2738 = vadd.f32 %v2161, %v2562
  %v2739 = vadd.f32 %v2162, %v2565
  %v2740 = vadd.f32 %v2163, %v2570
  %v2741 = vadd.f32 %v2164, %v2573
  %v2742 = vadd.f32 %v2165, %v2578
  %v2743 = vadd.f32 %v2166, %v2581
  %v2744 = vadd.f32 %v2167, %v2586
  %v2745 = vadd.f32 %v2168, %v2589
  %v2746 = vadd.f32 %v2169, %v2594
  %v2747 = vadd.f32 %v2170, %v2597
  %v2748 = vadd.f32 %v2171, %v2602
  %v2749 = vadd.f32 %v2172, %v2605
  %v2750 = vadd.f32 %v2173, %v2610
  %v2751 = vadd.f32 %v2174, %v2613
  %v2752 = vadd.f32 %v2175, %v2618
  %v2753 = vadd.f32 %v2176, %v2621
  %v2754 = vadd.f32 %v2177, %v2626
  %v2755 = vadd.f32 %v2178, %v2629
  %v2756 = vadd.f32 %v2179, %v2634
  %v2757 = vadd.f32 %v2180, %v2637
  %v2758 = vadd.f32 %v2181, %v2642
  %v2759 = vadd.f32 %v2182, %v2645
  %v2760 = vadd.f32 %v2183, %v2650
  %v2761 = vadd.f32 %v2184, %v2653
  %v2762 = vadd.f32 %v2185, %v2658
  %v2763 = vadd.f32 %v2186, %v2661
  %v2764 = vadd.f32 %v2187, %v2666
  %v2765 = vadd.f32 %v2188, %v2669
  %v2766 = vadd.f32 %v2189, %v2674
  %v2767 = vadd.f32 %v2190, %v2677
  %v2768 = vadd.f32 %v2191, %v2682
  %v2769 = vadd.f32 %v2192, %v2685
  %v2770 = vadd.f32 %v2193, %v2690
  %v2771 = vadd.f32 %v2194, %v2693
  %v2772 = vadd.f32 %v2195, %v2698
  %v2773 = vadd.f32 %v2196, %v2701
  %v2774 = vadd.f32 %v2197, %v2706
  %v2775 = vadd.f32 %v2198, %v2709
  %v2776 = vld [vmem:[%s0 + $0x19] sm:$0xff]
  %v2777 = vld [vmem:[%s0 + $0x21] sm:$0xff]
  %v2778 = vld [vmem:[%s0 + $0x29] sm:$0xff]
  %v2779 = vld [vmem:[%s0 + $0x31] sm:$0xff]
  %v2780 = vld [vmem:[%s0 + $0x39] sm:$0xff]
  %v2781 = vld [vmem:[%s0 + $0x41] sm:$0xff]
  %v2782 = vld [vmem:[%s0 + $0x49] sm:$0xff]
  %v2783 = vld [vmem:[%s0 + $0x51] sm:$0xff]
  %v2784 = vld [vmem:[%s0 + $0x59] sm:$0xff]
  %v2785 = vld [vmem:[%s0 + $0x61] sm:$0xff]
  %v2786 = vld [vmem:[%s0 + $0x69] sm:$0xff]
  %v2787 = vld [vmem:[%s0 + $0x71] sm:$0xff]
  %v2788 = vld [vmem:[%s0 + $0x79] sm:$0xff]
  %v2789 = vld [vmem:[%s0 + $0x81] sm:$0xff]
  %v2790 = vld [vmem:[%s0 + $0x89] sm:$0xff]
  %v2791 = vld [vmem:[%s0 + $0x91] sm:$0xff]
  %v2792 = vld [vmem:[%s0 + $0x99] sm:$0xff]
  %v2793 = vld [vmem:[%s0 + $0xa1] sm:$0xff]
  %v2794 = vld [vmem:[%s0 + $0xa9] sm:$0xff]
  %v2795 = vld [vmem:[%s0 + $0xb1] sm:$0xff]
  %v2796 = vld [vmem:[%s0 + $0xb9] sm:$0xff]
  %v2797 = vld [vmem:[%s0 + $0xc1] sm:$0xff]
  %v2798 = vld [vmem:[%s0 + $0xc9] sm:$0xff]
  %v2799 = vld [vmem:[%s0 + $0xd1] sm:$0xff]
  %v2800 = vld [vmem:[%s0 + $0xd9] sm:$0xff]
  %v2801 = vld [vmem:[%s0 + $0xe1] sm:$0xff]
  %v2802 = vld [vmem:[%s0 + $0xe9] sm:$0xff]
  %v2803 = vld [vmem:[%s0 + $0xf1] sm:$0xff]
  %v2804 = vld [vmem:[%s0 + $0xf9] sm:$0xff]
  %v2805 = vld [vmem:[%s0 + $0x101] sm:$0xff]
  %v2806 = vld [vmem:[%s0 + $0x109] sm:$0xff]
  %v2807 = vld [vmem:[%s0 + $0x111] sm:$0xff]
  %v2808 = vld [vmem:[%s0 + $0x119] sm:$0xff]
  %v2809 = vld [vmem:[%s0 + $0x121] sm:$0xff]
  %v2810 = vld [vmem:[%s0 + $0x129] sm:$0xff]
  %v2811 = vld [vmem:[%s0 + $0x131] sm:$0xff]
  %v2812 = vld [vmem:[%s0 + $0x139] sm:$0xff]
  %v2813 = vld [vmem:[%s0 + $0x141] sm:$0xff]
  %v2814 = vld [vmem:[%s0 + $0x149] sm:$0xff]
  %v2815 = vld [vmem:[%s0 + $0x151] sm:$0xff]
  %v2816 = vld [vmem:[%s0 + $0x159] sm:$0xff]
  %v2817 = vld [vmem:[%s0 + $0x161] sm:$0xff]
  %v2818 = vld [vmem:[%s0 + $0x169] sm:$0xff]
  %v2819 = vld [vmem:[%s0 + $0x171] sm:$0xff]
  %v2820 = vld [vmem:[%s0 + $0x179] sm:$0xff]
  %v2821 = vld [vmem:[%s0 + $0x181] sm:$0xff]
  %v2822 = vld [vmem:[%s0 + $0x189] sm:$0xff]
  %v2823 = vld [vmem:[%s0 + $0x191] sm:$0xff]
  %v2824 = vld [vmem:[%s0 + $0x199] sm:$0xff]
  %v2825 = vld [vmem:[%s0 + $0x1a1] sm:$0xff]
  %v2826 = vld [vmem:[%s0 + $0x1a9] sm:$0xff]
  %v2827 = vld [vmem:[%s0 + $0x1b1] sm:$0xff]
  %v2828 = vld [vmem:[%s0 + $0x1b9] sm:$0xff]
  %v2829 = vld [vmem:[%s0 + $0x1c1] sm:$0xff]
  %v2830 = vld [vmem:[%s0 + $0x1c9] sm:$0xff]
  %v2831 = vld [vmem:[%s0 + $0x1d1] sm:$0xff]
  %v2832 = vld [vmem:[%s0 + $0x1d9] sm:$0xff]
  %v2833 = vld [vmem:[%s0 + $0x1e1] sm:$0xff]
  %v2834 = vld [vmem:[%s0 + $0x1e9] sm:$0xff]
  %v2835 = vld [vmem:[%s0 + $0x1f1] sm:$0xff]
  %v2836 = vld [vmem:[%s0 + $0x1f9] sm:$0xff]
  %v2837 = vld [vmem:[%s0 + $0x201] sm:$0xff]
  %v2838 = vld [vmem:[%s0 + $0x209] sm:$0xff]
  %v2839 = vld [vmem:[%s0 + $0x211] sm:$0xff]
  %v2840 = vpack.c.bf16 %v2777, %v2776
  %v2841 = vpack.c.bf16 %v2779, %v2778
  %v2842 = vpack.c.bf16 %v2781, %v2780
  %v2843 = vpack.c.bf16 %v2783, %v2782
  %v2844 = vpack.c.bf16 %v2785, %v2784
  %v2845 = vpack.c.bf16 %v2787, %v2786
  %v2846 = vpack.c.bf16 %v2789, %v2788
  %v2847 = vpack.c.bf16 %v2791, %v2790
  %v2848 = vpack.c.bf16 %v2793, %v2792
  %v2849 = vpack.c.bf16 %v2795, %v2794
  %v2850 = vpack.c.bf16 %v2797, %v2796
  %v2851 = vpack.c.bf16 %v2799, %v2798
  %v2852 = vpack.c.bf16 %v2801, %v2800
  %v2853 = vpack.c.bf16 %v2803, %v2802
  %v2854 = vpack.c.bf16 %v2805, %v2804
  %v2855 = vpack.c.bf16 %v2807, %v2806
  %v2856 = vpack.c.bf16 %v2809, %v2808
  %v2857 = vpack.c.bf16 %v2811, %v2810
  %v2858 = vpack.c.bf16 %v2813, %v2812
  %v2859 = vpack.c.bf16 %v2815, %v2814
  %v2860 = vpack.c.bf16 %v2817, %v2816
  %v2861 = vpack.c.bf16 %v2819, %v2818
  %v2862 = vpack.c.bf16 %v2821, %v2820
  %v2863 = vpack.c.bf16 %v2823, %v2822
  %v2864 = vpack.c.bf16 %v2825, %v2824
  %v2865 = vpack.c.bf16 %v2827, %v2826
  %v2866 = vpack.c.bf16 %v2829, %v2828
  %v2867 = vpack.c.bf16 %v2831, %v2830
  %v2868 = vpack.c.bf16 %v2833, %v2832
  %v2869 = vpack.c.bf16 %v2835, %v2834
  %v2870 = vpack.c.bf16 %v2837, %v2836
  %v2871 = vpack.c.bf16 %v2839, %v2838
  %v2872 = vld [vmem:[%s1 + $0xa0] sm:$0xf]
  %v2873 = vld [vmem:[%s1 + $0xa4] sm:$0xf]
  %v2874 = vld [vmem:[%s1 + $0xa8] sm:$0xf]
  %v2875 = vld [vmem:[%s1 + $0xac] sm:$0xf]
  %v2876 = vld [vmem:[%s1 + $0xb0] sm:$0xf]
  %v2877 = vld [vmem:[%s1 + $0xb4] sm:$0xf]
  %v2878 = vld [vmem:[%s1 + $0xb8] sm:$0xf]
  %v2879 = vld [vmem:[%s1 + $0xbc] sm:$0xf]
  %v2888 = vunpack.c.l.b16 %v2872
  %v2889 = vunpack.c.l.b16 %v2873
  %v2890 = vunpack.c.l.b16 %v2874
  %v2891 = vunpack.c.l.b16 %v2875
  %v2892 = vunpack.c.l.b16 %v2876
  %v2893 = vunpack.c.l.b16 %v2877
  %v2894 = vunpack.c.l.b16 %v2878
  %v2895 = vunpack.c.l.b16 %v2879
  %v2896 = vpack.c.b16 %v2889, %v2888
  %v2897 = vpack.c.b16 %v2891, %v2890
  %v2898 = vpack.c.b16 %v2893, %v2892
  %v2899 = vpack.c.b16 %v2895, %v2894
  %v2905 = vsel %vm250, %v2840, 0
  %v2908 = vsel %vm250, %v2841, 0
  %v2911 = vsel %vm250, %v2842, 0
  %v2914 = vsel %vm250, %v2843, 0
  %v2917 = vsel %vm250, %v2844, 0
  %v2920 = vsel %vm250, %v2845, 0
  %v2923 = vsel %vm250, %v2846, 0
  %v2926 = vsel %vm250, %v2847, 0
  %v2929 = vsel %vm250, %v2848, 0
  %v2932 = vsel %vm250, %v2849, 0
  %v2935 = vsel %vm250, %v2850, 0
  %v2938 = vsel %vm250, %v2851, 0
  %v2941 = vsel %vm250, %v2852, 0
  %v2944 = vsel %vm250, %v2853, 0
  %v2947 = vsel %vm250, %v2854, 0
  %v2950 = vsel %vm250, %v2855, 0
  %v2953 = vsel %vm250, %v2856, 0
  %v2956 = vsel %vm250, %v2857, 0
  %v2959 = vsel %vm250, %v2858, 0
  %v2962 = vsel %vm250, %v2859, 0
  %v2965 = vsel %vm250, %v2860, 0
  %v2968 = vsel %vm250, %v2861, 0
  %v2971 = vsel %vm250, %v2862, 0
  %v2974 = vsel %vm250, %v2863, 0
  %v2977 = vsel %vm250, %v2864, 0
  %v2980 = vsel %vm250, %v2865, 0
  %v2983 = vsel %vm250, %v2866, 0
  %v2986 = vsel %vm250, %v2867, 0
  %v2989 = vsel %vm250, %v2868, 0
  %v2992 = vsel %vm250, %v2869, 0
  %v2995 = vsel %vm250, %v2870, 0
  %v2998 = vsel %vm250, %v2871, 0
  %3000 = vmatprep.subr.bf16.mxu0 0
  %3001 = vmatpush1.bf16.msra.mxu0 %v2896
  %3002 = vmatprep.subr.bf16.mxu0 0
  %3003 = vmatpush1.bf16.msra.mxu0 %v2897
  %3004 = vmatprep.subr.bf16.mxu0 0
  %3005 = vmatpush1.bf16.msra.mxu0 %v2898
  %3006 = vmatprep.subr.bf16.mxu0 0
  %3007 = vmatpush1.bf16.msra.mxu0 %v2899
  %3008 = vmatprep.subr.bf16.mxu0 0
  %3009 = vmatpush1.bf16.msra.mxu0 0
  %3010 = vmatprep.subr.bf16.mxu0 0
  %3011 = vmatpush1.bf16.msra.mxu0 0
  %3012 = vmatprep.subr.bf16.mxu0 0
  %3013 = vmatpush1.bf16.msra.mxu0 0
  %3014 = vmatprep.subr.bf16.mxu0 0
  %3015 = vmatpush1.bf16.msra.mxu0 0
  %3016 = vmatprep.subr.bf16.mxu0 0
  %3017 = vmatpush1.bf16.msra.mxu0 0
  %3018 = vmatprep.subr.bf16.mxu0 0
  %3019 = vmatpush1.bf16.msra.mxu0 0
  %3020 = vmatprep.subr.bf16.mxu0 0
  %3021 = vmatpush1.bf16.msra.mxu0 0
  %3022 = vmatprep.subr.bf16.mxu0 0
  %3023 = vmatpush1.bf16.msra.mxu0 0
  %3024 = vmatprep.subr.bf16.mxu0 0
  %3025 = vmatpush1.bf16.msra.mxu0 0
  %3026 = vmatprep.subr.bf16.mxu0 0
  %3027 = vmatpush1.bf16.msra.mxu0 0
  %3028 = vmatprep.subr.bf16.mxu0 0
  %3029 = vmatpush1.bf16.msra.mxu0 0
  %3030 = vmatprep.subr.bf16.mxu0 0
  %3031 = vmatpush1.bf16.msra.mxu0 0
  %3032 = vmatprep.mubr.bf16.mxu0 0
  %3033 = vmatmul.mubr.bf16.gmra.mrb[0].mxu0 %v2905
  %v3034 = vpop.f32.mrb[0].mxu0
  %v3035 = vadd.f32 0.0, %v3034
  %v3036 = vpop.f32.mrb[0].mxu0
  %v3037 = vpop.f32.mrb[0].mxu0
  %v3038 = vadd.f32 0.0, %v3037
  %v3039 = vpop.f32.mrb[0].mxu0
  %3040 = vmatprep.mubr.bf16.mxu0 0
  %3041 = vmatmul.mubr.bf16.gmra.mrb[0].mxu0 %v2908
  %v3042 = vpop.f32.mrb[0].mxu0
  %v3043 = vadd.f32 0.0, %v3042
  %v3044 = vpop.f32.mrb[0].mxu0
  %v3045 = vpop.f32.mrb[0].mxu0
  %v3046 = vadd.f32 0.0, %v3045
  %v3047 = vpop.f32.mrb[0].mxu0
  %3048 = vmatprep.mubr.bf16.mxu0 0
  %3049 = vmatmul.mubr.bf16.gmra.mrb[0].mxu0 %v2911
  %v3050 = vpop.f32.mrb[0].mxu0
  %v3051 = vadd.f32 0.0, %v3050
  %v3052 = vpop.f32.mrb[0].mxu0
  %v3053 = vpop.f32.mrb[0].mxu0
  %v3054 = vadd.f32 0.0, %v3053
  %v3055 = vpop.f32.mrb[0].mxu0
  %3056 = vmatprep.mubr.bf16.mxu0 0
  %3057 = vmatmul.mubr.bf16.gmra.mrb[0].mxu0 %v2914
  %v3058 = vpop.f32.mrb[0].mxu0
  %v3059 = vadd.f32 0.0, %v3058
  %v3060 = vpop.f32.mrb[0].mxu0
  %v3061 = vpop.f32.mrb[0].mxu0
  %v3062 = vadd.f32 0.0, %v3061
  %v3063 = vpop.f32.mrb[0].mxu0
  %3064 = vmatprep.mubr.bf16.mxu0 0
  %3065 = vmatmul.mubr.bf16.gmra.mrb[0].mxu0 %v2917
  %v3066 = vpop.f32.mrb[0].mxu0
  %v3067 = vadd.f32 0.0, %v3066
  %v3068 = vpop.f32.mrb[0].mxu0
  %v3069 = vpop.f32.mrb[0].mxu0
  %v3070 = vadd.f32 0.0, %v3069
  %v3071 = vpop.f32.mrb[0].mxu0
  %3072 = vmatprep.mubr.bf16.mxu0 0
  %3073 = vmatmul.mubr.bf16.gmra.mrb[0].mxu0 %v2920
  %v3074 = vpop.f32.mrb[0].mxu0
  %v3075 = vadd.f32 0.0, %v3074
  %v3076 = vpop.f32.mrb[0].mxu0
  %v3077 = vpop.f32.mrb[0].mxu0
  %v3078 = vadd.f32 0.0, %v3077
  %v3079 = vpop.f32.mrb[0].mxu0
  %3080 = vmatprep.mubr.bf16.mxu0 0
  %3081 = vmatmul.mubr.bf16.gmra.mrb[0].mxu0 %v2923
  %v3082 = vpop.f32.mrb[0].mxu0
  %v3083 = vadd.f32 0.0, %v3082
  %v3084 = vpop.f32.mrb[0].mxu0
  %v3085 = vpop.f32.mrb[0].mxu0
  %v3086 = vadd.f32 0.0, %v3085
  %v3087 = vpop.f32.mrb[0].mxu0
  %3088 = vmatprep.mubr.bf16.mxu0 0
  %3089 = vmatmul.mubr.bf16.gmra.mrb[0].mxu0 %v2926
  %v3090 = vpop.f32.mrb[0].mxu0
  %v3091 = vadd.f32 0.0, %v3090
  %v3092 = vpop.f32.mrb[0].mxu0
  %v3093 = vpop.f32.mrb[0].mxu0
  %v3094 = vadd.f32 0.0, %v3093
  %v3095 = vpop.f32.mrb[0].mxu0
  %3096 = vmatprep.mubr.bf16.mxu0 0
  %3097 = vmatmul.mubr.bf16.gmra.mrb[0].mxu0 %v2929
  %v3098 = vpop.f32.mrb[0].mxu0
  %v3099 = vadd.f32 0.0, %v3098
  %v3100 = vpop.f32.mrb[0].mxu0
  %v3101 = vpop.f32.mrb[0].mxu0
  %v3102 = vadd.f32 0.0, %v3101
  %v3103 = vpop.f32.mrb[0].mxu0
  %3104 = vmatprep.mubr.bf16.mxu0 0
  %3105 = vmatmul.mubr.bf16.gmra.mrb[0].mxu0 %v2932
  %v3106 = vpop.f32.mrb[0].mxu0
  %v3107 = vadd.f32 0.0, %v3106
  %v3108 = vpop.f32.mrb[0].mxu0
  %v3109 = vpop.f32.mrb[0].mxu0
  %v3110 = vadd.f32 0.0, %v3109
  %v3111 = vpop.f32.mrb[0].mxu0
  %3112 = vmatprep.mubr.bf16.mxu0 0
  %3113 = vmatmul.mubr.bf16.gmra.mrb[0].mxu0 %v2935
  %v3114 = vpop.f32.mrb[0].mxu0
  %v3115 = vadd.f32 0.0, %v3114
  %v3116 = vpop.f32.mrb[0].mxu0
  %v3117 = vpop.f32.mrb[0].mxu0
  %v3118 = vadd.f32 0.0, %v3117
  %v3119 = vpop.f32.mrb[0].mxu0
  %3120 = vmatprep.mubr.bf16.mxu0 0
  %3121 = vmatmul.mubr.bf16.gmra.mrb[0].mxu0 %v2938
  %v3122 = vpop.f32.mrb[0].mxu0
  %v3123 = vadd.f32 0.0, %v3122
  %v3124 = vpop.f32.mrb[0].mxu0
  %v3125 = vpop.f32.mrb[0].mxu0
  %v3126 = vadd.f32 0.0, %v3125
  %v3127 = vpop.f32.mrb[0].mxu0
  %3128 = vmatprep.mubr.bf16.mxu0 0
  %3129 = vmatmul.mubr.bf16.gmra.mrb[0].mxu0 %v2941
  %v3130 = vpop.f32.mrb[0].mxu0
  %v3131 = vadd.f32 0.0, %v3130
  %v3132 = vpop.f32.mrb[0].mxu0
  %v3133 = vpop.f32.mrb[0].mxu0
  %v3134 = vadd.f32 0.0, %v3133
  %v3135 = vpop.f32.mrb[0].mxu0
  %3136 = vmatprep.mubr.bf16.mxu0 0
  %3137 = vmatmul.mubr.bf16.gmra.mrb[0].mxu0 %v2944
  %v3138 = vpop.f32.mrb[0].mxu0
  %v3139 = vadd.f32 0.0, %v3138
  %v3140 = vpop.f32.mrb[0].mxu0
  %v3141 = vpop.f32.mrb[0].mxu0
  %v3142 = vadd.f32 0.0, %v3141
  %v3143 = vpop.f32.mrb[0].mxu0
  %3144 = vmatprep.mubr.bf16.mxu0 0
  %3145 = vmatmul.mubr.bf16.gmra.mrb[0].mxu0 %v2947
  %v3146 = vpop.f32.mrb[0].mxu0
  %v3147 = vadd.f32 0.0, %v3146
  %v3148 = vpop.f32.mrb[0].mxu0
  %v3149 = vpop.f32.mrb[0].mxu0
  %v3150 = vadd.f32 0.0, %v3149
  %v3151 = vpop.f32.mrb[0].mxu0
  %3152 = vmatprep.mubr.bf16.mxu0 0
  %3153 = vmatmul.mubr.bf16.gmra.mrb[0].mxu0 %v2950
  %v3154 = vpop.f32.mrb[0].mxu0
  %v3155 = vadd.f32 0.0, %v3154
  %v3156 = vpop.f32.mrb[0].mxu0
  %v3157 = vpop.f32.mrb[0].mxu0
  %v3158 = vadd.f32 0.0, %v3157
  %v3159 = vpop.f32.mrb[0].mxu0
  %3160 = vmatprep.mubr.bf16.mxu0 0
  %3161 = vmatmul.mubr.bf16.gmra.mrb[0].mxu0 %v2953
  %v3162 = vpop.f32.mrb[0].mxu0
  %v3163 = vadd.f32 0.0, %v3162
  %v3164 = vpop.f32.mrb[0].mxu0
  %v3165 = vpop.f32.mrb[0].mxu0
  %v3166 = vadd.f32 0.0, %v3165
  %v3167 = vpop.f32.mrb[0].mxu0
  %3168 = vmatprep.mubr.bf16.mxu0 0
  %3169 = vmatmul.mubr.bf16.gmra.mrb[0].mxu0 %v2956
  %v3170 = vpop.f32.mrb[0].mxu0
  %v3171 = vadd.f32 0.0, %v3170
  %v3172 = vpop.f32.mrb[0].mxu0
  %v3173 = vpop.f32.mrb[0].mxu0
  %v3174 = vadd.f32 0.0, %v3173
  %v3175 = vpop.f32.mrb[0].mxu0
  %3176 = vmatprep.mubr.bf16.mxu0 0
  %3177 = vmatmul.mubr.bf16.gmra.mrb[0].mxu0 %v2959
  %v3178 = vpop.f32.mrb[0].mxu0
  %v3179 = vadd.f32 0.0, %v3178
  %v3180 = vpop.f32.mrb[0].mxu0
  %v3181 = vpop.f32.mrb[0].mxu0
  %v3182 = vadd.f32 0.0, %v3181
  %v3183 = vpop.f32.mrb[0].mxu0
  %3184 = vmatprep.mubr.bf16.mxu0 0
  %3185 = vmatmul.mubr.bf16.gmra.mrb[0].mxu0 %v2962
  %v3186 = vpop.f32.mrb[0].mxu0
  %v3187 = vadd.f32 0.0, %v3186
  %v3188 = vpop.f32.mrb[0].mxu0
  %v3189 = vpop.f32.mrb[0].mxu0
  %v3190 = vadd.f32 0.0, %v3189
  %v3191 = vpop.f32.mrb[0].mxu0
  %3192 = vmatprep.mubr.bf16.mxu0 0
  %3193 = vmatmul.mubr.bf16.gmra.mrb[0].mxu0 %v2965
  %v3194 = vpop.f32.mrb[0].mxu0
  %v3195 = vadd.f32 0.0, %v3194
  %v3196 = vpop.f32.mrb[0].mxu0
  %v3197 = vpop.f32.mrb[0].mxu0
  %v3198 = vadd.f32 0.0, %v3197
  %v3199 = vpop.f32.mrb[0].mxu0
  %3200 = vmatprep.mubr.bf16.mxu0 0
  %3201 = vmatmul.mubr.bf16.gmra.mrb[0].mxu0 %v2968
  %v3202 = vpop.f32.mrb[0].mxu0
  %v3203 = vadd.f32 0.0, %v3202
  %v3204 = vpop.f32.mrb[0].mxu0
  %v3205 = vpop.f32.mrb[0].mxu0
  %v3206 = vadd.f32 0.0, %v3205
  %v3207 = vpop.f32.mrb[0].mxu0
  %3208 = vmatprep.mubr.bf16.mxu0 0
  %3209 = vmatmul.mubr.bf16.gmra.mrb[0].mxu0 %v2971
  %v3210 = vpop.f32.mrb[0].mxu0
  %v3211 = vadd.f32 0.0, %v3210
  %v3212 = vpop.f32.mrb[0].mxu0
  %v3213 = vpop.f32.mrb[0].mxu0
  %v3214 = vadd.f32 0.0, %v3213
  %v3215 = vpop.f32.mrb[0].mxu0
  %3216 = vmatprep.mubr.bf16.mxu0 0
  %3217 = vmatmul.mubr.bf16.gmra.mrb[0].mxu0 %v2974
  %v3218 = vpop.f32.mrb[0].mxu0
  %v3219 = vadd.f32 0.0, %v3218
  %v3220 = vpop.f32.mrb[0].mxu0
  %v3221 = vpop.f32.mrb[0].mxu0
  %v3222 = vadd.f32 0.0, %v3221
  %v3223 = vpop.f32.mrb[0].mxu0
  %3224 = vmatprep.mubr.bf16.mxu0 0
  %3225 = vmatmul.mubr.bf16.gmra.mrb[0].mxu0 %v2977
  %v3226 = vpop.f32.mrb[0].mxu0
  %v3227 = vadd.f32 0.0, %v3226
  %v3228 = vpop.f32.mrb[0].mxu0
  %v3229 = vpop.f32.mrb[0].mxu0
  %v3230 = vadd.f32 0.0, %v3229
  %v3231 = vpop.f32.mrb[0].mxu0
  %3232 = vmatprep.mubr.bf16.mxu0 0
  %3233 = vmatmul.mubr.bf16.gmra.mrb[0].mxu0 %v2980
  %v3234 = vpop.f32.mrb[0].mxu0
  %v3235 = vadd.f32 0.0, %v3234
  %v3236 = vpop.f32.mrb[0].mxu0
  %v3237 = vpop.f32.mrb[0].mxu0
  %v3238 = vadd.f32 0.0, %v3237
  %v3239 = vpop.f32.mrb[0].mxu0
  %3240 = vmatprep.mubr.bf16.mxu0 0
  %3241 = vmatmul.mubr.bf16.gmra.mrb[0].mxu0 %v2983
  %v3242 = vpop.f32.mrb[0].mxu0
  %v3243 = vadd.f32 0.0, %v3242
  %v3244 = vpop.f32.mrb[0].mxu0
  %v3245 = vpop.f32.mrb[0].mxu0
  %v3246 = vadd.f32 0.0, %v3245
  %v3247 = vpop.f32.mrb[0].mxu0
  %3248 = vmatprep.mubr.bf16.mxu0 0
  %3249 = vmatmul.mubr.bf16.gmra.mrb[0].mxu0 %v2986
  %v3250 = vpop.f32.mrb[0].mxu0
  %v3251 = vadd.f32 0.0, %v3250
  %v3252 = vpop.f32.mrb[0].mxu0
  %v3253 = vpop.f32.mrb[0].mxu0
  %v3254 = vadd.f32 0.0, %v3253
  %v3255 = vpop.f32.mrb[0].mxu0
  %3256 = vmatprep.mubr.bf16.mxu0 0
  %3257 = vmatmul.mubr.bf16.gmra.mrb[0].mxu0 %v2989
  %v3258 = vpop.f32.mrb[0].mxu0
  %v3259 = vadd.f32 0.0, %v3258
  %v3260 = vpop.f32.mrb[0].mxu0
  %v3261 = vpop.f32.mrb[0].mxu0
  %v3262 = vadd.f32 0.0, %v3261
  %v3263 = vpop.f32.mrb[0].mxu0
  %3264 = vmatprep.mubr.bf16.mxu0 0
  %3265 = vmatmul.mubr.bf16.gmra.mrb[0].mxu0 %v2992
  %v3266 = vpop.f32.mrb[0].mxu0
  %v3267 = vadd.f32 0.0, %v3266
  %v3268 = vpop.f32.mrb[0].mxu0
  %v3269 = vpop.f32.mrb[0].mxu0
  %v3270 = vadd.f32 0.0, %v3269
  %v3271 = vpop.f32.mrb[0].mxu0
  %3272 = vmatprep.mubr.bf16.mxu0 0
  %3273 = vmatmul.mubr.bf16.gmra.mrb[0].mxu0 %v2995
  %v3274 = vpop.f32.mrb[0].mxu0
  %v3275 = vadd.f32 0.0, %v3274
  %v3276 = vpop.f32.mrb[0].mxu0
  %v3277 = vpop.f32.mrb[0].mxu0
  %v3278 = vadd.f32 0.0, %v3277
  %v3279 = vpop.f32.mrb[0].mxu0
  %3280 = vmatprep.mubr.bf16.mxu0 0
  %3281 = vmatmul.mubr.bf16.gmra.mrb[0].mxu0 %v2998
  %v3282 = vpop.f32.mrb[0].mxu0
  %v3283 = vadd.f32 0.0, %v3282
  %v3284 = vpop.f32.mrb[0].mxu0
  %v3285 = vpop.f32.mrb[0].mxu0
  %v3286 = vadd.f32 0.0, %v3285
  %v3287 = vpop.f32.mrb[0].mxu0
  %3288 = vdwg.mxu0
  %v3289 = vadd.f32 %v2712, %v3035
  %v3290 = vadd.f32 %v2713, %v3038
  %v3291 = vadd.f32 %v2714, %v3043
  %v3292 = vadd.f32 %v2715, %v3046
  %v3293 = vadd.f32 %v2716, %v3051
  %v3294 = vadd.f32 %v2717, %v3054
  %v3295 = vadd.f32 %v2718, %v3059
  %v3296 = vadd.f32 %v2719, %v3062
  %v3297 = vadd.f32 %v2720, %v3067
  %v3298 = vadd.f32 %v2721, %v3070
  %v3299 = vadd.f32 %v2722, %v3075
  %v3300 = vadd.f32 %v2723, %v3078
  %v3301 = vadd.f32 %v2724, %v3083
  %v3302 = vadd.f32 %v2725, %v3086
  %v3303 = vadd.f32 %v2726, %v3091
  %v3304 = vadd.f32 %v2727, %v3094
  %v3305 = vadd.f32 %v2728, %v3099
  %v3306 = vadd.f32 %v2729, %v3102
  %v3307 = vadd.f32 %v2730, %v3107
  %v3308 = vadd.f32 %v2731, %v3110
  %v3309 = vadd.f32 %v2732, %v3115
  %v3310 = vadd.f32 %v2733, %v3118
  %v3311 = vadd.f32 %v2734, %v3123
  %v3312 = vadd.f32 %v2735, %v3126
  %v3313 = vadd.f32 %v2736, %v3131
  %v3314 = vadd.f32 %v2737, %v3134
  %v3315 = vadd.f32 %v2738, %v3139
  %v3316 = vadd.f32 %v2739, %v3142
  %v3317 = vadd.f32 %v2740, %v3147
  %v3318 = vadd.f32 %v2741, %v3150
  %v3319 = vadd.f32 %v2742, %v3155
  %v3320 = vadd.f32 %v2743, %v3158
  %v3321 = vadd.f32 %v2744, %v3163
  %v3322 = vadd.f32 %v2745, %v3166
  %v3323 = vadd.f32 %v2746, %v3171
  %v3324 = vadd.f32 %v2747, %v3174
  %v3325 = vadd.f32 %v2748, %v3179
  %v3326 = vadd.f32 %v2749, %v3182
  %v3327 = vadd.f32 %v2750, %v3187
  %v3328 = vadd.f32 %v2751, %v3190
  %v3329 = vadd.f32 %v2752, %v3195
  %v3330 = vadd.f32 %v2753, %v3198
  %v3331 = vadd.f32 %v2754, %v3203
  %v3332 = vadd.f32 %v2755, %v3206
  %v3333 = vadd.f32 %v2756, %v3211
  %v3334 = vadd.f32 %v2757, %v3214
  %v3335 = vadd.f32 %v2758, %v3219
  %v3336 = vadd.f32 %v2759, %v3222
  %v3337 = vadd.f32 %v2760, %v3227
  %v3338 = vadd.f32 %v2761, %v3230
  %v3339 = vadd.f32 %v2762, %v3235
  %v3340 = vadd.f32 %v2763, %v3238
  %v3341 = vadd.f32 %v2764, %v3243
  %v3342 = vadd.f32 %v2765, %v3246
  %v3343 = vadd.f32 %v2766, %v3251
  %v3344 = vadd.f32 %v2767, %v3254
  %v3345 = vadd.f32 %v2768, %v3259
  %v3346 = vadd.f32 %v2769, %v3262
  %v3347 = vadd.f32 %v2770, %v3267
  %v3348 = vadd.f32 %v2771, %v3270
  %v3349 = vadd.f32 %v2772, %v3275
  %v3350 = vadd.f32 %v2773, %v3278
  %v3351 = vadd.f32 %v2774, %v3283
  %v3352 = vadd.f32 %v2775, %v3286
  %v3353 = vld [vmem:[%s0 + $0x27] sm:$0xff]
  %v3354 = vld [vmem:[%s0 + $0x2f] sm:$0xff]
  %v3355 = vld [vmem:[%s0 + $0x37] sm:$0xff]
  %v3356 = vld [vmem:[%s0 + $0x3f] sm:$0xff]
  %v3357 = vld [vmem:[%s0 + $0x47] sm:$0xff]
  %v3358 = vld [vmem:[%s0 + $0x4f] sm:$0xff]
  %v3359 = vld [vmem:[%s0 + $0x57] sm:$0xff]
  %v3360 = vld [vmem:[%s0 + $0x5f] sm:$0xff]
  %v3361 = vld [vmem:[%s0 + $0x67] sm:$0xff]
  %v3362 = vld [vmem:[%s0 + $0x6f] sm:$0xff]
  %v3363 = vld [vmem:[%s0 + $0x77] sm:$0xff]
  %v3364 = vld [vmem:[%s0 + $0x7f] sm:$0xff]
  %v3365 = vld [vmem:[%s0 + $0x87] sm:$0xff]
  %v3366 = vld [vmem:[%s0 + $0x8f] sm:$0xff]
  %v3367 = vld [vmem:[%s0 + $0x97] sm:$0xff]
  %v3368 = vld [vmem:[%s0 + $0x9f] sm:$0xff]
  %v3369 = vld [vmem:[%s0 + $0xa7] sm:$0xff]
  %v3370 = vld [vmem:[%s0 + $0xaf] sm:$0xff]
  %v3371 = vld [vmem:[%s0 + $0xb7] sm:$0xff]
  %v3372 = vld [vmem:[%s0 + $0xbf] sm:$0xff]
  %v3373 = vld [vmem:[%s0 + $0xc7] sm:$0xff]
  %v3374 = vld [vmem:[%s0 + $0xcf] sm:$0xff]
  %v3375 = vld [vmem:[%s0 + $0xd7] sm:$0xff]
  %v3376 = vld [vmem:[%s0 + $0xdf] sm:$0xff]
  %v3377 = vld [vmem:[%s0 + $0xe7] sm:$0xff]
  %v3378 = vld [vmem:[%s0 + $0xef] sm:$0xff]
  %v3379 = vld [vmem:[%s0 + $0xf7] sm:$0xff]
  %v3380 = vld [vmem:[%s0 + $0xff] sm:$0xff]
  %v3381 = vld [vmem:[%s0 + $0x107] sm:$0xff]
  %v3382 = vld [vmem:[%s0 + $0x10f] sm:$0xff]
  %v3383 = vld [vmem:[%s0 + $0x117] sm:$0xff]
  %v3384 = vld [vmem:[%s0 + $0x11f] sm:$0xff]
  %v3385 = vld [vmem:[%s0 + $0x127] sm:$0xff]
  %v3386 = vld [vmem:[%s0 + $0x12f] sm:$0xff]
  %v3387 = vld [vmem:[%s0 + $0x137] sm:$0xff]
  %v3388 = vld [vmem:[%s0 + $0x13f] sm:$0xff]
  %v3389 = vld [vmem:[%s0 + $0x147] sm:$0xff]
  %v3390 = vld [vmem:[%s0 + $0x14f] sm:$0xff]
  %v3391 = vld [vmem:[%s0 + $0x157] sm:$0xff]
  %v3392 = vld [vmem:[%s0 + $0x15f] sm:$0xff]
  %v3393 = vld [vmem:[%s0 + $0x167] sm:$0xff]
  %v3394 = vld [vmem:[%s0 + $0x16f] sm:$0xff]
  %v3395 = vld [vmem:[%s0 + $0x177] sm:$0xff]
  %v3396 = vld [vmem:[%s0 + $0x17f] sm:$0xff]
  %v3397 = vld [vmem:[%s0 + $0x187] sm:$0xff]
  %v3398 = vld [vmem:[%s0 + $0x18f] sm:$0xff]
  %v3399 = vld [vmem:[%s0 + $0x197] sm:$0xff]
  %v3400 = vld [vmem:[%s0 + $0x19f] sm:$0xff]
  %v3401 = vld [vmem:[%s0 + $0x1a7] sm:$0xff]
  %v3402 = vld [vmem:[%s0 + $0x1af] sm:$0xff]
  %v3403 = vld [vmem:[%s0 + $0x1b7] sm:$0xff]
  %v3404 = vld [vmem:[%s0 + $0x1bf] sm:$0xff]
  %v3405 = vld [vmem:[%s0 + $0x1c7] sm:$0xff]
  %v3406 = vld [vmem:[%s0 + $0x1cf] sm:$0xff]
  %v3407 = vld [vmem:[%s0 + $0x1d7] sm:$0xff]
  %v3408 = vld [vmem:[%s0 + $0x1df] sm:$0xff]
  %v3409 = vld [vmem:[%s0 + $0x1e7] sm:$0xff]
  %v3410 = vld [vmem:[%s0 + $0x1ef] sm:$0xff]
  %v3411 = vld [vmem:[%s0 + $0x1f7] sm:$0xff]
  %v3412 = vld [vmem:[%s0 + $0x1ff] sm:$0xff]
  %v3413 = vld [vmem:[%s0 + $0x207] sm:$0xff]
  %v3414 = vld [vmem:[%s0 + $0x20f] sm:$0xff]
  %v3415 = vld [vmem:[%s0 + $0x217] sm:$0xff]
  %v3416 = vld [vmem:[%s0 + $0x21f] sm:$0xff]
  %v3417 = vpack.c.bf16 %v3354, %v3353
  %v3418 = vpack.c.bf16 %v3356, %v3355
  %v3419 = vpack.c.bf16 %v3358, %v3357
  %v3420 = vpack.c.bf16 %v3360, %v3359
  %v3421 = vpack.c.bf16 %v3362, %v3361
  %v3422 = vpack.c.bf16 %v3364, %v3363
  %v3423 = vpack.c.bf16 %v3366, %v3365
  %v3424 = vpack.c.bf16 %v3368, %v3367
  %v3425 = vpack.c.bf16 %v3370, %v3369
  %v3426 = vpack.c.bf16 %v3372, %v3371
  %v3427 = vpack.c.bf16 %v3374, %v3373
  %v3428 = vpack.c.bf16 %v3376, %v3375
  %v3429 = vpack.c.bf16 %v3378, %v3377
  %v3430 = vpack.c.bf16 %v3380, %v3379
  %v3431 = vpack.c.bf16 %v3382, %v3381
  %v3432 = vpack.c.bf16 %v3384, %v3383
  %v3433 = vpack.c.bf16 %v3386, %v3385
  %v3434 = vpack.c.bf16 %v3388, %v3387
  %v3435 = vpack.c.bf16 %v3390, %v3389
  %v3436 = vpack.c.bf16 %v3392, %v3391
  %v3437 = vpack.c.bf16 %v3394, %v3393
  %v3438 = vpack.c.bf16 %v3396, %v3395
  %v3439 = vpack.c.bf16 %v3398, %v3397
  %v3440 = vpack.c.bf16 %v3400, %v3399
  %v3441 = vpack.c.bf16 %v3402, %v3401
  %v3442 = vpack.c.bf16 %v3404, %v3403
  %v3443 = vpack.c.bf16 %v3406, %v3405
  %v3444 = vpack.c.bf16 %v3408, %v3407
  %v3445 = vpack.c.bf16 %v3410, %v3409
  %v3446 = vpack.c.bf16 %v3412, %v3411
  %v3447 = vpack.c.bf16 %v3414, %v3413
  %v3448 = vpack.c.bf16 %v3416, %v3415
  %v3449 = vld [vmem:[%s1 + $0xc0] sm:$0xf]
  %v3450 = vld [vmem:[%s1 + $0xc4] sm:$0xf]
  %v3451 = vld [vmem:[%s1 + $0xc8] sm:$0xf]
  %v3452 = vld [vmem:[%s1 + $0xcc] sm:$0xf]
  %v3453 = vld [vmem:[%s1 + $0xd0] sm:$0xf]
  %v3454 = vld [vmem:[%s1 + $0xd4] sm:$0xf]
  %v3455 = vld [vmem:[%s1 + $0xd8] sm:$0xf]
  %v3456 = vld [vmem:[%s1 + $0xdc] sm:$0xf]
  %v3465 = vunpack.c.l.b16 %v3449
  %v3466 = vunpack.c.l.b16 %v3450
  %v3467 = vunpack.c.l.b16 %v3451
  %v3468 = vunpack.c.l.b16 %v3452
  %v3469 = vunpack.c.l.b16 %v3453
  %v3470 = vunpack.c.l.b16 %v3454
  %v3471 = vunpack.c.l.b16 %v3455
  %v3472 = vunpack.c.l.b16 %v3456
  %v3473 = vpack.c.b16 %v3466, %v3465
  %v3474 = vpack.c.b16 %v3468, %v3467
  %v3475 = vpack.c.b16 %v3470, %v3469
  %v3476 = vpack.c.b16 %v3472, %v3471
  %v3482 = vsel %vm250, %v3417, 0
  %v3485 = vsel %vm250, %v3418, 0
  %v3488 = vsel %vm250, %v3419, 0
  %v3491 = vsel %vm250, %v3420, 0
  %v3494 = vsel %vm250, %v3421, 0
  %v3497 = vsel %vm250, %v3422, 0
  %v3500 = vsel %vm250, %v3423, 0
  %v3503 = vsel %vm250, %v3424, 0
  %v3506 = vsel %vm250, %v3425, 0
  %v3509 = vsel %vm250, %v3426, 0
  %v3512 = vsel %vm250, %v3427, 0
  %v3515 = vsel %vm250, %v3428, 0
  %v3518 = vsel %vm250, %v3429, 0
  %v3521 = vsel %vm250, %v3430, 0
  %v3524 = vsel %vm250, %v3431, 0
  %v3527 = vsel %vm250, %v3432, 0
  %v3530 = vsel %vm250, %v3433, 0
  %v3533 = vsel %vm250, %v3434, 0
  %v3536 = vsel %vm250, %v3435, 0
  %v3539 = vsel %vm250, %v3436, 0
  %v3542 = vsel %vm250, %v3437, 0
  %v3545 = vsel %vm250, %v3438, 0
  %v3548 = vsel %vm250, %v3439, 0
  %v3551 = vsel %vm250, %v3440, 0
  %v3554 = vsel %vm250, %v3441, 0
  %v3557 = vsel %vm250, %v3442, 0
  %v3560 = vsel %vm250, %v3443, 0
  %v3563 = vsel %vm250, %v3444, 0
  %v3566 = vsel %vm250, %v3445, 0
  %v3569 = vsel %vm250, %v3446, 0
  %v3572 = vsel %vm250, %v3447, 0
  %v3575 = vsel %vm250, %v3448, 0
  %3577 = vmatprep.subr.bf16.mxu0 0
  %3578 = vmatpush1.bf16.msra.mxu0 %v3473
  %3579 = vmatprep.subr.bf16.mxu0 0
  %3580 = vmatpush1.bf16.msra.mxu0 %v3474
  %3581 = vmatprep.subr.bf16.mxu0 0
  %3582 = vmatpush1.bf16.msra.mxu0 %v3475
  %3583 = vmatprep.subr.bf16.mxu0 0
  %3584 = vmatpush1.bf16.msra.mxu0 %v3476
  %3585 = vmatprep.subr.bf16.mxu0 0
  %3586 = vmatpush1.bf16.msra.mxu0 0
  %3587 = vmatprep.subr.bf16.mxu0 0
  %3588 = vmatpush1.bf16.msra.mxu0 0
  %3589 = vmatprep.subr.bf16.mxu0 0
  %3590 = vmatpush1.bf16.msra.mxu0 0
  %3591 = vmatprep.subr.bf16.mxu0 0
  %3592 = vmatpush1.bf16.msra.mxu0 0
  %3593 = vmatprep.subr.bf16.mxu0 0
  %3594 = vmatpush1.bf16.msra.mxu0 0
  %3595 = vmatprep.subr.bf16.mxu0 0
  %3596 = vmatpush1.bf16.msra.mxu0 0
  %3597 = vmatprep.subr.bf16.mxu0 0
  %3598 = vmatpush1.bf16.msra.mxu0 0
  %3599 = vmatprep.subr.bf16.mxu0 0
  %3600 = vmatpush1.bf16.msra.mxu0 0
  %3601 = vmatprep.subr.bf16.mxu0 0
  %3602 = vmatpush1.bf16.msra.mxu0 0
  %3603 = vmatprep.subr.bf16.mxu0 0
  %3604 = vmatpush1.bf16.msra.mxu0 0
  %3605 = vmatprep.subr.bf16.mxu0 0
  %3606 = vmatpush1.bf16.msra.mxu0 0
  %3607 = vmatprep.subr.bf16.mxu0 0
  %3608 = vmatpush1.bf16.msra.mxu0 0
  %3609 = vmatprep.mubr.bf16.mxu0 0
  %3610 = vmatmul.mubr.bf16.gmra.mrb[0].mxu0 %v3482
  %v3611 = vpop.f32.mrb[0].mxu0
  %v3612 = vadd.f32 0.0, %v3611
  %v3613 = vpop.f32.mrb[0].mxu0
  %v3614 = vpop.f32.mrb[0].mxu0
  %v3615 = vadd.f32 0.0, %v3614
  %v3616 = vpop.f32.mrb[0].mxu0
  %3617 = vmatprep.mubr.bf16.mxu0 0
  %3618 = vmatmul.mubr.bf16.gmra.mrb[0].mxu0 %v3485
  %v3619 = vpop.f32.mrb[0].mxu0
  %v3620 = vadd.f32 0.0, %v3619
  %v3621 = vpop.f32.mrb[0].mxu0
  %v3622 = vpop.f32.mrb[0].mxu0
  %v3623 = vadd.f32 0.0, %v3622
  %v3624 = vpop.f32.mrb[0].mxu0
  %3625 = vmatprep.mubr.bf16.mxu0 0
  %3626 = vmatmul.mubr.bf16.gmra.mrb[0].mxu0 %v3488
  %v3627 = vpop.f32.mrb[0].mxu0
  %v3628 = vadd.f32 0.0, %v3627
  %v3629 = vpop.f32.mrb[0].mxu0
  %v3630 = vpop.f32.mrb[0].mxu0
  %v3631 = vadd.f32 0.0, %v3630
  %v3632 = vpop.f32.mrb[0].mxu0
  %3633 = vmatprep.mubr.bf16.mxu0 0
  %3634 = vmatmul.mubr.bf16.gmra.mrb[0].mxu0 %v3491
  %v3635 = vpop.f32.mrb[0].mxu0
  %v3636 = vadd.f32 0.0, %v3635
  %v3637 = vpop.f32.mrb[0].mxu0
  %v3638 = vpop.f32.mrb[0].mxu0
  %v3639 = vadd.f32 0.0, %v3638
  %v3640 = vpop.f32.mrb[0].mxu0
  %3641 = vmatprep.mubr.bf16.mxu0 0
  %3642 = vmatmul.mubr.bf16.gmra.mrb[0].mxu0 %v3494
  %v3643 = vpop.f32.mrb[0].mxu0
  %v3644 = vadd.f32 0.0, %v3643
  %v3645 = vpop.f32.mrb[0].mxu0
  %v3646 = vpop.f32.mrb[0].mxu0
  %v3647 = vadd.f32 0.0, %v3646
  %v3648 = vpop.f32.mrb[0].mxu0
  %3649 = vmatprep.mubr.bf16.mxu0 0
  %3650 = vmatmul.mubr.bf16.gmra.mrb[0].mxu0 %v3497
  %v3651 = vpop.f32.mrb[0].mxu0
  %v3652 = vadd.f32 0.0, %v3651
  %v3653 = vpop.f32.mrb[0].mxu0
  %v3654 = vpop.f32.mrb[0].mxu0
  %v3655 = vadd.f32 0.0, %v3654
  %v3656 = vpop.f32.mrb[0].mxu0
  %3657 = vmatprep.mubr.bf16.mxu0 0
  %3658 = vmatmul.mubr.bf16.gmra.mrb[0].mxu0 %v3500
  %v3659 = vpop.f32.mrb[0].mxu0
  %v3660 = vadd.f32 0.0, %v3659
  %v3661 = vpop.f32.mrb[0].mxu0
  %v3662 = vpop.f32.mrb[0].mxu0
  %v3663 = vadd.f32 0.0, %v3662
  %v3664 = vpop.f32.mrb[0].mxu0
  %3665 = vmatprep.mubr.bf16.mxu0 0
  %3666 = vmatmul.mubr.bf16.gmra.mrb[0].mxu0 %v3503
  %v3667 = vpop.f32.mrb[0].mxu0
  %v3668 = vadd.f32 0.0, %v3667
  %v3669 = vpop.f32.mrb[0].mxu0
  %v3670 = vpop.f32.mrb[0].mxu0
  %v3671 = vadd.f32 0.0, %v3670
  %v3672 = vpop.f32.mrb[0].mxu0
  %3673 = vmatprep.mubr.bf16.mxu0 0
  %3674 = vmatmul.mubr.bf16.gmra.mrb[0].mxu0 %v3506
  %v3675 = vpop.f32.mrb[0].mxu0
  %v3676 = vadd.f32 0.0, %v3675
  %v3677 = vpop.f32.mrb[0].mxu0
  %v3678 = vpop.f32.mrb[0].mxu0
  %v3679 = vadd.f32 0.0, %v3678
  %v3680 = vpop.f32.mrb[0].mxu0
  %3681 = vmatprep.mubr.bf16.mxu0 0
  %3682 = vmatmul.mubr.bf16.gmra.mrb[0].mxu0 %v3509
  %v3683 = vpop.f32.mrb[0].mxu0
  %v3684 = vadd.f32 0.0, %v3683
  %v3685 = vpop.f32.mrb[0].mxu0
  %v3686 = vpop.f32.mrb[0].mxu0
  %v3687 = vadd.f32 0.0, %v3686
  %v3688 = vpop.f32.mrb[0].mxu0
  %3689 = vmatprep.mubr.bf16.mxu0 0
  %3690 = vmatmul.mubr.bf16.gmra.mrb[0].mxu0 %v3512
  %v3691 = vpop.f32.mrb[0].mxu0
  %v3692 = vadd.f32 0.0, %v3691
  %v3693 = vpop.f32.mrb[0].mxu0
  %v3694 = vpop.f32.mrb[0].mxu0
  %v3695 = vadd.f32 0.0, %v3694
  %v3696 = vpop.f32.mrb[0].mxu0
  %3697 = vmatprep.mubr.bf16.mxu0 0
  %3698 = vmatmul.mubr.bf16.gmra.mrb[0].mxu0 %v3515
  %v3699 = vpop.f32.mrb[0].mxu0
  %v3700 = vadd.f32 0.0, %v3699
  %v3701 = vpop.f32.mrb[0].mxu0
  %v3702 = vpop.f32.mrb[0].mxu0
  %v3703 = vadd.f32 0.0, %v3702
  %v3704 = vpop.f32.mrb[0].mxu0
  %3705 = vmatprep.mubr.bf16.mxu0 0
  %3706 = vmatmul.mubr.bf16.gmra.mrb[0].mxu0 %v3518
  %v3707 = vpop.f32.mrb[0].mxu0
  %v3708 = vadd.f32 0.0, %v3707
  %v3709 = vpop.f32.mrb[0].mxu0
  %v3710 = vpop.f32.mrb[0].mxu0
  %v3711 = vadd.f32 0.0, %v3710
  %v3712 = vpop.f32.mrb[0].mxu0
  %3713 = vmatprep.mubr.bf16.mxu0 0
  %3714 = vmatmul.mubr.bf16.gmra.mrb[0].mxu0 %v3521
  %v3715 = vpop.f32.mrb[0].mxu0
  %v3716 = vadd.f32 0.0, %v3715
  %v3717 = vpop.f32.mrb[0].mxu0
  %v3718 = vpop.f32.mrb[0].mxu0
  %v3719 = vadd.f32 0.0, %v3718
  %v3720 = vpop.f32.mrb[0].mxu0
  %3721 = vmatprep.mubr.bf16.mxu0 0
  %3722 = vmatmul.mubr.bf16.gmra.mrb[0].mxu0 %v3524
  %v3723 = vpop.f32.mrb[0].mxu0
  %v3724 = vadd.f32 0.0, %v3723
  %v3725 = vpop.f32.mrb[0].mxu0
  %v3726 = vpop.f32.mrb[0].mxu0
  %v3727 = vadd.f32 0.0, %v3726
  %v3728 = vpop.f32.mrb[0].mxu0
  %3729 = vmatprep.mubr.bf16.mxu0 0
  %3730 = vmatmul.mubr.bf16.gmra.mrb[0].mxu0 %v3527
  %v3731 = vpop.f32.mrb[0].mxu0
  %v3732 = vadd.f32 0.0, %v3731
  %v3733 = vpop.f32.mrb[0].mxu0
  %v3734 = vpop.f32.mrb[0].mxu0
  %v3735 = vadd.f32 0.0, %v3734
  %v3736 = vpop.f32.mrb[0].mxu0
  %3737 = vmatprep.mubr.bf16.mxu0 0
  %3738 = vmatmul.mubr.bf16.gmra.mrb[0].mxu0 %v3530
  %v3739 = vpop.f32.mrb[0].mxu0
  %v3740 = vadd.f32 0.0, %v3739
  %v3741 = vpop.f32.mrb[0].mxu0
  %v3742 = vpop.f32.mrb[0].mxu0
  %v3743 = vadd.f32 0.0, %v3742
  %v3744 = vpop.f32.mrb[0].mxu0
  %3745 = vmatprep.mubr.bf16.mxu0 0
  %3746 = vmatmul.mubr.bf16.gmra.mrb[0].mxu0 %v3533
  %v3747 = vpop.f32.mrb[0].mxu0
  %v3748 = vadd.f32 0.0, %v3747
  %v3749 = vpop.f32.mrb[0].mxu0
  %v3750 = vpop.f32.mrb[0].mxu0
  %v3751 = vadd.f32 0.0, %v3750
  %v3752 = vpop.f32.mrb[0].mxu0
  %3753 = vmatprep.mubr.bf16.mxu0 0
  %3754 = vmatmul.mubr.bf16.gmra.mrb[0].mxu0 %v3536
  %v3755 = vpop.f32.mrb[0].mxu0
  %v3756 = vadd.f32 0.0, %v3755
  %v3757 = vpop.f32.mrb[0].mxu0
  %v3758 = vpop.f32.mrb[0].mxu0
  %v3759 = vadd.f32 0.0, %v3758
  %v3760 = vpop.f32.mrb[0].mxu0
  %3761 = vmatprep.mubr.bf16.mxu0 0
  %3762 = vmatmul.mubr.bf16.gmra.mrb[0].mxu0 %v3539
  %v3763 = vpop.f32.mrb[0].mxu0
  %v3764 = vadd.f32 0.0, %v3763
  %v3765 = vpop.f32.mrb[0].mxu0
  %v3766 = vpop.f32.mrb[0].mxu0
  %v3767 = vadd.f32 0.0, %v3766
  %v3768 = vpop.f32.mrb[0].mxu0
  %3769 = vmatprep.mubr.bf16.mxu0 0
  %3770 = vmatmul.mubr.bf16.gmra.mrb[0].mxu0 %v3542
  %v3771 = vpop.f32.mrb[0].mxu0
  %v3772 = vadd.f32 0.0, %v3771
  %v3773 = vpop.f32.mrb[0].mxu0
  %v3774 = vpop.f32.mrb[0].mxu0
  %v3775 = vadd.f32 0.0, %v3774
  %v3776 = vpop.f32.mrb[0].mxu0
  %3777 = vmatprep.mubr.bf16.mxu0 0
  %3778 = vmatmul.mubr.bf16.gmra.mrb[0].mxu0 %v3545
  %v3779 = vpop.f32.mrb[0].mxu0
  %v3780 = vadd.f32 0.0, %v3779
  %v3781 = vpop.f32.mrb[0].mxu0
  %v3782 = vpop.f32.mrb[0].mxu0
  %v3783 = vadd.f32 0.0, %v3782
  %v3784 = vpop.f32.mrb[0].mxu0
  %3785 = vmatprep.mubr.bf16.mxu0 0
  %3786 = vmatmul.mubr.bf16.gmra.mrb[0].mxu0 %v3548
  %v3787 = vpop.f32.mrb[0].mxu0
  %v3788 = vadd.f32 0.0, %v3787
  %v3789 = vpop.f32.mrb[0].mxu0
  %v3790 = vpop.f32.mrb[0].mxu0
  %v3791 = vadd.f32 0.0, %v3790
  %v3792 = vpop.f32.mrb[0].mxu0
  %3793 = vmatprep.mubr.bf16.mxu0 0
  %3794 = vmatmul.mubr.bf16.gmra.mrb[0].mxu0 %v3551
  %v3795 = vpop.f32.mrb[0].mxu0
  %v3796 = vadd.f32 0.0, %v3795
  %v3797 = vpop.f32.mrb[0].mxu0
  %v3798 = vpop.f32.mrb[0].mxu0
  %v3799 = vadd.f32 0.0, %v3798
  %v3800 = vpop.f32.mrb[0].mxu0
  %3801 = vmatprep.mubr.bf16.mxu0 0
  %3802 = vmatmul.mubr.bf16.gmra.mrb[0].mxu0 %v3554
  %v3803 = vpop.f32.mrb[0].mxu0
  %v3804 = vadd.f32 0.0, %v3803
  %v3805 = vpop.f32.mrb[0].mxu0
  %v3806 = vpop.f32.mrb[0].mxu0
  %v3807 = vadd.f32 0.0, %v3806
  %v3808 = vpop.f32.mrb[0].mxu0
  %3809 = vmatprep.mubr.bf16.mxu0 0
  %3810 = vmatmul.mubr.bf16.gmra.mrb[0].mxu0 %v3557
  %v3811 = vpop.f32.mrb[0].mxu0
  %v3812 = vadd.f32 0.0, %v3811
  %v3813 = vpop.f32.mrb[0].mxu0
  %v3814 = vpop.f32.mrb[0].mxu0
  %v3815 = vadd.f32 0.0, %v3814
  %v3816 = vpop.f32.mrb[0].mxu0
  %3817 = vmatprep.mubr.bf16.mxu0 0
  %3818 = vmatmul.mubr.bf16.gmra.mrb[0].mxu0 %v3560
  %v3819 = vpop.f32.mrb[0].mxu0
  %v3820 = vadd.f32 0.0, %v3819
  %v3821 = vpop.f32.mrb[0].mxu0
  %v3822 = vpop.f32.mrb[0].mxu0
  %v3823 = vadd.f32 0.0, %v3822
  %v3824 = vpop.f32.mrb[0].mxu0
  %3825 = vmatprep.mubr.bf16.mxu0 0
  %3826 = vmatmul.mubr.bf16.gmra.mrb[0].mxu0 %v3563
  %v3827 = vpop.f32.mrb[0].mxu0
  %v3828 = vadd.f32 0.0, %v3827
  %v3829 = vpop.f32.mrb[0].mxu0
  %v3830 = vpop.f32.mrb[0].mxu0
  %v3831 = vadd.f32 0.0, %v3830
  %v3832 = vpop.f32.mrb[0].mxu0
  %3833 = vmatprep.mubr.bf16.mxu0 0
  %3834 = vmatmul.mubr.bf16.gmra.mrb[0].mxu0 %v3566
  %v3835 = vpop.f32.mrb[0].mxu0
  %v3836 = vadd.f32 0.0, %v3835
  %v3837 = vpop.f32.mrb[0].mxu0
  %v3838 = vpop.f32.mrb[0].mxu0
  %v3839 = vadd.f32 0.0, %v3838
  %v3840 = vpop.f32.mrb[0].mxu0
  %3841 = vmatprep.mubr.bf16.mxu0 0
  %3842 = vmatmul.mubr.bf16.gmra.mrb[0].mxu0 %v3569
  %v3843 = vpop.f32.mrb[0].mxu0
  %v3844 = vadd.f32 0.0, %v3843
  %v3845 = vpop.f32.mrb[0].mxu0
  %v3846 = vpop.f32.mrb[0].mxu0
  %v3847 = vadd.f32 0.0, %v3846
  %v3848 = vpop.f32.mrb[0].mxu0
  %3849 = vmatprep.mubr.bf16.mxu0 0
  %3850 = vmatmul.mubr.bf16.gmra.mrb[0].mxu0 %v3572
  %v3851 = vpop.f32.mrb[0].mxu0
  %v3852 = vadd.f32 0.0, %v3851
  %v3853 = vpop.f32.mrb[0].mxu0
  %v3854 = vpop.f32.mrb[0].mxu0
  %v3855 = vadd.f32 0.0, %v3854
  %v3856 = vpop.f32.mrb[0].mxu0
  %3857 = vmatprep.mubr.bf16.mxu0 0
  %3858 = vmatmul.mubr.bf16.gmra.mrb[0].mxu0 %v3575
  %v3859 = vpop.f32.mrb[0].mxu0
  %v3860 = vadd.f32 0.0, %v3859
  %v3861 = vpop.f32.mrb[0].mxu0
  %v3862 = vpop.f32.mrb[0].mxu0
  %v3863 = vadd.f32 0.0, %v3862
  %v3864 = vpop.f32.mrb[0].mxu0
  %3865 = vdwg.mxu0
  %v3866 = vadd.f32 %v3289, %v3612
  %v3867 = vadd.f32 %v3290, %v3615
  %v3868 = vadd.f32 %v3291, %v3620
  %v3869 = vadd.f32 %v3292, %v3623
  %v3870 = vadd.f32 %v3293, %v3628
  %v3871 = vadd.f32 %v3294, %v3631
  %v3872 = vadd.f32 %v3295, %v3636
  %v3873 = vadd.f32 %v3296, %v3639
  %v3874 = vadd.f32 %v3297, %v3644
  %v3875 = vadd.f32 %v3298, %v3647
  %v3876 = vadd.f32 %v3299, %v3652
  %v3877 = vadd.f32 %v3300, %v3655
  %v3878 = vadd.f32 %v3301, %v3660
  %v3879 = vadd.f32 %v3302, %v3663
  %v3880 = vadd.f32 %v3303, %v3668
  %v3881 = vadd.f32 %v3304, %v3671
  %v3882 = vadd.f32 %v3305, %v3676
  %v3883 = vadd.f32 %v3306, %v3679
  %v3884 = vadd.f32 %v3307, %v3684
  %v3885 = vadd.f32 %v3308, %v3687
  %v3886 = vadd.f32 %v3309, %v3692
  %v3887 = vadd.f32 %v3310, %v3695
  %v3888 = vadd.f32 %v3311, %v3700
  %v3889 = vadd.f32 %v3312, %v3703
  %v3890 = vadd.f32 %v3313, %v3708
  %v3891 = vadd.f32 %v3314, %v3711
  %v3892 = vadd.f32 %v3315, %v3716
  %v3893 = vadd.f32 %v3316, %v3719
  %v3894 = vadd.f32 %v3317, %v3724
  %v3895 = vadd.f32 %v3318, %v3727
  %v3896 = vadd.f32 %v3319, %v3732
  %v3897 = vadd.f32 %v3320, %v3735
  %v3898 = vadd.f32 %v3321, %v3740
  %v3899 = vadd.f32 %v3322, %v3743
  %v3900 = vadd.f32 %v3323, %v3748
  %v3901 = vadd.f32 %v3324, %v3751
  %v3902 = vadd.f32 %v3325, %v3756
  %v3903 = vadd.f32 %v3326, %v3759
  %v3904 = vadd.f32 %v3327, %v3764
  %v3905 = vadd.f32 %v3328, %v3767
  %v3906 = vadd.f32 %v3329, %v3772
  %v3907 = vadd.f32 %v3330, %v3775
  %v3908 = vadd.f32 %v3331, %v3780
  %v3909 = vadd.f32 %v3332, %v3783
  %v3910 = vadd.f32 %v3333, %v3788
  %v3911 = vadd.f32 %v3334, %v3791
  %v3912 = vadd.f32 %v3335, %v3796
  %v3913 = vadd.f32 %v3336, %v3799
  %v3914 = vadd.f32 %v3337, %v3804
  %v3915 = vadd.f32 %v3338, %v3807
  %v3916 = vadd.f32 %v3339, %v3812
  %v3917 = vadd.f32 %v3340, %v3815
  %v3918 = vadd.f32 %v3341, %v3820
  %v3919 = vadd.f32 %v3342, %v3823
  %v3920 = vadd.f32 %v3343, %v3828
  %v3921 = vadd.f32 %v3344, %v3831
  %v3922 = vadd.f32 %v3345, %v3836
  %v3923 = vadd.f32 %v3346, %v3839
  %v3924 = vadd.f32 %v3347, %v3844
  %v3925 = vadd.f32 %v3348, %v3847
  %v3926 = vadd.f32 %v3349, %v3852
  %v3927 = vadd.f32 %v3350, %v3855
  %v3928 = vadd.f32 %v3351, %v3860
  %v3929 = vadd.f32 %v3352, %v3863
  %v3930 = vld [vmem:[%s0 + $0x28] sm:$0xff]
  %v3931 = vld [vmem:[%s0 + $0x30] sm:$0xff]
  %v3932 = vld [vmem:[%s0 + $0x38] sm:$0xff]
  %v3933 = vld [vmem:[%s0 + $0x40] sm:$0xff]
  %v3934 = vld [vmem:[%s0 + $0x48] sm:$0xff]
  %v3935 = vld [vmem:[%s0 + $0x50] sm:$0xff]
  %v3936 = vld [vmem:[%s0 + $0x58] sm:$0xff]
  %v3937 = vld [vmem:[%s0 + $0x60] sm:$0xff]
  %v3938 = vld [vmem:[%s0 + $0x68] sm:$0xff]
  %v3939 = vld [vmem:[%s0 + $0x70] sm:$0xff]
  %v3940 = vld [vmem:[%s0 + $0x78] sm:$0xff]
  %v3941 = vld [vmem:[%s0 + $0x80] sm:$0xff]
  %v3942 = vld [vmem:[%s0 + $0x88] sm:$0xff]
  %v3943 = vld [vmem:[%s0 + $0x90] sm:$0xff]
  %v3944 = vld [vmem:[%s0 + $0x98] sm:$0xff]
  %v3945 = vld [vmem:[%s0 + $0xa0] sm:$0xff]
  %v3946 = vld [vmem:[%s0 + $0xa8] sm:$0xff]
  %v3947 = vld [vmem:[%s0 + $0xb0] sm:$0xff]
  %v3948 = vld [vmem:[%s0 + $0xb8] sm:$0xff]
  %v3949 = vld [vmem:[%s0 + $0xc0] sm:$0xff]
  %v3950 = vld [vmem:[%s0 + $0xc8] sm:$0xff]
  %v3951 = vld [vmem:[%s0 + $0xd0] sm:$0xff]
  %v3952 = vld [vmem:[%s0 + $0xd8] sm:$0xff]
  %v3953 = vld [vmem:[%s0 + $0xe0] sm:$0xff]
  %v3954 = vld [vmem:[%s0 + $0xe8] sm:$0xff]
  %v3955 = vld [vmem:[%s0 + $0xf0] sm:$0xff]
  %v3956 = vld [vmem:[%s0 + $0xf8] sm:$0xff]
  %v3957 = vld [vmem:[%s0 + $0x100] sm:$0xff]
  %v3958 = vld [vmem:[%s0 + $0x108] sm:$0xff]
  %v3959 = vld [vmem:[%s0 + $0x110] sm:$0xff]
  %v3960 = vld [vmem:[%s0 + $0x118] sm:$0xff]
  %v3961 = vld [vmem:[%s0 + $0x120] sm:$0xff]
  %v3962 = vld [vmem:[%s0 + $0x128] sm:$0xff]
  %v3963 = vld [vmem:[%s0 + $0x130] sm:$0xff]
  %v3964 = vld [vmem:[%s0 + $0x138] sm:$0xff]
  %v3965 = vld [vmem:[%s0 + $0x140] sm:$0xff]
  %v3966 = vld [vmem:[%s0 + $0x148] sm:$0xff]
  %v3967 = vld [vmem:[%s0 + $0x150] sm:$0xff]
  %v3968 = vld [vmem:[%s0 + $0x158] sm:$0xff]
  %v3969 = vld [vmem:[%s0 + $0x160] sm:$0xff]
  %v3970 = vld [vmem:[%s0 + $0x168] sm:$0xff]
  %v3971 = vld [vmem:[%s0 + $0x170] sm:$0xff]
  %v3972 = vld [vmem:[%s0 + $0x178] sm:$0xff]
  %v3973 = vld [vmem:[%s0 + $0x180] sm:$0xff]
  %v3974 = vld [vmem:[%s0 + $0x188] sm:$0xff]
  %v3975 = vld [vmem:[%s0 + $0x190] sm:$0xff]
  %v3976 = vld [vmem:[%s0 + $0x198] sm:$0xff]
  %v3977 = vld [vmem:[%s0 + $0x1a0] sm:$0xff]
  %v3978 = vld [vmem:[%s0 + $0x1a8] sm:$0xff]
  %v3979 = vld [vmem:[%s0 + $0x1b0] sm:$0xff]
  %v3980 = vld [vmem:[%s0 + $0x1b8] sm:$0xff]
  %v3981 = vld [vmem:[%s0 + $0x1c0] sm:$0xff]
  %v3982 = vld [vmem:[%s0 + $0x1c8] sm:$0xff]
  %v3983 = vld [vmem:[%s0 + $0x1d0] sm:$0xff]
  %v3984 = vld [vmem:[%s0 + $0x1d8] sm:$0xff]
  %v3985 = vld [vmem:[%s0 + $0x1e0] sm:$0xff]
  %v3986 = vld [vmem:[%s0 + $0x1e8] sm:$0xff]
  %v3987 = vld [vmem:[%s0 + $0x1f0] sm:$0xff]
  %v3988 = vld [vmem:[%s0 + $0x1f8] sm:$0xff]
  %v3989 = vld [vmem:[%s0 + $0x200] sm:$0xff]
  %v3990 = vld [vmem:[%s0 + $0x208] sm:$0xff]
  %v3991 = vld [vmem:[%s0 + $0x210] sm:$0xff]
  %v3992 = vld [vmem:[%s0 + $0x218] sm:$0xff]
  %v3993 = vld [vmem:[%s0 + $0x220] sm:$0xff]
  %v3994 = vpack.c.bf16 %v3931, %v3930
  %v3995 = vpack.c.bf16 %v3933, %v3932
  %v3996 = vpack.c.bf16 %v3935, %v3934
  %v3997 = vpack.c.bf16 %v3937, %v3936
  %v3998 = vpack.c.bf16 %v3939, %v3938
  %v3999 = vpack.c.bf16 %v3941, %v3940
  %v4000 = vpack.c.bf16 %v3943, %v3942
  %v4001 = vpack.c.bf16 %v3945, %v3944
  %v4002 = vpack.c.bf16 %v3947, %v3946
  %v4003 = vpack.c.bf16 %v3949, %v3948
  %v4004 = vpack.c.bf16 %v3951, %v3950
  %v4005 = vpack.c.bf16 %v3953, %v3952
  %v4006 = vpack.c.bf16 %v3955, %v3954
  %v4007 = vpack.c.bf16 %v3957, %v3956
  %v4008 = vpack.c.bf16 %v3959, %v3958
  %v4009 = vpack.c.bf16 %v3961, %v3960
  %v4010 = vpack.c.bf16 %v3963, %v3962
  %v4011 = vpack.c.bf16 %v3965, %v3964
  %v4012 = vpack.c.bf16 %v3967, %v3966
  %v4013 = vpack.c.bf16 %v3969, %v3968
  %v4014 = vpack.c.bf16 %v3971, %v3970
  %v4015 = vpack.c.bf16 %v3973, %v3972
  %v4016 = vpack.c.bf16 %v3975, %v3974
  %v4017 = vpack.c.bf16 %v3977, %v3976
  %v4018 = vpack.c.bf16 %v3979, %v3978
  %v4019 = vpack.c.bf16 %v3981, %v3980
  %v4020 = vpack.c.bf16 %v3983, %v3982
  %v4021 = vpack.c.bf16 %v3985, %v3984
  %v4022 = vpack.c.bf16 %v3987, %v3986
  %v4023 = vpack.c.bf16 %v3989, %v3988
  %v4024 = vpack.c.bf16 %v3991, %v3990
  %v4025 = vpack.c.bf16 %v3993, %v3992
  %v4026 = vld [vmem:[%s1 + $0xe0] sm:$0xf]
  %v4027 = vld [vmem:[%s1 + $0xe4] sm:$0xf]
  %v4028 = vld [vmem:[%s1 + $0xe8] sm:$0xf]
  %v4029 = vld [vmem:[%s1 + $0xec] sm:$0xf]
  %v4030 = vld [vmem:[%s1 + $0xf0] sm:$0xf]
  %v4031 = vld [vmem:[%s1 + $0xf4] sm:$0xf]
  %v4032 = vld [vmem:[%s1 + $0xf8] sm:$0xf]
  %v4033 = vld [vmem:[%s1 + $0xfc] sm:$0xf]
  %v4042 = vunpack.c.l.b16 %v4026
  %v4043 = vunpack.c.l.b16 %v4027
  %v4044 = vunpack.c.l.b16 %v4028
  %v4045 = vunpack.c.l.b16 %v4029
  %v4046 = vunpack.c.l.b16 %v4030
  %v4047 = vunpack.c.l.b16 %v4031
  %v4048 = vunpack.c.l.b16 %v4032
  %v4049 = vunpack.c.l.b16 %v4033
  %v4050 = vpack.c.b16 %v4043, %v4042
  %v4051 = vpack.c.b16 %v4045, %v4044
  %v4052 = vpack.c.b16 %v4047, %v4046
  %v4053 = vpack.c.b16 %v4049, %v4048
  %v4059 = vsel %vm250, %v3994, 0
  %v4062 = vsel %vm250, %v3995, 0
  %v4065 = vsel %vm250, %v3996, 0
  %v4068 = vsel %vm250, %v3997, 0
  %v4071 = vsel %vm250, %v3998, 0
  %v4074 = vsel %vm250, %v3999, 0
  %v4077 = vsel %vm250, %v4000, 0
  %v4080 = vsel %vm250, %v4001, 0
  %v4083 = vsel %vm250, %v4002, 0
  %v4086 = vsel %vm250, %v4003, 0
  %v4089 = vsel %vm250, %v4004, 0
  %v4092 = vsel %vm250, %v4005, 0
  %v4095 = vsel %vm250, %v4006, 0
  %v4098 = vsel %vm250, %v4007, 0
  %v4101 = vsel %vm250, %v4008, 0
  %v4104 = vsel %vm250, %v4009, 0
  %v4107 = vsel %vm250, %v4010, 0
  %v4110 = vsel %vm250, %v4011, 0
  %v4113 = vsel %vm250, %v4012, 0
  %v4116 = vsel %vm250, %v4013, 0
  %v4119 = vsel %vm250, %v4014, 0
  %v4122 = vsel %vm250, %v4015, 0
  %v4125 = vsel %vm250, %v4016, 0
  %v4128 = vsel %vm250, %v4017, 0
  %v4131 = vsel %vm250, %v4018, 0
  %v4134 = vsel %vm250, %v4019, 0
  %v4137 = vsel %vm250, %v4020, 0
  %v4140 = vsel %vm250, %v4021, 0
  %v4143 = vsel %vm250, %v4022, 0
  %v4146 = vsel %vm250, %v4023, 0
  %v4149 = vsel %vm250, %v4024, 0
  %v4152 = vsel %vm250, %v4025, 0
  %4154 = vmatprep.subr.bf16.mxu0 0
  %4155 = vmatpush1.bf16.msra.mxu0 %v4050
  %4156 = vmatprep.subr.bf16.mxu0 0
  %4157 = vmatpush1.bf16.msra.mxu0 %v4051
  %4158 = vmatprep.subr.bf16.mxu0 0
  %4159 = vmatpush1.bf16.msra.mxu0 %v4052
  %4160 = vmatprep.subr.bf16.mxu0 0
  %4161 = vmatpush1.bf16.msra.mxu0 %v4053
  %4162 = vmatprep.subr.bf16.mxu0 0
  %4163 = vmatpush1.bf16.msra.mxu0 0
  %4164 = vmatprep.subr.bf16.mxu0 0
  %4165 = vmatpush1.bf16.msra.mxu0 0
  %4166 = vmatprep.subr.bf16.mxu0 0
  %4167 = vmatpush1.bf16.msra.mxu0 0
  %4168 = vmatprep.subr.bf16.mxu0 0
  %4169 = vmatpush1.bf16.msra.mxu0 0
  %4170 = vmatprep.subr.bf16.mxu0 0
  %4171 = vmatpush1.bf16.msra.mxu0 0
  %4172 = vmatprep.subr.bf16.mxu0 0
  %4173 = vmatpush1.bf16.msra.mxu0 0
  %4174 = vmatprep.subr.bf16.mxu0 0
  %4175 = vmatpush1.bf16.msra.mxu0 0
  %4176 = vmatprep.subr.bf16.mxu0 0
  %4177 = vmatpush1.bf16.msra.mxu0 0
  %4178 = vmatprep.subr.bf16.mxu0 0
  %4179 = vmatpush1.bf16.msra.mxu0 0
  %4180 = vmatprep.subr.bf16.mxu0 0
  %4181 = vmatpush1.bf16.msra.mxu0 0
  %4182 = vmatprep.subr.bf16.mxu0 0
  %4183 = vmatpush1.bf16.msra.mxu0 0
  %4184 = vmatprep.subr.bf16.mxu0 0
  %4185 = vmatpush1.bf16.msra.mxu0 0
  %4186 = vmatprep.mubr.bf16.mxu0 0
  %4187 = vmatmul.mubr.bf16.gmra.mrb[0].mxu0 %v4059
  %v4188 = vpop.f32.mrb[0].mxu0
  %v4189 = vadd.f32 0.0, %v4188
  %v4190 = vpop.f32.mrb[0].mxu0
  %v4191 = vpop.f32.mrb[0].mxu0
  %v4192 = vadd.f32 0.0, %v4191
  %v4193 = vpop.f32.mrb[0].mxu0
  %4194 = vmatprep.mubr.bf16.mxu0 0
  %4195 = vmatmul.mubr.bf16.gmra.mrb[0].mxu0 %v4062
  %v4196 = vpop.f32.mrb[0].mxu0
  %v4197 = vadd.f32 0.0, %v4196
  %v4198 = vpop.f32.mrb[0].mxu0
  %v4199 = vpop.f32.mrb[0].mxu0
  %v4200 = vadd.f32 0.0, %v4199
  %v4201 = vpop.f32.mrb[0].mxu0
  %4202 = vmatprep.mubr.bf16.mxu0 0
  %4203 = vmatmul.mubr.bf16.gmra.mrb[0].mxu0 %v4065
  %v4204 = vpop.f32.mrb[0].mxu0
  %v4205 = vadd.f32 0.0, %v4204
  %v4206 = vpop.f32.mrb[0].mxu0
  %v4207 = vpop.f32.mrb[0].mxu0
  %v4208 = vadd.f32 0.0, %v4207
  %v4209 = vpop.f32.mrb[0].mxu0
  %4210 = vmatprep.mubr.bf16.mxu0 0
  %4211 = vmatmul.mubr.bf16.gmra.mrb[0].mxu0 %v4068
  %v4212 = vpop.f32.mrb[0].mxu0
  %v4213 = vadd.f32 0.0, %v4212
  %v4214 = vpop.f32.mrb[0].mxu0
  %v4215 = vpop.f32.mrb[0].mxu0
  %v4216 = vadd.f32 0.0, %v4215
  %v4217 = vpop.f32.mrb[0].mxu0
  %4218 = vmatprep.mubr.bf16.mxu0 0
  %4219 = vmatmul.mubr.bf16.gmra.mrb[0].mxu0 %v4071
  %v4220 = vpop.f32.mrb[0].mxu0
  %v4221 = vadd.f32 0.0, %v4220
  %v4222 = vpop.f32.mrb[0].mxu0
  %v4223 = vpop.f32.mrb[0].mxu0
  %v4224 = vadd.f32 0.0, %v4223
  %v4225 = vpop.f32.mrb[0].mxu0
  %4226 = vmatprep.mubr.bf16.mxu0 0
  %4227 = vmatmul.mubr.bf16.gmra.mrb[0].mxu0 %v4074
  %v4228 = vpop.f32.mrb[0].mxu0
  %v4229 = vadd.f32 0.0, %v4228
  %v4230 = vpop.f32.mrb[0].mxu0
  %v4231 = vpop.f32.mrb[0].mxu0
  %v4232 = vadd.f32 0.0, %v4231
  %v4233 = vpop.f32.mrb[0].mxu0
  %4234 = vmatprep.mubr.bf16.mxu0 0
  %4235 = vmatmul.mubr.bf16.gmra.mrb[0].mxu0 %v4077
  %v4236 = vpop.f32.mrb[0].mxu0
  %v4237 = vadd.f32 0.0, %v4236
  %v4238 = vpop.f32.mrb[0].mxu0
  %v4239 = vpop.f32.mrb[0].mxu0
  %v4240 = vadd.f32 0.0, %v4239
  %v4241 = vpop.f32.mrb[0].mxu0
  %4242 = vmatprep.mubr.bf16.mxu0 0
  %4243 = vmatmul.mubr.bf16.gmra.mrb[0].mxu0 %v4080
  %v4244 = vpop.f32.mrb[0].mxu0
  %v4245 = vadd.f32 0.0, %v4244
  %v4246 = vpop.f32.mrb[0].mxu0
  %v4247 = vpop.f32.mrb[0].mxu0
  %v4248 = vadd.f32 0.0, %v4247
  %v4249 = vpop.f32.mrb[0].mxu0
  %4250 = vmatprep.mubr.bf16.mxu0 0
  %4251 = vmatmul.mubr.bf16.gmra.mrb[0].mxu0 %v4083
  %v4252 = vpop.f32.mrb[0].mxu0
  %v4253 = vadd.f32 0.0, %v4252
  %v4254 = vpop.f32.mrb[0].mxu0
  %v4255 = vpop.f32.mrb[0].mxu0
  %v4256 = vadd.f32 0.0, %v4255
  %v4257 = vpop.f32.mrb[0].mxu0
  %4258 = vmatprep.mubr.bf16.mxu0 0
  %4259 = vmatmul.mubr.bf16.gmra.mrb[0].mxu0 %v4086
  %v4260 = vpop.f32.mrb[0].mxu0
  %v4261 = vadd.f32 0.0, %v4260
  %v4262 = vpop.f32.mrb[0].mxu0
  %v4263 = vpop.f32.mrb[0].mxu0
  %v4264 = vadd.f32 0.0, %v4263
  %v4265 = vpop.f32.mrb[0].mxu0
  %4266 = vmatprep.mubr.bf16.mxu0 0
  %4267 = vmatmul.mubr.bf16.gmra.mrb[0].mxu0 %v4089
  %v4268 = vpop.f32.mrb[0].mxu0
  %v4269 = vadd.f32 0.0, %v4268
  %v4270 = vpop.f32.mrb[0].mxu0
  %v4271 = vpop.f32.mrb[0].mxu0
  %v4272 = vadd.f32 0.0, %v4271
  %v4273 = vpop.f32.mrb[0].mxu0
  %4274 = vmatprep.mubr.bf16.mxu0 0
  %4275 = vmatmul.mubr.bf16.gmra.mrb[0].mxu0 %v4092
  %v4276 = vpop.f32.mrb[0].mxu0
  %v4277 = vadd.f32 0.0, %v4276
  %v4278 = vpop.f32.mrb[0].mxu0
  %v4279 = vpop.f32.mrb[0].mxu0
  %v4280 = vadd.f32 0.0, %v4279
  %v4281 = vpop.f32.mrb[0].mxu0
  %4282 = vmatprep.mubr.bf16.mxu0 0
  %4283 = vmatmul.mubr.bf16.gmra.mrb[0].mxu0 %v4095
  %v4284 = vpop.f32.mrb[0].mxu0
  %v4285 = vadd.f32 0.0, %v4284
  %v4286 = vpop.f32.mrb[0].mxu0
  %v4287 = vpop.f32.mrb[0].mxu0
  %v4288 = vadd.f32 0.0, %v4287
  %v4289 = vpop.f32.mrb[0].mxu0
  %4290 = vmatprep.mubr.bf16.mxu0 0
  %4291 = vmatmul.mubr.bf16.gmra.mrb[0].mxu0 %v4098
  %v4292 = vpop.f32.mrb[0].mxu0
  %v4293 = vadd.f32 0.0, %v4292
  %v4294 = vpop.f32.mrb[0].mxu0
  %v4295 = vpop.f32.mrb[0].mxu0
  %v4296 = vadd.f32 0.0, %v4295
  %v4297 = vpop.f32.mrb[0].mxu0
  %4298 = vmatprep.mubr.bf16.mxu0 0
  %4299 = vmatmul.mubr.bf16.gmra.mrb[0].mxu0 %v4101
  %v4300 = vpop.f32.mrb[0].mxu0
  %v4301 = vadd.f32 0.0, %v4300
  %v4302 = vpop.f32.mrb[0].mxu0
  %v4303 = vpop.f32.mrb[0].mxu0
  %v4304 = vadd.f32 0.0, %v4303
  %v4305 = vpop.f32.mrb[0].mxu0
  %4306 = vmatprep.mubr.bf16.mxu0 0
  %4307 = vmatmul.mubr.bf16.gmra.mrb[0].mxu0 %v4104
  %v4308 = vpop.f32.mrb[0].mxu0
  %v4309 = vadd.f32 0.0, %v4308
  %v4310 = vpop.f32.mrb[0].mxu0
  %v4311 = vpop.f32.mrb[0].mxu0
  %v4312 = vadd.f32 0.0, %v4311
  %v4313 = vpop.f32.mrb[0].mxu0
  %4314 = vmatprep.mubr.bf16.mxu0 0
  %4315 = vmatmul.mubr.bf16.gmra.mrb[0].mxu0 %v4107
  %v4316 = vpop.f32.mrb[0].mxu0
  %v4317 = vadd.f32 0.0, %v4316
  %v4318 = vpop.f32.mrb[0].mxu0
  %v4319 = vpop.f32.mrb[0].mxu0
  %v4320 = vadd.f32 0.0, %v4319
  %v4321 = vpop.f32.mrb[0].mxu0
  %4322 = vmatprep.mubr.bf16.mxu0 0
  %4323 = vmatmul.mubr.bf16.gmra.mrb[0].mxu0 %v4110
  %v4324 = vpop.f32.mrb[0].mxu0
  %v4325 = vadd.f32 0.0, %v4324
  %v4326 = vpop.f32.mrb[0].mxu0
  %v4327 = vpop.f32.mrb[0].mxu0
  %v4328 = vadd.f32 0.0, %v4327
  %v4329 = vpop.f32.mrb[0].mxu0
  %4330 = vmatprep.mubr.bf16.mxu0 0
  %4331 = vmatmul.mubr.bf16.gmra.mrb[0].mxu0 %v4113
  %v4332 = vpop.f32.mrb[0].mxu0
  %v4333 = vadd.f32 0.0, %v4332
  %v4334 = vpop.f32.mrb[0].mxu0
  %v4335 = vpop.f32.mrb[0].mxu0
  %v4336 = vadd.f32 0.0, %v4335
  %v4337 = vpop.f32.mrb[0].mxu0
  %4338 = vmatprep.mubr.bf16.mxu0 0
  %4339 = vmatmul.mubr.bf16.gmra.mrb[0].mxu0 %v4116
  %v4340 = vpop.f32.mrb[0].mxu0
  %v4341 = vadd.f32 0.0, %v4340
  %v4342 = vpop.f32.mrb[0].mxu0
  %v4343 = vpop.f32.mrb[0].mxu0
  %v4344 = vadd.f32 0.0, %v4343
  %v4345 = vpop.f32.mrb[0].mxu0
  %4346 = vmatprep.mubr.bf16.mxu0 0
  %4347 = vmatmul.mubr.bf16.gmra.mrb[0].mxu0 %v4119
  %v4348 = vpop.f32.mrb[0].mxu0
  %v4349 = vadd.f32 0.0, %v4348
  %v4350 = vpop.f32.mrb[0].mxu0
  %v4351 = vpop.f32.mrb[0].mxu0
  %v4352 = vadd.f32 0.0, %v4351
  %v4353 = vpop.f32.mrb[0].mxu0
  %4354 = vmatprep.mubr.bf16.mxu0 0
  %4355 = vmatmul.mubr.bf16.gmra.mrb[0].mxu0 %v4122
  %v4356 = vpop.f32.mrb[0].mxu0
  %v4357 = vadd.f32 0.0, %v4356
  %v4358 = vpop.f32.mrb[0].mxu0
  %v4359 = vpop.f32.mrb[0].mxu0
  %v4360 = vadd.f32 0.0, %v4359
  %v4361 = vpop.f32.mrb[0].mxu0
  %4362 = vmatprep.mubr.bf16.mxu0 0
  %4363 = vmatmul.mubr.bf16.gmra.mrb[0].mxu0 %v4125
  %v4364 = vpop.f32.mrb[0].mxu0
  %v4365 = vadd.f32 0.0, %v4364
  %v4366 = vpop.f32.mrb[0].mxu0
  %v4367 = vpop.f32.mrb[0].mxu0
  %v4368 = vadd.f32 0.0, %v4367
  %v4369 = vpop.f32.mrb[0].mxu0
  %4370 = vmatprep.mubr.bf16.mxu0 0
  %4371 = vmatmul.mubr.bf16.gmra.mrb[0].mxu0 %v4128
  %v4372 = vpop.f32.mrb[0].mxu0
  %v4373 = vadd.f32 0.0, %v4372
  %v4374 = vpop.f32.mrb[0].mxu0
  %v4375 = vpop.f32.mrb[0].mxu0
  %v4376 = vadd.f32 0.0, %v4375
  %v4377 = vpop.f32.mrb[0].mxu0
  %4378 = vmatprep.mubr.bf16.mxu0 0
  %4379 = vmatmul.mubr.bf16.gmra.mrb[0].mxu0 %v4131
  %v4380 = vpop.f32.mrb[0].mxu0
  %v4381 = vadd.f32 0.0, %v4380
  %v4382 = vpop.f32.mrb[0].mxu0
  %v4383 = vpop.f32.mrb[0].mxu0
  %v4384 = vadd.f32 0.0, %v4383
  %v4385 = vpop.f32.mrb[0].mxu0
  %4386 = vmatprep.mubr.bf16.mxu0 0
  %4387 = vmatmul.mubr.bf16.gmra.mrb[0].mxu0 %v4134
  %v4388 = vpop.f32.mrb[0].mxu0
  %v4389 = vadd.f32 0.0, %v4388
  %v4390 = vpop.f32.mrb[0].mxu0
  %v4391 = vpop.f32.mrb[0].mxu0
  %v4392 = vadd.f32 0.0, %v4391
  %v4393 = vpop.f32.mrb[0].mxu0
  %4394 = vmatprep.mubr.bf16.mxu0 0
  %4395 = vmatmul.mubr.bf16.gmra.mrb[0].mxu0 %v4137
  %v4396 = vpop.f32.mrb[0].mxu0
  %v4397 = vadd.f32 0.0, %v4396
  %v4398 = vpop.f32.mrb[0].mxu0
  %v4399 = vpop.f32.mrb[0].mxu0
  %v4400 = vadd.f32 0.0, %v4399
  %v4401 = vpop.f32.mrb[0].mxu0
  %4402 = vmatprep.mubr.bf16.mxu0 0
  %4403 = vmatmul.mubr.bf16.gmra.mrb[0].mxu0 %v4140
  %v4404 = vpop.f32.mrb[0].mxu0
  %v4405 = vadd.f32 0.0, %v4404
  %v4406 = vpop.f32.mrb[0].mxu0
  %v4407 = vpop.f32.mrb[0].mxu0
  %v4408 = vadd.f32 0.0, %v4407
  %v4409 = vpop.f32.mrb[0].mxu0
  %4410 = vmatprep.mubr.bf16.mxu0 0
  %4411 = vmatmul.mubr.bf16.gmra.mrb[0].mxu0 %v4143
  %v4412 = vpop.f32.mrb[0].mxu0
  %v4413 = vadd.f32 0.0, %v4412
  %v4414 = vpop.f32.mrb[0].mxu0
  %v4415 = vpop.f32.mrb[0].mxu0
  %v4416 = vadd.f32 0.0, %v4415
  %v4417 = vpop.f32.mrb[0].mxu0
  %4418 = vmatprep.mubr.bf16.mxu0 0
  %4419 = vmatmul.mubr.bf16.gmra.mrb[0].mxu0 %v4146
  %v4420 = vpop.f32.mrb[0].mxu0
  %v4421 = vadd.f32 0.0, %v4420
  %v4422 = vpop.f32.mrb[0].mxu0
  %v4423 = vpop.f32.mrb[0].mxu0
  %v4424 = vadd.f32 0.0, %v4423
  %v4425 = vpop.f32.mrb[0].mxu0
  %4426 = vmatprep.mubr.bf16.mxu0 0
  %4427 = vmatmul.mubr.bf16.gmra.mrb[0].mxu0 %v4149
  %v4428 = vpop.f32.mrb[0].mxu0
  %v4429 = vadd.f32 0.0, %v4428
  %v4430 = vpop.f32.mrb[0].mxu0
  %v4431 = vpop.f32.mrb[0].mxu0
  %v4432 = vadd.f32 0.0, %v4431
  %v4433 = vpop.f32.mrb[0].mxu0
  %4434 = vmatprep.mubr.bf16.mxu0 0
  %4435 = vmatmul.mubr.bf16.gmra.mrb[0].mxu0 %v4152
  %v4436 = vpop.f32.mrb[0].mxu0
  %v4437 = vadd.f32 0.0, %v4436
  %v4438 = vpop.f32.mrb[0].mxu0
  %v4439 = vpop.f32.mrb[0].mxu0
  %v4440 = vadd.f32 0.0, %v4439
  %v4441 = vpop.f32.mrb[0].mxu0
  %4442 = vdwg.mxu0
  %v4443 = vadd.f32 %v3866, %v4189
  %v4444 = vadd.f32 %v3867, %v4192
  %v4445 = vadd.f32 %v3868, %v4197
  %v4446 = vadd.f32 %v3869, %v4200
  %v4447 = vadd.f32 %v3870, %v4205
  %v4448 = vadd.f32 %v3871, %v4208
  %v4449 = vadd.f32 %v3872, %v4213
  %v4450 = vadd.f32 %v3873, %v4216
  %v4451 = vadd.f32 %v3874, %v4221
  %v4452 = vadd.f32 %v3875, %v4224
  %v4453 = vadd.f32 %v3876, %v4229
  %v4454 = vadd.f32 %v3877, %v4232
  %v4455 = vadd.f32 %v3878, %v4237
  %v4456 = vadd.f32 %v3879, %v4240
  %v4457 = vadd.f32 %v3880, %v4245
  %v4458 = vadd.f32 %v3881, %v4248
  %v4459 = vadd.f32 %v3882, %v4253
  %v4460 = vadd.f32 %v3883, %v4256
  %v4461 = vadd.f32 %v3884, %v4261
  %v4462 = vadd.f32 %v3885, %v4264
  %v4463 = vadd.f32 %v3886, %v4269
  %v4464 = vadd.f32 %v3887, %v4272
  %v4465 = vadd.f32 %v3888, %v4277
  %v4466 = vadd.f32 %v3889, %v4280
  %v4467 = vadd.f32 %v3890, %v4285
  %v4468 = vadd.f32 %v3891, %v4288
  %v4469 = vadd.f32 %v3892, %v4293
  %v4470 = vadd.f32 %v3893, %v4296
  %v4471 = vadd.f32 %v3894, %v4301
  %v4472 = vadd.f32 %v3895, %v4304
  %v4473 = vadd.f32 %v3896, %v4309
  %v4474 = vadd.f32 %v3897, %v4312
  %v4475 = vadd.f32 %v3898, %v4317
  %v4476 = vadd.f32 %v3899, %v4320
  %v4477 = vadd.f32 %v3900, %v4325
  %v4478 = vadd.f32 %v3901, %v4328
  %v4479 = vadd.f32 %v3902, %v4333
  %v4480 = vadd.f32 %v3903, %v4336
  %v4481 = vadd.f32 %v3904, %v4341
  %v4482 = vadd.f32 %v3905, %v4344
  %v4483 = vadd.f32 %v3906, %v4349
  %v4484 = vadd.f32 %v3907, %v4352
  %v4485 = vadd.f32 %v3908, %v4357
  %v4486 = vadd.f32 %v3909, %v4360
  %v4487 = vadd.f32 %v3910, %v4365
  %v4488 = vadd.f32 %v3911, %v4368
  %v4489 = vadd.f32 %v3912, %v4373
  %v4490 = vadd.f32 %v3913, %v4376
  %v4491 = vadd.f32 %v3914, %v4381
  %v4492 = vadd.f32 %v3915, %v4384
  %v4493 = vadd.f32 %v3916, %v4389
  %v4494 = vadd.f32 %v3917, %v4392
  %v4495 = vadd.f32 %v3918, %v4397
  %v4496 = vadd.f32 %v3919, %v4400
  %v4497 = vadd.f32 %v3920, %v4405
  %v4498 = vadd.f32 %v3921, %v4408
  %v4499 = vadd.f32 %v3922, %v4413
  %v4500 = vadd.f32 %v3923, %v4416
  %v4501 = vadd.f32 %v3924, %v4421
  %v4502 = vadd.f32 %v3925, %v4424
  %v4503 = vadd.f32 %v3926, %v4429
  %v4504 = vadd.f32 %v3927, %v4432
  %v4505 = vadd.f32 %v3928, %v4437
  %v4506 = vadd.f32 %v3929, %v4440
  %v4507 = vld [vmem:[%s0 + $0x29] sm:$0xff]
  %v4508 = vld [vmem:[%s0 + $0x31] sm:$0xff]
  %v4509 = vld [vmem:[%s0 + $0x39] sm:$0xff]
  %v4510 = vld [vmem:[%s0 + $0x41] sm:$0xff]
  %v4511 = vld [vmem:[%s0 + $0x49] sm:$0xff]
  %v4512 = vld [vmem:[%s0 + $0x51] sm:$0xff]
  %v4513 = vld [vmem:[%s0 + $0x59] sm:$0xff]
  %v4514 = vld [vmem:[%s0 + $0x61] sm:$0xff]
  %v4515 = vld [vmem:[%s0 + $0x69] sm:$0xff]
  %v4516 = vld [vmem:[%s0 + $0x71] sm:$0xff]
  %v4517 = vld [vmem:[%s0 + $0x79] sm:$0xff]
  %v4518 = vld [vmem:[%s0 + $0x81] sm:$0xff]
  %v4519 = vld [vmem:[%s0 + $0x89] sm:$0xff]
  %v4520 = vld [vmem:[%s0 + $0x91] sm:$0xff]
  %v4521 = vld [vmem:[%s0 + $0x99] sm:$0xff]
  %v4522 = vld [vmem:[%s0 + $0xa1] sm:$0xff]
  %v4523 = vld [vmem:[%s0 + $0xa9] sm:$0xff]
  %v4524 = vld [vmem:[%s0 + $0xb1] sm:$0xff]
  %v4525 = vld [vmem:[%s0 + $0xb9] sm:$0xff]
  %v4526 = vld [vmem:[%s0 + $0xc1] sm:$0xff]
  %v4527 = vld [vmem:[%s0 + $0xc9] sm:$0xff]
  %v4528 = vld [vmem:[%s0 + $0xd1] sm:$0xff]
  %v4529 = vld [vmem:[%s0 + $0xd9] sm:$0xff]
  %v4530 = vld [vmem:[%s0 + $0xe1] sm:$0xff]
  %v4531 = vld [vmem:[%s0 + $0xe9] sm:$0xff]
  %v4532 = vld [vmem:[%s0 + $0xf1] sm:$0xff]
  %v4533 = vld [vmem:[%s0 + $0xf9] sm:$0xff]
  %v4534 = vld [vmem:[%s0 + $0x101] sm:$0xff]
  %v4535 = vld [vmem:[%s0 + $0x109] sm:$0xff]
  %v4536 = vld [vmem:[%s0 + $0x111] sm:$0xff]
  %v4537 = vld [vmem:[%s0 + $0x119] sm:$0xff]
  %v4538 = vld [vmem:[%s0 + $0x121] sm:$0xff]
  %v4539 = vld [vmem:[%s0 + $0x129] sm:$0xff]
  %v4540 = vld [vmem:[%s0 + $0x131] sm:$0xff]
  %v4541 = vld [vmem:[%s0 + $0x139] sm:$0xff]
  %v4542 = vld [vmem:[%s0 + $0x141] sm:$0xff]
  %v4543 = vld [vmem:[%s0 + $0x149] sm:$0xff]
  %v4544 = vld [vmem:[%s0 + $0x151] sm:$0xff]
  %v4545 = vld [vmem:[%s0 + $0x159] sm:$0xff]
  %v4546 = vld [vmem:[%s0 + $0x161] sm:$0xff]
  %v4547 = vld [vmem:[%s0 + $0x169] sm:$0xff]
  %v4548 = vld [vmem:[%s0 + $0x171] sm:$0xff]
  %v4549 = vld [vmem:[%s0 + $0x179] sm:$0xff]
  %v4550 = vld [vmem:[%s0 + $0x181] sm:$0xff]
  %v4551 = vld [vmem:[%s0 + $0x189] sm:$0xff]
  %v4552 = vld [vmem:[%s0 + $0x191] sm:$0xff]
  %v4553 = vld [vmem:[%s0 + $0x199] sm:$0xff]
  %v4554 = vld [vmem:[%s0 + $0x1a1] sm:$0xff]
  %v4555 = vld [vmem:[%s0 + $0x1a9] sm:$0xff]
  %v4556 = vld [vmem:[%s0 + $0x1b1] sm:$0xff]
  %v4557 = vld [vmem:[%s0 + $0x1b9] sm:$0xff]
  %v4558 = vld [vmem:[%s0 + $0x1c1] sm:$0xff]
  %v4559 = vld [vmem:[%s0 + $0x1c9] sm:$0xff]
  %v4560 = vld [vmem:[%s0 + $0x1d1] sm:$0xff]
  %v4561 = vld [vmem:[%s0 + $0x1d9] sm:$0xff]
  %v4562 = vld [vmem:[%s0 + $0x1e1] sm:$0xff]
  %v4563 = vld [vmem:[%s0 + $0x1e9] sm:$0xff]
  %v4564 = vld [vmem:[%s0 + $0x1f1] sm:$0xff]
  %v4565 = vld [vmem:[%s0 + $0x1f9] sm:$0xff]
  %v4566 = vld [vmem:[%s0 + $0x201] sm:$0xff]
  %v4567 = vld [vmem:[%s0 + $0x209] sm:$0xff]
  %v4568 = vld [vmem:[%s0 + $0x211] sm:$0xff]
  %v4569 = vld [vmem:[%s0 + $0x219] sm:$0xff]
  %v4570 = vld [vmem:[%s0 + $0x221] sm:$0xff]
  %v4571 = vpack.c.bf16 %v4508, %v4507
  %v4572 = vpack.c.bf16 %v4510, %v4509
  %v4573 = vpack.c.bf16 %v4512, %v4511
  %v4574 = vpack.c.bf16 %v4514, %v4513
  %v4575 = vpack.c.bf16 %v4516, %v4515
  %v4576 = vpack.c.bf16 %v4518, %v4517
  %v4577 = vpack.c.bf16 %v4520, %v4519
  %v4578 = vpack.c.bf16 %v4522, %v4521
  %v4579 = vpack.c.bf16 %v4524, %v4523
  %v4580 = vpack.c.bf16 %v4526, %v4525
  %v4581 = vpack.c.bf16 %v4528, %v4527
  %v4582 = vpack.c.bf16 %v4530, %v4529
  %v4583 = vpack.c.bf16 %v4532, %v4531
  %v4584 = vpack.c.bf16 %v4534, %v4533
  %v4585 = vpack.c.bf16 %v4536, %v4535
  %v4586 = vpack.c.bf16 %v4538, %v4537
  %v4587 = vpack.c.bf16 %v4540, %v4539
  %v4588 = vpack.c.bf16 %v4542, %v4541
  %v4589 = vpack.c.bf16 %v4544, %v4543
  %v4590 = vpack.c.bf16 %v4546, %v4545
  %v4591 = vpack.c.bf16 %v4548, %v4547
  %v4592 = vpack.c.bf16 %v4550, %v4549
  %v4593 = vpack.c.bf16 %v4552, %v4551
  %v4594 = vpack.c.bf16 %v4554, %v4553
  %v4595 = vpack.c.bf16 %v4556, %v4555
  %v4596 = vpack.c.bf16 %v4558, %v4557
  %v4597 = vpack.c.bf16 %v4560, %v4559
  %v4598 = vpack.c.bf16 %v4562, %v4561
  %v4599 = vpack.c.bf16 %v4564, %v4563
  %v4600 = vpack.c.bf16 %v4566, %v4565
  %v4601 = vpack.c.bf16 %v4568, %v4567
  %v4602 = vpack.c.bf16 %v4570, %v4569
  %v4603 = vld [vmem:[%s1 + $0x100] sm:$0xf]
  %v4604 = vld [vmem:[%s1 + $0x104] sm:$0xf]
  %v4605 = vld [vmem:[%s1 + $0x108] sm:$0xf]
  %v4606 = vld [vmem:[%s1 + $0x10c] sm:$0xf]
  %v4607 = vld [vmem:[%s1 + $0x110] sm:$0xf]
  %v4608 = vld [vmem:[%s1 + $0x114] sm:$0xf]
  %v4609 = vld [vmem:[%s1 + $0x118] sm:$0xf]
  %v4610 = vld [vmem:[%s1 + $0x11c] sm:$0xf]
  %v4619 = vunpack.c.l.b16 %v4603
  %v4620 = vunpack.c.l.b16 %v4604
  %v4621 = vunpack.c.l.b16 %v4605
  %v4622 = vunpack.c.l.b16 %v4606
  %v4623 = vunpack.c.l.b16 %v4607
  %v4624 = vunpack.c.l.b16 %v4608
  %v4625 = vunpack.c.l.b16 %v4609
  %v4626 = vunpack.c.l.b16 %v4610
  %v4627 = vpack.c.b16 %v4620, %v4619
  %v4628 = vpack.c.b16 %v4622, %v4621
  %v4629 = vpack.c.b16 %v4624, %v4623
  %v4630 = vpack.c.b16 %v4626, %v4625
  %v4636 = vsel %vm250, %v4571, 0
  %v4639 = vsel %vm250, %v4572, 0
  %v4642 = vsel %vm250, %v4573, 0
  %v4645 = vsel %vm250, %v4574, 0
  %v4648 = vsel %vm250, %v4575, 0
  %v4651 = vsel %vm250, %v4576, 0
  %v4654 = vsel %vm250, %v4577, 0
  %v4657 = vsel %vm250, %v4578, 0
  %v4660 = vsel %vm250, %v4579, 0
  %v4663 = vsel %vm250, %v4580, 0
  %v4666 = vsel %vm250, %v4581, 0
  %v4669 = vsel %vm250, %v4582, 0
  %v4672 = vsel %vm250, %v4583, 0
  %v4675 = vsel %vm250, %v4584, 0
  %v4678 = vsel %vm250, %v4585, 0
  %v4681 = vsel %vm250, %v4586, 0
  %v4684 = vsel %vm250, %v4587, 0
  %v4687 = vsel %vm250, %v4588, 0
  %v4690 = vsel %vm250, %v4589, 0
  %v4693 = vsel %vm250, %v4590, 0
  %v4696 = vsel %vm250, %v4591, 0
  %v4699 = vsel %vm250, %v4592, 0
  %v4702 = vsel %vm250, %v4593, 0
  %v4705 = vsel %vm250, %v4594, 0
  %v4708 = vsel %vm250, %v4595, 0
  %v4711 = vsel %vm250, %v4596, 0
  %v4714 = vsel %vm250, %v4597, 0
  %v4717 = vsel %vm250, %v4598, 0
  %v4720 = vsel %vm250, %v4599, 0
  %v4723 = vsel %vm250, %v4600, 0
  %v4726 = vsel %vm250, %v4601, 0
  %v4729 = vsel %vm250, %v4602, 0
  %4731 = vmatprep.subr.bf16.mxu0 0
  %4732 = vmatpush1.bf16.msra.mxu0 %v4627
  %4733 = vmatprep.subr.bf16.mxu0 0
  %4734 = vmatpush1.bf16.msra.mxu0 %v4628
  %4735 = vmatprep.subr.bf16.mxu0 0
  %4736 = vmatpush1.bf16.msra.mxu0 %v4629
  %4737 = vmatprep.subr.bf16.mxu0 0
  %4738 = vmatpush1.bf16.msra.mxu0 %v4630
  %4739 = vmatprep.subr.bf16.mxu0 0
  %4740 = vmatpush1.bf16.msra.mxu0 0
  %4741 = vmatprep.subr.bf16.mxu0 0
  %4742 = vmatpush1.bf16.msra.mxu0 0
  %4743 = vmatprep.subr.bf16.mxu0 0
  %4744 = vmatpush1.bf16.msra.mxu0 0
  %4745 = vmatprep.subr.bf16.mxu0 0
  %4746 = vmatpush1.bf16.msra.mxu0 0
  %4747 = vmatprep.subr.bf16.mxu0 0
  %4748 = vmatpush1.bf16.msra.mxu0 0
  %4749 = vmatprep.subr.bf16.mxu0 0
  %4750 = vmatpush1.bf16.msra.mxu0 0
  %4751 = vmatprep.subr.bf16.mxu0 0
  %4752 = vmatpush1.bf16.msra.mxu0 0
  %4753 = vmatprep.subr.bf16.mxu0 0
  %4754 = vmatpush1.bf16.msra.mxu0 0
  %4755 = vmatprep.subr.bf16.mxu0 0
  %4756 = vmatpush1.bf16.msra.mxu0 0
  %4757 = vmatprep.subr.bf16.mxu0 0
  %4758 = vmatpush1.bf16.msra.mxu0 0
  %4759 = vmatprep.subr.bf16.mxu0 0
  %4760 = vmatpush1.bf16.msra.mxu0 0
  %4761 = vmatprep.subr.bf16.mxu0 0
  %4762 = vmatpush1.bf16.msra.mxu0 0
  %4763 = vmatprep.mubr.bf16.mxu0 0
  %4764 = vmatmul.mubr.bf16.gmra.mrb[0].mxu0 %v4636
  %v4765 = vpop.f32.mrb[0].mxu0
  %v4766 = vadd.f32 0.0, %v4765
  %v4767 = vpop.f32.mrb[0].mxu0
  %v4768 = vpop.f32.mrb[0].mxu0
  %v4769 = vadd.f32 0.0, %v4768
  %v4770 = vpop.f32.mrb[0].mxu0
  %4771 = vmatprep.mubr.bf16.mxu0 0
  %4772 = vmatmul.mubr.bf16.gmra.mrb[0].mxu0 %v4639
  %v4773 = vpop.f32.mrb[0].mxu0
  %v4774 = vadd.f32 0.0, %v4773
  %v4775 = vpop.f32.mrb[0].mxu0
  %v4776 = vpop.f32.mrb[0].mxu0
  %v4777 = vadd.f32 0.0, %v4776
  %v4778 = vpop.f32.mrb[0].mxu0
  %4779 = vmatprep.mubr.bf16.mxu0 0
  %4780 = vmatmul.mubr.bf16.gmra.mrb[0].mxu0 %v4642
  %v4781 = vpop.f32.mrb[0].mxu0
  %v4782 = vadd.f32 0.0, %v4781
  %v4783 = vpop.f32.mrb[0].mxu0
  %v4784 = vpop.f32.mrb[0].mxu0
  %v4785 = vadd.f32 0.0, %v4784
  %v4786 = vpop.f32.mrb[0].mxu0
  %4787 = vmatprep.mubr.bf16.mxu0 0
  %4788 = vmatmul.mubr.bf16.gmra.mrb[0].mxu0 %v4645
  %v4789 = vpop.f32.mrb[0].mxu0
  %v4790 = vadd.f32 0.0, %v4789
  %v4791 = vpop.f32.mrb[0].mxu0
  %v4792 = vpop.f32.mrb[0].mxu0
  %v4793 = vadd.f32 0.0, %v4792
  %v4794 = vpop.f32.mrb[0].mxu0
  %4795 = vmatprep.mubr.bf16.mxu0 0
  %4796 = vmatmul.mubr.bf16.gmra.mrb[0].mxu0 %v4648
  %v4797 = vpop.f32.mrb[0].mxu0
  %v4798 = vadd.f32 0.0, %v4797
  %v4799 = vpop.f32.mrb[0].mxu0
  %v4800 = vpop.f32.mrb[0].mxu0
  %v4801 = vadd.f32 0.0, %v4800
  %v4802 = vpop.f32.mrb[0].mxu0
  %4803 = vmatprep.mubr.bf16.mxu0 0
  %4804 = vmatmul.mubr.bf16.gmra.mrb[0].mxu0 %v4651
  %v4805 = vpop.f32.mrb[0].mxu0
  %v4806 = vadd.f32 0.0, %v4805
  %v4807 = vpop.f32.mrb[0].mxu0
  %v4808 = vpop.f32.mrb[0].mxu0
  %v4809 = vadd.f32 0.0, %v4808
  %v4810 = vpop.f32.mrb[0].mxu0
  %4811 = vmatprep.mubr.bf16.mxu0 0
  %4812 = vmatmul.mubr.bf16.gmra.mrb[0].mxu0 %v4654
  %v4813 = vpop.f32.mrb[0].mxu0
  %v4814 = vadd.f32 0.0, %v4813
  %v4815 = vpop.f32.mrb[0].mxu0
  %v4816 = vpop.f32.mrb[0].mxu0
  %v4817 = vadd.f32 0.0, %v4816
  %v4818 = vpop.f32.mrb[0].mxu0
  %4819 = vmatprep.mubr.bf16.mxu0 0
  %4820 = vmatmul.mubr.bf16.gmra.mrb[0].mxu0 %v4657
  %v4821 = vpop.f32.mrb[0].mxu0
  %v4822 = vadd.f32 0.0, %v4821
  %v4823 = vpop.f32.mrb[0].mxu0
  %v4824 = vpop.f32.mrb[0].mxu0
  %v4825 = vadd.f32 0.0, %v4824
  %v4826 = vpop.f32.mrb[0].mxu0
  %4827 = vmatprep.mubr.bf16.mxu0 0
  %4828 = vmatmul.mubr.bf16.gmra.mrb[0].mxu0 %v4660
  %v4829 = vpop.f32.mrb[0].mxu0
  %v4830 = vadd.f32 0.0, %v4829
  %v4831 = vpop.f32.mrb[0].mxu0
  %v4832 = vpop.f32.mrb[0].mxu0
  %v4833 = vadd.f32 0.0, %v4832
  %v4834 = vpop.f32.mrb[0].mxu0
  %4835 = vmatprep.mubr.bf16.mxu0 0
  %4836 = vmatmul.mubr.bf16.gmra.mrb[0].mxu0 %v4663
  %v4837 = vpop.f32.mrb[0].mxu0
  %v4838 = vadd.f32 0.0, %v4837
  %v4839 = vpop.f32.mrb[0].mxu0
  %v4840 = vpop.f32.mrb[0].mxu0
  %v4841 = vadd.f32 0.0, %v4840
  %v4842 = vpop.f32.mrb[0].mxu0
  %4843 = vmatprep.mubr.bf16.mxu0 0
  %4844 = vmatmul.mubr.bf16.gmra.mrb[0].mxu0 %v4666
  %v4845 = vpop.f32.mrb[0].mxu0
  %v4846 = vadd.f32 0.0, %v4845
  %v4847 = vpop.f32.mrb[0].mxu0
  %v4848 = vpop.f32.mrb[0].mxu0
  %v4849 = vadd.f32 0.0, %v4848
  %v4850 = vpop.f32.mrb[0].mxu0
  %4851 = vmatprep.mubr.bf16.mxu0 0
  %4852 = vmatmul.mubr.bf16.gmra.mrb[0].mxu0 %v4669
  %v4853 = vpop.f32.mrb[0].mxu0
  %v4854 = vadd.f32 0.0, %v4853
  %v4855 = vpop.f32.mrb[0].mxu0
  %v4856 = vpop.f32.mrb[0].mxu0
  %v4857 = vadd.f32 0.0, %v4856
  %v4858 = vpop.f32.mrb[0].mxu0
  %4859 = vmatprep.mubr.bf16.mxu0 0
  %4860 = vmatmul.mubr.bf16.gmra.mrb[0].mxu0 %v4672
  %v4861 = vpop.f32.mrb[0].mxu0
  %v4862 = vadd.f32 0.0, %v4861
  %v4863 = vpop.f32.mrb[0].mxu0
  %v4864 = vpop.f32.mrb[0].mxu0
  %v4865 = vadd.f32 0.0, %v4864
  %v4866 = vpop.f32.mrb[0].mxu0
  %4867 = vmatprep.mubr.bf16.mxu0 0
  %4868 = vmatmul.mubr.bf16.gmra.mrb[0].mxu0 %v4675
  %v4869 = vpop.f32.mrb[0].mxu0
  %v4870 = vadd.f32 0.0, %v4869
  %v4871 = vpop.f32.mrb[0].mxu0
  %v4872 = vpop.f32.mrb[0].mxu0
  %v4873 = vadd.f32 0.0, %v4872
  %v4874 = vpop.f32.mrb[0].mxu0
  %4875 = vmatprep.mubr.bf16.mxu0 0
  %4876 = vmatmul.mubr.bf16.gmra.mrb[0].mxu0 %v4678
  %v4877 = vpop.f32.mrb[0].mxu0
  %v4878 = vadd.f32 0.0, %v4877
  %v4879 = vpop.f32.mrb[0].mxu0
  %v4880 = vpop.f32.mrb[0].mxu0
  %v4881 = vadd.f32 0.0, %v4880
  %v4882 = vpop.f32.mrb[0].mxu0
  %4883 = vmatprep.mubr.bf16.mxu0 0
  %4884 = vmatmul.mubr.bf16.gmra.mrb[0].mxu0 %v4681
  %v4885 = vpop.f32.mrb[0].mxu0
  %v4886 = vadd.f32 0.0, %v4885
  %v4887 = vpop.f32.mrb[0].mxu0
  %v4888 = vpop.f32.mrb[0].mxu0
  %v4889 = vadd.f32 0.0, %v4888
  %v4890 = vpop.f32.mrb[0].mxu0
  %4891 = vmatprep.mubr.bf16.mxu0 0
  %4892 = vmatmul.mubr.bf16.gmra.mrb[0].mxu0 %v4684
  %v4893 = vpop.f32.mrb[0].mxu0
  %v4894 = vadd.f32 0.0, %v4893
  %v4895 = vpop.f32.mrb[0].mxu0
  %v4896 = vpop.f32.mrb[0].mxu0
  %v4897 = vadd.f32 0.0, %v4896
  %v4898 = vpop.f32.mrb[0].mxu0
  %4899 = vmatprep.mubr.bf16.mxu0 0
  %4900 = vmatmul.mubr.bf16.gmra.mrb[0].mxu0 %v4687
  %v4901 = vpop.f32.mrb[0].mxu0
  %v4902 = vadd.f32 0.0, %v4901
  %v4903 = vpop.f32.mrb[0].mxu0
  %v4904 = vpop.f32.mrb[0].mxu0
  %v4905 = vadd.f32 0.0, %v4904
  %v4906 = vpop.f32.mrb[0].mxu0
  %4907 = vmatprep.mubr.bf16.mxu0 0
  %4908 = vmatmul.mubr.bf16.gmra.mrb[0].mxu0 %v4690
  %v4909 = vpop.f32.mrb[0].mxu0
  %v4910 = vadd.f32 0.0, %v4909
  %v4911 = vpop.f32.mrb[0].mxu0
  %v4912 = vpop.f32.mrb[0].mxu0
  %v4913 = vadd.f32 0.0, %v4912
  %v4914 = vpop.f32.mrb[0].mxu0
  %4915 = vmatprep.mubr.bf16.mxu0 0
  %4916 = vmatmul.mubr.bf16.gmra.mrb[0].mxu0 %v4693
  %v4917 = vpop.f32.mrb[0].mxu0
  %v4918 = vadd.f32 0.0, %v4917
  %v4919 = vpop.f32.mrb[0].mxu0
  %v4920 = vpop.f32.mrb[0].mxu0
  %v4921 = vadd.f32 0.0, %v4920
  %v4922 = vpop.f32.mrb[0].mxu0
  %4923 = vmatprep.mubr.bf16.mxu0 0
  %4924 = vmatmul.mubr.bf16.gmra.mrb[0].mxu0 %v4696
  %v4925 = vpop.f32.mrb[0].mxu0
  %v4926 = vadd.f32 0.0, %v4925
  %v4927 = vpop.f32.mrb[0].mxu0
  %v4928 = vpop.f32.mrb[0].mxu0
  %v4929 = vadd.f32 0.0, %v4928
  %v4930 = vpop.f32.mrb[0].mxu0
  %4931 = vmatprep.mubr.bf16.mxu0 0
  %4932 = vmatmul.mubr.bf16.gmra.mrb[0].mxu0 %v4699
  %v4933 = vpop.f32.mrb[0].mxu0
  %v4934 = vadd.f32 0.0, %v4933
  %v4935 = vpop.f32.mrb[0].mxu0
  %v4936 = vpop.f32.mrb[0].mxu0
  %v4937 = vadd.f32 0.0, %v4936
  %v4938 = vpop.f32.mrb[0].mxu0
  %4939 = vmatprep.mubr.bf16.mxu0 0
  %4940 = vmatmul.mubr.bf16.gmra.mrb[0].mxu0 %v4702
  %v4941 = vpop.f32.mrb[0].mxu0
  %v4942 = vadd.f32 0.0, %v4941
  %v4943 = vpop.f32.mrb[0].mxu0
  %v4944 = vpop.f32.mrb[0].mxu0
  %v4945 = vadd.f32 0.0, %v4944
  %v4946 = vpop.f32.mrb[0].mxu0
  %4947 = vmatprep.mubr.bf16.mxu0 0
  %4948 = vmatmul.mubr.bf16.gmra.mrb[0].mxu0 %v4705
  %v4949 = vpop.f32.mrb[0].mxu0
  %v4950 = vadd.f32 0.0, %v4949
  %v4951 = vpop.f32.mrb[0].mxu0
  %v4952 = vpop.f32.mrb[0].mxu0
  %v4953 = vadd.f32 0.0, %v4952
  %v4954 = vpop.f32.mrb[0].mxu0
  %4955 = vmatprep.mubr.bf16.mxu0 0
  %4956 = vmatmul.mubr.bf16.gmra.mrb[0].mxu0 %v4708
  %v4957 = vpop.f32.mrb[0].mxu0
  %v4958 = vadd.f32 0.0, %v4957
  %v4959 = vpop.f32.mrb[0].mxu0
  %v4960 = vpop.f32.mrb[0].mxu0
  %v4961 = vadd.f32 0.0, %v4960
  %v4962 = vpop.f32.mrb[0].mxu0
  %4963 = vmatprep.mubr.bf16.mxu0 0
  %4964 = vmatmul.mubr.bf16.gmra.mrb[0].mxu0 %v4711
  %v4965 = vpop.f32.mrb[0].mxu0
  %v4966 = vadd.f32 0.0, %v4965
  %v4967 = vpop.f32.mrb[0].mxu0
  %v4968 = vpop.f32.mrb[0].mxu0
  %v4969 = vadd.f32 0.0, %v4968
  %v4970 = vpop.f32.mrb[0].mxu0
  %4971 = vmatprep.mubr.bf16.mxu0 0
  %4972 = vmatmul.mubr.bf16.gmra.mrb[0].mxu0 %v4714
  %v4973 = vpop.f32.mrb[0].mxu0
  %v4974 = vadd.f32 0.0, %v4973
  %v4975 = vpop.f32.mrb[0].mxu0
  %v4976 = vpop.f32.mrb[0].mxu0
  %v4977 = vadd.f32 0.0, %v4976
  %v4978 = vpop.f32.mrb[0].mxu0
  %4979 = vmatprep.mubr.bf16.mxu0 0
  %4980 = vmatmul.mubr.bf16.gmra.mrb[0].mxu0 %v4717
  %v4981 = vpop.f32.mrb[0].mxu0
  %v4982 = vadd.f32 0.0, %v4981
  %v4983 = vpop.f32.mrb[0].mxu0
  %v4984 = vpop.f32.mrb[0].mxu0
  %v4985 = vadd.f32 0.0, %v4984
  %v4986 = vpop.f32.mrb[0].mxu0
  %4987 = vmatprep.mubr.bf16.mxu0 0
  %4988 = vmatmul.mubr.bf16.gmra.mrb[0].mxu0 %v4720
  %v4989 = vpop.f32.mrb[0].mxu0
  %v4990 = vadd.f32 0.0, %v4989
  %v4991 = vpop.f32.mrb[0].mxu0
  %v4992 = vpop.f32.mrb[0].mxu0
  %v4993 = vadd.f32 0.0, %v4992
  %v4994 = vpop.f32.mrb[0].mxu0
  %4995 = vmatprep.mubr.bf16.mxu0 0
  %4996 = vmatmul.mubr.bf16.gmra.mrb[0].mxu0 %v4723
  %v4997 = vpop.f32.mrb[0].mxu0
  %v4998 = vadd.f32 0.0, %v4997
  %v4999 = vpop.f32.mrb[0].mxu0
  %v5000 = vpop.f32.mrb[0].mxu0
  %v5001 = vadd.f32 0.0, %v5000
  %v5002 = vpop.f32.mrb[0].mxu0
  %5003 = vmatprep.mubr.bf16.mxu0 0
  %5004 = vmatmul.mubr.bf16.gmra.mrb[0].mxu0 %v4726
  %v5005 = vpop.f32.mrb[0].mxu0
  %v5006 = vadd.f32 0.0, %v5005
  %v5007 = vpop.f32.mrb[0].mxu0
  %v5008 = vpop.f32.mrb[0].mxu0
  %v5009 = vadd.f32 0.0, %v5008
  %v5010 = vpop.f32.mrb[0].mxu0
  %5011 = vmatprep.mubr.bf16.mxu0 0
  %5012 = vmatmul.mubr.bf16.gmra.mrb[0].mxu0 %v4729
  %v5013 = vpop.f32.mrb[0].mxu0
  %v5014 = vadd.f32 0.0, %v5013
  %v5015 = vpop.f32.mrb[0].mxu0
  %v5016 = vpop.f32.mrb[0].mxu0
  %v5017 = vadd.f32 0.0, %v5016
  %v5018 = vpop.f32.mrb[0].mxu0
  %5019 = vdwg.mxu0
  %v5020 = vadd.f32 %v4443, %v4766
  %v5021 = vadd.f32 %v4444, %v4769
  %v5022 = vadd.f32 %v4445, %v4774
  %v5023 = vadd.f32 %v4446, %v4777
  %v5024 = vadd.f32 %v4447, %v4782
  %v5025 = vadd.f32 %v4448, %v4785
  %v5026 = vadd.f32 %v4449, %v4790
  %v5027 = vadd.f32 %v4450, %v4793
  %v5028 = vadd.f32 %v4451, %v4798
  %v5029 = vadd.f32 %v4452, %v4801
  %v5030 = vadd.f32 %v4453, %v4806
  %v5031 = vadd.f32 %v4454, %v4809
  %v5032 = vadd.f32 %v4455, %v4814
  %v5033 = vadd.f32 %v4456, %v4817
  %v5034 = vadd.f32 %v4457, %v4822
  %v5035 = vadd.f32 %v4458, %v4825
  %v5036 = vadd.f32 %v4459, %v4830
  %v5037 = vadd.f32 %v4460, %v4833
  %v5038 = vadd.f32 %v4461, %v4838
  %v5039 = vadd.f32 %v4462, %v4841
  %v5040 = vadd.f32 %v4463, %v4846
  %v5041 = vadd.f32 %v4464, %v4849
  %v5042 = vadd.f32 %v4465, %v4854
  %v5043 = vadd.f32 %v4466, %v4857
  %v5044 = vadd.f32 %v4467, %v4862
  %v5045 = vadd.f32 %v4468, %v4865
  %v5046 = vadd.f32 %v4469, %v4870
  %v5047 = vadd.f32 %v4470, %v4873
  %v5048 = vadd.f32 %v4471, %v4878
  %v5049 = vadd.f32 %v4472, %v4881
  %v5050 = vadd.f32 %v4473, %v4886
  %v5051 = vadd.f32 %v4474, %v4889
  %v5052 = vadd.f32 %v4475, %v4894
  %v5053 = vadd.f32 %v4476, %v4897
  %v5054 = vadd.f32 %v4477, %v4902
  %v5055 = vadd.f32 %v4478, %v4905
  %v5056 = vadd.f32 %v4479, %v4910
  %v5057 = vadd.f32 %v4480, %v4913
  %v5058 = vadd.f32 %v4481, %v4918
  %v5059 = vadd.f32 %v4482, %v4921
  %v5060 = vadd.f32 %v4483, %v4926
  %v5061 = vadd.f32 %v4484, %v4929
  %v5062 = vadd.f32 %v4485, %v4934
  %v5063 = vadd.f32 %v4486, %v4937
  %v5064 = vadd.f32 %v4487, %v4942
  %v5065 = vadd.f32 %v4488, %v4945
  %v5066 = vadd.f32 %v4489, %v4950
  %v5067 = vadd.f32 %v4490, %v4953
  %v5068 = vadd.f32 %v4491, %v4958
  %v5069 = vadd.f32 %v4492, %v4961
  %v5070 = vadd.f32 %v4493, %v4966
  %v5071 = vadd.f32 %v4494, %v4969
  %v5072 = vadd.f32 %v4495, %v4974
  %v5073 = vadd.f32 %v4496, %v4977
  %v5074 = vadd.f32 %v4497, %v4982
  %v5075 = vadd.f32 %v4498, %v4985
  %v5076 = vadd.f32 %v4499, %v4990
  %v5077 = vadd.f32 %v4500, %v4993
  %v5078 = vadd.f32 %v4501, %v4998
  %v5079 = vadd.f32 %v4502, %v5001
  %v5080 = vadd.f32 %v4503, %v5006
  %v5081 = vadd.f32 %v4504, %v5009
  %v5082 = vadd.f32 %v4505, %v5014
  %v5083 = vadd.f32 %v4506, %v5017
  %v5084 = vld [vmem:[%s2] sm:$0x1]
  %v5086 = vlaneseq
  %v5087 = vshrl.u32 %v5086, 7
  %v5088 = vsub.s32 0, %v5087
  %v5089 = vrot.slane %v5084, %v5088
  %v5091 = vmul.f32 %v5020, %v5089
  %v5092 = vmul.f32 %v5021, %v5089
  %v5093 = vmul.f32 %v5022, %v5089
  %v5094 = vmul.f32 %v5023, %v5089
  %v5095 = vmul.f32 %v5024, %v5089
  %v5096 = vmul.f32 %v5025, %v5089
  %v5097 = vmul.f32 %v5026, %v5089
  %v5098 = vmul.f32 %v5027, %v5089
  %v5099 = vmul.f32 %v5028, %v5089
  %v5100 = vmul.f32 %v5029, %v5089
  %v5101 = vmul.f32 %v5030, %v5089
  %v5102 = vmul.f32 %v5031, %v5089
  %v5103 = vmul.f32 %v5032, %v5089
  %v5104 = vmul.f32 %v5033, %v5089
  %v5105 = vmul.f32 %v5034, %v5089
  %v5106 = vmul.f32 %v5035, %v5089
  %v5107 = vmul.f32 %v5036, %v5089
  %v5108 = vmul.f32 %v5037, %v5089
  %v5109 = vmul.f32 %v5038, %v5089
  %v5110 = vmul.f32 %v5039, %v5089
  %v5111 = vmul.f32 %v5040, %v5089
  %v5112 = vmul.f32 %v5041, %v5089
  %v5113 = vmul.f32 %v5042, %v5089
  %v5114 = vmul.f32 %v5043, %v5089
  %v5115 = vmul.f32 %v5044, %v5089
  %v5116 = vmul.f32 %v5045, %v5089
  %v5117 = vmul.f32 %v5046, %v5089
  %v5118 = vmul.f32 %v5047, %v5089
  %v5119 = vmul.f32 %v5048, %v5089
  %v5120 = vmul.f32 %v5049, %v5089
  %v5121 = vmul.f32 %v5050, %v5089
  %v5122 = vmul.f32 %v5051, %v5089
  %v5123 = vmul.f32 %v5052, %v5089
  %v5124 = vmul.f32 %v5053, %v5089
  %v5125 = vmul.f32 %v5054, %v5089
  %v5126 = vmul.f32 %v5055, %v5089
  %v5127 = vmul.f32 %v5056, %v5089
  %v5128 = vmul.f32 %v5057, %v5089
  %v5129 = vmul.f32 %v5058, %v5089
  %v5130 = vmul.f32 %v5059, %v5089
  %v5131 = vmul.f32 %v5060, %v5089
  %v5132 = vmul.f32 %v5061, %v5089
  %v5133 = vmul.f32 %v5062, %v5089
  %v5134 = vmul.f32 %v5063, %v5089
  %v5135 = vmul.f32 %v5064, %v5089
  %v5136 = vmul.f32 %v5065, %v5089
  %v5137 = vmul.f32 %v5066, %v5089
  %v5138 = vmul.f32 %v5067, %v5089
  %v5139 = vmul.f32 %v5068, %v5089
  %v5140 = vmul.f32 %v5069, %v5089
  %v5141 = vmul.f32 %v5070, %v5089
  %v5142 = vmul.f32 %v5071, %v5089
  %v5143 = vmul.f32 %v5072, %v5089
  %v5144 = vmul.f32 %v5073, %v5089
  %v5145 = vmul.f32 %v5074, %v5089
  %v5146 = vmul.f32 %v5075, %v5089
  %v5147 = vmul.f32 %v5076, %v5089
  %v5148 = vmul.f32 %v5077, %v5089
  %v5149 = vmul.f32 %v5078, %v5089
  %v5150 = vmul.f32 %v5079, %v5089
  %v5151 = vmul.f32 %v5080, %v5089
  %v5152 = vmul.f32 %v5081, %v5089
  %v5153 = vmul.f32 %v5082, %v5089
  %v5154 = vmul.f32 %v5083, %v5089
  %v5155 = vld [vmem:[%s3] sm:$0x1]
  %v5157 = vlaneseq
  %v5158 = vshrl.u32 %v5157, 7
  %v5159 = vsub.s32 0, %v5158
  %v5160 = vrot.slane %v5155, %v5159
  %v5162 = vadd.f32 %v5091, %v5160
  %v5163 = vadd.f32 %v5092, %v5160
  %v5164 = vadd.f32 %v5093, %v5160
  %v5165 = vadd.f32 %v5094, %v5160
  %v5166 = vadd.f32 %v5095, %v5160
  %v5167 = vadd.f32 %v5096, %v5160
  %v5168 = vadd.f32 %v5097, %v5160
  %v5169 = vadd.f32 %v5098, %v5160
  %v5170 = vadd.f32 %v5099, %v5160
  %v5171 = vadd.f32 %v5100, %v5160
  %v5172 = vadd.f32 %v5101, %v5160
  %v5173 = vadd.f32 %v5102, %v5160
  %v5174 = vadd.f32 %v5103, %v5160
  %v5175 = vadd.f32 %v5104, %v5160
  %v5176 = vadd.f32 %v5105, %v5160
  %v5177 = vadd.f32 %v5106, %v5160
  %v5178 = vadd.f32 %v5107, %v5160
  %v5179 = vadd.f32 %v5108, %v5160
  %v5180 = vadd.f32 %v5109, %v5160
  %v5181 = vadd.f32 %v5110, %v5160
  %v5182 = vadd.f32 %v5111, %v5160
  %v5183 = vadd.f32 %v5112, %v5160
  %v5184 = vadd.f32 %v5113, %v5160
  %v5185 = vadd.f32 %v5114, %v5160
  %v5186 = vadd.f32 %v5115, %v5160
  %v5187 = vadd.f32 %v5116, %v5160
  %v5188 = vadd.f32 %v5117, %v5160
  %v5189 = vadd.f32 %v5118, %v5160
  %v5190 = vadd.f32 %v5119, %v5160
  %v5191 = vadd.f32 %v5120, %v5160
  %v5192 = vadd.f32 %v5121, %v5160
  %v5193 = vadd.f32 %v5122, %v5160
  %v5194 = vadd.f32 %v5123, %v5160
  %v5195 = vadd.f32 %v5124, %v5160
  %v5196 = vadd.f32 %v5125, %v5160
  %v5197 = vadd.f32 %v5126, %v5160
  %v5198 = vadd.f32 %v5127, %v5160
  %v5199 = vadd.f32 %v5128, %v5160
  %v5200 = vadd.f32 %v5129, %v5160
  %v5201 = vadd.f32 %v5130, %v5160
  %v5202 = vadd.f32 %v5131, %v5160
  %v5203 = vadd.f32 %v5132, %v5160
  %v5204 = vadd.f32 %v5133, %v5160
  %v5205 = vadd.f32 %v5134, %v5160
  %v5206 = vadd.f32 %v5135, %v5160
  %v5207 = vadd.f32 %v5136, %v5160
  %v5208 = vadd.f32 %v5137, %v5160
  %v5209 = vadd.f32 %v5138, %v5160
  %v5210 = vadd.f32 %v5139, %v5160
  %v5211 = vadd.f32 %v5140, %v5160
  %v5212 = vadd.f32 %v5141, %v5160
  %v5213 = vadd.f32 %v5142, %v5160
  %v5214 = vadd.f32 %v5143, %v5160
  %v5215 = vadd.f32 %v5144, %v5160
  %v5216 = vadd.f32 %v5145, %v5160
  %v5217 = vadd.f32 %v5146, %v5160
  %v5218 = vadd.f32 %v5147, %v5160
  %v5219 = vadd.f32 %v5148, %v5160
  %v5220 = vadd.f32 %v5149, %v5160
  %v5221 = vadd.f32 %v5150, %v5160
  %v5222 = vadd.f32 %v5151, %v5160
  %v5223 = vadd.f32 %v5152, %v5160
  %v5224 = vadd.f32 %v5153, %v5160
  %v5225 = vadd.f32 %v5154, %v5160
  %v5226 = vxor.u32 %v5162, 2147483648
  %v5227 = vxor.u32 %v5163, 2147483648
  %v5228 = vxor.u32 %v5164, 2147483648
  %v5229 = vxor.u32 %v5165, 2147483648
  %v5230 = vxor.u32 %v5166, 2147483648
  %v5231 = vxor.u32 %v5167, 2147483648
  %v5232 = vxor.u32 %v5168, 2147483648
  %v5233 = vxor.u32 %v5169, 2147483648
  %v5234 = vxor.u32 %v5170, 2147483648
  %v5235 = vxor.u32 %v5171, 2147483648
  %v5236 = vxor.u32 %v5172, 2147483648
  %v5237 = vxor.u32 %v5173, 2147483648
  %v5238 = vxor.u32 %v5174, 2147483648
  %v5239 = vxor.u32 %v5175, 2147483648
  %v5240 = vxor.u32 %v5176, 2147483648
  %v5241 = vxor.u32 %v5177, 2147483648
  %v5242 = vxor.u32 %v5178, 2147483648
  %v5243 = vxor.u32 %v5179, 2147483648
  %v5244 = vxor.u32 %v5180, 2147483648
  %v5245 = vxor.u32 %v5181, 2147483648
  %v5246 = vxor.u32 %v5182, 2147483648
  %v5247 = vxor.u32 %v5183, 2147483648
  %v5248 = vxor.u32 %v5184, 2147483648
  %v5249 = vxor.u32 %v5185, 2147483648
  %v5250 = vxor.u32 %v5186, 2147483648
  %v5251 = vxor.u32 %v5187, 2147483648
  %v5252 = vxor.u32 %v5188, 2147483648
  %v5253 = vxor.u32 %v5189, 2147483648
  %v5254 = vxor.u32 %v5190, 2147483648
  %v5255 = vxor.u32 %v5191, 2147483648
  %v5256 = vxor.u32 %v5192, 2147483648
  %v5257 = vxor.u32 %v5193, 2147483648
  %v5258 = vxor.u32 %v5194, 2147483648
  %v5259 = vxor.u32 %v5195, 2147483648
  %v5260 = vxor.u32 %v5196, 2147483648
  %v5261 = vxor.u32 %v5197, 2147483648
  %v5262 = vxor.u32 %v5198, 2147483648
  %v5263 = vxor.u32 %v5199, 2147483648
  %v5264 = vxor.u32 %v5200, 2147483648
  %v5265 = vxor.u32 %v5201, 2147483648
  %v5266 = vxor.u32 %v5202, 2147483648
  %v5267 = vxor.u32 %v5203, 2147483648
  %v5268 = vxor.u32 %v5204, 2147483648
  %v5269 = vxor.u32 %v5205, 2147483648
  %v5270 = vxor.u32 %v5206, 2147483648
  %v5271 = vxor.u32 %v5207, 2147483648
  %v5272 = vxor.u32 %v5208, 2147483648
  %v5273 = vxor.u32 %v5209, 2147483648
  %v5274 = vxor.u32 %v5210, 2147483648
  %v5275 = vxor.u32 %v5211, 2147483648
  %v5276 = vxor.u32 %v5212, 2147483648
  %v5277 = vxor.u32 %v5213, 2147483648
  %v5278 = vxor.u32 %v5214, 2147483648
  %v5279 = vxor.u32 %v5215, 2147483648
  %v5280 = vxor.u32 %v5216, 2147483648
  %v5281 = vxor.u32 %v5217, 2147483648
  %v5282 = vxor.u32 %v5218, 2147483648
  %v5283 = vxor.u32 %v5219, 2147483648
  %v5284 = vxor.u32 %v5220, 2147483648
  %v5285 = vxor.u32 %v5221, 2147483648
  %v5286 = vxor.u32 %v5222, 2147483648
  %v5287 = vxor.u32 %v5223, 2147483648
  %v5288 = vxor.u32 %v5224, 2147483648
  %v5289 = vxor.u32 %v5225, 2147483648
  %v5290 = vmul.f32 %v5226, 1.442695
  %v5291 = vpow.pop %v5290
  %v5292 = vmul.f32 %v5227, 1.442695
  %v5293 = vpow.pop %v5292
  %v5294 = vmul.f32 %v5228, 1.442695
  %v5295 = vpow.pop %v5294
  %v5296 = vmul.f32 %v5229, 1.442695
  %v5297 = vpow.pop %v5296
  %v5298 = vmul.f32 %v5230, 1.442695
  %v5299 = vpow.pop %v5298
  %v5300 = vmul.f32 %v5231, 1.442695
  %v5301 = vpow.pop %v5300
  %v5302 = vmul.f32 %v5232, 1.442695
  %v5303 = vpow.pop %v5302
  %v5304 = vmul.f32 %v5233, 1.442695
  %v5305 = vpow.pop %v5304
  %v5306 = vmul.f32 %v5234, 1.442695
  %v5307 = vpow.pop %v5306
  %v5308 = vmul.f32 %v5235, 1.442695
  %v5309 = vpow.pop %v5308
  %v5310 = vmul.f32 %v5236, 1.442695
  %v5311 = vpow.pop %v5310
  %v5312 = vmul.f32 %v5237, 1.442695
  %v5313 = vpow.pop %v5312
  %v5314 = vmul.f32 %v5238, 1.442695
  %v5315 = vpow.pop %v5314
  %v5316 = vmul.f32 %v5239, 1.442695
  %v5317 = vpow.pop %v5316
  %v5318 = vmul.f32 %v5240, 1.442695
  %v5319 = vpow.pop %v5318
  %v5320 = vmul.f32 %v5241, 1.442695
  %v5321 = vpow.pop %v5320
  %v5322 = vmul.f32 %v5242, 1.442695
  %v5323 = vpow.pop %v5322
  %v5324 = vmul.f32 %v5243, 1.442695
  %v5325 = vpow.pop %v5324
  %v5326 = vmul.f32 %v5244, 1.442695
  %v5327 = vpow.pop %v5326
  %v5328 = vmul.f32 %v5245, 1.442695
  %v5329 = vpow.pop %v5328
  %v5330 = vmul.f32 %v5246, 1.442695
  %v5331 = vpow.pop %v5330
  %v5332 = vmul.f32 %v5247, 1.442695
  %v5333 = vpow.pop %v5332
  %v5334 = vmul.f32 %v5248, 1.442695
  %v5335 = vpow.pop %v5334
  %v5336 = vmul.f32 %v5249, 1.442695
  %v5337 = vpow.pop %v5336
  %v5338 = vmul.f32 %v5250, 1.442695
  %v5339 = vpow.pop %v5338
  %v5340 = vmul.f32 %v5251, 1.442695
  %v5341 = vpow.pop %v5340
  %v5342 = vmul.f32 %v5252, 1.442695
  %v5343 = vpow.pop %v5342
  %v5344 = vmul.f32 %v5253, 1.442695
  %v5345 = vpow.pop %v5344
  %v5346 = vmul.f32 %v5254, 1.442695
  %v5347 = vpow.pop %v5346
  %v5348 = vmul.f32 %v5255, 1.442695
  %v5349 = vpow.pop %v5348
  %v5350 = vmul.f32 %v5256, 1.442695
  %v5351 = vpow.pop %v5350
  %v5352 = vmul.f32 %v5257, 1.442695
  %v5353 = vpow.pop %v5352
  %v5354 = vmul.f32 %v5258, 1.442695
  %v5355 = vpow.pop %v5354
  %v5356 = vmul.f32 %v5259, 1.442695
  %v5357 = vpow.pop %v5356
  %v5358 = vmul.f32 %v5260, 1.442695
  %v5359 = vpow.pop %v5358
  %v5360 = vmul.f32 %v5261, 1.442695
  %v5361 = vpow.pop %v5360
  %v5362 = vmul.f32 %v5262, 1.442695
  %v5363 = vpow.pop %v5362
  %v5364 = vmul.f32 %v5263, 1.442695
  %v5365 = vpow.pop %v5364
  %v5366 = vmul.f32 %v5264, 1.442695
  %v5367 = vpow.pop %v5366
  %v5368 = vmul.f32 %v5265, 1.442695
  %v5369 = vpow.pop %v5368
  %v5370 = vmul.f32 %v5266, 1.442695
  %v5371 = vpow.pop %v5370
  %v5372 = vmul.f32 %v5267, 1.442695
  %v5373 = vpow.pop %v5372
  %v5374 = vmul.f32 %v5268, 1.442695
  %v5375 = vpow.pop %v5374
  %v5376 = vmul.f32 %v5269, 1.442695
  %v5377 = vpow.pop %v5376
  %v5378 = vmul.f32 %v5270, 1.442695
  %v5379 = vpow.pop %v5378
  %v5380 = vmul.f32 %v5271, 1.442695
  %v5381 = vpow.pop %v5380
  %v5382 = vmul.f32 %v5272, 1.442695
  %v5383 = vpow.pop %v5382
  %v5384 = vmul.f32 %v5273, 1.442695
  %v5385 = vpow.pop %v5384
  %v5386 = vmul.f32 %v5274, 1.442695
  %v5387 = vpow.pop %v5386
  %v5388 = vmul.f32 %v5275, 1.442695
  %v5389 = vpow.pop %v5388
  %v5390 = vmul.f32 %v5276, 1.442695
  %v5391 = vpow.pop %v5390
  %v5392 = vmul.f32 %v5277, 1.442695
  %v5393 = vpow.pop %v5392
  %v5394 = vmul.f32 %v5278, 1.442695
  %v5395 = vpow.pop %v5394
  %v5396 = vmul.f32 %v5279, 1.442695
  %v5397 = vpow.pop %v5396
  %v5398 = vmul.f32 %v5280, 1.442695
  %v5399 = vpow.pop %v5398
  %v5400 = vmul.f32 %v5281, 1.442695
  %v5401 = vpow.pop %v5400
  %v5402 = vmul.f32 %v5282, 1.442695
  %v5403 = vpow.pop %v5402
  %v5404 = vmul.f32 %v5283, 1.442695
  %v5405 = vpow.pop %v5404
  %v5406 = vmul.f32 %v5284, 1.442695
  %v5407 = vpow.pop %v5406
  %v5408 = vmul.f32 %v5285, 1.442695
  %v5409 = vpow.pop %v5408
  %v5410 = vmul.f32 %v5286, 1.442695
  %v5411 = vpow.pop %v5410
  %v5412 = vmul.f32 %v5287, 1.442695
  %v5413 = vpow.pop %v5412
  %v5414 = vmul.f32 %v5288, 1.442695
  %v5415 = vpow.pop %v5414
  %v5416 = vmul.f32 %v5289, 1.442695
  %v5417 = vpow.pop %v5416
  %v5418 = vadd.f32 %v5291, 1.0
  %v5419 = vadd.f32 %v5293, 1.0
  %v5420 = vadd.f32 %v5295, 1.0
  %v5421 = vadd.f32 %v5297, 1.0
  %v5422 = vadd.f32 %v5299, 1.0
  %v5423 = vadd.f32 %v5301, 1.0
  %v5424 = vadd.f32 %v5303, 1.0
  %v5425 = vadd.f32 %v5305, 1.0
  %v5426 = vadd.f32 %v5307, 1.0
  %v5427 = vadd.f32 %v5309, 1.0
  %v5428 = vadd.f32 %v5311, 1.0
  %v5429 = vadd.f32 %v5313, 1.0
  %v5430 = vadd.f32 %v5315, 1.0
  %v5431 = vadd.f32 %v5317, 1.0
  %v5432 = vadd.f32 %v5319, 1.0
  %v5433 = vadd.f32 %v5321, 1.0
  %v5434 = vadd.f32 %v5323, 1.0
  %v5435 = vadd.f32 %v5325, 1.0
  %v5436 = vadd.f32 %v5327, 1.0
  %v5437 = vadd.f32 %v5329, 1.0
  %v5438 = vadd.f32 %v5331, 1.0
  %v5439 = vadd.f32 %v5333, 1.0
  %v5440 = vadd.f32 %v5335, 1.0
  %v5441 = vadd.f32 %v5337, 1.0
  %v5442 = vadd.f32 %v5339, 1.0
  %v5443 = vadd.f32 %v5341, 1.0
  %v5444 = vadd.f32 %v5343, 1.0
  %v5445 = vadd.f32 %v5345, 1.0
  %v5446 = vadd.f32 %v5347, 1.0
  %v5447 = vadd.f32 %v5349, 1.0
  %v5448 = vadd.f32 %v5351, 1.0
  %v5449 = vadd.f32 %v5353, 1.0
  %v5450 = vadd.f32 %v5355, 1.0
  %v5451 = vadd.f32 %v5357, 1.0
  %v5452 = vadd.f32 %v5359, 1.0
  %v5453 = vadd.f32 %v5361, 1.0
  %v5454 = vadd.f32 %v5363, 1.0
  %v5455 = vadd.f32 %v5365, 1.0
  %v5456 = vadd.f32 %v5367, 1.0
  %v5457 = vadd.f32 %v5369, 1.0
  %v5458 = vadd.f32 %v5371, 1.0
  %v5459 = vadd.f32 %v5373, 1.0
  %v5460 = vadd.f32 %v5375, 1.0
  %v5461 = vadd.f32 %v5377, 1.0
  %v5462 = vadd.f32 %v5379, 1.0
  %v5463 = vadd.f32 %v5381, 1.0
  %v5464 = vadd.f32 %v5383, 1.0
  %v5465 = vadd.f32 %v5385, 1.0
  %v5466 = vadd.f32 %v5387, 1.0
  %v5467 = vadd.f32 %v5389, 1.0
  %v5468 = vadd.f32 %v5391, 1.0
  %v5469 = vadd.f32 %v5393, 1.0
  %v5470 = vadd.f32 %v5395, 1.0
  %v5471 = vadd.f32 %v5397, 1.0
  %v5472 = vadd.f32 %v5399, 1.0
  %v5473 = vadd.f32 %v5401, 1.0
  %v5474 = vadd.f32 %v5403, 1.0
  %v5475 = vadd.f32 %v5405, 1.0
  %v5476 = vadd.f32 %v5407, 1.0
  %v5477 = vadd.f32 %v5409, 1.0
  %v5478 = vadd.f32 %v5411, 1.0
  %v5479 = vadd.f32 %v5413, 1.0
  %v5480 = vadd.f32 %v5415, 1.0
  %v5481 = vadd.f32 %v5417, 1.0
  %v5482 = vrcp.pop %v5418
  %v5483 = vmul.f32 1.0, %v5482
  %v5484 = vrcp.pop %v5419
  %v5485 = vmul.f32 1.0, %v5484
  %v5486 = vrcp.pop %v5420
  %v5487 = vmul.f32 1.0, %v5486
  %v5488 = vrcp.pop %v5421
  %v5489 = vmul.f32 1.0, %v5488
  %v5490 = vrcp.pop %v5422
  %v5491 = vmul.f32 1.0, %v5490
  %v5492 = vrcp.pop %v5423
  %v5493 = vmul.f32 1.0, %v5492
  %v5494 = vrcp.pop %v5424
  %v5495 = vmul.f32 1.0, %v5494
  %v5496 = vrcp.pop %v5425
  %v5497 = vmul.f32 1.0, %v5496
  %v5498 = vrcp.pop %v5426
  %v5499 = vmul.f32 1.0, %v5498
  %v5500 = vrcp.pop %v5427
  %v5501 = vmul.f32 1.0, %v5500
  %v5502 = vrcp.pop %v5428
  %v5503 = vmul.f32 1.0, %v5502
  %v5504 = vrcp.pop %v5429
  %v5505 = vmul.f32 1.0, %v5504
  %v5506 = vrcp.pop %v5430
  %v5507 = vmul.f32 1.0, %v5506
  %v5508 = vrcp.pop %v5431
  %v5509 = vmul.f32 1.0, %v5508
  %v5510 = vrcp.pop %v5432
  %v5511 = vmul.f32 1.0, %v5510
  %v5512 = vrcp.pop %v5433
  %v5513 = vmul.f32 1.0, %v5512
  %v5514 = vrcp.pop %v5434
  %v5515 = vmul.f32 1.0, %v5514
  %v5516 = vrcp.pop %v5435
  %v5517 = vmul.f32 1.0, %v5516
  %v5518 = vrcp.pop %v5436
  %v5519 = vmul.f32 1.0, %v5518
  %v5520 = vrcp.pop %v5437
  %v5521 = vmul.f32 1.0, %v5520
  %v5522 = vrcp.pop %v5438
  %v5523 = vmul.f32 1.0, %v5522
  %v5524 = vrcp.pop %v5439
  %v5525 = vmul.f32 1.0, %v5524
  %v5526 = vrcp.pop %v5440
  %v5527 = vmul.f32 1.0, %v5526
  %v5528 = vrcp.pop %v5441
  %v5529 = vmul.f32 1.0, %v5528
  %v5530 = vrcp.pop %v5442
  %v5531 = vmul.f32 1.0, %v5530
  %v5532 = vrcp.pop %v5443
  %v5533 = vmul.f32 1.0, %v5532
  %v5534 = vrcp.pop %v5444
  %v5535 = vmul.f32 1.0, %v5534
  %v5536 = vrcp.pop %v5445
  %v5537 = vmul.f32 1.0, %v5536
  %v5538 = vrcp.pop %v5446
  %v5539 = vmul.f32 1.0, %v5538
  %v5540 = vrcp.pop %v5447
  %v5541 = vmul.f32 1.0, %v5540
  %v5542 = vrcp.pop %v5448
  %v5543 = vmul.f32 1.0, %v5542
  %v5544 = vrcp.pop %v5449
  %v5545 = vmul.f32 1.0, %v5544
  %v5546 = vrcp.pop %v5450
  %v5547 = vmul.f32 1.0, %v5546
  %v5548 = vrcp.pop %v5451
  %v5549 = vmul.f32 1.0, %v5548
  %v5550 = vrcp.pop %v5452
  %v5551 = vmul.f32 1.0, %v5550
  %v5552 = vrcp.pop %v5453
  %v5553 = vmul.f32 1.0, %v5552
  %v5554 = vrcp.pop %v5454
  %v5555 = vmul.f32 1.0, %v5554
  %v5556 = vrcp.pop %v5455
  %v5557 = vmul.f32 1.0, %v5556
  %v5558 = vrcp.pop %v5456
  %v5559 = vmul.f32 1.0, %v5558
  %v5560 = vrcp.pop %v5457
  %v5561 = vmul.f32 1.0, %v5560
  %v5562 = vrcp.pop %v5458
  %v5563 = vmul.f32 1.0, %v5562
  %v5564 = vrcp.pop %v5459
  %v5565 = vmul.f32 1.0, %v5564
  %v5566 = vrcp.pop %v5460
  %v5567 = vmul.f32 1.0, %v5566
  %v5568 = vrcp.pop %v5461
  %v5569 = vmul.f32 1.0, %v5568
  %v5570 = vrcp.pop %v5462
  %v5571 = vmul.f32 1.0, %v5570
  %v5572 = vrcp.pop %v5463
  %v5573 = vmul.f32 1.0, %v5572
  %v5574 = vrcp.pop %v5464
  %v5575 = vmul.f32 1.0, %v5574
  %v5576 = vrcp.pop %v5465
  %v5577 = vmul.f32 1.0, %v5576
  %v5578 = vrcp.pop %v5466
  %v5579 = vmul.f32 1.0, %v5578
  %v5580 = vrcp.pop %v5467
  %v5581 = vmul.f32 1.0, %v5580
  %v5582 = vrcp.pop %v5468
  %v5583 = vmul.f32 1.0, %v5582
  %v5584 = vrcp.pop %v5469
  %v5585 = vmul.f32 1.0, %v5584
  %v5586 = vrcp.pop %v5470
  %v5587 = vmul.f32 1.0, %v5586
  %v5588 = vrcp.pop %v5471
  %v5589 = vmul.f32 1.0, %v5588
  %v5590 = vrcp.pop %v5472
  %v5591 = vmul.f32 1.0, %v5590
  %v5592 = vrcp.pop %v5473
  %v5593 = vmul.f32 1.0, %v5592
  %v5594 = vrcp.pop %v5474
  %v5595 = vmul.f32 1.0, %v5594
  %v5596 = vrcp.pop %v5475
  %v5597 = vmul.f32 1.0, %v5596
  %v5598 = vrcp.pop %v5476
  %v5599 = vmul.f32 1.0, %v5598
  %v5600 = vrcp.pop %v5477
  %v5601 = vmul.f32 1.0, %v5600
  %v5602 = vrcp.pop %v5478
  %v5603 = vmul.f32 1.0, %v5602
  %v5604 = vrcp.pop %v5479
  %v5605 = vmul.f32 1.0, %v5604
  %v5606 = vrcp.pop %v5480
  %v5607 = vmul.f32 1.0, %v5606
  %v5608 = vrcp.pop %v5481
  %v5609 = vmul.f32 1.0, %v5608
  %5610 = vst [vmem:[%s4] sm:$0xff] %v5483
  %5611 = vst [vmem:[%s4 + $0x8] sm:$0xff] %v5485
  %5612 = vst [vmem:[%s4 + $0x10] sm:$0xff] %v5487
  %5613 = vst [vmem:[%s4 + $0x18] sm:$0xff] %v5489
  %5614 = vst [vmem:[%s4 + $0x20] sm:$0xff] %v5491
  %5615 = vst [vmem:[%s4 + $0x28] sm:$0xff] %v5493
  %5616 = vst [vmem:[%s4 + $0x30] sm:$0xff] %v5495
  %5617 = vst [vmem:[%s4 + $0x38] sm:$0xff] %v5497
  %5618 = vst [vmem:[%s4 + $0x40] sm:$0xff] %v5499
  %5619 = vst [vmem:[%s4 + $0x48] sm:$0xff] %v5501
  %5620 = vst [vmem:[%s4 + $0x50] sm:$0xff] %v5503
  %5621 = vst [vmem:[%s4 + $0x58] sm:$0xff] %v5505
  %5622 = vst [vmem:[%s4 + $0x60] sm:$0xff] %v5507
  %5623 = vst [vmem:[%s4 + $0x68] sm:$0xff] %v5509
  %5624 = vst [vmem:[%s4 + $0x70] sm:$0xff] %v5511
  %5625 = vst [vmem:[%s4 + $0x78] sm:$0xff] %v5513
  %5626 = vst [vmem:[%s4 + $0x80] sm:$0xff] %v5515
  %5627 = vst [vmem:[%s4 + $0x88] sm:$0xff] %v5517
  %5628 = vst [vmem:[%s4 + $0x90] sm:$0xff] %v5519
  %5629 = vst [vmem:[%s4 + $0x98] sm:$0xff] %v5521
  %5630 = vst [vmem:[%s4 + $0xa0] sm:$0xff] %v5523
  %5631 = vst [vmem:[%s4 + $0xa8] sm:$0xff] %v5525
  %5632 = vst [vmem:[%s4 + $0xb0] sm:$0xff] %v5527
  %5633 = vst [vmem:[%s4 + $0xb8] sm:$0xff] %v5529
  %5634 = vst [vmem:[%s4 + $0xc0] sm:$0xff] %v5531
  %5635 = vst [vmem:[%s4 + $0xc8] sm:$0xff] %v5533
  %5636 = vst [vmem:[%s4 + $0xd0] sm:$0xff] %v5535
  %5637 = vst [vmem:[%s4 + $0xd8] sm:$0xff] %v5537
  %5638 = vst [vmem:[%s4 + $0xe0] sm:$0xff] %v5539
  %5639 = vst [vmem:[%s4 + $0xe8] sm:$0xff] %v5541
  %5640 = vst [vmem:[%s4 + $0xf0] sm:$0xff] %v5543
  %5641 = vst [vmem:[%s4 + $0xf8] sm:$0xff] %v5545
  %5642 = vst [vmem:[%s4 + $0x100] sm:$0xff] %v5547
  %5643 = vst [vmem:[%s4 + $0x108] sm:$0xff] %v5549
  %5644 = vst [vmem:[%s4 + $0x110] sm:$0xff] %v5551
  %5645 = vst [vmem:[%s4 + $0x118] sm:$0xff] %v5553
  %5646 = vst [vmem:[%s4 + $0x120] sm:$0xff] %v5555
  %5647 = vst [vmem:[%s4 + $0x128] sm:$0xff] %v5557
  %5648 = vst [vmem:[%s4 + $0x130] sm:$0xff] %v5559
  %5649 = vst [vmem:[%s4 + $0x138] sm:$0xff] %v5561
  %5650 = vst [vmem:[%s4 + $0x140] sm:$0xff] %v5563
  %5651 = vst [vmem:[%s4 + $0x148] sm:$0xff] %v5565
  %5652 = vst [vmem:[%s4 + $0x150] sm:$0xff] %v5567
  %5653 = vst [vmem:[%s4 + $0x158] sm:$0xff] %v5569
  %5654 = vst [vmem:[%s4 + $0x160] sm:$0xff] %v5571
  %5655 = vst [vmem:[%s4 + $0x168] sm:$0xff] %v5573
  %5656 = vst [vmem:[%s4 + $0x170] sm:$0xff] %v5575
  %5657 = vst [vmem:[%s4 + $0x178] sm:$0xff] %v5577
  %5658 = vst [vmem:[%s4 + $0x180] sm:$0xff] %v5579
  %5659 = vst [vmem:[%s4 + $0x188] sm:$0xff] %v5581
  %5660 = vst [vmem:[%s4 + $0x190] sm:$0xff] %v5583
  %5661 = vst [vmem:[%s4 + $0x198] sm:$0xff] %v5585
  %5662 = vst [vmem:[%s4 + $0x1a0] sm:$0xff] %v5587
  %5663 = vst [vmem:[%s4 + $0x1a8] sm:$0xff] %v5589
  %5664 = vst [vmem:[%s4 + $0x1b0] sm:$0xff] %v5591
  %5665 = vst [vmem:[%s4 + $0x1b8] sm:$0xff] %v5593
  %5666 = vst [vmem:[%s4 + $0x1c0] sm:$0xff] %v5595
  %5667 = vst [vmem:[%s4 + $0x1c8] sm:$0xff] %v5597
  %5668 = vst [vmem:[%s4 + $0x1d0] sm:$0xff] %v5599
  %5669 = vst [vmem:[%s4 + $0x1d8] sm:$0xff] %v5601
  %5670 = vst [vmem:[%s4 + $0x1e0] sm:$0xff] %v5603
  %5671 = vst [vmem:[%s4 + $0x1e8] sm:$0xff] %v5605
  %5672 = vst [vmem:[%s4 + $0x1f0] sm:$0xff] %v5607
  %5673 = vst [vmem:[%s4 + $0x1f8] sm:$0xff] %v5609
  // Predicated region
  $region18: #{clustergan_dec_forward.5} parent=0 // pred_check
    _
  $region19: #{clustergan_dec_forward.5} parent=0 // pred_check_branch
    %5675 = sbr.rel (0) target = $region21
  $region20: #{clustergan_dec_forward.5} parent=0 // pred_region
    _
  $region21: #{clustergan_dec_forward.5} parent=0 // pred_fallthru
    _
  // Predicated region
  $region22: #{clustergan_dec_forward.5} parent=0 // pred_check
    _
  $region23: #{clustergan_dec_forward.5} parent=0 // pred_check_branch
    %5677 = sbr.rel (0) target = $region25
  $region24: #{clustergan_dec_forward.5} parent=0 // pred_region
    _
  $region25: #{clustergan_dec_forward.5} parent=0 // pred_fallthru
    _

</llo_original>
